<compile_context>
chip_gen: v5e
topology: v5e:2x2
jax: 0.10.0
libtpu: 0.0.40
codegen_flags: <defaults>
</compile_context>

<pallas_src>
import math
from functools import partial

import jax
import jax.numpy as jnp
from jax import lax
from jax.experimental import pallas as pl
from jax.experimental.pallas import tpu as pltpu

# ----------------------------- config ---------------------------------------
N_LAYERS   = 2
NUM_HEAD   = 4
EMBED_DIM  = 32
MLP_HIDDEN = 2048
SRC_VOCAB  = 256
TRG_VOCAB  = 128
BATCH      = 2
SEQ_SRC    = 8
SEQ_TRG    = 8
EPS        = 1e-6
DTYPE      = jnp.float32


# ------------------------ in-kernel helper math ------------------------------
def _layernorm(x, a, b, d):
    # Matches the custom `Norm` module: alpha*(x-mean)/(std+eps)+bias,
    # torch std => unbiased (d-1).
    mean = jnp.mean(x, axis=-1, keepdims=True)
    var = jnp.sum((x - mean) ** 2, axis=-1, keepdims=True) * (1.0 / (d - 1))
    inv = pl.reciprocal(jnp.sqrt(var) + EPS, approx=True)   # EUP slot, ~free
    return a * (x - mean) * inv + b


def _softmax_rows(s):
    s = s - jnp.max(s, axis=-1, keepdims=True)
    p = jnp.exp(s)
    return p * pl.reciprocal(jnp.sum(p, axis=-1, keepdims=True), approx=True)


def _attention_core(q_all, k_all, v_all, B, Sq, Sk, H, Dh):
    """Per-(batch, head) scaled dot-product attention on flattened row slabs.

    q_all: (B*Sq, H*Dh), k_all/v_all: (B*Sk, H*Dh)  ->  (B*Sq, H*Dh)
    Masks are None in this configuration, so no additive bias is applied.
    Static slicing + lax.dot_general (contract last dims) => no in-kernel .T.
    """
    scale = 1.0 / math.sqrt(Dh)
    batch_rows = []
    for b in range(B):
        qb = q_all[b * Sq:(b + 1) * Sq, :]
        kb = k_all[b * Sk:(b + 1) * Sk, :]
        vb = v_all[b * Sk:(b + 1) * Sk, :]
        head_outs = []
        for h in range(H):
            c = h * Dh
            q = qb[:, c:c + Dh]
            k = kb[:, c:c + Dh]
            v = vb[:, c:c + Dh]
            s = lax.dot_general(q, k, (((1,), (1,)), ((), ())),
                                preferred_element_type=jnp.float32) * scale
            p = _softmax_rows(s)
            head_outs.append(jnp.dot(p, v, preferred_element_type=jnp.float32))
        batch_rows.append(jnp.concatenate(head_outs, axis=-1))   # (Sq, H*Dh)
    return jnp.concatenate(batch_rows, axis=0)                   # (B*Sq, H*Dh)


# --------------------------- fused stack kernels ------------------------------
def _encoder_stack_kernel(x_ref,
                          ln1a, ln1b, wqkv, bqkv, wo, bo,
                          ln2a, ln2b, w1, b1, w2, b2,
                          fina, finb,
                          o_ref, x_sc,
                          *, B, S, D, H, n_layers):
    l = pl.program_id(0)

    @pl.when(l == 0)
    def _():
        x_sc[...] = x_ref[...]

    x = x_sc[...]
    Dh = D // H

    # --- pre-norm + fused-QKV self-attention + out-proj + residual ---
    x1 = _layernorm(x, ln1a[...], ln1b[...], D)
    qkv = jnp.dot(x1, wqkv[...], preferred_element_type=jnp.float32) + bqkv[...]
    a = _attention_core(qkv[:, :D], qkv[:, D:2 * D], qkv[:, 2 * D:], B, S, S, H, Dh)
    x = x + jnp.dot(a, wo[...], preferred_element_type=jnp.float32) + bo[...]

    # --- pre-norm + MLP (w1 -> ReLU -> w2) + residual, hidden stays in VMEM ---
    x2 = _layernorm(x, ln2a[...], ln2b[...], D)
    hid = jnp.maximum(
        jnp.dot(x2, w1[...], preferred_element_type=jnp.float32) + b1[...], 0.0)
    x = x + jnp.dot(hid, w2[...], preferred_element_type=jnp.float32) + b2[...]

    x_sc[...] = x

    @pl.when(l == n_layers - 1)
    def _():
        o_ref[...] = _layernorm(x, fina[...], finb[...], D).astype(o_ref.dtype)


def _decoder_stack_kernel(y_ref, mem_ref,
                          ln1a, ln1b, wqkv1, bqkv1, wo1, bo1,
                          ln2a, ln2b, wq2, bq2, wkv2, bkv2, wo2, bo2,
                          ln3a, ln3b, w1, b1, w2, b2,
                          fina, finb, outw, outb,
                          o_ref, y_sc,
                          *, B, St, Ss, D, H, n_layers):
    l = pl.program_id(0)

    @pl.when(l == 0)
    def _():
        y_sc[...] = y_ref[...]

    y = y_sc[...]
    mem = mem_ref[...]
    Dh = D // H

    # --- pre-norm + masked(=no-op) self-attention + residual ---
    y1 = _layernorm(y, ln1a[...], ln1b[...], D)
    qkv = jnp.dot(y1, wqkv1[...], preferred_element_type=jnp.float32) + bqkv1[...]
    a1 = _attention_core(qkv[:, :D], qkv[:, D:2 * D], qkv[:, 2 * D:], B, St, St, H, Dh)
    y = y + jnp.dot(a1, wo1[...], preferred_element_type=jnp.float32) + bo1[...]

    # --- pre-norm + cross-attention over encoder memory + residual ---
    y2 = _layernorm(y, ln2a[...], ln2b[...], D)
    q = jnp.dot(y2, wq2[...], preferred_element_type=jnp.float32) + bq2[...]
    kv = jnp.dot(mem, wkv2[...], preferred_element_type=jnp.float32) + bkv2[...]
    a2 = _attention_core(q, kv[:, :D], kv[:, D:], B, St, Ss, H, Dh)
    y = y + jnp.dot(a2, wo2[...], preferred_element_type=jnp.float32) + bo2[...]

    # --- pre-norm + MLP + residual ---
    y3 = _layernorm(y, ln3a[...], ln3b[...], D)
    hid = jnp.maximum(
        jnp.dot(y3, w1[...], preferred_element_type=jnp.float32) + b1[...], 0.0)
    y = y + jnp.dot(hid, w2[...], preferred_element_type=jnp.float32) + b2[...]

    y_sc[...] = y

    # Last layer: fuse final norm + output projection (lane-dense, 128-wide).
    @pl.when(l == n_layers - 1)
    def _():
        yf = _layernorm(y, fina[...], finb[...], D)
        o_ref[...] = (jnp.dot(yf, outw[...], preferred_element_type=jnp.float32)
                      + outb[...]).astype(o_ref.dtype)


# --------------------------- pallas_call wrappers -----------------------------
def _stacked_spec(arr):
    # Per-layer stacked weight: leading layer dim is squeezed; kernel sees 2-D.
    return pl.BlockSpec((None,) + tuple(arr.shape[1:]), lambda l: (l, 0, 0))


def _const_spec(arr):
    # Same full block every grid step (activations / global params).
    return pl.BlockSpec(tuple(arr.shape), lambda l: (0, 0))


_ENC_NAMES = ["ln1_a", "ln1_b", "wqkv", "bqkv", "wo", "bo",
              "ln2_a", "ln2_b", "w1", "b1", "w2", "b2"]

_DEC_NAMES = ["ln1_a", "ln1_b", "wqkv1", "bqkv1", "wo1", "bo1",
              "ln2_a", "ln2_b", "wq2", "bq2", "wkv2", "bkv2", "wo2", "bo2",
              "ln3_a", "ln3_b", "w1", "b1", "w2", "b2"]


def encode(params, x_tok):
    B, Ss = x_tok.shape
    D = EMBED_DIM
    x = jnp.take(params["src_embed"], x_tok, axis=0) * math.sqrt(D) + params["pe"][:Ss][None]
    x2 = x.reshape(B * Ss, D).astype(DTYPE)

    e = params["enc"]
    L = e["wqkv"].shape[0]
    ins = [x2] + [e[n] for n in _ENC_NAMES] + [params["enc_fin_a"], params["enc_fin_b"]]
    in_specs = ([_const_spec(x2)] + [_stacked_spec(e[n]) for n in _ENC_NAMES]
                + [_const_spec(params["enc_fin_a"]), _const_spec(params["enc_fin_b"])])

    mem = pl.pallas_call(
        partial(_encoder_stack_kernel, B=B, S=Ss, D=D, H=NUM_HEAD, n_layers=L),
        out_shape=jax.ShapeDtypeStruct((B * Ss, D), DTYPE),
        grid=(L,),
        in_specs=in_specs,
        out_specs=pl.BlockSpec((B * Ss, D), lambda l: (0, 0)),
        scratch_shapes=[pltpu.VMEM((B * Ss, D), jnp.float32)],
        compiler_params=pltpu.CompilerParams(dimension_semantics=("arbitrary",)),
    )(*ins)
    return mem


def decode(params, y_tok, mem):
    B, St = y_tok.shape
    D = EMBED_DIM
    Ss = mem.shape[0] // B
    y = jnp.take(params["trg_embed"], y_tok, axis=0) * math.sqrt(D) + params["pe"][:St][None]
    y2 = y.reshape(B * St, D).astype(DTYPE)

    d = params["dec"]
    L = d["wqkv1"].shape[0]
    ins = ([y2, mem] + [d[n] for n in _DEC_NAMES]
           + [params["dec_fin_a"], params["dec_fin_b"], params["out_w"], params["out_b"]])
    in_specs = ([_const_spec(y2), _const_spec(mem)]
                + [_stacked_spec(d[n]) for n in _DEC_NAMES]
                + [_const_spec(params["dec_fin_a"]), _const_spec(params["dec_fin_b"]),
                   _const_spec(params["out_w"]), _const_spec(params["out_b"])])

    logits = pl.pallas_call(
        partial(_decoder_stack_kernel, B=B, St=St, Ss=Ss, D=D, H=NUM_HEAD, n_layers=L),
        out_shape=jax.ShapeDtypeStruct((B * St, TRG_VOCAB), DTYPE),
        grid=(L,),
        in_specs=in_specs,
        out_specs=pl.BlockSpec((B * St, TRG_VOCAB), lambda l: (0, 0)),
        scratch_shapes=[pltpu.VMEM((B * St, D), jnp.float32)],
        compiler_params=pltpu.CompilerParams(dimension_semantics=("arbitrary",)),
    )(*ins)
    return logits.reshape(B, St, TRG_VOCAB)


def transformer_forward(params, x_tok, y_tok, x_mask=None, y_mask=None):
    if x_mask is not None or y_mask is not None:
        # TODO(synk): non-None padding/causal masks would be threaded into
        # _attention_core as additive -1e9 biases; the reference forward is
        # exercised with masks=None.
        raise NotImplementedError("masks are not supported in this fused kernel")
    mem = encode(params, x_tok)
    return decode(params, y_tok, mem)


# --------------------------- parameter init ----------------------------------
def make_pe(max_len, d):
    pos = jnp.arange(max_len, dtype=jnp.float32)[:, None]
    i = jnp.arange(0, d, 2, dtype=jnp.float32)
    div = jnp.exp(-(math.log(10000.0) / d) * i)
    pe = jnp.zeros((max_len, d), DTYPE)
    pe = pe.at[:, 0::2].set(jnp.sin(pos * div))
    pe = pe.at[:, 1::2].set(jnp.cos(pos * div))
    return pe


def init_params(key):
    L, D, Hd = N_LAYERS, EMBED_DIM, MLP_HIDDEN
    keys = iter(jax.random.split(key, 32))

    def nrm(shape):
        return jax.random.normal(next(keys), shape, DTYPE) * 0.02

    def ones(shape):
        return jnp.ones(shape, DTYPE)

    def zeros(shape):
        return jnp.zeros(shape, DTYPE)

    enc = {
        "ln1_a": ones((L, 1, D)), "ln1_b": zeros((L, 1, D)),
        "wqkv": nrm((L, D, 3 * D)), "bqkv": zeros((L, 1, 3 * D)),
        "wo": nrm((L, D, D)), "bo": zeros((L, 1, D)),
        "ln2_a": ones((L, 1, D)), "ln2_b": zeros((L, 1, D)),
        "w1": nrm((L, D, Hd)), "b1": zeros((L, 1, Hd)),
        "w2": nrm((L, Hd, D)), "b2": zeros((L, 1, D)),
    }
    dec = {
        "ln1_a": ones((L, 1, D)), "ln1_b": zeros((L, 1, D)),
        "wqkv1": nrm((L, D, 3 * D)), "bqkv1": zeros((L, 1, 3 * D)),
        "wo1": nrm((L, D, D)), "bo1": zeros((L, 1, D)),
        "ln2_a": ones((L, 1, D)), "ln2_b": zeros((L, 1, D)),
        "wq2": nrm((L, D, D)), "bq2": zeros((L, 1, D)),
        "wkv2": nrm((L, D, 2 * D)), "bkv2": zeros((L, 1, 2 * D)),
        "wo2": nrm((L, D, D)), "bo2": zeros((L, 1, D)),
        "ln3_a": ones((L, 1, D)), "ln3_b": zeros((L, 1, D)),
        "w1": nrm((L, D, Hd)), "b1": zeros((L, 1, Hd)),
        "w2": nrm((L, Hd, D)), "b2": zeros((L, 1, D)),
    }
    params = {
        "src_embed": nrm((SRC_VOCAB, D)),
        "trg_embed": nrm((TRG_VOCAB, D)),
        "pe": make_pe(80, D),
        "enc": enc,
        "dec": dec,
        "enc_fin_a": ones((1, D)), "enc_fin_b": zeros((1, D)),
        "dec_fin_a": ones((1, D)), "dec_fin_b": zeros((1, D)),
        "out_w": nrm((D, TRG_VOCAB)), "out_b": zeros((1, TRG_VOCAB)),
    }
    return params


# ------------------------------- main ----------------------------------------
if __name__ == "__main__":
    key = jax.random.PRNGKey(0)
    k_p, k_x, k_y = jax.random.split(key, 3)
    params = init_params(k_p)

    x_tok = jax.random.randint(k_x, (BATCH, SEQ_SRC), 0, SRC_VOCAB, dtype=jnp.int32)
    y_tok = jax.random.randint(k_y, (BATCH, SEQ_TRG), 0, TRG_VOCAB, dtype=jnp.int32)

    fwd = jax.jit(lambda xt, yt: transformer_forward(params, xt, yt))
    out = fwd(x_tok, y_tok)
    jax.block_until_ready(out)

    assert out.shape == (BATCH, SEQ_TRG, TRG_VOCAB), out.shape
    assert bool(jnp.all(jnp.isfinite(out)))
    print("KERNEL_OK")
</pallas_src>

<mosaic_0001>
module attributes {stable_mosaic.version = 11 : i64} {
  func.func @_encoder_stack_kernel(%arg0: i32, %arg1: memref<16x32xf32, #tpu.memory_space<vmem>>, %arg2: memref<1x1x32xf32, #tpu.memory_space<vmem>>, %arg3: memref<1x1x32xf32, #tpu.memory_space<vmem>>, %arg4: memref<1x32x96xf32, #tpu.memory_space<vmem>>, %arg5: memref<1x1x96xf32, #tpu.memory_space<vmem>>, %arg6: memref<1x32x32xf32, #tpu.memory_space<vmem>>, %arg7: memref<1x1x32xf32, #tpu.memory_space<vmem>>, %arg8: memref<1x1x32xf32, #tpu.memory_space<vmem>>, %arg9: memref<1x1x32xf32, #tpu.memory_space<vmem>>, %arg10: memref<1x32x2048xf32, #tpu.memory_space<vmem>>, %arg11: memref<1x1x2048xf32, #tpu.memory_space<vmem>>, %arg12: memref<1x2048x32xf32, #tpu.memory_space<vmem>>, %arg13: memref<1x1x32xf32, #tpu.memory_space<vmem>>, %arg14: memref<1x32xf32, #tpu.memory_space<vmem>>, %arg15: memref<1x32xf32, #tpu.memory_space<vmem>>, %arg16: memref<16x32xf32, #tpu.memory_space<vmem>>, %arg17: memref<16x32xf32, #tpu.memory_space<vmem>>) attributes {dimension_semantics = [#tpu.dimension_semantics<arbitrary>], iteration_bounds = array<i64: 2>, scalar_prefetch = 0 : i64, scratch_operands = 1 : i64, tpu.core_type = #tpu.core_type<tc>, window_params = [{pipeline_mode = #tpu.pipeline_mode<synchronous>, transform_indices = @transform_0, window_bounds = array<i64: 16, 32>}, {transform_indices = @transform_1, window_bounds = array<i64: 1, 1, 32>}, {transform_indices = @transform_2, window_bounds = array<i64: 1, 1, 32>}, {transform_indices = @transform_3, window_bounds = array<i64: 1, 32, 96>}, {transform_indices = @transform_4, window_bounds = array<i64: 1, 1, 96>}, {transform_indices = @transform_5, window_bounds = array<i64: 1, 32, 32>}, {transform_indices = @transform_6, window_bounds = array<i64: 1, 1, 32>}, {transform_indices = @transform_7, window_bounds = array<i64: 1, 1, 32>}, {transform_indices = @transform_8, window_bounds = array<i64: 1, 1, 32>}, {transform_indices = @transform_9, window_bounds = array<i64: 1, 32, 2048>}, {transform_indices = @transform_10, window_bounds = array<i64: 1, 1, 2048>}, {transform_indices = @transform_11, window_bounds = array<i64: 1, 2048, 32>}, {transform_indices = @transform_12, window_bounds = array<i64: 1, 1, 32>}, {pipeline_mode = #tpu.pipeline_mode<synchronous>, transform_indices = @transform_13, window_bounds = array<i64: 1, 32>}, {pipeline_mode = #tpu.pipeline_mode<synchronous>, transform_indices = @transform_14, window_bounds = array<i64: 1, 32>}, {pipeline_mode = #tpu.pipeline_mode<synchronous>, transform_indices = @transform_15, window_bounds = array<i64: 16, 32>}]} {
    %c0_i32 = arith.constant 0 : i32
    %0 = arith.cmpi eq, %arg0, %c0_i32 : i32
    %1 = arith.extui %0 : i1 to i32
    %c0_i32_0 = arith.constant 0 : i32
    %2 = arith.cmpi ne, %1, %c0_i32_0 : i32
    scf.if %2 {
      %c0_95 = arith.constant 0 : index
      %c0_96 = arith.constant 0 : index
      %242 = vector.load %arg1[%c0_95, %c0_96] : memref<16x32xf32, #tpu.memory_space<vmem>>, vector<16x32xf32>
      %c0_97 = arith.constant 0 : index
      %c0_98 = arith.constant 0 : index
      %243 = vector.load %arg17[%c0_97, %c0_98] : memref<16x32xf32, #tpu.memory_space<vmem>>, vector<16x32xf32>
      tpu.vector_store %arg17[%c0_97, %c0_98], %242 {strides = array<i32>} : memref<16x32xf32, #tpu.memory_space<vmem>>, vector<16x32xf32>,
    } else {
    }
    %c0 = arith.constant 0 : index
    %c0_1 = arith.constant 0 : index
    %3 = vector.load %arg17[%c0, %c0_1] : memref<16x32xf32, #tpu.memory_space<vmem>>, vector<16x32xf32>
    %c0_2 = arith.constant 0 : index
    %c0_3 = arith.constant 0 : index
    %c0_4 = arith.constant 0 : index
    %4 = vector.load %arg2[%c0_2, %c0_3, %c0_4] : memref<1x1x32xf32, #tpu.memory_space<vmem>>, vector<1x1x32xf32>
    %5 = vector.shape_cast %4 : vector<1x1x32xf32> to vector<1x32xf32>
    %c0_5 = arith.constant 0 : index
    %c0_6 = arith.constant 0 : index
    %c0_7 = arith.constant 0 : index
    %6 = vector.load %arg3[%c0_5, %c0_6, %c0_7] : memref<1x1x32xf32, #tpu.memory_space<vmem>>, vector<1x1x32xf32>
    %7 = vector.shape_cast %6 : vector<1x1x32xf32> to vector<1x32xf32>
    %cst = arith.constant dense<0.000000e+00> : vector<16xf32>
    %8 = vector.multi_reduction <add>, %3, %cst [1] : vector<16x32xf32> to vector<16xf32>
    %9 = vector.shape_cast %8 : vector<16xf32> to vector<16x1xf32>
    %cst_8 = arith.constant 3.200000e+01 : f32
    %10 = vector.broadcast %cst_8 : f32 to vector<16x1xf32>
    %11 = arith.divf %9, %10 : vector<16x1xf32>
    %12 = vector.broadcast %11 : vector<16x1xf32> to vector<16x32xf32>
    %13 = arith.subf %3, %12 : vector<16x32xf32>
    %14 = arith.mulf %13, %13 : vector<16x32xf32>
    %cst_9 = arith.constant dense<0.000000e+00> : vector<16xf32>
    %15 = vector.multi_reduction <add>, %14, %cst_9 [1] : vector<16x32xf32> to vector<16xf32>
    %16 = vector.shape_cast %15 : vector<16xf32> to vector<16x1xf32>
    %cst_10 = arith.constant 0.0322580636 : f32
    %17 = vector.broadcast %cst_10 : f32 to vector<16x1xf32>
    %18 = arith.mulf %16, %17 : vector<16x1xf32>
    %19 = math.sqrt %18 : vector<16x1xf32>
    %cst_11 = arith.constant 9.99999997E-7 : f32
    %20 = vector.broadcast %cst_11 : f32 to vector<16x1xf32>
    %21 = arith.addf %19, %20 : vector<16x1xf32>
    %22 = tpu.reciprocal %21 {approx = true} : vector<16x1xf32> -> vector<16x1xf32>
    %23 = vector.broadcast %11 : vector<16x1xf32> to vector<16x32xf32>
    %24 = arith.subf %3, %23 : vector<16x32xf32>
    %25 = vector.broadcast %5 : vector<1x32xf32> to vector<16x32xf32>
    %26 = arith.mulf %25, %24 : vector<16x32xf32>
    %27 = vector.broadcast %22 : vector<16x1xf32> to vector<16x32xf32>
    %28 = arith.mulf %26, %27 : vector<16x32xf32>
    %29 = vector.broadcast %7 : vector<1x32xf32> to vector<16x32xf32>
    %30 = arith.addf %28, %29 : vector<16x32xf32>
    %c0_12 = arith.constant 0 : index
    %c0_13 = arith.constant 0 : index
    %c0_14 = arith.constant 0 : index
    %31 = vector.load %arg4[%c0_12, %c0_13, %c0_14] : memref<1x32x96xf32, #tpu.memory_space<vmem>>, vector<1x32x96xf32>
    %32 = vector.shape_cast %31 : vector<1x32x96xf32> to vector<32x96xf32>
    %cst_15 = arith.constant dense<0.000000e+00> : vector<16x96xf32>
    %33 = tpu.matmul %30, %32, %cst_15 {dimension_numbers = #tpu.dot_dimension_numbers<[1], [0], [0], [1], [0, 0, 1, 1], [], []>} : vector<16x32xf32>, vector<32x96xf32>, vector<16x96xf32> -> vector<16x96xf32>
    %c0_16 = arith.constant 0 : index
    %c0_17 = arith.constant 0 : index
    %c0_18 = arith.constant 0 : index
    %34 = vector.load %arg5[%c0_16, %c0_17, %c0_18] : memref<1x1x96xf32, #tpu.memory_space<vmem>>, vector<1x1x96xf32>
    %35 = vector.shape_cast %34 : vector<1x1x96xf32> to vector<1x96xf32>
    %36 = vector.broadcast %35 : vector<1x96xf32> to vector<16x96xf32>
    %37 = arith.addf %33, %36 : vector<16x96xf32>
    %38 = vector.extract_strided_slice %37 {offsets = [0, 0], sizes = [16, 32], strides = [1, 1]} : vector<16x96xf32> to vector<16x32xf32>
    %39 = vector.extract_strided_slice %37 {offsets = [0, 32], sizes = [16, 32], strides = [1, 1]} : vector<16x96xf32> to vector<16x32xf32>
    %40 = vector.extract_strided_slice %37 {offsets = [0, 64], sizes = [16, 32], strides = [1, 1]} : vector<16x96xf32> to vector<16x32xf32>
    %41 = vector.extract_strided_slice %38 {offsets = [0, 0], sizes = [8, 32], strides = [1, 1]} : vector<16x32xf32> to vector<8x32xf32>
    %42 = vector.extract_strided_slice %39 {offsets = [0, 0], sizes = [8, 32], strides = [1, 1]} : vector<16x32xf32> to vector<8x32xf32>
    %43 = vector.extract_strided_slice %40 {offsets = [0, 0], sizes = [8, 32], strides = [1, 1]} : vector<16x32xf32> to vector<8x32xf32>
    %44 = vector.extract_strided_slice %41 {offsets = [0, 0], sizes = [8, 8], strides = [1, 1]} : vector<8x32xf32> to vector<8x8xf32>
    %45 = vector.extract_strided_slice %42 {offsets = [0, 0], sizes = [8, 8], strides = [1, 1]} : vector<8x32xf32> to vector<8x8xf32>
    %46 = vector.extract_strided_slice %43 {offsets = [0, 0], sizes = [8, 8], strides = [1, 1]} : vector<8x32xf32> to vector<8x8xf32>
    %cst_19 = arith.constant dense<0.000000e+00> : vector<8x8xf32>
    %47 = tpu.matmul %44, %45, %cst_19 {dimension_numbers = #tpu.dot_dimension_numbers<[1], [1], [0], [0], [0, 0, 1, 0], [], []>} : vector<8x8xf32>, vector<8x8xf32>, vector<8x8xf32> -> vector<8x8xf32>
    %cst_20 = arith.constant 0.353553385 : f32
    %48 = vector.broadcast %cst_20 : f32 to vector<8x8xf32>
    %49 = arith.mulf %47, %48 : vector<8x8xf32>
    %cst_21 = arith.constant dense<0xFF800000> : vector<8xf32>
    %50 = vector.multi_reduction <maximumf>, %49, %cst_21 [1] : vector<8x8xf32> to vector<8xf32>
    %51 = vector.shape_cast %50 : vector<8xf32> to vector<8x1xf32>
    %52 = vector.broadcast %51 : vector<8x1xf32> to vector<8x8xf32>
    %53 = arith.subf %49, %52 : vector<8x8xf32>
    %54 = math.exp %53 : vector<8x8xf32>
    %cst_22 = arith.constant dense<0.000000e+00> : vector<8xf32>
    %55 = vector.multi_reduction <add>, %54, %cst_22 [1] : vector<8x8xf32> to vector<8xf32>
    %56 = vector.shape_cast %55 : vector<8xf32> to vector<8x1xf32>
    %57 = tpu.reciprocal %56 {approx = true} : vector<8x1xf32> -> vector<8x1xf32>
    %58 = vector.broadcast %57 : vector<8x1xf32> to vector<8x8xf32>
    %59 = arith.mulf %54, %58 : vector<8x8xf32>
    %cst_23 = arith.constant dense<0.000000e+00> : vector<8x8xf32>
    %60 = tpu.matmul %59, %46, %cst_23 {dimension_numbers = #tpu.dot_dimension_numbers<[1], [0], [0], [1], [0, 0, 1, 1], [], []>} : vector<8x8xf32>, vector<8x8xf32>, vector<8x8xf32> -> vector<8x8xf32>
    %61 = vector.extract_strided_slice %41 {offsets = [0, 8], sizes = [8, 8], strides = [1, 1]} : vector<8x32xf32> to vector<8x8xf32>
    %62 = vector.extract_strided_slice %42 {offsets = [0, 8], sizes = [8, 8], strides = [1, 1]} : vector<8x32xf32> to vector<8x8xf32>
    %63 = vector.extract_strided_slice %43 {offsets = [0, 8], sizes = [8, 8], strides = [1, 1]} : vector<8x32xf32> to vector<8x8xf32>
    %cst_24 = arith.constant dense<0.000000e+00> : vector<8x8xf32>
    %64 = tpu.matmul %61, %62, %cst_24 {dimension_numbers = #tpu.dot_dimension_numbers<[1], [1], [0], [0], [0, 0, 1, 0], [], []>} : vector<8x8xf32>, vector<8x8xf32>, vector<8x8xf32> -> vector<8x8xf32>
    %cst_25 = arith.constant 0.353553385 : f32
    %65 = vector.broadcast %cst_25 : f32 to vector<8x8xf32>
    %66 = arith.mulf %64, %65 : vector<8x8xf32>
    %cst_26 = arith.constant dense<0xFF800000> : vector<8xf32>
    %67 = vector.multi_reduction <maximumf>, %66, %cst_26 [1] : vector<8x8xf32> to vector<8xf32>
    %68 = vector.shape_cast %67 : vector<8xf32> to vector<8x1xf32>
    %69 = vector.broadcast %68 : vector<8x1xf32> to vector<8x8xf32>
    %70 = arith.subf %66, %69 : vector<8x8xf32>
    %71 = math.exp %70 : vector<8x8xf32>
    %cst_27 = arith.constant dense<0.000000e+00> : vector<8xf32>
    %72 = vector.multi_reduction <add>, %71, %cst_27 [1] : vector<8x8xf32> to vector<8xf32>
    %73 = vector.shape_cast %72 : vector<8xf32> to vector<8x1xf32>
    %74 = tpu.reciprocal %73 {approx = true} : vector<8x1xf32> -> vector<8x1xf32>
    %75 = vector.broadcast %74 : vector<8x1xf32> to vector<8x8xf32>
    %76 = arith.mulf %71, %75 : vector<8x8xf32>
    %cst_28 = arith.constant dense<0.000000e+00> : vector<8x8xf32>
    %77 = tpu.matmul %76, %63, %cst_28 {dimension_numbers = #tpu.dot_dimension_numbers<[1], [0], [0], [1], [0, 0, 1, 1], [], []>} : vector<8x8xf32>, vector<8x8xf32>, vector<8x8xf32> -> vector<8x8xf32>
    %78 = vector.extract_strided_slice %41 {offsets = [0, 16], sizes = [8, 8], strides = [1, 1]} : vector<8x32xf32> to vector<8x8xf32>
    %79 = vector.extract_strided_slice %42 {offsets = [0, 16], sizes = [8, 8], strides = [1, 1]} : vector<8x32xf32> to vector<8x8xf32>
    %80 = vector.extract_strided_slice %43 {offsets = [0, 16], sizes = [8, 8], strides = [1, 1]} : vector<8x32xf32> to vector<8x8xf32>
    %cst_29 = arith.constant dense<0.000000e+00> : vector<8x8xf32>
    %81 = tpu.matmul %78, %79, %cst_29 {dimension_numbers = #tpu.dot_dimension_numbers<[1], [1], [0], [0], [0, 0, 1, 0], [], []>} : vector<8x8xf32>, vector<8x8xf32>, vector<8x8xf32> -> vector<8x8xf32>
    %cst_30 = arith.constant 0.353553385 : f32
    %82 = vector.broadcast %cst_30 : f32 to vector<8x8xf32>
    %83 = arith.mulf %81, %82 : vector<8x8xf32>
    %cst_31 = arith.constant dense<0xFF800000> : vector<8xf32>
    %84 = vector.multi_reduction <maximumf>, %83, %cst_31 [1] : vector<8x8xf32> to vector<8xf32>
    %85 = vector.shape_cast %84 : vector<8xf32> to vector<8x1xf32>
    %86 = vector.broadcast %85 : vector<8x1xf32> to vector<8x8xf32>
    %87 = arith.subf %83, %86 : vector<8x8xf32>
    %88 = math.exp %87 : vector<8x8xf32>
    %cst_32 = arith.constant dense<0.000000e+00> : vector<8xf32>
    %89 = vector.multi_reduction <add>, %88, %cst_32 [1] : vector<8x8xf32> to vector<8xf32>
    %90 = vector.shape_cast %89 : vector<8xf32> to vector<8x1xf32>
    %91 = tpu.reciprocal %90 {approx = true} : vector<8x1xf32> -> vector<8x1xf32>
    %92 = vector.broadcast %91 : vector<8x1xf32> to vector<8x8xf32>
    %93 = arith.mulf %88, %92 : vector<8x8xf32>
    %cst_33 = arith.constant dense<0.000000e+00> : vector<8x8xf32>
    %94 = tpu.matmul %93, %80, %cst_33 {dimension_numbers = #tpu.dot_dimension_numbers<[1], [0], [0], [1], [0, 0, 1, 1], [], []>} : vector<8x8xf32>, vector<8x8xf32>, vector<8x8xf32> -> vector<8x8xf32>
    %95 = vector.extract_strided_slice %41 {offsets = [0, 24], sizes = [8, 8], strides = [1, 1]} : vector<8x32xf32> to vector<8x8xf32>
    %96 = vector.extract_strided_slice %42 {offsets = [0, 24], sizes = [8, 8], strides = [1, 1]} : vector<8x32xf32> to vector<8x8xf32>
    %97 = vector.extract_strided_slice %43 {offsets = [0, 24], sizes = [8, 8], strides = [1, 1]} : vector<8x32xf32> to vector<8x8xf32>
    %cst_34 = arith.constant dense<0.000000e+00> : vector<8x8xf32>
    %98 = tpu.matmul %95, %96, %cst_34 {dimension_numbers = #tpu.dot_dimension_numbers<[1], [1], [0], [0], [0, 0, 1, 0], [], []>} : vector<8x8xf32>, vector<8x8xf32>, vector<8x8xf32> -> vector<8x8xf32>
    %cst_35 = arith.constant 0.353553385 : f32
    %99 = vector.broadcast %cst_35 : f32 to vector<8x8xf32>
    %100 = arith.mulf %98, %99 : vector<8x8xf32>
    %cst_36 = arith.constant dense<0xFF800000> : vector<8xf32>
    %101 = vector.multi_reduction <maximumf>, %100, %cst_36 [1] : vector<8x8xf32> to vector<8xf32>
    %102 = vector.shape_cast %101 : vector<8xf32> to vector<8x1xf32>
    %103 = vector.broadcast %102 : vector<8x1xf32> to vector<8x8xf32>
    %104 = arith.subf %100, %103 : vector<8x8xf32>
    %105 = math.exp %104 : vector<8x8xf32>
    %cst_37 = arith.constant dense<0.000000e+00> : vector<8xf32>
    %106 = vector.multi_reduction <add>, %105, %cst_37 [1] : vector<8x8xf32> to vector<8xf32>
    %107 = vector.shape_cast %106 : vector<8xf32> to vector<8x1xf32>
    %108 = tpu.reciprocal %107 {approx = true} : vector<8x1xf32> -> vector<8x1xf32>
    %109 = vector.broadcast %108 : vector<8x1xf32> to vector<8x8xf32>
    %110 = arith.mulf %105, %109 : vector<8x8xf32>
    %cst_38 = arith.constant dense<0.000000e+00> : vector<8x8xf32>
    %111 = tpu.matmul %110, %97, %cst_38 {dimension_numbers = #tpu.dot_dimension_numbers<[1], [0], [0], [1], [0, 0, 1, 1], [], []>} : vector<8x8xf32>, vector<8x8xf32>, vector<8x8xf32> -> vector<8x8xf32>
    %112 = tpu.concatenate %60, %77, %94, %111 in 1 : vector<8x8xf32>, vector<8x8xf32>, vector<8x8xf32>, vector<8x8xf32> -> vector<8x32xf32>
    %113 = vector.extract_strided_slice %38 {offsets = [8, 0], sizes = [8, 32], strides = [1, 1]} : vector<16x32xf32> to vector<8x32xf32>
    %114 = vector.extract_strided_slice %39 {offsets = [8, 0], sizes = [8, 32], strides = [1, 1]} : vector<16x32xf32> to vector<8x32xf32>
    %115 = vector.extract_strided_slice %40 {offsets = [8, 0], sizes = [8, 32], strides = [1, 1]} : vector<16x32xf32> to vector<8x32xf32>
    %116 = vector.extract_strided_slice %113 {offsets = [0, 0], sizes = [8, 8], strides = [1, 1]} : vector<8x32xf32> to vector<8x8xf32>
    %117 = vector.extract_strided_slice %114 {offsets = [0, 0], sizes = [8, 8], strides = [1, 1]} : vector<8x32xf32> to vector<8x8xf32>
    %118 = vector.extract_strided_slice %115 {offsets = [0, 0], sizes = [8, 8], strides = [1, 1]} : vector<8x32xf32> to vector<8x8xf32>
    %cst_39 = arith.constant dense<0.000000e+00> : vector<8x8xf32>
    %119 = tpu.matmul %116, %117, %cst_39 {dimension_numbers = #tpu.dot_dimension_numbers<[1], [1], [0], [0], [0, 0, 1, 0], [], []>} : vector<8x8xf32>, vector<8x8xf32>, vector<8x8xf32> -> vector<8x8xf32>
    %cst_40 = arith.constant 0.353553385 : f32
    %120 = vector.broadcast %cst_40 : f32 to vector<8x8xf32>
    %121 = arith.mulf %119, %120 : vector<8x8xf32>
    %cst_41 = arith.constant dense<0xFF800000> : vector<8xf32>
    %122 = vector.multi_reduction <maximumf>, %121, %cst_41 [1] : vector<8x8xf32> to vector<8xf32>
    %123 = vector.shape_cast %122 : vector<8xf32> to vector<8x1xf32>
    %124 = vector.broadcast %123 : vector<8x1xf32> to vector<8x8xf32>
    %125 = arith.subf %121, %124 : vector<8x8xf32>
    %126 = math.exp %125 : vector<8x8xf32>
    %cst_42 = arith.constant dense<0.000000e+00> : vector<8xf32>
    %127 = vector.multi_reduction <add>, %126, %cst_42 [1] : vector<8x8xf32> to vector<8xf32>
    %128 = vector.shape_cast %127 : vector<8xf32> to vector<8x1xf32>
    %129 = tpu.reciprocal %128 {approx = true} : vector<8x1xf32> -> vector<8x1xf32>
    %130 = vector.broadcast %129 : vector<8x1xf32> to vector<8x8xf32>
    %131 = arith.mulf %126, %130 : vector<8x8xf32>
    %cst_43 = arith.constant dense<0.000000e+00> : vector<8x8xf32>
    %132 = tpu.matmul %131, %118, %cst_43 {dimension_numbers = #tpu.dot_dimension_numbers<[1], [0], [0], [1], [0, 0, 1, 1], [], []>} : vector<8x8xf32>, vector<8x8xf32>, vector<8x8xf32> -> vector<8x8xf32>
    %133 = vector.extract_strided_slice %113 {offsets = [0, 8], sizes = [8, 8], strides = [1, 1]} : vector<8x32xf32> to vector<8x8xf32>
    %134 = vector.extract_strided_slice %114 {offsets = [0, 8], sizes = [8, 8], strides = [1, 1]} : vector<8x32xf32> to vector<8x8xf32>
    %135 = vector.extract_strided_slice %115 {offsets = [0, 8], sizes = [8, 8], strides = [1, 1]} : vector<8x32xf32> to vector<8x8xf32>
    %cst_44 = arith.constant dense<0.000000e+00> : vector<8x8xf32>
    %136 = tpu.matmul %133, %134, %cst_44 {dimension_numbers = #tpu.dot_dimension_numbers<[1], [1], [0], [0], [0, 0, 1, 0], [], []>} : vector<8x8xf32>, vector<8x8xf32>, vector<8x8xf32> -> vector<8x8xf32>
    %cst_45 = arith.constant 0.353553385 : f32
    %137 = vector.broadcast %cst_45 : f32 to vector<8x8xf32>
    %138 = arith.mulf %136, %137 : vector<8x8xf32>
    %cst_46 = arith.constant dense<0xFF800000> : vector<8xf32>
    %139 = vector.multi_reduction <maximumf>, %138, %cst_46 [1] : vector<8x8xf32> to vector<8xf32>
    %140 = vector.shape_cast %139 : vector<8xf32> to vector<8x1xf32>
    %141 = vector.broadcast %140 : vector<8x1xf32> to vector<8x8xf32>
    %142 = arith.subf %138, %141 : vector<8x8xf32>
    %143 = math.exp %142 : vector<8x8xf32>
    %cst_47 = arith.constant dense<0.000000e+00> : vector<8xf32>
    %144 = vector.multi_reduction <add>, %143, %cst_47 [1] : vector<8x8xf32> to vector<8xf32>
    %145 = vector.shape_cast %144 : vector<8xf32> to vector<8x1xf32>
    %146 = tpu.reciprocal %145 {approx = true} : vector<8x1xf32> -> vector<8x1xf32>
    %147 = vector.broadcast %146 : vector<8x1xf32> to vector<8x8xf32>
    %148 = arith.mulf %143, %147 : vector<8x8xf32>
    %cst_48 = arith.constant dense<0.000000e+00> : vector<8x8xf32>
    %149 = tpu.matmul %148, %135, %cst_48 {dimension_numbers = #tpu.dot_dimension_numbers<[1], [0], [0], [1], [0, 0, 1, 1], [], []>} : vector<8x8xf32>, vector<8x8xf32>, vector<8x8xf32> -> vector<8x8xf32>
    %150 = vector.extract_strided_slice %113 {offsets = [0, 16], sizes = [8, 8], strides = [1, 1]} : vector<8x32xf32> to vector<8x8xf32>
    %151 = vector.extract_strided_slice %114 {offsets = [0, 16], sizes = [8, 8], strides = [1, 1]} : vector<8x32xf32> to vector<8x8xf32>
    %152 = vector.extract_strided_slice %115 {offsets = [0, 16], sizes = [8, 8], strides = [1, 1]} : vector<8x32xf32> to vector<8x8xf32>
    %cst_49 = arith.constant dense<0.000000e+00> : vector<8x8xf32>
    %153 = tpu.matmul %150, %151, %cst_49 {dimension_numbers = #tpu.dot_dimension_numbers<[1], [1], [0], [0], [0, 0, 1, 0], [], []>} : vector<8x8xf32>, vector<8x8xf32>, vector<8x8xf32> -> vector<8x8xf32>
    %cst_50 = arith.constant 0.353553385 : f32
    %154 = vector.broadcast %cst_50 : f32 to vector<8x8xf32>
    %155 = arith.mulf %153, %154 : vector<8x8xf32>
    %cst_51 = arith.constant dense<0xFF800000> : vector<8xf32>
    %156 = vector.multi_reduction <maximumf>, %155, %cst_51 [1] : vector<8x8xf32> to vector<8xf32>
    %157 = vector.shape_cast %156 : vector<8xf32> to vector<8x1xf32>
    %158 = vector.broadcast %157 : vector<8x1xf32> to vector<8x8xf32>
    %159 = arith.subf %155, %158 : vector<8x8xf32>
    %160 = math.exp %159 : vector<8x8xf32>
    %cst_52 = arith.constant dense<0.000000e+00> : vector<8xf32>
    %161 = vector.multi_reduction <add>, %160, %cst_52 [1] : vector<8x8xf32> to vector<8xf32>
    %162 = vector.shape_cast %161 : vector<8xf32> to vector<8x1xf32>
    %163 = tpu.reciprocal %162 {approx = true} : vector<8x1xf32> -> vector<8x1xf32>
    %164 = vector.broadcast %163 : vector<8x1xf32> to vector<8x8xf32>
    %165 = arith.mulf %160, %164 : vector<8x8xf32>
    %cst_53 = arith.constant dense<0.000000e+00> : vector<8x8xf32>
    %166 = tpu.matmul %165, %152, %cst_53 {dimension_numbers = #tpu.dot_dimension_numbers<[1], [0], [0], [1], [0, 0, 1, 1], [], []>} : vector<8x8xf32>, vector<8x8xf32>, vector<8x8xf32> -> vector<8x8xf32>
    %167 = vector.extract_strided_slice %113 {offsets = [0, 24], sizes = [8, 8], strides = [1, 1]} : vector<8x32xf32> to vector<8x8xf32>
    %168 = vector.extract_strided_slice %114 {offsets = [0, 24], sizes = [8, 8], strides = [1, 1]} : vector<8x32xf32> to vector<8x8xf32>
    %169 = vector.extract_strided_slice %115 {offsets = [0, 24], sizes = [8, 8], strides = [1, 1]} : vector<8x32xf32> to vector<8x8xf32>
    %cst_54 = arith.constant dense<0.000000e+00> : vector<8x8xf32>
    %170 = tpu.matmul %167, %168, %cst_54 {dimension_numbers = #tpu.dot_dimension_numbers<[1], [1], [0], [0], [0, 0, 1, 0], [], []>} : vector<8x8xf32>, vector<8x8xf32>, vector<8x8xf32> -> vector<8x8xf32>
    %cst_55 = arith.constant 0.353553385 : f32
    %171 = vector.broadcast %cst_55 : f32 to vector<8x8xf32>
    %172 = arith.mulf %170, %171 : vector<8x8xf32>
    %cst_56 = arith.constant dense<0xFF800000> : vector<8xf32>
    %173 = vector.multi_reduction <maximumf>, %172, %cst_56 [1] : vector<8x8xf32> to vector<8xf32>
    %174 = vector.shape_cast %173 : vector<8xf32> to vector<8x1xf32>
    %175 = vector.broadcast %174 : vector<8x1xf32> to vector<8x8xf32>
    %176 = arith.subf %172, %175 : vector<8x8xf32>
    %177 = math.exp %176 : vector<8x8xf32>
    %cst_57 = arith.constant dense<0.000000e+00> : vector<8xf32>
    %178 = vector.multi_reduction <add>, %177, %cst_57 [1] : vector<8x8xf32> to vector<8xf32>
    %179 = vector.shape_cast %178 : vector<8xf32> to vector<8x1xf32>
    %180 = tpu.reciprocal %179 {approx = true} : vector<8x1xf32> -> vector<8x1xf32>
    %181 = vector.broadcast %180 : vector<8x1xf32> to vector<8x8xf32>
    %182 = arith.mulf %177, %181 : vector<8x8xf32>
    %cst_58 = arith.constant dense<0.000000e+00> : vector<8x8xf32>
    %183 = tpu.matmul %182, %169, %cst_58 {dimension_numbers = #tpu.dot_dimension_numbers<[1], [0], [0], [1], [0, 0, 1, 1], [], []>} : vector<8x8xf32>, vector<8x8xf32>, vector<8x8xf32> -> vector<8x8xf32>
    %184 = tpu.concatenate %132, %149, %166, %183 in 1 : vector<8x8xf32>, vector<8x8xf32>, vector<8x8xf32>, vector<8x8xf32> -> vector<8x32xf32>
    %185 = tpu.concatenate %112, %184 in 0 : vector<8x32xf32>, vector<8x32xf32> -> vector<16x32xf32>
    %c0_59 = arith.constant 0 : index
    %c0_60 = arith.constant 0 : index
    %c0_61 = arith.constant 0 : index
    %186 = vector.load %arg6[%c0_59, %c0_60, %c0_61] : memref<1x32x32xf32, #tpu.memory_space<vmem>>, vector<1x32x32xf32>
    %187 = vector.shape_cast %186 : vector<1x32x32xf32> to vector<32x32xf32>
    %cst_62 = arith.constant dense<0.000000e+00> : vector<16x32xf32>
    %188 = tpu.matmul %185, %187, %cst_62 {dimension_numbers = #tpu.dot_dimension_numbers<[1], [0], [0], [1], [0, 0, 1, 1], [], []>} : vector<16x32xf32>, vector<32x32xf32>, vector<16x32xf32> -> vector<16x32xf32>
    %189 = arith.addf %3, %188 : vector<16x32xf32>
    %c0_63 = arith.constant 0 : index
    %c0_64 = arith.constant 0 : index
    %c0_65 = arith.constant 0 : index
    %190 = vector.load %arg7[%c0_63, %c0_64, %c0_65] : memref<1x1x32xf32, #tpu.memory_space<vmem>>, vector<1x1x32xf32>
    %191 = vector.shape_cast %190 : vector<1x1x32xf32> to vector<1x32xf32>
    %192 = vector.broadcast %191 : vector<1x32xf32> to vector<16x32xf32>
    %193 = arith.addf %189, %192 : vector<16x32xf32>
    %c0_66 = arith.constant 0 : index
    %c0_67 = arith.constant 0 : index
    %c0_68 = arith.constant 0 : index
    %194 = vector.load %arg8[%c0_66, %c0_67, %c0_68] : memref<1x1x32xf32, #tpu.memory_space<vmem>>, vector<1x1x32xf32>
    %195 = vector.shape_cast %194 : vector<1x1x32xf32> to vector<1x32xf32>
    %c0_69 = arith.constant 0 : index
    %c0_70 = arith.constant 0 : index
    %c0_71 = arith.constant 0 : index
    %196 = vector.load %arg9[%c0_69, %c0_70, %c0_71] : memref<1x1x32xf32, #tpu.memory_space<vmem>>, vector<1x1x32xf32>
    %197 = vector.shape_cast %196 : vector<1x1x32xf32> to vector<1x32xf32>
    %cst_72 = arith.constant dense<0.000000e+00> : vector<16xf32>
    %198 = vector.multi_reduction <add>, %193, %cst_72 [1] : vector<16x32xf32> to vector<16xf32>
    %199 = vector.shape_cast %198 : vector<16xf32> to vector<16x1xf32>
    %cst_73 = arith.constant 3.200000e+01 : f32
    %200 = vector.broadcast %cst_73 : f32 to vector<16x1xf32>
    %201 = arith.divf %199, %200 : vector<16x1xf32>
    %202 = vector.broadcast %201 : vector<16x1xf32> to vector<16x32xf32>
    %203 = arith.subf %193, %202 : vector<16x32xf32>
    %204 = arith.mulf %203, %203 : vector<16x32xf32>
    %cst_74 = arith.constant dense<0.000000e+00> : vector<16xf32>
    %205 = vector.multi_reduction <add>, %204, %cst_74 [1] : vector<16x32xf32> to vector<16xf32>
    %206 = vector.shape_cast %205 : vector<16xf32> to vector<16x1xf32>
    %cst_75 = arith.constant 0.0322580636 : f32
    %207 = vector.broadcast %cst_75 : f32 to vector<16x1xf32>
    %208 = arith.mulf %206, %207 : vector<16x1xf32>
    %209 = math.sqrt %208 : vector<16x1xf32>
    %cst_76 = arith.constant 9.99999997E-7 : f32
    %210 = vector.broadcast %cst_76 : f32 to vector<16x1xf32>
    %211 = arith.addf %209, %210 : vector<16x1xf32>
    %212 = tpu.reciprocal %211 {approx = true} : vector<16x1xf32> -> vector<16x1xf32>
    %213 = vector.broadcast %201 : vector<16x1xf32> to vector<16x32xf32>
    %214 = arith.subf %193, %213 : vector<16x32xf32>
    %215 = vector.broadcast %195 : vector<1x32xf32> to vector<16x32xf32>
    %216 = arith.mulf %215, %214 : vector<16x32xf32>
    %217 = vector.broadcast %212 : vector<16x1xf32> to vector<16x32xf32>
    %218 = arith.mulf %216, %217 : vector<16x32xf32>
    %219 = vector.broadcast %197 : vector<1x32xf32> to vector<16x32xf32>
    %220 = arith.addf %218, %219 : vector<16x32xf32>
    %c0_77 = arith.constant 0 : index
    %c0_78 = arith.constant 0 : index
    %c0_79 = arith.constant 0 : index
    %221 = vector.load %arg10[%c0_77, %c0_78, %c0_79] : memref<1x32x2048xf32, #tpu.memory_space<vmem>>, vector<1x32x2048xf32>
    %222 = vector.shape_cast %221 : vector<1x32x2048xf32> to vector<32x2048xf32>
    %cst_80 = arith.constant dense<0.000000e+00> : vector<16x2048xf32>
    %223 = tpu.matmul %220, %222, %cst_80 {dimension_numbers = #tpu.dot_dimension_numbers<[1], [0], [0], [1], [0, 0, 1, 1], [], []>} : vector<16x32xf32>, vector<32x2048xf32>, vector<16x2048xf32> -> vector<16x2048xf32>
    %c0_81 = arith.constant 0 : index
    %c0_82 = arith.constant 0 : index
    %c0_83 = arith.constant 0 : index
    %224 = vector.load %arg11[%c0_81, %c0_82, %c0_83] : memref<1x1x2048xf32, #tpu.memory_space<vmem>>, vector<1x1x2048xf32>
    %225 = vector.shape_cast %224 : vector<1x1x2048xf32> to vector<1x2048xf32>
    %226 = vector.broadcast %225 : vector<1x2048xf32> to vector<16x2048xf32>
    %227 = arith.addf %223, %226 : vector<16x2048xf32>
    %cst_84 = arith.constant 0.000000e+00 : f32
    %228 = vector.broadcast %cst_84 : f32 to vector<16x2048xf32>
    %229 = arith.maximumf %227, %228 : vector<16x2048xf32>
    %c0_85 = arith.constant 0 : index
    %c0_86 = arith.constant 0 : index
    %c0_87 = arith.constant 0 : index
    %230 = vector.load %arg12[%c0_85, %c0_86, %c0_87] : memref<1x2048x32xf32, #tpu.memory_space<vmem>>, vector<1x2048x32xf32>
    %231 = vector.shape_cast %230 : vector<1x2048x32xf32> to vector<2048x32xf32>
    %cst_88 = arith.constant dense<0.000000e+00> : vector<16x32xf32>
    %232 = tpu.matmul %229, %231, %cst_88 {dimension_numbers = #tpu.dot_dimension_numbers<[1], [0], [0], [1], [0, 0, 1, 1], [], []>} : vector<16x2048xf32>, vector<2048x32xf32>, vector<16x32xf32> -> vector<16x32xf32>
    %233 = arith.addf %193, %232 : vector<16x32xf32>
    %c0_89 = arith.constant 0 : index
    %c0_90 = arith.constant 0 : index
    %c0_91 = arith.constant 0 : index
    %234 = vector.load %arg13[%c0_89, %c0_90, %c0_91] : memref<1x1x32xf32, #tpu.memory_space<vmem>>, vector<1x1x32xf32>
    %235 = vector.shape_cast %234 : vector<1x1x32xf32> to vector<1x32xf32>
    %236 = vector.broadcast %235 : vector<1x32xf32> to vector<16x32xf32>
    %237 = arith.addf %233, %236 : vector<16x32xf32>
    %c0_92 = arith.constant 0 : index
    %c0_93 = arith.constant 0 : index
    %238 = vector.load %arg17[%c0_92, %c0_93] : memref<16x32xf32, #tpu.memory_space<vmem>>, vector<16x32xf32>
    tpu.vector_store %arg17[%c0_92, %c0_93], %237 {strides = array<i32>} : memref<16x32xf32, #tpu.memory_space<vmem>>, vector<16x32xf32>,
    %c1_i32 = arith.constant 1 : i32
    %239 = arith.cmpi eq, %arg0, %c1_i32 : i32
    %240 = arith.extui %239 : i1 to i32
    %c0_i32_94 = arith.constant 0 : i32
    %241 = arith.cmpi ne, %240, %c0_i32_94 : i32
    scf.if %241 {
      %c0_95 = arith.constant 0 : index
      %c0_96 = arith.constant 0 : index
      %242 = vector.load %arg14[%c0_95, %c0_96] : memref<1x32xf32, #tpu.memory_space<vmem>>, vector<1x32xf32>
      %c0_97 = arith.constant 0 : index
      %c0_98 = arith.constant 0 : index
      %243 = vector.load %arg15[%c0_97, %c0_98] : memref<1x32xf32, #tpu.memory_space<vmem>>, vector<1x32xf32>
      %cst_99 = arith.constant dense<0.000000e+00> : vector<16xf32>
      %244 = vector.multi_reduction <add>, %237, %cst_99 [1] : vector<16x32xf32> to vector<16xf32>
      %245 = vector.shape_cast %244 : vector<16xf32> to vector<16x1xf32>
      %cst_100 = arith.constant 3.200000e+01 : f32
      %246 = vector.broadcast %cst_100 : f32 to vector<16x1xf32>
      %247 = arith.divf %245, %246 : vector<16x1xf32>
      %248 = vector.broadcast %247 : vector<16x1xf32> to vector<16x32xf32>
      %249 = arith.subf %237, %248 : vector<16x32xf32>
      %250 = arith.mulf %249, %249 : vector<16x32xf32>
      %cst_101 = arith.constant dense<0.000000e+00> : vector<16xf32>
      %251 = vector.multi_reduction <add>, %250, %cst_101 [1] : vector<16x32xf32> to vector<16xf32>
      %252 = vector.shape_cast %251 : vector<16xf32> to vector<16x1xf32>
      %cst_102 = arith.constant 0.0322580636 : f32
      %253 = vector.broadcast %cst_102 : f32 to vector<16x1xf32>
      %254 = arith.mulf %252, %253 : vector<16x1xf32>
      %255 = math.sqrt %254 : vector<16x1xf32>
      %cst_103 = arith.constant 9.99999997E-7 : f32
      %256 = vector.broadcast %cst_103 : f32 to vector<16x1xf32>
      %257 = arith.addf %255, %256 : vector<16x1xf32>
      %258 = tpu.reciprocal %257 {approx = true} : vector<16x1xf32> -> vector<16x1xf32>
      %259 = vector.broadcast %247 : vector<16x1xf32> to vector<16x32xf32>
      %260 = arith.subf %237, %259 : vector<16x32xf32>
      %261 = vector.broadcast %242 : vector<1x32xf32> to vector<16x32xf32>
      %262 = arith.mulf %261, %260 : vector<16x32xf32>
      %263 = vector.broadcast %258 : vector<16x1xf32> to vector<16x32xf32>
      %264 = arith.mulf %262, %263 : vector<16x32xf32>
      %265 = vector.broadcast %243 : vector<1x32xf32> to vector<16x32xf32>
      %266 = arith.addf %264, %265 : vector<16x32xf32>
      %c0_104 = arith.constant 0 : index
      %c0_105 = arith.constant 0 : index
      %267 = vector.load %arg16[%c0_104, %c0_105] : memref<16x32xf32, #tpu.memory_space<vmem>>, vector<16x32xf32>
      tpu.vector_store %arg16[%c0_104, %c0_105], %266 {strides = array<i32>} : memref<16x32xf32, #tpu.memory_space<vmem>>, vector<16x32xf32>,
    } else {
    }
    return
  }
  func.func @transform_0(%arg0: i32) -> (i32, i32) {
    %c0_i32 = arith.constant 0 : i32
    %c0_i32_0 = arith.constant 0 : i32
    %c0_i32_1 = arith.constant 0 : i32
    return %c0_i32, %c0_i32_0 : i32, i32
  }
  func.func @transform_1(%arg0: i32) -> (i32, i32, i32) {
    %c0_i32 = arith.constant 0 : i32
    %c0_i32_0 = arith.constant 0 : i32
    %c0_i32_1 = arith.constant 0 : i32
    return %arg0, %c0_i32, %c0_i32_0 : i32, i32, i32
  }
  func.func @transform_2(%arg0: i32) -> (i32, i32, i32) {
    %c0_i32 = arith.constant 0 : i32
    %c0_i32_0 = arith.constant 0 : i32
    %c0_i32_1 = arith.constant 0 : i32
    return %arg0, %c0_i32, %c0_i32_0 : i32, i32, i32
  }
  func.func @transform_3(%arg0: i32) -> (i32, i32, i32) {
    %c0_i32 = arith.constant 0 : i32
    %c0_i32_0 = arith.constant 0 : i32
    %c0_i32_1 = arith.constant 0 : i32
    return %arg0, %c0_i32, %c0_i32_0 : i32, i32, i32
  }
  func.func @transform_4(%arg0: i32) -> (i32, i32, i32) {
    %c0_i32 = arith.constant 0 : i32
    %c0_i32_0 = arith.constant 0 : i32
    %c0_i32_1 = arith.constant 0 : i32
    return %arg0, %c0_i32, %c0_i32_0 : i32, i32, i32
  }
  func.func @transform_5(%arg0: i32) -> (i32, i32, i32) {
    %c0_i32 = arith.constant 0 : i32
    %c0_i32_0 = arith.constant 0 : i32
    %c0_i32_1 = arith.constant 0 : i32
    return %arg0, %c0_i32, %c0_i32_0 : i32, i32, i32
  }
  func.func @transform_6(%arg0: i32) -> (i32, i32, i32) {
    %c0_i32 = arith.constant 0 : i32
    %c0_i32_0 = arith.constant 0 : i32
    %c0_i32_1 = arith.constant 0 : i32
    return %arg0, %c0_i32, %c0_i32_0 : i32, i32, i32
  }
  func.func @transform_7(%arg0: i32) -> (i32, i32, i32) {
    %c0_i32 = arith.constant 0 : i32
    %c0_i32_0 = arith.constant 0 : i32
    %c0_i32_1 = arith.constant 0 : i32
    return %arg0, %c0_i32, %c0_i32_0 : i32, i32, i32
  }
  func.func @transform_8(%arg0: i32) -> (i32, i32, i32) {
    %c0_i32 = arith.constant 0 : i32
    %c0_i32_0 = arith.constant 0 : i32
    %c0_i32_1 = arith.constant 0 : i32
    return %arg0, %c0_i32, %c0_i32_0 : i32, i32, i32
  }
  func.func @transform_9(%arg0: i32) -> (i32, i32, i32) {
    %c0_i32 = arith.constant 0 : i32
    %c0_i32_0 = arith.constant 0 : i32
    %c0_i32_1 = arith.constant 0 : i32
    return %arg0, %c0_i32, %c0_i32_0 : i32, i32, i32
  }
  func.func @transform_10(%arg0: i32) -> (i32, i32, i32) {
    %c0_i32 = arith.constant 0 : i32
    %c0_i32_0 = arith.constant 0 : i32
    %c0_i32_1 = arith.constant 0 : i32
    return %arg0, %c0_i32, %c0_i32_0 : i32, i32, i32
  }
  func.func @transform_11(%arg0: i32) -> (i32, i32, i32) {
    %c0_i32 = arith.constant 0 : i32
    %c0_i32_0 = arith.constant 0 : i32
    %c0_i32_1 = arith.constant 0 : i32
    return %arg0, %c0_i32, %c0_i32_0 : i32, i32, i32
  }
  func.func @transform_12(%arg0: i32) -> (i32, i32, i32) {
    %c0_i32 = arith.constant 0 : i32
    %c0_i32_0 = arith.constant 0 : i32
    %c0_i32_1 = arith.constant 0 : i32
    return %arg0, %c0_i32, %c0_i32_0 : i32, i32, i32
  }
  func.func @transform_13(%arg0: i32) -> (i32, i32) {
    %c0_i32 = arith.constant 0 : i32
    %c0_i32_0 = arith.constant 0 : i32
    %c0_i32_1 = arith.constant 0 : i32
    return %c0_i32, %c0_i32_0 : i32, i32
  }
  func.func @transform_14(%arg0: i32) -> (i32, i32) {
    %c0_i32 = arith.constant 0 : i32
    %c0_i32_0 = arith.constant 0 : i32
    %c0_i32_1 = arith.constant 0 : i32
    return %c0_i32, %c0_i32_0 : i32, i32
  }
  func.func @transform_15(%arg0: i32) -> (i32, i32) {
    %c0_i32 = arith.constant 0 : i32
    %c0_i32_0 = arith.constant 0 : i32
    %c0_i32_1 = arith.constant 0 : i32
    return %c0_i32, %c0_i32_0 : i32, i32
  }
}

module attributes {stable_mosaic.version = 11 : i64} {
  func.func @_decoder_stack_kernel(%arg0: i32, %arg1: memref<16x32xf32, #tpu.memory_space<vmem>>, %arg2: memref<16x32xf32, #tpu.memory_space<vmem>>, %arg3: memref<1x1x32xf32, #tpu.memory_space<vmem>>, %arg4: memref<1x1x32xf32, #tpu.memory_space<vmem>>, %arg5: memref<1x32x96xf32, #tpu.memory_space<vmem>>, %arg6: memref<1x1x96xf32, #tpu.memory_space<vmem>>, %arg7: memref<1x32x32xf32, #tpu.memory_space<vmem>>, %arg8: memref<1x1x32xf32, #tpu.memory_space<vmem>>, %arg9: memref<1x1x32xf32, #tpu.memory_space<vmem>>, %arg10: memref<1x1x32xf32, #tpu.memory_space<vmem>>, %arg11: memref<1x32x32xf32, #tpu.memory_space<vmem>>, %arg12: memref<1x1x32xf32, #tpu.memory_space<vmem>>, %arg13: memref<1x32x64xf32, #tpu.memory_space<vmem>>, %arg14: memref<1x1x64xf32, #tpu.memory_space<vmem>>, %arg15: memref<1x32x32xf32, #tpu.memory_space<vmem>>, %arg16: memref<1x1x32xf32, #tpu.memory_space<vmem>>, %arg17: memref<1x1x32xf32, #tpu.memory_space<vmem>>, %arg18: memref<1x1x32xf32, #tpu.memory_space<vmem>>, %arg19: memref<1x32x2048xf32, #tpu.memory_space<vmem>>, %arg20: memref<1x1x2048xf32, #tpu.memory_space<vmem>>, %arg21: memref<1x2048x32xf32, #tpu.memory_space<vmem>>, %arg22: memref<1x1x32xf32, #tpu.memory_space<vmem>>, %arg23: memref<1x32xf32, #tpu.memory_space<vmem>>, %arg24: memref<1x32xf32, #tpu.memory_space<vmem>>, %arg25: memref<32x128xf32, #tpu.memory_space<vmem>>, %arg26: memref<1x128xf32, #tpu.memory_space<vmem>>, %arg27: memref<16x128xf32, #tpu.memory_space<vmem>>, %arg28: memref<16x32xf32, #tpu.memory_space<vmem>>) attributes {dimension_semantics = [#tpu.dimension_semantics<arbitrary>], iteration_bounds = array<i64: 2>, scalar_prefetch = 0 : i64, scratch_operands = 1 : i64, tpu.core_type = #tpu.core_type<tc>, window_params = [{pipeline_mode = #tpu.pipeline_mode<synchronous>, transform_indices = @transform_0, window_bounds = array<i64: 16, 32>}, {pipeline_mode = #tpu.pipeline_mode<synchronous>, transform_indices = @transform_1, window_bounds = array<i64: 16, 32>}, {transform_indices = @transform_2, window_bounds = array<i64: 1, 1, 32>}, {transform_indices = @transform_3, window_bounds = array<i64: 1, 1, 32>}, {transform_indices = @transform_4, window_bounds = array<i64: 1, 32, 96>}, {transform_indices = @transform_5, window_bounds = array<i64: 1, 1, 96>}, {transform_indices = @transform_6, window_bounds = array<i64: 1, 32, 32>}, {transform_indices = @transform_7, window_bounds = array<i64: 1, 1, 32>}, {transform_indices = @transform_8, window_bounds = array<i64: 1, 1, 32>}, {transform_indices = @transform_9, window_bounds = array<i64: 1, 1, 32>}, {transform_indices = @transform_10, window_bounds = array<i64: 1, 32, 32>}, {transform_indices = @transform_11, window_bounds = array<i64: 1, 1, 32>}, {transform_indices = @transform_12, window_bounds = array<i64: 1, 32, 64>}, {transform_indices = @transform_13, window_bounds = array<i64: 1, 1, 64>}, {transform_indices = @transform_14, window_bounds = array<i64: 1, 32, 32>}, {transform_indices = @transform_15, window_bounds = array<i64: 1, 1, 32>}, {transform_indices = @transform_16, window_bounds = array<i64: 1, 1, 32>}, {transform_indices = @transform_17, window_bounds = array<i64: 1, 1, 32>}, {transform_indices = @transform_18, window_bounds = array<i64: 1, 32, 2048>}, {transform_indices = @transform_19, window_bounds = array<i64: 1, 1, 2048>}, {transform_indices = @transform_20, window_bounds = array<i64: 1, 2048, 32>}, {transform_indices = @transform_21, window_bounds = array<i64: 1, 1, 32>}, {pipeline_mode = #tpu.pipeline_mode<synchronous>, transform_indices = @transform_22, window_bounds = array<i64: 1, 32>}, {pipeline_mode = #tpu.pipeline_mode<synchronous>, transform_indices = @transform_23, window_bounds = array<i64: 1, 32>}, {pipeline_mode = #tpu.pipeline_mode<synchronous>, transform_indices = @transform_24, window_bounds = array<i64: 32, 128>}, {pipeline_mode = #tpu.pipeline_mode<synchronous>, transform_indices = @transform_25, window_bounds = array<i64: 1, 128>}, {pipeline_mode = #tpu.pipeline_mode<synchronous>, transform_indices = @transform_26, window_bounds = array<i64: 16, 128>}]} {
    %c0_i32 = arith.constant 0 : i32
    %0 = arith.cmpi eq, %arg0, %c0_i32 : i32
    %1 = arith.extui %0 : i1 to i32
    %c0_i32_0 = arith.constant 0 : i32
    %2 = arith.cmpi ne, %1, %c0_i32_0 : i32
    scf.if %2 {
      %c0_169 = arith.constant 0 : index
      %c0_170 = arith.constant 0 : index
      %439 = vector.load %arg1[%c0_169, %c0_170] : memref<16x32xf32, #tpu.memory_space<vmem>>, vector<16x32xf32>
      %c0_171 = arith.constant 0 : index
      %c0_172 = arith.constant 0 : index
      %440 = vector.load %arg28[%c0_171, %c0_172] : memref<16x32xf32, #tpu.memory_space<vmem>>, vector<16x32xf32>
      tpu.vector_store %arg28[%c0_171, %c0_172], %439 {strides = array<i32>} : memref<16x32xf32, #tpu.memory_space<vmem>>, vector<16x32xf32>,
    } else {
    }
    %c0 = arith.constant 0 : index
    %c0_1 = arith.constant 0 : index
    %3 = vector.load %arg28[%c0, %c0_1] : memref<16x32xf32, #tpu.memory_space<vmem>>, vector<16x32xf32>
    %c0_2 = arith.constant 0 : index
    %c0_3 = arith.constant 0 : index
    %4 = vector.load %arg2[%c0_2, %c0_3] : memref<16x32xf32, #tpu.memory_space<vmem>>, vector<16x32xf32>
    %c0_4 = arith.constant 0 : index
    %c0_5 = arith.constant 0 : index
    %c0_6 = arith.constant 0 : index
    %5 = vector.load %arg3[%c0_4, %c0_5, %c0_6] : memref<1x1x32xf32, #tpu.memory_space<vmem>>, vector<1x1x32xf32>
    %6 = vector.shape_cast %5 : vector<1x1x32xf32> to vector<1x32xf32>
    %c0_7 = arith.constant 0 : index
    %c0_8 = arith.constant 0 : index
    %c0_9 = arith.constant 0 : index
    %7 = vector.load %arg4[%c0_7, %c0_8, %c0_9] : memref<1x1x32xf32, #tpu.memory_space<vmem>>, vector<1x1x32xf32>
    %8 = vector.shape_cast %7 : vector<1x1x32xf32> to vector<1x32xf32>
    %cst = arith.constant dense<0.000000e+00> : vector<16xf32>
    %9 = vector.multi_reduction <add>, %3, %cst [1] : vector<16x32xf32> to vector<16xf32>
    %10 = vector.shape_cast %9 : vector<16xf32> to vector<16x1xf32>
    %cst_10 = arith.constant 3.200000e+01 : f32
    %11 = vector.broadcast %cst_10 : f32 to vector<16x1xf32>
    %12 = arith.divf %10, %11 : vector<16x1xf32>
    %13 = vector.broadcast %12 : vector<16x1xf32> to vector<16x32xf32>
    %14 = arith.subf %3, %13 : vector<16x32xf32>
    %15 = arith.mulf %14, %14 : vector<16x32xf32>
    %cst_11 = arith.constant dense<0.000000e+00> : vector<16xf32>
    %16 = vector.multi_reduction <add>, %15, %cst_11 [1] : vector<16x32xf32> to vector<16xf32>
    %17 = vector.shape_cast %16 : vector<16xf32> to vector<16x1xf32>
    %cst_12 = arith.constant 0.0322580636 : f32
    %18 = vector.broadcast %cst_12 : f32 to vector<16x1xf32>
    %19 = arith.mulf %17, %18 : vector<16x1xf32>
    %20 = math.sqrt %19 : vector<16x1xf32>
    %cst_13 = arith.constant 9.99999997E-7 : f32
    %21 = vector.broadcast %cst_13 : f32 to vector<16x1xf32>
    %22 = arith.addf %20, %21 : vector<16x1xf32>
    %23 = tpu.reciprocal %22 {approx = true} : vector<16x1xf32> -> vector<16x1xf32>
    %24 = vector.broadcast %12 : vector<16x1xf32> to vector<16x32xf32>
    %25 = arith.subf %3, %24 : vector<16x32xf32>
    %26 = vector.broadcast %6 : vector<1x32xf32> to vector<16x32xf32>
    %27 = arith.mulf %26, %25 : vector<16x32xf32>
    %28 = vector.broadcast %23 : vector<16x1xf32> to vector<16x32xf32>
    %29 = arith.mulf %27, %28 : vector<16x32xf32>
    %30 = vector.broadcast %8 : vector<1x32xf32> to vector<16x32xf32>
    %31 = arith.addf %29, %30 : vector<16x32xf32>
    %c0_14 = arith.constant 0 : index
    %c0_15 = arith.constant 0 : index
    %c0_16 = arith.constant 0 : index
    %32 = vector.load %arg5[%c0_14, %c0_15, %c0_16] : memref<1x32x96xf32, #tpu.memory_space<vmem>>, vector<1x32x96xf32>
    %33 = vector.shape_cast %32 : vector<1x32x96xf32> to vector<32x96xf32>
    %cst_17 = arith.constant dense<0.000000e+00> : vector<16x96xf32>
    %34 = tpu.matmul %31, %33, %cst_17 {dimension_numbers = #tpu.dot_dimension_numbers<[1], [0], [0], [1], [0, 0, 1, 1], [], []>} : vector<16x32xf32>, vector<32x96xf32>, vector<16x96xf32> -> vector<16x96xf32>
    %c0_18 = arith.constant 0 : index
    %c0_19 = arith.constant 0 : index
    %c0_20 = arith.constant 0 : index
    %35 = vector.load %arg6[%c0_18, %c0_19, %c0_20] : memref<1x1x96xf32, #tpu.memory_space<vmem>>, vector<1x1x96xf32>
    %36 = vector.shape_cast %35 : vector<1x1x96xf32> to vector<1x96xf32>
    %37 = vector.broadcast %36 : vector<1x96xf32> to vector<16x96xf32>
    %38 = arith.addf %34, %37 : vector<16x96xf32>
    %39 = vector.extract_strided_slice %38 {offsets = [0, 0], sizes = [16, 32], strides = [1, 1]} : vector<16x96xf32> to vector<16x32xf32>
    %40 = vector.extract_strided_slice %38 {offsets = [0, 32], sizes = [16, 32], strides = [1, 1]} : vector<16x96xf32> to vector<16x32xf32>
    %41 = vector.extract_strided_slice %38 {offsets = [0, 64], sizes = [16, 32], strides = [1, 1]} : vector<16x96xf32> to vector<16x32xf32>
    %42 = vector.extract_strided_slice %39 {offsets = [0, 0], sizes = [8, 32], strides = [1, 1]} : vector<16x32xf32> to vector<8x32xf32>
    %43 = vector.extract_strided_slice %40 {offsets = [0, 0], sizes = [8, 32], strides = [1, 1]} : vector<16x32xf32> to vector<8x32xf32>
    %44 = vector.extract_strided_slice %41 {offsets = [0, 0], sizes = [8, 32], strides = [1, 1]} : vector<16x32xf32> to vector<8x32xf32>
    %45 = vector.extract_strided_slice %42 {offsets = [0, 0], sizes = [8, 8], strides = [1, 1]} : vector<8x32xf32> to vector<8x8xf32>
    %46 = vector.extract_strided_slice %43 {offsets = [0, 0], sizes = [8, 8], strides = [1, 1]} : vector<8x32xf32> to vector<8x8xf32>
    %47 = vector.extract_strided_slice %44 {offsets = [0, 0], sizes = [8, 8], strides = [1, 1]} : vector<8x32xf32> to vector<8x8xf32>
    %cst_21 = arith.constant dense<0.000000e+00> : vector<8x8xf32>
    %48 = tpu.matmul %45, %46, %cst_21 {dimension_numbers = #tpu.dot_dimension_numbers<[1], [1], [0], [0], [0, 0, 1, 0], [], []>} : vector<8x8xf32>, vector<8x8xf32>, vector<8x8xf32> -> vector<8x8xf32>
    %cst_22 = arith.constant 0.353553385 : f32
    %49 = vector.broadcast %cst_22 : f32 to vector<8x8xf32>
    %50 = arith.mulf %48, %49 : vector<8x8xf32>
    %cst_23 = arith.constant dense<0xFF800000> : vector<8xf32>
    %51 = vector.multi_reduction <maximumf>, %50, %cst_23 [1] : vector<8x8xf32> to vector<8xf32>
    %52 = vector.shape_cast %51 : vector<8xf32> to vector<8x1xf32>
    %53 = vector.broadcast %52 : vector<8x1xf32> to vector<8x8xf32>
    %54 = arith.subf %50, %53 : vector<8x8xf32>
    %55 = math.exp %54 : vector<8x8xf32>
    %cst_24 = arith.constant dense<0.000000e+00> : vector<8xf32>
    %56 = vector.multi_reduction <add>, %55, %cst_24 [1] : vector<8x8xf32> to vector<8xf32>
    %57 = vector.shape_cast %56 : vector<8xf32> to vector<8x1xf32>
    %58 = tpu.reciprocal %57 {approx = true} : vector<8x1xf32> -> vector<8x1xf32>
    %59 = vector.broadcast %58 : vector<8x1xf32> to vector<8x8xf32>
    %60 = arith.mulf %55, %59 : vector<8x8xf32>
    %cst_25 = arith.constant dense<0.000000e+00> : vector<8x8xf32>
    %61 = tpu.matmul %60, %47, %cst_25 {dimension_numbers = #tpu.dot_dimension_numbers<[1], [0], [0], [1], [0, 0, 1, 1], [], []>} : vector<8x8xf32>, vector<8x8xf32>, vector<8x8xf32> -> vector<8x8xf32>
    %62 = vector.extract_strided_slice %42 {offsets = [0, 8], sizes = [8, 8], strides = [1, 1]} : vector<8x32xf32> to vector<8x8xf32>
    %63 = vector.extract_strided_slice %43 {offsets = [0, 8], sizes = [8, 8], strides = [1, 1]} : vector<8x32xf32> to vector<8x8xf32>
    %64 = vector.extract_strided_slice %44 {offsets = [0, 8], sizes = [8, 8], strides = [1, 1]} : vector<8x32xf32> to vector<8x8xf32>
    %cst_26 = arith.constant dense<0.000000e+00> : vector<8x8xf32>
    %65 = tpu.matmul %62, %63, %cst_26 {dimension_numbers = #tpu.dot_dimension_numbers<[1], [1], [0], [0], [0, 0, 1, 0], [], []>} : vector<8x8xf32>, vector<8x8xf32>, vector<8x8xf32> -> vector<8x8xf32>
    %cst_27 = arith.constant 0.353553385 : f32
    %66 = vector.broadcast %cst_27 : f32 to vector<8x8xf32>
    %67 = arith.mulf %65, %66 : vector<8x8xf32>
    %cst_28 = arith.constant dense<0xFF800000> : vector<8xf32>
    %68 = vector.multi_reduction <maximumf>, %67, %cst_28 [1] : vector<8x8xf32> to vector<8xf32>
    %69 = vector.shape_cast %68 : vector<8xf32> to vector<8x1xf32>
    %70 = vector.broadcast %69 : vector<8x1xf32> to vector<8x8xf32>
    %71 = arith.subf %67, %70 : vector<8x8xf32>
    %72 = math.exp %71 : vector<8x8xf32>
    %cst_29 = arith.constant dense<0.000000e+00> : vector<8xf32>
    %73 = vector.multi_reduction <add>, %72, %cst_29 [1] : vector<8x8xf32> to vector<8xf32>
    %74 = vector.shape_cast %73 : vector<8xf32> to vector<8x1xf32>
    %75 = tpu.reciprocal %74 {approx = true} : vector<8x1xf32> -> vector<8x1xf32>
    %76 = vector.broadcast %75 : vector<8x1xf32> to vector<8x8xf32>
    %77 = arith.mulf %72, %76 : vector<8x8xf32>
    %cst_30 = arith.constant dense<0.000000e+00> : vector<8x8xf32>
    %78 = tpu.matmul %77, %64, %cst_30 {dimension_numbers = #tpu.dot_dimension_numbers<[1], [0], [0], [1], [0, 0, 1, 1], [], []>} : vector<8x8xf32>, vector<8x8xf32>, vector<8x8xf32> -> vector<8x8xf32>
    %79 = vector.extract_strided_slice %42 {offsets = [0, 16], sizes = [8, 8], strides = [1, 1]} : vector<8x32xf32> to vector<8x8xf32>
    %80 = vector.extract_strided_slice %43 {offsets = [0, 16], sizes = [8, 8], strides = [1, 1]} : vector<8x32xf32> to vector<8x8xf32>
    %81 = vector.extract_strided_slice %44 {offsets = [0, 16], sizes = [8, 8], strides = [1, 1]} : vector<8x32xf32> to vector<8x8xf32>
    %cst_31 = arith.constant dense<0.000000e+00> : vector<8x8xf32>
    %82 = tpu.matmul %79, %80, %cst_31 {dimension_numbers = #tpu.dot_dimension_numbers<[1], [1], [0], [0], [0, 0, 1, 0], [], []>} : vector<8x8xf32>, vector<8x8xf32>, vector<8x8xf32> -> vector<8x8xf32>
    %cst_32 = arith.constant 0.353553385 : f32
    %83 = vector.broadcast %cst_32 : f32 to vector<8x8xf32>
    %84 = arith.mulf %82, %83 : vector<8x8xf32>
    %cst_33 = arith.constant dense<0xFF800000> : vector<8xf32>
    %85 = vector.multi_reduction <maximumf>, %84, %cst_33 [1] : vector<8x8xf32> to vector<8xf32>
    %86 = vector.shape_cast %85 : vector<8xf32> to vector<8x1xf32>
    %87 = vector.broadcast %86 : vector<8x1xf32> to vector<8x8xf32>
    %88 = arith.subf %84, %87 : vector<8x8xf32>
    %89 = math.exp %88 : vector<8x8xf32>
    %cst_34 = arith.constant dense<0.000000e+00> : vector<8xf32>
    %90 = vector.multi_reduction <add>, %89, %cst_34 [1] : vector<8x8xf32> to vector<8xf32>
    %91 = vector.shape_cast %90 : vector<8xf32> to vector<8x1xf32>
    %92 = tpu.reciprocal %91 {approx = true} : vector<8x1xf32> -> vector<8x1xf32>
    %93 = vector.broadcast %92 : vector<8x1xf32> to vector<8x8xf32>
    %94 = arith.mulf %89, %93 : vector<8x8xf32>
    %cst_35 = arith.constant dense<0.000000e+00> : vector<8x8xf32>
    %95 = tpu.matmul %94, %81, %cst_35 {dimension_numbers = #tpu.dot_dimension_numbers<[1], [0], [0], [1], [0, 0, 1, 1], [], []>} : vector<8x8xf32>, vector<8x8xf32>, vector<8x8xf32> -> vector<8x8xf32>
    %96 = vector.extract_strided_slice %42 {offsets = [0, 24], sizes = [8, 8], strides = [1, 1]} : vector<8x32xf32> to vector<8x8xf32>
    %97 = vector.extract_strided_slice %43 {offsets = [0, 24], sizes = [8, 8], strides = [1, 1]} : vector<8x32xf32> to vector<8x8xf32>
    %98 = vector.extract_strided_slice %44 {offsets = [0, 24], sizes = [8, 8], strides = [1, 1]} : vector<8x32xf32> to vector<8x8xf32>
    %cst_36 = arith.constant dense<0.000000e+00> : vector<8x8xf32>
    %99 = tpu.matmul %96, %97, %cst_36 {dimension_numbers = #tpu.dot_dimension_numbers<[1], [1], [0], [0], [0, 0, 1, 0], [], []>} : vector<8x8xf32>, vector<8x8xf32>, vector<8x8xf32> -> vector<8x8xf32>
    %cst_37 = arith.constant 0.353553385 : f32
    %100 = vector.broadcast %cst_37 : f32 to vector<8x8xf32>
    %101 = arith.mulf %99, %100 : vector<8x8xf32>
    %cst_38 = arith.constant dense<0xFF800000> : vector<8xf32>
    %102 = vector.multi_reduction <maximumf>, %101, %cst_38 [1] : vector<8x8xf32> to vector<8xf32>
    %103 = vector.shape_cast %102 : vector<8xf32> to vector<8x1xf32>
    %104 = vector.broadcast %103 : vector<8x1xf32> to vector<8x8xf32>
    %105 = arith.subf %101, %104 : vector<8x8xf32>
    %106 = math.exp %105 : vector<8x8xf32>
    %cst_39 = arith.constant dense<0.000000e+00> : vector<8xf32>
    %107 = vector.multi_reduction <add>, %106, %cst_39 [1] : vector<8x8xf32> to vector<8xf32>
    %108 = vector.shape_cast %107 : vector<8xf32> to vector<8x1xf32>
    %109 = tpu.reciprocal %108 {approx = true} : vector<8x1xf32> -> vector<8x1xf32>
    %110 = vector.broadcast %109 : vector<8x1xf32> to vector<8x8xf32>
    %111 = arith.mulf %106, %110 : vector<8x8xf32>
    %cst_40 = arith.constant dense<0.000000e+00> : vector<8x8xf32>
    %112 = tpu.matmul %111, %98, %cst_40 {dimension_numbers = #tpu.dot_dimension_numbers<[1], [0], [0], [1], [0, 0, 1, 1], [], []>} : vector<8x8xf32>, vector<8x8xf32>, vector<8x8xf32> -> vector<8x8xf32>
    %113 = tpu.concatenate %61, %78, %95, %112 in 1 : vector<8x8xf32>, vector<8x8xf32>, vector<8x8xf32>, vector<8x8xf32> -> vector<8x32xf32>
    %114 = vector.extract_strided_slice %39 {offsets = [8, 0], sizes = [8, 32], strides = [1, 1]} : vector<16x32xf32> to vector<8x32xf32>
    %115 = vector.extract_strided_slice %40 {offsets = [8, 0], sizes = [8, 32], strides = [1, 1]} : vector<16x32xf32> to vector<8x32xf32>
    %116 = vector.extract_strided_slice %41 {offsets = [8, 0], sizes = [8, 32], strides = [1, 1]} : vector<16x32xf32> to vector<8x32xf32>
    %117 = vector.extract_strided_slice %114 {offsets = [0, 0], sizes = [8, 8], strides = [1, 1]} : vector<8x32xf32> to vector<8x8xf32>
    %118 = vector.extract_strided_slice %115 {offsets = [0, 0], sizes = [8, 8], strides = [1, 1]} : vector<8x32xf32> to vector<8x8xf32>
    %119 = vector.extract_strided_slice %116 {offsets = [0, 0], sizes = [8, 8], strides = [1, 1]} : vector<8x32xf32> to vector<8x8xf32>
    %cst_41 = arith.constant dense<0.000000e+00> : vector<8x8xf32>
    %120 = tpu.matmul %117, %118, %cst_41 {dimension_numbers = #tpu.dot_dimension_numbers<[1], [1], [0], [0], [0, 0, 1, 0], [], []>} : vector<8x8xf32>, vector<8x8xf32>, vector<8x8xf32> -> vector<8x8xf32>
    %cst_42 = arith.constant 0.353553385 : f32
    %121 = vector.broadcast %cst_42 : f32 to vector<8x8xf32>
    %122 = arith.mulf %120, %121 : vector<8x8xf32>
    %cst_43 = arith.constant dense<0xFF800000> : vector<8xf32>
    %123 = vector.multi_reduction <maximumf>, %122, %cst_43 [1] : vector<8x8xf32> to vector<8xf32>
    %124 = vector.shape_cast %123 : vector<8xf32> to vector<8x1xf32>
    %125 = vector.broadcast %124 : vector<8x1xf32> to vector<8x8xf32>
    %126 = arith.subf %122, %125 : vector<8x8xf32>
    %127 = math.exp %126 : vector<8x8xf32>
    %cst_44 = arith.constant dense<0.000000e+00> : vector<8xf32>
    %128 = vector.multi_reduction <add>, %127, %cst_44 [1] : vector<8x8xf32> to vector<8xf32>
    %129 = vector.shape_cast %128 : vector<8xf32> to vector<8x1xf32>
    %130 = tpu.reciprocal %129 {approx = true} : vector<8x1xf32> -> vector<8x1xf32>
    %131 = vector.broadcast %130 : vector<8x1xf32> to vector<8x8xf32>
    %132 = arith.mulf %127, %131 : vector<8x8xf32>
    %cst_45 = arith.constant dense<0.000000e+00> : vector<8x8xf32>
    %133 = tpu.matmul %132, %119, %cst_45 {dimension_numbers = #tpu.dot_dimension_numbers<[1], [0], [0], [1], [0, 0, 1, 1], [], []>} : vector<8x8xf32>, vector<8x8xf32>, vector<8x8xf32> -> vector<8x8xf32>
    %134 = vector.extract_strided_slice %114 {offsets = [0, 8], sizes = [8, 8], strides = [1, 1]} : vector<8x32xf32> to vector<8x8xf32>
    %135 = vector.extract_strided_slice %115 {offsets = [0, 8], sizes = [8, 8], strides = [1, 1]} : vector<8x32xf32> to vector<8x8xf32>
    %136 = vector.extract_strided_slice %116 {offsets = [0, 8], sizes = [8, 8], strides = [1, 1]} : vector<8x32xf32> to vector<8x8xf32>
    %cst_46 = arith.constant dense<0.000000e+00> : vector<8x8xf32>
    %137 = tpu.matmul %134, %135, %cst_46 {dimension_numbers = #tpu.dot_dimension_numbers<[1], [1], [0], [0], [0, 0, 1, 0], [], []>} : vector<8x8xf32>, vector<8x8xf32>, vector<8x8xf32> -> vector<8x8xf32>
    %cst_47 = arith.constant 0.353553385 : f32
    %138 = vector.broadcast %cst_47 : f32 to vector<8x8xf32>
    %139 = arith.mulf %137, %138 : vector<8x8xf32>
    %cst_48 = arith.constant dense<0xFF800000> : vector<8xf32>
    %140 = vector.multi_reduction <maximumf>, %139, %cst_48 [1] : vector<8x8xf32> to vector<8xf32>
    %141 = vector.shape_cast %140 : vector<8xf32> to vector<8x1xf32>
    %142 = vector.broadcast %141 : vector<8x1xf32> to vector<8x8xf32>
    %143 = arith.subf %139, %142 : vector<8x8xf32>
    %144 = math.exp %143 : vector<8x8xf32>
    %cst_49 = arith.constant dense<0.000000e+00> : vector<8xf32>
    %145 = vector.multi_reduction <add>, %144, %cst_49 [1] : vector<8x8xf32> to vector<8xf32>
    %146 = vector.shape_cast %145 : vector<8xf32> to vector<8x1xf32>
    %147 = tpu.reciprocal %146 {approx = true} : vector<8x1xf32> -> vector<8x1xf32>
    %148 = vector.broadcast %147 : vector<8x1xf32> to vector<8x8xf32>
    %149 = arith.mulf %144, %148 : vector<8x8xf32>
    %cst_50 = arith.constant dense<0.000000e+00> : vector<8x8xf32>
    %150 = tpu.matmul %149, %136, %cst_50 {dimension_numbers = #tpu.dot_dimension_numbers<[1], [0], [0], [1], [0, 0, 1, 1], [], []>} : vector<8x8xf32>, vector<8x8xf32>, vector<8x8xf32> -> vector<8x8xf32>
    %151 = vector.extract_strided_slice %114 {offsets = [0, 16], sizes = [8, 8], strides = [1, 1]} : vector<8x32xf32> to vector<8x8xf32>
    %152 = vector.extract_strided_slice %115 {offsets = [0, 16], sizes = [8, 8], strides = [1, 1]} : vector<8x32xf32> to vector<8x8xf32>
    %153 = vector.extract_strided_slice %116 {offsets = [0, 16], sizes = [8, 8], strides = [1, 1]} : vector<8x32xf32> to vector<8x8xf32>
    %cst_51 = arith.constant dense<0.000000e+00> : vector<8x8xf32>
    %154 = tpu.matmul %151, %152, %cst_51 {dimension_numbers = #tpu.dot_dimension_numbers<[1], [1], [0], [0], [0, 0, 1, 0], [], []>} : vector<8x8xf32>, vector<8x8xf32>, vector<8x8xf32> -> vector<8x8xf32>
    %cst_52 = arith.constant 0.353553385 : f32
    %155 = vector.broadcast %cst_52 : f32 to vector<8x8xf32>
    %156 = arith.mulf %154, %155 : vector<8x8xf32>
    %cst_53 = arith.constant dense<0xFF800000> : vector<8xf32>
    %157 = vector.multi_reduction <maximumf>, %156, %cst_53 [1] : vector<8x8xf32> to vector<8xf32>
    %158 = vector.shape_cast %157 : vector<8xf32> to vector<8x1xf32>
    %159 = vector.broadcast %158 : vector<8x1xf32> to vector<8x8xf32>
    %160 = arith.subf %156, %159 : vector<8x8xf32>
    %161 = math.exp %160 : vector<8x8xf32>
    %cst_54 = arith.constant dense<0.000000e+00> : vector<8xf32>
    %162 = vector.multi_reduction <add>, %161, %cst_54 [1] : vector<8x8xf32> to vector<8xf32>
    %163 = vector.shape_cast %162 : vector<8xf32> to vector<8x1xf32>
    %164 = tpu.reciprocal %163 {approx = true} : vector<8x1xf32> -> vector<8x1xf32>
    %165 = vector.broadcast %164 : vector<8x1xf32> to vector<8x8xf32>
    %166 = arith.mulf %161, %165 : vector<8x8xf32>
    %cst_55 = arith.constant dense<0.000000e+00> : vector<8x8xf32>
    %167 = tpu.matmul %166, %153, %cst_55 {dimension_numbers = #tpu.dot_dimension_numbers<[1], [0], [0], [1], [0, 0, 1, 1], [], []>} : vector<8x8xf32>, vector<8x8xf32>, vector<8x8xf32> -> vector<8x8xf32>
    %168 = vector.extract_strided_slice %114 {offsets = [0, 24], sizes = [8, 8], strides = [1, 1]} : vector<8x32xf32> to vector<8x8xf32>
    %169 = vector.extract_strided_slice %115 {offsets = [0, 24], sizes = [8, 8], strides = [1, 1]} : vector<8x32xf32> to vector<8x8xf32>
    %170 = vector.extract_strided_slice %116 {offsets = [0, 24], sizes = [8, 8], strides = [1, 1]} : vector<8x32xf32> to vector<8x8xf32>
    %cst_56 = arith.constant dense<0.000000e+00> : vector<8x8xf32>
    %171 = tpu.matmul %168, %169, %cst_56 {dimension_numbers = #tpu.dot_dimension_numbers<[1], [1], [0], [0], [0, 0, 1, 0], [], []>} : vector<8x8xf32>, vector<8x8xf32>, vector<8x8xf32> -> vector<8x8xf32>
    %cst_57 = arith.constant 0.353553385 : f32
    %172 = vector.broadcast %cst_57 : f32 to vector<8x8xf32>
    %173 = arith.mulf %171, %172 : vector<8x8xf32>
    %cst_58 = arith.constant dense<0xFF800000> : vector<8xf32>
    %174 = vector.multi_reduction <maximumf>, %173, %cst_58 [1] : vector<8x8xf32> to vector<8xf32>
    %175 = vector.shape_cast %174 : vector<8xf32> to vector<8x1xf32>
    %176 = vector.broadcast %175 : vector<8x1xf32> to vector<8x8xf32>
    %177 = arith.subf %173, %176 : vector<8x8xf32>
    %178 = math.exp %177 : vector<8x8xf32>
    %cst_59 = arith.constant dense<0.000000e+00> : vector<8xf32>
    %179 = vector.multi_reduction <add>, %178, %cst_59 [1] : vector<8x8xf32> to vector<8xf32>
    %180 = vector.shape_cast %179 : vector<8xf32> to vector<8x1xf32>
    %181 = tpu.reciprocal %180 {approx = true} : vector<8x1xf32> -> vector<8x1xf32>
    %182 = vector.broadcast %181 : vector<8x1xf32> to vector<8x8xf32>
    %183 = arith.mulf %178, %182 : vector<8x8xf32>
    %cst_60 = arith.constant dense<0.000000e+00> : vector<8x8xf32>
    %184 = tpu.matmul %183, %170, %cst_60 {dimension_numbers = #tpu.dot_dimension_numbers<[1], [0], [0], [1], [0, 0, 1, 1], [], []>} : vector<8x8xf32>, vector<8x8xf32>, vector<8x8xf32> -> vector<8x8xf32>
    %185 = tpu.concatenate %133, %150, %167, %184 in 1 : vector<8x8xf32>, vector<8x8xf32>, vector<8x8xf32>, vector<8x8xf32> -> vector<8x32xf32>
    %186 = tpu.concatenate %113, %185 in 0 : vector<8x32xf32>, vector<8x32xf32> -> vector<16x32xf32>
    %c0_61 = arith.constant 0 : index
    %c0_62 = arith.constant 0 : index
    %c0_63 = arith.constant 0 : index
    %187 = vector.load %arg7[%c0_61, %c0_62, %c0_63] : memref<1x32x32xf32, #tpu.memory_space<vmem>>, vector<1x32x32xf32>
    %188 = vector.shape_cast %187 : vector<1x32x32xf32> to vector<32x32xf32>
    %cst_64 = arith.constant dense<0.000000e+00> : vector<16x32xf32>
    %189 = tpu.matmul %186, %188, %cst_64 {dimension_numbers = #tpu.dot_dimension_numbers<[1], [0], [0], [1], [0, 0, 1, 1], [], []>} : vector<16x32xf32>, vector<32x32xf32>, vector<16x32xf32> -> vector<16x32xf32>
    %190 = arith.addf %3, %189 : vector<16x32xf32>
    %c0_65 = arith.constant 0 : index
    %c0_66 = arith.constant 0 : index
    %c0_67 = arith.constant 0 : index
    %191 = vector.load %arg8[%c0_65, %c0_66, %c0_67] : memref<1x1x32xf32, #tpu.memory_space<vmem>>, vector<1x1x32xf32>
    %192 = vector.shape_cast %191 : vector<1x1x32xf32> to vector<1x32xf32>
    %193 = vector.broadcast %192 : vector<1x32xf32> to vector<16x32xf32>
    %194 = arith.addf %190, %193 : vector<16x32xf32>
    %c0_68 = arith.constant 0 : index
    %c0_69 = arith.constant 0 : index
    %c0_70 = arith.constant 0 : index
    %195 = vector.load %arg9[%c0_68, %c0_69, %c0_70] : memref<1x1x32xf32, #tpu.memory_space<vmem>>, vector<1x1x32xf32>
    %196 = vector.shape_cast %195 : vector<1x1x32xf32> to vector<1x32xf32>
    %c0_71 = arith.constant 0 : index
    %c0_72 = arith.constant 0 : index
    %c0_73 = arith.constant 0 : index
    %197 = vector.load %arg10[%c0_71, %c0_72, %c0_73] : memref<1x1x32xf32, #tpu.memory_space<vmem>>, vector<1x1x32xf32>
    %198 = vector.shape_cast %197 : vector<1x1x32xf32> to vector<1x32xf32>
    %cst_74 = arith.constant dense<0.000000e+00> : vector<16xf32>
    %199 = vector.multi_reduction <add>, %194, %cst_74 [1] : vector<16x32xf32> to vector<16xf32>
    %200 = vector.shape_cast %199 : vector<16xf32> to vector<16x1xf32>
    %cst_75 = arith.constant 3.200000e+01 : f32
    %201 = vector.broadcast %cst_75 : f32 to vector<16x1xf32>
    %202 = arith.divf %200, %201 : vector<16x1xf32>
    %203 = vector.broadcast %202 : vector<16x1xf32> to vector<16x32xf32>
    %204 = arith.subf %194, %203 : vector<16x32xf32>
    %205 = arith.mulf %204, %204 : vector<16x32xf32>
    %cst_76 = arith.constant dense<0.000000e+00> : vector<16xf32>
    %206 = vector.multi_reduction <add>, %205, %cst_76 [1] : vector<16x32xf32> to vector<16xf32>
    %207 = vector.shape_cast %206 : vector<16xf32> to vector<16x1xf32>
    %cst_77 = arith.constant 0.0322580636 : f32
    %208 = vector.broadcast %cst_77 : f32 to vector<16x1xf32>
    %209 = arith.mulf %207, %208 : vector<16x1xf32>
    %210 = math.sqrt %209 : vector<16x1xf32>
    %cst_78 = arith.constant 9.99999997E-7 : f32
    %211 = vector.broadcast %cst_78 : f32 to vector<16x1xf32>
    %212 = arith.addf %210, %211 : vector<16x1xf32>
    %213 = tpu.reciprocal %212 {approx = true} : vector<16x1xf32> -> vector<16x1xf32>
    %214 = vector.broadcast %202 : vector<16x1xf32> to vector<16x32xf32>
    %215 = arith.subf %194, %214 : vector<16x32xf32>
    %216 = vector.broadcast %196 : vector<1x32xf32> to vector<16x32xf32>
    %217 = arith.mulf %216, %215 : vector<16x32xf32>
    %218 = vector.broadcast %213 : vector<16x1xf32> to vector<16x32xf32>
    %219 = arith.mulf %217, %218 : vector<16x32xf32>
    %220 = vector.broadcast %198 : vector<1x32xf32> to vector<16x32xf32>
    %221 = arith.addf %219, %220 : vector<16x32xf32>
    %c0_79 = arith.constant 0 : index
    %c0_80 = arith.constant 0 : index
    %c0_81 = arith.constant 0 : index
    %222 = vector.load %arg11[%c0_79, %c0_80, %c0_81] : memref<1x32x32xf32, #tpu.memory_space<vmem>>, vector<1x32x32xf32>
    %223 = vector.shape_cast %222 : vector<1x32x32xf32> to vector<32x32xf32>
    %cst_82 = arith.constant dense<0.000000e+00> : vector<16x32xf32>
    %224 = tpu.matmul %221, %223, %cst_82 {dimension_numbers = #tpu.dot_dimension_numbers<[1], [0], [0], [1], [0, 0, 1, 1], [], []>} : vector<16x32xf32>, vector<32x32xf32>, vector<16x32xf32> -> vector<16x32xf32>
    %c0_83 = arith.constant 0 : index
    %c0_84 = arith.constant 0 : index
    %c0_85 = arith.constant 0 : index
    %225 = vector.load %arg12[%c0_83, %c0_84, %c0_85] : memref<1x1x32xf32, #tpu.memory_space<vmem>>, vector<1x1x32xf32>
    %226 = vector.shape_cast %225 : vector<1x1x32xf32> to vector<1x32xf32>
    %227 = vector.broadcast %226 : vector<1x32xf32> to vector<16x32xf32>
    %228 = arith.addf %224, %227 : vector<16x32xf32>
    %c0_86 = arith.constant 0 : index
    %c0_87 = arith.constant 0 : index
    %c0_88 = arith.constant 0 : index
    %229 = vector.load %arg13[%c0_86, %c0_87, %c0_88] : memref<1x32x64xf32, #tpu.memory_space<vmem>>, vector<1x32x64xf32>
    %230 = vector.shape_cast %229 : vector<1x32x64xf32> to vector<32x64xf32>
    %cst_89 = arith.constant dense<0.000000e+00> : vector<16x64xf32>
    %231 = tpu.matmul %4, %230, %cst_89 {dimension_numbers = #tpu.dot_dimension_numbers<[1], [0], [0], [1], [0, 0, 1, 1], [], []>} : vector<16x32xf32>, vector<32x64xf32>, vector<16x64xf32> -> vector<16x64xf32>
    %c0_90 = arith.constant 0 : index
    %c0_91 = arith.constant 0 : index
    %c0_92 = arith.constant 0 : index
    %232 = vector.load %arg14[%c0_90, %c0_91, %c0_92] : memref<1x1x64xf32, #tpu.memory_space<vmem>>, vector<1x1x64xf32>
    %233 = vector.shape_cast %232 : vector<1x1x64xf32> to vector<1x64xf32>
    %234 = vector.broadcast %233 : vector<1x64xf32> to vector<16x64xf32>
    %235 = arith.addf %231, %234 : vector<16x64xf32>
    %236 = vector.extract_strided_slice %235 {offsets = [0, 0], sizes = [16, 32], strides = [1, 1]} : vector<16x64xf32> to vector<16x32xf32>
    %237 = vector.extract_strided_slice %235 {offsets = [0, 32], sizes = [16, 32], strides = [1, 1]} : vector<16x64xf32> to vector<16x32xf32>
    %238 = vector.extract_strided_slice %228 {offsets = [0, 0], sizes = [8, 32], strides = [1, 1]} : vector<16x32xf32> to vector<8x32xf32>
    %239 = vector.extract_strided_slice %236 {offsets = [0, 0], sizes = [8, 32], strides = [1, 1]} : vector<16x32xf32> to vector<8x32xf32>
    %240 = vector.extract_strided_slice %237 {offsets = [0, 0], sizes = [8, 32], strides = [1, 1]} : vector<16x32xf32> to vector<8x32xf32>
    %241 = vector.extract_strided_slice %238 {offsets = [0, 0], sizes = [8, 8], strides = [1, 1]} : vector<8x32xf32> to vector<8x8xf32>
    %242 = vector.extract_strided_slice %239 {offsets = [0, 0], sizes = [8, 8], strides = [1, 1]} : vector<8x32xf32> to vector<8x8xf32>
    %243 = vector.extract_strided_slice %240 {offsets = [0, 0], sizes = [8, 8], strides = [1, 1]} : vector<8x32xf32> to vector<8x8xf32>
    %cst_93 = arith.constant dense<0.000000e+00> : vector<8x8xf32>
    %244 = tpu.matmul %241, %242, %cst_93 {dimension_numbers = #tpu.dot_dimension_numbers<[1], [1], [0], [0], [0, 0, 1, 0], [], []>} : vector<8x8xf32>, vector<8x8xf32>, vector<8x8xf32> -> vector<8x8xf32>
    %cst_94 = arith.constant 0.353553385 : f32
    %245 = vector.broadcast %cst_94 : f32 to vector<8x8xf32>
    %246 = arith.mulf %244, %245 : vector<8x8xf32>
    %cst_95 = arith.constant dense<0xFF800000> : vector<8xf32>
    %247 = vector.multi_reduction <maximumf>, %246, %cst_95 [1] : vector<8x8xf32> to vector<8xf32>
    %248 = vector.shape_cast %247 : vector<8xf32> to vector<8x1xf32>
    %249 = vector.broadcast %248 : vector<8x1xf32> to vector<8x8xf32>
    %250 = arith.subf %246, %249 : vector<8x8xf32>
    %251 = math.exp %250 : vector<8x8xf32>
    %cst_96 = arith.constant dense<0.000000e+00> : vector<8xf32>
    %252 = vector.multi_reduction <add>, %251, %cst_96 [1] : vector<8x8xf32> to vector<8xf32>
    %253 = vector.shape_cast %252 : vector<8xf32> to vector<8x1xf32>
    %254 = tpu.reciprocal %253 {approx = true} : vector<8x1xf32> -> vector<8x1xf32>
    %255 = vector.broadcast %254 : vector<8x1xf32> to vector<8x8xf32>
    %256 = arith.mulf %251, %255 : vector<8x8xf32>
    %cst_97 = arith.constant dense<0.000000e+00> : vector<8x8xf32>
    %257 = tpu.matmul %256, %243, %cst_97 {dimension_numbers = #tpu.dot_dimension_numbers<[1], [0], [0], [1], [0, 0, 1, 1], [], []>} : vector<8x8xf32>, vector<8x8xf32>, vector<8x8xf32> -> vector<8x8xf32>
    %258 = vector.extract_strided_slice %238 {offsets = [0, 8], sizes = [8, 8], strides = [1, 1]} : vector<8x32xf32> to vector<8x8xf32>
    %259 = vector.extract_strided_slice %239 {offsets = [0, 8], sizes = [8, 8], strides = [1, 1]} : vector<8x32xf32> to vector<8x8xf32>
    %260 = vector.extract_strided_slice %240 {offsets = [0, 8], sizes = [8, 8], strides = [1, 1]} : vector<8x32xf32> to vector<8x8xf32>
    %cst_98 = arith.constant dense<0.000000e+00> : vector<8x8xf32>
    %261 = tpu.matmul %258, %259, %cst_98 {dimension_numbers = #tpu.dot_dimension_numbers<[1], [1], [0], [0], [0, 0, 1, 0], [], []>} : vector<8x8xf32>, vector<8x8xf32>, vector<8x8xf32> -> vector<8x8xf32>
    %cst_99 = arith.constant 0.353553385 : f32
    %262 = vector.broadcast %cst_99 : f32 to vector<8x8xf32>
    %263 = arith.mulf %261, %262 : vector<8x8xf32>
    %cst_100 = arith.constant dense<0xFF800000> : vector<8xf32>
    %264 = vector.multi_reduction <maximumf>, %263, %cst_100 [1] : vector<8x8xf32> to vector<8xf32>
    %265 = vector.shape_cast %264 : vector<8xf32> to vector<8x1xf32>
    %266 = vector.broadcast %265 : vector<8x1xf32> to vector<8x8xf32>
    %267 = arith.subf %263, %266 : vector<8x8xf32>
    %268 = math.exp %267 : vector<8x8xf32>
    %cst_101 = arith.constant dense<0.000000e+00> : vector<8xf32>
    %269 = vector.multi_reduction <add>, %268, %cst_101 [1] : vector<8x8xf32> to vector<8xf32>
    %270 = vector.shape_cast %269 : vector<8xf32> to vector<8x1xf32>
    %271 = tpu.reciprocal %270 {approx = true} : vector<8x1xf32> -> vector<8x1xf32>
    %272 = vector.broadcast %271 : vector<8x1xf32> to vector<8x8xf32>
    %273 = arith.mulf %268, %272 : vector<8x8xf32>
    %cst_102 = arith.constant dense<0.000000e+00> : vector<8x8xf32>
    %274 = tpu.matmul %273, %260, %cst_102 {dimension_numbers = #tpu.dot_dimension_numbers<[1], [0], [0], [1], [0, 0, 1, 1], [], []>} : vector<8x8xf32>, vector<8x8xf32>, vector<8x8xf32> -> vector<8x8xf32>
    %275 = vector.extract_strided_slice %238 {offsets = [0, 16], sizes = [8, 8], strides = [1, 1]} : vector<8x32xf32> to vector<8x8xf32>
    %276 = vector.extract_strided_slice %239 {offsets = [0, 16], sizes = [8, 8], strides = [1, 1]} : vector<8x32xf32> to vector<8x8xf32>
    %277 = vector.extract_strided_slice %240 {offsets = [0, 16], sizes = [8, 8], strides = [1, 1]} : vector<8x32xf32> to vector<8x8xf32>
    %cst_103 = arith.constant dense<0.000000e+00> : vector<8x8xf32>
    %278 = tpu.matmul %275, %276, %cst_103 {dimension_numbers = #tpu.dot_dimension_numbers<[1], [1], [0], [0], [0, 0, 1, 0], [], []>} : vector<8x8xf32>, vector<8x8xf32>, vector<8x8xf32> -> vector<8x8xf32>
    %cst_104 = arith.constant 0.353553385 : f32
    %279 = vector.broadcast %cst_104 : f32 to vector<8x8xf32>
    %280 = arith.mulf %278, %279 : vector<8x8xf32>
    %cst_105 = arith.constant dense<0xFF800000> : vector<8xf32>
    %281 = vector.multi_reduction <maximumf>, %280, %cst_105 [1] : vector<8x8xf32> to vector<8xf32>
    %282 = vector.shape_cast %281 : vector<8xf32> to vector<8x1xf32>
    %283 = vector.broadcast %282 : vector<8x1xf32> to vector<8x8xf32>
    %284 = arith.subf %280, %283 : vector<8x8xf32>
    %285 = math.exp %284 : vector<8x8xf32>
    %cst_106 = arith.constant dense<0.000000e+00> : vector<8xf32>
    %286 = vector.multi_reduction <add>, %285, %cst_106 [1] : vector<8x8xf32> to vector<8xf32>
    %287 = vector.shape_cast %286 : vector<8xf32> to vector<8x1xf32>
    %288 = tpu.reciprocal %287 {approx = true} : vector<8x1xf32> -> vector<8x1xf32>
    %289 = vector.broadcast %288 : vector<8x1xf32> to vector<8x8xf32>
    %290 = arith.mulf %285, %289 : vector<8x8xf32>
    %cst_107 = arith.constant dense<0.000000e+00> : vector<8x8xf32>
    %291 = tpu.matmul %290, %277, %cst_107 {dimension_numbers = #tpu.dot_dimension_numbers<[1], [0], [0], [1], [0, 0, 1, 1], [], []>} : vector<8x8xf32>, vector<8x8xf32>, vector<8x8xf32> -> vector<8x8xf32>
    %292 = vector.extract_strided_slice %238 {offsets = [0, 24], sizes = [8, 8], strides = [1, 1]} : vector<8x32xf32> to vector<8x8xf32>
    %293 = vector.extract_strided_slice %239 {offsets = [0, 24], sizes = [8, 8], strides = [1, 1]} : vector<8x32xf32> to vector<8x8xf32>
    %294 = vector.extract_strided_slice %240 {offsets = [0, 24], sizes = [8, 8], strides = [1, 1]} : vector<8x32xf32> to vector<8x8xf32>
    %cst_108 = arith.constant dense<0.000000e+00> : vector<8x8xf32>
    %295 = tpu.matmul %292, %293, %cst_108 {dimension_numbers = #tpu.dot_dimension_numbers<[1], [1], [0], [0], [0, 0, 1, 0], [], []>} : vector<8x8xf32>, vector<8x8xf32>, vector<8x8xf32> -> vector<8x8xf32>
    %cst_109 = arith.constant 0.353553385 : f32
    %296 = vector.broadcast %cst_109 : f32 to vector<8x8xf32>
    %297 = arith.mulf %295, %296 : vector<8x8xf32>
    %cst_110 = arith.constant dense<0xFF800000> : vector<8xf32>
    %298 = vector.multi_reduction <maximumf>, %297, %cst_110 [1] : vector<8x8xf32> to vector<8xf32>
    %299 = vector.shape_cast %298 : vector<8xf32> to vector<8x1xf32>
    %300 = vector.broadcast %299 : vector<8x1xf32> to vector<8x8xf32>
    %301 = arith.subf %297, %300 : vector<8x8xf32>
    %302 = math.exp %301 : vector<8x8xf32>
    %cst_111 = arith.constant dense<0.000000e+00> : vector<8xf32>
    %303 = vector.multi_reduction <add>, %302, %cst_111 [1] : vector<8x8xf32> to vector<8xf32>
    %304 = vector.shape_cast %303 : vector<8xf32> to vector<8x1xf32>
    %305 = tpu.reciprocal %304 {approx = true} : vector<8x1xf32> -> vector<8x1xf32>
    %306 = vector.broadcast %305 : vector<8x1xf32> to vector<8x8xf32>
    %307 = arith.mulf %302, %306 : vector<8x8xf32>
    %cst_112 = arith.constant dense<0.000000e+00> : vector<8x8xf32>
    %308 = tpu.matmul %307, %294, %cst_112 {dimension_numbers = #tpu.dot_dimension_numbers<[1], [0], [0], [1], [0, 0, 1, 1], [], []>} : vector<8x8xf32>, vector<8x8xf32>, vector<8x8xf32> -> vector<8x8xf32>
    %309 = tpu.concatenate %257, %274, %291, %308 in 1 : vector<8x8xf32>, vector<8x8xf32>, vector<8x8xf32>, vector<8x8xf32> -> vector<8x32xf32>
    %310 = vector.extract_strided_slice %228 {offsets = [8, 0], sizes = [8, 32], strides = [1, 1]} : vector<16x32xf32> to vector<8x32xf32>
    %311 = vector.extract_strided_slice %236 {offsets = [8, 0], sizes = [8, 32], strides = [1, 1]} : vector<16x32xf32> to vector<8x32xf32>
    %312 = vector.extract_strided_slice %237 {offsets = [8, 0], sizes = [8, 32], strides = [1, 1]} : vector<16x32xf32> to vector<8x32xf32>
    %313 = vector.extract_strided_slice %310 {offsets = [0, 0], sizes = [8, 8], strides = [1, 1]} : vector<8x32xf32> to vector<8x8xf32>
    %314 = vector.extract_strided_slice %311 {offsets = [0, 0], sizes = [8, 8], strides = [1, 1]} : vector<8x32xf32> to vector<8x8xf32>
    %315 = vector.extract_strided_slice %312 {offsets = [0, 0], sizes = [8, 8], strides = [1, 1]} : vector<8x32xf32> to vector<8x8xf32>
    %cst_113 = arith.constant dense<0.000000e+00> : vector<8x8xf32>
    %316 = tpu.matmul %313, %314, %cst_113 {dimension_numbers = #tpu.dot_dimension_numbers<[1], [1], [0], [0], [0, 0, 1, 0], [], []>} : vector<8x8xf32>, vector<8x8xf32>, vector<8x8xf32> -> vector<8x8xf32>
    %cst_114 = arith.constant 0.353553385 : f32
    %317 = vector.broadcast %cst_114 : f32 to vector<8x8xf32>
    %318 = arith.mulf %316, %317 : vector<8x8xf32>
    %cst_115 = arith.constant dense<0xFF800000> : vector<8xf32>
    %319 = vector.multi_reduction <maximumf>, %318, %cst_115 [1] : vector<8x8xf32> to vector<8xf32>
    %320 = vector.shape_cast %319 : vector<8xf32> to vector<8x1xf32>
    %321 = vector.broadcast %320 : vector<8x1xf32> to vector<8x8xf32>
    %322 = arith.subf %318, %321 : vector<8x8xf32>
    %323 = math.exp %322 : vector<8x8xf32>
    %cst_116 = arith.constant dense<0.000000e+00> : vector<8xf32>
    %324 = vector.multi_reduction <add>, %323, %cst_116 [1] : vector<8x8xf32> to vector<8xf32>
    %325 = vector.shape_cast %324 : vector<8xf32> to vector<8x1xf32>
    %326 = tpu.reciprocal %325 {approx = true} : vector<8x1xf32> -> vector<8x1xf32>
    %327 = vector.broadcast %326 : vector<8x1xf32> to vector<8x8xf32>
    %328 = arith.mulf %323, %327 : vector<8x8xf32>
    %cst_117 = arith.constant dense<0.000000e+00> : vector<8x8xf32>
    %329 = tpu.matmul %328, %315, %cst_117 {dimension_numbers = #tpu.dot_dimension_numbers<[1], [0], [0], [1], [0, 0, 1, 1], [], []>} : vector<8x8xf32>, vector<8x8xf32>, vector<8x8xf32> -> vector<8x8xf32>
    %330 = vector.extract_strided_slice %310 {offsets = [0, 8], sizes = [8, 8], strides = [1, 1]} : vector<8x32xf32> to vector<8x8xf32>
    %331 = vector.extract_strided_slice %311 {offsets = [0, 8], sizes = [8, 8], strides = [1, 1]} : vector<8x32xf32> to vector<8x8xf32>
    %332 = vector.extract_strided_slice %312 {offsets = [0, 8], sizes = [8, 8], strides = [1, 1]} : vector<8x32xf32> to vector<8x8xf32>
    %cst_118 = arith.constant dense<0.000000e+00> : vector<8x8xf32>
    %333 = tpu.matmul %330, %331, %cst_118 {dimension_numbers = #tpu.dot_dimension_numbers<[1], [1], [0], [0], [0, 0, 1, 0], [], []>} : vector<8x8xf32>, vector<8x8xf32>, vector<8x8xf32> -> vector<8x8xf32>
    %cst_119 = arith.constant 0.353553385 : f32
    %334 = vector.broadcast %cst_119 : f32 to vector<8x8xf32>
    %335 = arith.mulf %333, %334 : vector<8x8xf32>
    %cst_120 = arith.constant dense<0xFF800000> : vector<8xf32>
    %336 = vector.multi_reduction <maximumf>, %335, %cst_120 [1] : vector<8x8xf32> to vector<8xf32>
    %337 = vector.shape_cast %336 : vector<8xf32> to vector<8x1xf32>
    %338 = vector.broadcast %337 : vector<8x1xf32> to vector<8x8xf32>
    %339 = arith.subf %335, %338 : vector<8x8xf32>
    %340 = math.exp %339 : vector<8x8xf32>
    %cst_121 = arith.constant dense<0.000000e+00> : vector<8xf32>
    %341 = vector.multi_reduction <add>, %340, %cst_121 [1] : vector<8x8xf32> to vector<8xf32>
    %342 = vector.shape_cast %341 : vector<8xf32> to vector<8x1xf32>
    %343 = tpu.reciprocal %342 {approx = true} : vector<8x1xf32> -> vector<8x1xf32>
    %344 = vector.broadcast %343 : vector<8x1xf32> to vector<8x8xf32>
    %345 = arith.mulf %340, %344 : vector<8x8xf32>
    %cst_122 = arith.constant dense<0.000000e+00> : vector<8x8xf32>
    %346 = tpu.matmul %345, %332, %cst_122 {dimension_numbers = #tpu.dot_dimension_numbers<[1], [0], [0], [1], [0, 0, 1, 1], [], []>} : vector<8x8xf32>, vector<8x8xf32>, vector<8x8xf32> -> vector<8x8xf32>
    %347 = vector.extract_strided_slice %310 {offsets = [0, 16], sizes = [8, 8], strides = [1, 1]} : vector<8x32xf32> to vector<8x8xf32>
    %348 = vector.extract_strided_slice %311 {offsets = [0, 16], sizes = [8, 8], strides = [1, 1]} : vector<8x32xf32> to vector<8x8xf32>
    %349 = vector.extract_strided_slice %312 {offsets = [0, 16], sizes = [8, 8], strides = [1, 1]} : vector<8x32xf32> to vector<8x8xf32>
    %cst_123 = arith.constant dense<0.000000e+00> : vector<8x8xf32>
    %350 = tpu.matmul %347, %348, %cst_123 {dimension_numbers = #tpu.dot_dimension_numbers<[1], [1], [0], [0], [0, 0, 1, 0], [], []>} : vector<8x8xf32>, vector<8x8xf32>, vector<8x8xf32> -> vector<8x8xf32>
    %cst_124 = arith.constant 0.353553385 : f32
    %351 = vector.broadcast %cst_124 : f32 to vector<8x8xf32>
    %352 = arith.mulf %350, %351 : vector<8x8xf32>
    %cst_125 = arith.constant dense<0xFF800000> : vector<8xf32>
    %353 = vector.multi_reduction <maximumf>, %352, %cst_125 [1] : vector<8x8xf32> to vector<8xf32>
    %354 = vector.shape_cast %353 : vector<8xf32> to vector<8x1xf32>
    %355 = vector.broadcast %354 : vector<8x1xf32> to vector<8x8xf32>
    %356 = arith.subf %352, %355 : vector<8x8xf32>
    %357 = math.exp %356 : vector<8x8xf32>
    %cst_126 = arith.constant dense<0.000000e+00> : vector<8xf32>
    %358 = vector.multi_reduction <add>, %357, %cst_126 [1] : vector<8x8xf32> to vector<8xf32>
    %359 = vector.shape_cast %358 : vector<8xf32> to vector<8x1xf32>
    %360 = tpu.reciprocal %359 {approx = true} : vector<8x1xf32> -> vector<8x1xf32>
    %361 = vector.broadcast %360 : vector<8x1xf32> to vector<8x8xf32>
    %362 = arith.mulf %357, %361 : vector<8x8xf32>
    %cst_127 = arith.constant dense<0.000000e+00> : vector<8x8xf32>
    %363 = tpu.matmul %362, %349, %cst_127 {dimension_numbers = #tpu.dot_dimension_numbers<[1], [0], [0], [1], [0, 0, 1, 1], [], []>} : vector<8x8xf32>, vector<8x8xf32>, vector<8x8xf32> -> vector<8x8xf32>
    %364 = vector.extract_strided_slice %310 {offsets = [0, 24], sizes = [8, 8], strides = [1, 1]} : vector<8x32xf32> to vector<8x8xf32>
    %365 = vector.extract_strided_slice %311 {offsets = [0, 24], sizes = [8, 8], strides = [1, 1]} : vector<8x32xf32> to vector<8x8xf32>
    %366 = vector.extract_strided_slice %312 {offsets = [0, 24], sizes = [8, 8], strides = [1, 1]} : vector<8x32xf32> to vector<8x8xf32>
    %cst_128 = arith.constant dense<0.000000e+00> : vector<8x8xf32>
    %367 = tpu.matmul %364, %365, %cst_128 {dimension_numbers = #tpu.dot_dimension_numbers<[1], [1], [0], [0], [0, 0, 1, 0], [], []>} : vector<8x8xf32>, vector<8x8xf32>, vector<8x8xf32> -> vector<8x8xf32>
    %cst_129 = arith.constant 0.353553385 : f32
    %368 = vector.broadcast %cst_129 : f32 to vector<8x8xf32>
    %369 = arith.mulf %367, %368 : vector<8x8xf32>
    %cst_130 = arith.constant dense<0xFF800000> : vector<8xf32>
    %370 = vector.multi_reduction <maximumf>, %369, %cst_130 [1] : vector<8x8xf32> to vector<8xf32>
    %371 = vector.shape_cast %370 : vector<8xf32> to vector<8x1xf32>
    %372 = vector.broadcast %371 : vector<8x1xf32> to vector<8x8xf32>
    %373 = arith.subf %369, %372 : vector<8x8xf32>
    %374 = math.exp %373 : vector<8x8xf32>
    %cst_131 = arith.constant dense<0.000000e+00> : vector<8xf32>
    %375 = vector.multi_reduction <add>, %374, %cst_131 [1] : vector<8x8xf32> to vector<8xf32>
    %376 = vector.shape_cast %375 : vector<8xf32> to vector<8x1xf32>
    %377 = tpu.reciprocal %376 {approx = true} : vector<8x1xf32> -> vector<8x1xf32>
    %378 = vector.broadcast %377 : vector<8x1xf32> to vector<8x8xf32>
    %379 = arith.mulf %374, %378 : vector<8x8xf32>
    %cst_132 = arith.constant dense<0.000000e+00> : vector<8x8xf32>
    %380 = tpu.matmul %379, %366, %cst_132 {dimension_numbers = #tpu.dot_dimension_numbers<[1], [0], [0], [1], [0, 0, 1, 1], [], []>} : vector<8x8xf32>, vector<8x8xf32>, vector<8x8xf32> -> vector<8x8xf32>
    %381 = tpu.concatenate %329, %346, %363, %380 in 1 : vector<8x8xf32>, vector<8x8xf32>, vector<8x8xf32>, vector<8x8xf32> -> vector<8x32xf32>
    %382 = tpu.concatenate %309, %381 in 0 : vector<8x32xf32>, vector<8x32xf32> -> vector<16x32xf32>
    %c0_133 = arith.constant 0 : index
    %c0_134 = arith.constant 0 : index
    %c0_135 = arith.constant 0 : index
    %383 = vector.load %arg15[%c0_133, %c0_134, %c0_135] : memref<1x32x32xf32, #tpu.memory_space<vmem>>, vector<1x32x32xf32>
    %384 = vector.shape_cast %383 : vector<1x32x32xf32> to vector<32x32xf32>
    %cst_136 = arith.constant dense<0.000000e+00> : vector<16x32xf32>
    %385 = tpu.matmul %382, %384, %cst_136 {dimension_numbers = #tpu.dot_dimension_numbers<[1], [0], [0], [1], [0, 0, 1, 1], [], []>} : vector<16x32xf32>, vector<32x32xf32>, vector<16x32xf32> -> vector<16x32xf32>
    %386 = arith.addf %194, %385 : vector<16x32xf32>
    %c0_137 = arith.constant 0 : index
    %c0_138 = arith.constant 0 : index
    %c0_139 = arith.constant 0 : index
    %387 = vector.load %arg16[%c0_137, %c0_138, %c0_139] : memref<1x1x32xf32, #tpu.memory_space<vmem>>, vector<1x1x32xf32>
    %388 = vector.shape_cast %387 : vector<1x1x32xf32> to vector<1x32xf32>
    %389 = vector.broadcast %388 : vector<1x32xf32> to vector<16x32xf32>
    %390 = arith.addf %386, %389 : vector<16x32xf32>
    %c0_140 = arith.constant 0 : index
    %c0_141 = arith.constant 0 : index
    %c0_142 = arith.constant 0 : index
    %391 = vector.load %arg17[%c0_140, %c0_141, %c0_142] : memref<1x1x32xf32, #tpu.memory_space<vmem>>, vector<1x1x32xf32>
    %392 = vector.shape_cast %391 : vector<1x1x32xf32> to vector<1x32xf32>
    %c0_143 = arith.constant 0 : index
    %c0_144 = arith.constant 0 : index
    %c0_145 = arith.constant 0 : index
    %393 = vector.load %arg18[%c0_143, %c0_144, %c0_145] : memref<1x1x32xf32, #tpu.memory_space<vmem>>, vector<1x1x32xf32>
    %394 = vector.shape_cast %393 : vector<1x1x32xf32> to vector<1x32xf32>
    %cst_146 = arith.constant dense<0.000000e+00> : vector<16xf32>
    %395 = vector.multi_reduction <add>, %390, %cst_146 [1] : vector<16x32xf32> to vector<16xf32>
    %396 = vector.shape_cast %395 : vector<16xf32> to vector<16x1xf32>
    %cst_147 = arith.constant 3.200000e+01 : f32
    %397 = vector.broadcast %cst_147 : f32 to vector<16x1xf32>
    %398 = arith.divf %396, %397 : vector<16x1xf32>
    %399 = vector.broadcast %398 : vector<16x1xf32> to vector<16x32xf32>
    %400 = arith.subf %390, %399 : vector<16x32xf32>
    %401 = arith.mulf %400, %400 : vector<16x32xf32>
    %cst_148 = arith.constant dense<0.000000e+00> : vector<16xf32>
    %402 = vector.multi_reduction <add>, %401, %cst_148 [1] : vector<16x32xf32> to vector<16xf32>
    %403 = vector.shape_cast %402 : vector<16xf32> to vector<16x1xf32>
    %cst_149 = arith.constant 0.0322580636 : f32
    %404 = vector.broadcast %cst_149 : f32 to vector<16x1xf32>
    %405 = arith.mulf %403, %404 : vector<16x1xf32>
    %406 = math.sqrt %405 : vector<16x1xf32>
    %cst_150 = arith.constant 9.99999997E-7 : f32
    %407 = vector.broadcast %cst_150 : f32 to vector<16x1xf32>
    %408 = arith.addf %406, %407 : vector<16x1xf32>
    %409 = tpu.reciprocal %408 {approx = true} : vector<16x1xf32> -> vector<16x1xf32>
    %410 = vector.broadcast %398 : vector<16x1xf32> to vector<16x32xf32>
    %411 = arith.subf %390, %410 : vector<16x32xf32>
    %412 = vector.broadcast %392 : vector<1x32xf32> to vector<16x32xf32>
    %413 = arith.mulf %412, %411 : vector<16x32xf32>
    %414 = vector.broadcast %409 : vector<16x1xf32> to vector<16x32xf32>
    %415 = arith.mulf %413, %414 : vector<16x32xf32>
    %416 = vector.broadcast %394 : vector<1x32xf32> to vector<16x32xf32>
    %417 = arith.addf %415, %416 : vector<16x32xf32>
    %c0_151 = arith.constant 0 : index
    %c0_152 = arith.constant 0 : index
    %c0_153 = arith.constant 0 : index
    %418 = vector.load %arg19[%c0_151, %c0_152, %c0_153] : memref<1x32x2048xf32, #tpu.memory_space<vmem>>, vector<1x32x2048xf32>
    %419 = vector.shape_cast %418 : vector<1x32x2048xf32> to vector<32x2048xf32>
    %cst_154 = arith.constant dense<0.000000e+00> : vector<16x2048xf32>
    %420 = tpu.matmul %417, %419, %cst_154 {dimension_numbers = #tpu.dot_dimension_numbers<[1], [0], [0], [1], [0, 0, 1, 1], [], []>} : vector<16x32xf32>, vector<32x2048xf32>, vector<16x2048xf32> -> vector<16x2048xf32>
    %c0_155 = arith.constant 0 : index
    %c0_156 = arith.constant 0 : index
    %c0_157 = arith.constant 0 : index
    %421 = vector.load %arg20[%c0_155, %c0_156, %c0_157] : memref<1x1x2048xf32, #tpu.memory_space<vmem>>, vector<1x1x2048xf32>
    %422 = vector.shape_cast %421 : vector<1x1x2048xf32> to vector<1x2048xf32>
    %423 = vector.broadcast %422 : vector<1x2048xf32> to vector<16x2048xf32>
    %424 = arith.addf %420, %423 : vector<16x2048xf32>
    %cst_158 = arith.constant 0.000000e+00 : f32
    %425 = vector.broadcast %cst_158 : f32 to vector<16x2048xf32>
    %426 = arith.maximumf %424, %425 : vector<16x2048xf32>
    %c0_159 = arith.constant 0 : index
    %c0_160 = arith.constant 0 : index
    %c0_161 = arith.constant 0 : index
    %427 = vector.load %arg21[%c0_159, %c0_160, %c0_161] : memref<1x2048x32xf32, #tpu.memory_space<vmem>>, vector<1x2048x32xf32>
    %428 = vector.shape_cast %427 : vector<1x2048x32xf32> to vector<2048x32xf32>
    %cst_162 = arith.constant dense<0.000000e+00> : vector<16x32xf32>
    %429 = tpu.matmul %426, %428, %cst_162 {dimension_numbers = #tpu.dot_dimension_numbers<[1], [0], [0], [1], [0, 0, 1, 1], [], []>} : vector<16x2048xf32>, vector<2048x32xf32>, vector<16x32xf32> -> vector<16x32xf32>
    %430 = arith.addf %390, %429 : vector<16x32xf32>
    %c0_163 = arith.constant 0 : index
    %c0_164 = arith.constant 0 : index
    %c0_165 = arith.constant 0 : index
    %431 = vector.load %arg22[%c0_163, %c0_164, %c0_165] : memref<1x1x32xf32, #tpu.memory_space<vmem>>, vector<1x1x32xf32>
    %432 = vector.shape_cast %431 : vector<1x1x32xf32> to vector<1x32xf32>
    %433 = vector.broadcast %432 : vector<1x32xf32> to vector<16x32xf32>
    %434 = arith.addf %430, %433 : vector<16x32xf32>
    %c0_166 = arith.constant 0 : index
    %c0_167 = arith.constant 0 : index
    %435 = vector.load %arg28[%c0_166, %c0_167] : memref<16x32xf32, #tpu.memory_space<vmem>>, vector<16x32xf32>
    tpu.vector_store %arg28[%c0_166, %c0_167], %434 {strides = array<i32>} : memref<16x32xf32, #tpu.memory_space<vmem>>, vector<16x32xf32>,
    %c1_i32 = arith.constant 1 : i32
    %436 = arith.cmpi eq, %arg0, %c1_i32 : i32
    %437 = arith.extui %436 : i1 to i32
    %c0_i32_168 = arith.constant 0 : i32
    %438 = arith.cmpi ne, %437, %c0_i32_168 : i32
    scf.if %438 {
      %c0_169 = arith.constant 0 : index
      %c0_170 = arith.constant 0 : index
      %439 = vector.load %arg23[%c0_169, %c0_170] : memref<1x32xf32, #tpu.memory_space<vmem>>, vector<1x32xf32>
      %c0_171 = arith.constant 0 : index
      %c0_172 = arith.constant 0 : index
      %440 = vector.load %arg24[%c0_171, %c0_172] : memref<1x32xf32, #tpu.memory_space<vmem>>, vector<1x32xf32>
      %cst_173 = arith.constant dense<0.000000e+00> : vector<16xf32>
      %441 = vector.multi_reduction <add>, %434, %cst_173 [1] : vector<16x32xf32> to vector<16xf32>
      %442 = vector.shape_cast %441 : vector<16xf32> to vector<16x1xf32>
      %cst_174 = arith.constant 3.200000e+01 : f32
      %443 = vector.broadcast %cst_174 : f32 to vector<16x1xf32>
      %444 = arith.divf %442, %443 : vector<16x1xf32>
      %445 = vector.broadcast %444 : vector<16x1xf32> to vector<16x32xf32>
      %446 = arith.subf %434, %445 : vector<16x32xf32>
      %447 = arith.mulf %446, %446 : vector<16x32xf32>
      %cst_175 = arith.constant dense<0.000000e+00> : vector<16xf32>
      %448 = vector.multi_reduction <add>, %447, %cst_175 [1] : vector<16x32xf32> to vector<16xf32>
      %449 = vector.shape_cast %448 : vector<16xf32> to vector<16x1xf32>
      %cst_176 = arith.constant 0.0322580636 : f32
      %450 = vector.broadcast %cst_176 : f32 to vector<16x1xf32>
      %451 = arith.mulf %449, %450 : vector<16x1xf32>
      %452 = math.sqrt %451 : vector<16x1xf32>
      %cst_177 = arith.constant 9.99999997E-7 : f32
      %453 = vector.broadcast %cst_177 : f32 to vector<16x1xf32>
      %454 = arith.addf %452, %453 : vector<16x1xf32>
      %455 = tpu.reciprocal %454 {approx = true} : vector<16x1xf32> -> vector<16x1xf32>
      %456 = vector.broadcast %444 : vector<16x1xf32> to vector<16x32xf32>
      %457 = arith.subf %434, %456 : vector<16x32xf32>
      %458 = vector.broadcast %439 : vector<1x32xf32> to vector<16x32xf32>
      %459 = arith.mulf %458, %457 : vector<16x32xf32>
      %460 = vector.broadcast %455 : vector<16x1xf32> to vector<16x32xf32>
      %461 = arith.mulf %459, %460 : vector<16x32xf32>
      %462 = vector.broadcast %440 : vector<1x32xf32> to vector<16x32xf32>
      %463 = arith.addf %461, %462 : vector<16x32xf32>
      %c0_178 = arith.constant 0 : index
      %c0_179 = arith.constant 0 : index
      %464 = vector.load %arg25[%c0_178, %c0_179] : memref<32x128xf32, #tpu.memory_space<vmem>>, vector<32x128xf32>
      %cst_180 = arith.constant dense<0.000000e+00> : vector<16x128xf32>
      %465 = tpu.matmul %463, %464, %cst_180 {dimension_numbers = #tpu.dot_dimension_numbers<[1], [0], [0], [1], [0, 0, 1, 1], [], []>} : vector<16x32xf32>, vector<32x128xf32>, vector<16x128xf32> -> vector<16x128xf32>
      %c0_181 = arith.constant 0 : index
      %c0_182 = arith.constant 0 : index
      %466 = vector.load %arg26[%c0_181, %c0_182] : memref<1x128xf32, #tpu.memory_space<vmem>>, vector<1x128xf32>
      %467 = vector.broadcast %466 : vector<1x128xf32> to vector<16x128xf32>
      %468 = arith.addf %465, %467 : vector<16x128xf32>
      %c0_183 = arith.constant 0 : index
      %c0_184 = arith.constant 0 : index
      %469 = vector.load %arg27[%c0_183, %c0_184] : memref<16x128xf32, #tpu.memory_space<vmem>>, vector<16x128xf32>
      tpu.vector_store %arg27[%c0_183, %c0_184], %468 {strides = array<i32>} : memref<16x128xf32, #tpu.memory_space<vmem>>, vector<16x128xf32>,
    } else {
    }
    return
  }
  func.func @transform_0(%arg0: i32) -> (i32, i32) {
    %c0_i32 = arith.constant 0 : i32
    %c0_i32_0 = arith.constant 0 : i32
    %c0_i32_1 = arith.constant 0 : i32
    return %c0_i32, %c0_i32_0 : i32, i32
  }
  func.func @transform_1(%arg0: i32) -> (i32, i32) {
    %c0_i32 = arith.constant 0 : i32
    %c0_i32_0 = arith.constant 0 : i32
    %c0_i32_1 = arith.constant 0 : i32
    return %c0_i32, %c0_i32_0 : i32, i32
  }
  func.func @transform_2(%arg0: i32) -> (i32, i32, i32) {
    %c0_i32 = arith.constant 0 : i32
    %c0_i32_0 = arith.constant 0 : i32
    %c0_i32_1 = arith.constant 0 : i32
    return %arg0, %c0_i32, %c0_i32_0 : i32, i32, i32
  }
  func.func @transform_3(%arg0: i32) -> (i32, i32, i32) {
    %c0_i32 = arith.constant 0 : i32
    %c0_i32_0 = arith.constant 0 : i32
    %c0_i32_1 = arith.constant 0 : i32
    return %arg0, %c0_i32, %c0_i32_0 : i32, i32, i32
  }
  func.func @transform_4(%arg0: i32) -> (i32, i32, i32) {
    %c0_i32 = arith.constant 0 : i32
    %c0_i32_0 = arith.constant 0 : i32
    %c0_i32_1 = arith.constant 0 : i32
    return %arg0, %c0_i32, %c0_i32_0 : i32, i32, i32
  }
  func.func @transform_5(%arg0: i32) -> (i32, i32, i32) {
    %c0_i32 = arith.constant 0 : i32
    %c0_i32_0 = arith.constant 0 : i32
    %c0_i32_1 = arith.constant 0 : i32
    return %arg0, %c0_i32, %c0_i32_0 : i32, i32, i32
  }
  func.func @transform_6(%arg0: i32) -> (i32, i32, i32) {
    %c0_i32 = arith.constant 0 : i32
    %c0_i32_0 = arith.constant 0 : i32
    %c0_i32_1 = arith.constant 0 : i32
    return %arg0, %c0_i32, %c0_i32_0 : i32, i32, i32
  }
  func.func @transform_7(%arg0: i32) -> (i32, i32, i32) {
    %c0_i32 = arith.constant 0 : i32
    %c0_i32_0 = arith.constant 0 : i32
    %c0_i32_1 = arith.constant 0 : i32
    return %arg0, %c0_i32, %c0_i32_0 : i32, i32, i32
  }
  func.func @transform_8(%arg0: i32) -> (i32, i32, i32) {
    %c0_i32 = arith.constant 0 : i32
    %c0_i32_0 = arith.constant 0 : i32
    %c0_i32_1 = arith.constant 0 : i32
    return %arg0, %c0_i32, %c0_i32_0 : i32, i32, i32
  }
  func.func @transform_9(%arg0: i32) -> (i32, i32, i32) {
    %c0_i32 = arith.constant 0 : i32
    %c0_i32_0 = arith.constant 0 : i32
    %c0_i32_1 = arith.constant 0 : i32
    return %arg0, %c0_i32, %c0_i32_0 : i32, i32, i32
  }
  func.func @transform_10(%arg0: i32) -> (i32, i32, i32) {
    %c0_i32 = arith.constant 0 : i32
    %c0_i32_0 = arith.constant 0 : i32
    %c0_i32_1 = arith.constant 0 : i32
    return %arg0, %c0_i32, %c0_i32_0 : i32, i32, i32
  }
  func.func @transform_11(%arg0: i32) -> (i32, i32, i32) {
    %c0_i32 = arith.constant 0 : i32
    %c0_i32_0 = arith.constant 0 : i32
    %c0_i32_1 = arith.constant 0 : i32
    return %arg0, %c0_i32, %c0_i32_0 : i32, i32, i32
  }
  func.func @transform_12(%arg0: i32) -> (i32, i32, i32) {
    %c0_i32 = arith.constant 0 : i32
    %c0_i32_0 = arith.constant 0 : i32
    %c0_i32_1 = arith.constant 0 : i32
    return %arg0, %c0_i32, %c0_i32_0 : i32, i32, i32
  }
  func.func @transform_13(%arg0: i32) -> (i32, i32, i32) {
    %c0_i32 = arith.constant 0 : i32
    %c0_i32_0 = arith.constant 0 : i32
    %c0_i32_1 = arith.constant 0 : i32
    return %arg0, %c0_i32, %c0_i32_0 : i32, i32, i32
  }
  func.func @transform_14(%arg0: i32) -> (i32, i32, i32) {
    %c0_i32 = arith.constant 0 : i32
    %c0_i32_0 = arith.constant 0 : i32
    %c0_i32_1 = arith.constant 0 : i32
    return %arg0, %c0_i32, %c0_i32_0 : i32, i32, i32
  }
  func.func @transform_15(%arg0: i32) -> (i32, i32, i32) {
    %c0_i32 = arith.constant 0 : i32
    %c0_i32_0 = arith.constant 0 : i32
    %c0_i32_1 = arith.constant 0 : i32
    return %arg0, %c0_i32, %c0_i32_0 : i32, i32, i32
  }
  func.func @transform_16(%arg0: i32) -> (i32, i32, i32) {
    %c0_i32 = arith.constant 0 : i32
    %c0_i32_0 = arith.constant 0 : i32
    %c0_i32_1 = arith.constant 0 : i32
    return %arg0, %c0_i32, %c0_i32_0 : i32, i32, i32
  }
  func.func @transform_17(%arg0: i32) -> (i32, i32, i32) {
    %c0_i32 = arith.constant 0 : i32
    %c0_i32_0 = arith.constant 0 : i32
    %c0_i32_1 = arith.constant 0 : i32
    return %arg0, %c0_i32, %c0_i32_0 : i32, i32, i32
  }
  func.func @transform_18(%arg0: i32) -> (i32, i32, i32) {
    %c0_i32 = arith.constant 0 : i32
    %c0_i32_0 = arith.constant 0 : i32
    %c0_i32_1 = arith.constant 0 : i32
    return %arg0, %c0_i32, %c0_i32_0 : i32, i32, i32
  }
  func.func @transform_19(%arg0: i32) -> (i32, i32, i32) {
    %c0_i32 = arith.constant 0 : i32
    %c0_i32_0 = arith.constant 0 : i32
    %c0_i32_1 = arith.constant 0 : i32
    return %arg0, %c0_i32, %c0_i32_0 : i32, i32, i32
  }
  func.func @transform_20(%arg0: i32) -> (i32, i32, i32) {
    %c0_i32 = arith.constant 0 : i32
    %c0_i32_0 = arith.constant 0 : i32
    %c0_i32_1 = arith.constant 0 : i32
    return %arg0, %c0_i32, %c0_i32_0 : i32, i32, i32
  }
  func.func @transform_21(%arg0: i32) -> (i32, i32, i32) {
    %c0_i32 = arith.constant 0 : i32
    %c0_i32_0 = arith.constant 0 : i32
    %c0_i32_1 = arith.constant 0 : i32
    return %arg0, %c0_i32, %c0_i32_0 : i32, i32, i32
  }
  func.func @transform_22(%arg0: i32) -> (i32, i32) {
    %c0_i32 = arith.constant 0 : i32
    %c0_i32_0 = arith.constant 0 : i32
    %c0_i32_1 = arith.constant 0 : i32
    return %c0_i32, %c0_i32_0 : i32, i32
  }
  func.func @transform_23(%arg0: i32) -> (i32, i32) {
    %c0_i32 = arith.constant 0 : i32
    %c0_i32_0 = arith.constant 0 : i32
    %c0_i32_1 = arith.constant 0 : i32
    return %c0_i32, %c0_i32_0 : i32, i32
  }
  func.func @transform_24(%arg0: i32) -> (i32, i32) {
    %c0_i32 = arith.constant 0 : i32
    %c0_i32_0 = arith.constant 0 : i32
    %c0_i32_1 = arith.constant 0 : i32
    return %c0_i32, %c0_i32_0 : i32, i32
  }
  func.func @transform_25(%arg0: i32) -> (i32, i32) {
    %c0_i32 = arith.constant 0 : i32
    %c0_i32_0 = arith.constant 0 : i32
    %c0_i32_1 = arith.constant 0 : i32
    return %c0_i32, %c0_i32_0 : i32, i32
  }
  func.func @transform_26(%arg0: i32) -> (i32, i32) {
    %c0_i32 = arith.constant 0 : i32
    %c0_i32_0 = arith.constant 0 : i32
    %c0_i32_1 = arith.constant 0 : i32
    return %c0_i32, %c0_i32_0 : i32, i32
  }
}

</mosaic_0001>

<llo_original>
// kernel: _lambda_.2
$region0: #{_lambda_.2}
  #allocation0 [shape = 'u32[]', space=smem, size = 0x4, offset = 0x4, fixed_abs, tag = 'smem constant byte address 0x4 - core index']
  #allocation1 [shape = 'u32[72,128]{1,0:T(1,128)}', space=vmem, size = 0x9000, scoped, tag = 'internal scratch']
  #allocation2 [shape = 'f32[16,32]{1,0:T(8,128)}', space=vmem, size = 0x2000, scoped, tag = 'scratch operand']
  %s0 = inlined_call_operand.vmem [shape: f32[16,32], index: 0, kind: input, shape index: {}]
  %s1 = inlined_call_operand.vmem [shape: f32[2,1,32], index: 1, kind: input, shape index: {}, may-alias: {1,7}]
  %s2 = inlined_call_operand.vmem [shape: f32[2,1,32], index: 2, kind: input, shape index: {}, may-alias: {2,6,8,12}]
  %s3 = inlined_call_operand.hbm [shape: f32[2,32,96], index: 3, kind: input, shape index: {}]
  %s4 = inlined_call_operand.vmem [shape: f32[2,1,96], index: 4, kind: input, shape index: {}]
  %s5 = inlined_call_operand.hbm [shape: f32[2,32,32], index: 5, kind: input, shape index: {}]
  %s6 = inlined_call_operand.vmem [shape: f32[2,1,32], index: 6, kind: input, shape index: {}, may-alias: {2,6,8,12}]
  %s7 = inlined_call_operand.vmem [shape: f32[2,1,32], index: 7, kind: input, shape index: {}, may-alias: {1,7}]
  %s8 = inlined_call_operand.vmem [shape: f32[2,1,32], index: 8, kind: input, shape index: {}, may-alias: {2,6,8,12}]
  %s9 = inlined_call_operand.hbm [shape: f32[2,32,2048], index: 9, kind: input, shape index: {}]
  %s10 = inlined_call_operand.vmem [shape: f32[2,1,2048], index: 10, kind: input, shape index: {}]
  %s11 = inlined_call_operand.hbm [shape: f32[2,2048,32], index: 11, kind: input, shape index: {}]
  %s12 = inlined_call_operand.vmem [shape: f32[2,1,32], index: 12, kind: input, shape index: {}, may-alias: {2,6,8,12}]
  %s13 = inlined_call_operand.vmem [shape: f32[1,32], index: 13, kind: input, shape index: {}]
  %s14 = inlined_call_operand.vmem [shape: f32[1,32], index: 14, kind: input, shape index: {}]
  %s15 = inlined_call_operand.vmem [shape: f32[16,32], index: 15, kind: output, shape index: {}]
  %s16 = sld [smem:[#allocation0]]
  $region117: #{_lambda_.2} parent=0
    _
  %s18 = ssub.s32 1, %s16
  %s19 = scalar_select 0, %s18, %s16
  $region1: #{_lambda_.2} parent=0
    #allocation3 [shape = 'u8[32768]{0}', space=vmem, size = 0x8000, scoped, tag = 'input window, operand 3']
    #allocation4 [shape = 's32[2]{0}', space=sflag, size = 0x8, scoped, tag = 'scoped memory for _lambda_.2']
    #allocation5 [shape = 'u8[32768]{0}', space=vmem, size = 0x8000, scoped, tag = 'input window, operand 5']
    #allocation6 [shape = 's32[2]{0}', space=sflag, size = 0x8, scoped, tag = 'scoped memory for _lambda_.2']
    #allocation7 [shape = 'u8[524288]{0}', space=vmem, size = 0x80000, scoped, tag = 'input window, operand 9']
    #allocation8 [shape = 'u8[2097152]{0}', space=vmem, size = 0x200000, scoped, tag = 'input window, operand 11']
    #allocation9 [shape = 's32[2]{0}', space=sflag, size = 0x8, scoped, tag = 'scoped memory for _lambda_.2']
    %20 = vsyncpa [#allocation4], 0
    %s21 = scalar_lea.sflag [#allocation4], 1
    %22 = vsyncpa %s21, 0
    %23 = vsyncpa [#allocation6], 0
    %s24 = scalar_lea.sflag [#allocation6], 1
    %25 = vsyncpa %s24, 0
    %26 = vsyncpa [#allocation9], 0
    %s27 = scalar_lea.sflag [#allocation9], 1
    %28 = vsyncpa %s27, 0
    loop: start=0, step=1, limit=4
    $region2: #{_lambda_.2} parent=1 // loop_pre_header
      _
    $region3: #{_lambda_.2} parent=1 // loop_header
      %s30 = sphi 0, %s34
      %p31 = scmp.ge.s32.totalorder %s30, 4
      %s38 = sphi 0, %s38
      %s40 = sphi 0, %s38
      %s41 = sphi 0, %s40
      %s55 = sphi 0, %s41
      %s61 = sphi 0, %s63
      %s64 = sphi 0, %s61
      %s65 = sphi 0, %s64
      %s81 = sphi 0, %s65
      %s87 = sphi 0, %s89
      %s90 = sphi 0, %s87
      %s91 = sphi 0, %s90
      %s107 = sphi 0, %s91
      %s113 = sphi 0, %s115
      %s116 = sphi 0, %s113
      %s117 = sphi 0, %s116
      %s133 = sphi 0, %s117
      %s139 = sphi 0, %s141
      %s142 = sphi 0, %s139
      %s143 = sphi 0, %s142
      %s159 = sphi 0, %s143
      %s165 = sphi 0, %s167
      %s168 = sphi 0, %s165
      %s169 = sphi 0, %s168
      %s185 = sphi 0, %s169
      %s191 = sphi 0, %s193
      %s194 = sphi 0, %s191
      %s195 = sphi 0, %s194
      %s211 = sphi 0, %s195
      %s217 = sphi 0, %s219
      %s220 = sphi 0, %s217
      %s221 = sphi 0, %s220
      %s237 = sphi 0, %s221
      %s243 = sphi 0, %s245
      %s246 = sphi 0, %s243
      %s247 = sphi 0, %s246
      %s263 = sphi 0, %s247
      %s269 = sphi 0, %s271
      %s272 = sphi 0, %s269
      %s273 = sphi 0, %s272
      %s289 = sphi 0, %s273
      %s295 = sphi 0, %s297
      %s298 = sphi 0, %s295
      %s299 = sphi 0, %s298
      %s315 = sphi 0, %s299
      %s321 = sphi 0, %s323
      %s324 = sphi 0, %s321
      %s325 = sphi 0, %s324
      %s341 = sphi 0, %s325
      %s347 = sphi 0, %s349
      %s350 = sphi 0, %s347
      %s351 = sphi 0, %s350
      %s367 = sphi 0, %s351
      %s371 = sphi 0, %s371
      %s373 = sphi 0, %s371
      %s374 = sphi 0, %s373
      %s388 = sphi 0, %s374
      %s392 = sphi 0, %s392
      %s394 = sphi 0, %s392
      %s395 = sphi 0, %s394
      %s409 = sphi 0, %s395
      %s413 = sphi 0, %s413
      %s415 = sphi 0, %s413
      %s416 = sphi 0, %s415
      %s430 = sphi 0, %s416
    $region4: #{_lambda_.2} parent=1 // loop_header_branch
      %33 = sbr.rel (%p31) target = $region8
    $region5: #{_lambda_.2} parent=1 // loop_body
      %s35 = ssub.s32 %s30, 1
      %s36 = ssub.s32 %s30, 2
      %s37 = sadd.s32 %s30, 1
      %s39 = sadd.s32 %s38, 1
      %p42 = scmp.eq.s32.totalorder %s30, 1
      %p43 = scmp.ne.s32.totalorder %s38, %s40
      %p44 = scmp.eq.s32.totalorder %s30, 0
      %p45 = por %p43, %p44
      %p46 = scmp.ne.s32.totalorder %s38, %s40
      %p47 = scmp.eq.s32.totalorder %s35, 1
      %p48 = por %p46, %p47
      %p49 = scmp.ne.s32.totalorder %s40, %s41
      %p50 = scmp.eq.s32.totalorder %s35, 0
      %p51 = por %p49, %p50
      %p52 = scmp.ne.s32.totalorder %s40, %s41
      %p53 = scmp.eq.s32.totalorder %s36, 1
      %p54 = por %p52, %p53
      %p56 = scmp.ne.s32.totalorder %s41, %s55
      %p57 = scmp.eq.s32.totalorder %s36, 0
      %p58 = por %p56, %p57
      %s59 = ssub.s32 %s30, %s37
      %p60 = scmp.eq.s32.totalorder %s59, 0
      %s62 = sadd.s32 %s61, 1
      %s63 = scalar_select %p60, %s61, %s62
      %p66 = pneg %p60
      %p67 = scmp.eq.s32.totalorder %s30, 1
      %p68 = por %p66, %p67
      %p69 = scmp.ne.s32.totalorder %s61, %s64
      %p70 = scmp.eq.s32.totalorder %s30, 0
      %p71 = por %p69, %p70
      %p72 = scmp.ne.s32.totalorder %s61, %s64
      %p73 = scmp.eq.s32.totalorder %s35, 1
      %p74 = por %p72, %p73
      %p75 = scmp.ne.s32.totalorder %s64, %s65
      %p76 = scmp.eq.s32.totalorder %s35, 0
      %p77 = por %p75, %p76
      %p78 = scmp.ne.s32.totalorder %s64, %s65
      %p79 = scmp.eq.s32.totalorder %s36, 1
      %p80 = por %p78, %p79
      %p82 = scmp.ne.s32.totalorder %s65, %s81
      %p83 = scmp.eq.s32.totalorder %s36, 0
      %p84 = por %p82, %p83
      %s85 = ssub.s32 %s30, %s37
      %p86 = scmp.eq.s32.totalorder %s85, 0
      %s88 = sadd.s32 %s87, 1
      %s89 = scalar_select %p86, %s87, %s88
      %p92 = pneg %p86
      %p93 = scmp.eq.s32.totalorder %s30, 1
      %p94 = por %p92, %p93
      %p95 = scmp.ne.s32.totalorder %s87, %s90
      %p96 = scmp.eq.s32.totalorder %s30, 0
      %p97 = por %p95, %p96
      %p98 = scmp.ne.s32.totalorder %s87, %s90
      %p99 = scmp.eq.s32.totalorder %s35, 1
      %p100 = por %p98, %p99
      %p101 = scmp.ne.s32.totalorder %s90, %s91
      %p102 = scmp.eq.s32.totalorder %s35, 0
      %p103 = por %p101, %p102
      %p104 = scmp.ne.s32.totalorder %s90, %s91
      %p105 = scmp.eq.s32.totalorder %s36, 1
      %p106 = por %p104, %p105
      %p108 = scmp.ne.s32.totalorder %s91, %s107
      %p109 = scmp.eq.s32.totalorder %s36, 0
      %p110 = por %p108, %p109
      %s111 = ssub.s32 %s30, %s37
      %p112 = scmp.eq.s32.totalorder %s111, 0
      %s114 = sadd.s32 %s113, 1
      %s115 = scalar_select %p112, %s113, %s114
      %p118 = pneg %p112
      %p119 = scmp.eq.s32.totalorder %s30, 1
      %p120 = por %p118, %p119
      %p121 = scmp.ne.s32.totalorder %s113, %s116
      %p122 = scmp.eq.s32.totalorder %s30, 0
      %p123 = por %p121, %p122
      %p124 = scmp.ne.s32.totalorder %s113, %s116
      %p125 = scmp.eq.s32.totalorder %s35, 1
      %p126 = por %p124, %p125
      %p127 = scmp.ne.s32.totalorder %s116, %s117
      %p128 = scmp.eq.s32.totalorder %s35, 0
      %p129 = por %p127, %p128
      %p130 = scmp.ne.s32.totalorder %s116, %s117
      %p131 = scmp.eq.s32.totalorder %s36, 1
      %p132 = por %p130, %p131
      %p134 = scmp.ne.s32.totalorder %s117, %s133
      %p135 = scmp.eq.s32.totalorder %s36, 0
      %p136 = por %p134, %p135
      %s137 = ssub.s32 %s30, %s37
      %p138 = scmp.eq.s32.totalorder %s137, 0
      %s140 = sadd.s32 %s139, 1
      %s141 = scalar_select %p138, %s139, %s140
      %p144 = pneg %p138
      %p145 = scmp.eq.s32.totalorder %s30, 1
      %p146 = por %p144, %p145
      %p147 = scmp.ne.s32.totalorder %s139, %s142
      %p148 = scmp.eq.s32.totalorder %s30, 0
      %p149 = por %p147, %p148
      %p150 = scmp.ne.s32.totalorder %s139, %s142
      %p151 = scmp.eq.s32.totalorder %s35, 1
      %p152 = por %p150, %p151
      %p153 = scmp.ne.s32.totalorder %s142, %s143
      %p154 = scmp.eq.s32.totalorder %s35, 0
      %p155 = por %p153, %p154
      %p156 = scmp.ne.s32.totalorder %s142, %s143
      %p157 = scmp.eq.s32.totalorder %s36, 1
      %p158 = por %p156, %p157
      %p160 = scmp.ne.s32.totalorder %s143, %s159
      %p161 = scmp.eq.s32.totalorder %s36, 0
      %p162 = por %p160, %p161
      %s163 = ssub.s32 %s30, %s37
      %p164 = scmp.eq.s32.totalorder %s163, 0
      %s166 = sadd.s32 %s165, 1
      %s167 = scalar_select %p164, %s165, %s166
      %p170 = pneg %p164
      %p171 = scmp.eq.s32.totalorder %s30, 1
      %p172 = por %p170, %p171
      %p173 = scmp.ne.s32.totalorder %s165, %s168
      %p174 = scmp.eq.s32.totalorder %s30, 0
      %p175 = por %p173, %p174
      %p176 = scmp.ne.s32.totalorder %s165, %s168
      %p177 = scmp.eq.s32.totalorder %s35, 1
      %p178 = por %p176, %p177
      %p179 = scmp.ne.s32.totalorder %s168, %s169
      %p180 = scmp.eq.s32.totalorder %s35, 0
      %p181 = por %p179, %p180
      %p182 = scmp.ne.s32.totalorder %s168, %s169
      %p183 = scmp.eq.s32.totalorder %s36, 1
      %p184 = por %p182, %p183
      %p186 = scmp.ne.s32.totalorder %s169, %s185
      %p187 = scmp.eq.s32.totalorder %s36, 0
      %p188 = por %p186, %p187
      %s189 = ssub.s32 %s30, %s37
      %p190 = scmp.eq.s32.totalorder %s189, 0
      %s192 = sadd.s32 %s191, 1
      %s193 = scalar_select %p190, %s191, %s192
      %p196 = pneg %p190
      %p197 = scmp.eq.s32.totalorder %s30, 1
      %p198 = por %p196, %p197
      %p199 = scmp.ne.s32.totalorder %s191, %s194
      %p200 = scmp.eq.s32.totalorder %s30, 0
      %p201 = por %p199, %p200
      %p202 = scmp.ne.s32.totalorder %s191, %s194
      %p203 = scmp.eq.s32.totalorder %s35, 1
      %p204 = por %p202, %p203
      %p205 = scmp.ne.s32.totalorder %s194, %s195
      %p206 = scmp.eq.s32.totalorder %s35, 0
      %p207 = por %p205, %p206
      %p208 = scmp.ne.s32.totalorder %s194, %s195
      %p209 = scmp.eq.s32.totalorder %s36, 1
      %p210 = por %p208, %p209
      %p212 = scmp.ne.s32.totalorder %s195, %s211
      %p213 = scmp.eq.s32.totalorder %s36, 0
      %p214 = por %p212, %p213
      %s215 = ssub.s32 %s30, %s37
      %p216 = scmp.eq.s32.totalorder %s215, 0
      %s218 = sadd.s32 %s217, 1
      %s219 = scalar_select %p216, %s217, %s218
      %p222 = pneg %p216
      %p223 = scmp.eq.s32.totalorder %s30, 1
      %p224 = por %p222, %p223
      %p225 = scmp.ne.s32.totalorder %s217, %s220
      %p226 = scmp.eq.s32.totalorder %s30, 0
      %p227 = por %p225, %p226
      %p228 = scmp.ne.s32.totalorder %s217, %s220
      %p229 = scmp.eq.s32.totalorder %s35, 1
      %p230 = por %p228, %p229
      %p231 = scmp.ne.s32.totalorder %s220, %s221
      %p232 = scmp.eq.s32.totalorder %s35, 0
      %p233 = por %p231, %p232
      %p234 = scmp.ne.s32.totalorder %s220, %s221
      %p235 = scmp.eq.s32.totalorder %s36, 1
      %p236 = por %p234, %p235
      %p238 = scmp.ne.s32.totalorder %s221, %s237
      %p239 = scmp.eq.s32.totalorder %s36, 0
      %p240 = por %p238, %p239
      %s241 = ssub.s32 %s30, %s37
      %p242 = scmp.eq.s32.totalorder %s241, 0
      %s244 = sadd.s32 %s243, 1
      %s245 = scalar_select %p242, %s243, %s244
      %p248 = pneg %p242
      %p249 = scmp.eq.s32.totalorder %s30, 1
      %p250 = por %p248, %p249
      %p251 = scmp.ne.s32.totalorder %s243, %s246
      %p252 = scmp.eq.s32.totalorder %s30, 0
      %p253 = por %p251, %p252
      %p254 = scmp.ne.s32.totalorder %s243, %s246
      %p255 = scmp.eq.s32.totalorder %s35, 1
      %p256 = por %p254, %p255
      %p257 = scmp.ne.s32.totalorder %s246, %s247
      %p258 = scmp.eq.s32.totalorder %s35, 0
      %p259 = por %p257, %p258
      %p260 = scmp.ne.s32.totalorder %s246, %s247
      %p261 = scmp.eq.s32.totalorder %s36, 1
      %p262 = por %p260, %p261
      %p264 = scmp.ne.s32.totalorder %s247, %s263
      %p265 = scmp.eq.s32.totalorder %s36, 0
      %p266 = por %p264, %p265
      %s267 = ssub.s32 %s30, %s37
      %p268 = scmp.eq.s32.totalorder %s267, 0
      %s270 = sadd.s32 %s269, 1
      %s271 = scalar_select %p268, %s269, %s270
      %p274 = pneg %p268
      %p275 = scmp.eq.s32.totalorder %s30, 1
      %p276 = por %p274, %p275
      %p277 = scmp.ne.s32.totalorder %s269, %s272
      %p278 = scmp.eq.s32.totalorder %s30, 0
      %p279 = por %p277, %p278
      %p280 = scmp.ne.s32.totalorder %s269, %s272
      %p281 = scmp.eq.s32.totalorder %s35, 1
      %p282 = por %p280, %p281
      %p283 = scmp.ne.s32.totalorder %s272, %s273
      %p284 = scmp.eq.s32.totalorder %s35, 0
      %p285 = por %p283, %p284
      %p286 = scmp.ne.s32.totalorder %s272, %s273
      %p287 = scmp.eq.s32.totalorder %s36, 1
      %p288 = por %p286, %p287
      %p290 = scmp.ne.s32.totalorder %s273, %s289
      %p291 = scmp.eq.s32.totalorder %s36, 0
      %p292 = por %p290, %p291
      %s293 = ssub.s32 %s30, %s37
      %p294 = scmp.eq.s32.totalorder %s293, 0
      %s296 = sadd.s32 %s295, 1
      %s297 = scalar_select %p294, %s295, %s296
      %p300 = pneg %p294
      %p301 = scmp.eq.s32.totalorder %s30, 1
      %p302 = por %p300, %p301
      %p303 = scmp.ne.s32.totalorder %s295, %s298
      %p304 = scmp.eq.s32.totalorder %s30, 0
      %p305 = por %p303, %p304
      %p306 = scmp.ne.s32.totalorder %s295, %s298
      %p307 = scmp.eq.s32.totalorder %s35, 1
      %p308 = por %p306, %p307
      %p309 = scmp.ne.s32.totalorder %s298, %s299
      %p310 = scmp.eq.s32.totalorder %s35, 0
      %p311 = por %p309, %p310
      %p312 = scmp.ne.s32.totalorder %s298, %s299
      %p313 = scmp.eq.s32.totalorder %s36, 1
      %p314 = por %p312, %p313
      %p316 = scmp.ne.s32.totalorder %s299, %s315
      %p317 = scmp.eq.s32.totalorder %s36, 0
      %p318 = por %p316, %p317
      %s319 = ssub.s32 %s30, %s37
      %p320 = scmp.eq.s32.totalorder %s319, 0
      %s322 = sadd.s32 %s321, 1
      %s323 = scalar_select %p320, %s321, %s322
      %p326 = pneg %p320
      %p327 = scmp.eq.s32.totalorder %s30, 1
      %p328 = por %p326, %p327
      %p329 = scmp.ne.s32.totalorder %s321, %s324
      %p330 = scmp.eq.s32.totalorder %s30, 0
      %p331 = por %p329, %p330
      %p332 = scmp.ne.s32.totalorder %s321, %s324
      %p333 = scmp.eq.s32.totalorder %s35, 1
      %p334 = por %p332, %p333
      %p335 = scmp.ne.s32.totalorder %s324, %s325
      %p336 = scmp.eq.s32.totalorder %s35, 0
      %p337 = por %p335, %p336
      %p338 = scmp.ne.s32.totalorder %s324, %s325
      %p339 = scmp.eq.s32.totalorder %s36, 1
      %p340 = por %p338, %p339
      %p342 = scmp.ne.s32.totalorder %s325, %s341
      %p343 = scmp.eq.s32.totalorder %s36, 0
      %p344 = por %p342, %p343
      %s345 = ssub.s32 %s30, %s37
      %p346 = scmp.eq.s32.totalorder %s345, 0
      %s348 = sadd.s32 %s347, 1
      %s349 = scalar_select %p346, %s347, %s348
      %p352 = pneg %p346
      %p353 = scmp.eq.s32.totalorder %s30, 1
      %p354 = por %p352, %p353
      %p355 = scmp.ne.s32.totalorder %s347, %s350
      %p356 = scmp.eq.s32.totalorder %s30, 0
      %p357 = por %p355, %p356
      %p358 = scmp.ne.s32.totalorder %s347, %s350
      %p359 = scmp.eq.s32.totalorder %s35, 1
      %p360 = por %p358, %p359
      %p361 = scmp.ne.s32.totalorder %s350, %s351
      %p362 = scmp.eq.s32.totalorder %s35, 0
      %p363 = por %p361, %p362
      %p364 = scmp.ne.s32.totalorder %s350, %s351
      %p365 = scmp.eq.s32.totalorder %s36, 1
      %p366 = por %p364, %p365
      %p368 = scmp.ne.s32.totalorder %s351, %s367
      %p369 = scmp.eq.s32.totalorder %s36, 0
      %p370 = por %p368, %p369
      %s372 = sadd.s32 %s371, 1
      %p375 = scmp.eq.s32.totalorder %s30, 1
      %p376 = scmp.ne.s32.totalorder %s371, %s373
      %p377 = scmp.eq.s32.totalorder %s30, 0
      %p378 = por %p376, %p377
      %p379 = scmp.ne.s32.totalorder %s371, %s373
      %p380 = scmp.eq.s32.totalorder %s35, 1
      %p381 = por %p379, %p380
      %p382 = scmp.ne.s32.totalorder %s373, %s374
      %p383 = scmp.eq.s32.totalorder %s35, 0
      %p384 = por %p382, %p383
      %p385 = scmp.ne.s32.totalorder %s373, %s374
      %p386 = scmp.eq.s32.totalorder %s36, 1
      %p387 = por %p385, %p386
      %p389 = scmp.ne.s32.totalorder %s374, %s388
      %p390 = scmp.eq.s32.totalorder %s36, 0
      %p391 = por %p389, %p390
      %s393 = sadd.s32 %s392, 1
      %p396 = scmp.eq.s32.totalorder %s30, 1
      %p397 = scmp.ne.s32.totalorder %s392, %s394
      %p398 = scmp.eq.s32.totalorder %s30, 0
      %p399 = por %p397, %p398
      %p400 = scmp.ne.s32.totalorder %s392, %s394
      %p401 = scmp.eq.s32.totalorder %s35, 1
      %p402 = por %p400, %p401
      %p403 = scmp.ne.s32.totalorder %s394, %s395
      %p404 = scmp.eq.s32.totalorder %s35, 0
      %p405 = por %p403, %p404
      %p406 = scmp.ne.s32.totalorder %s394, %s395
      %p407 = scmp.eq.s32.totalorder %s36, 1
      %p408 = por %p406, %p407
      %p410 = scmp.ne.s32.totalorder %s395, %s409
      %p411 = scmp.eq.s32.totalorder %s36, 0
      %p412 = por %p410, %p411
      %s414 = sadd.s32 %s413, 1
      %p417 = scmp.eq.s32.totalorder %s30, 1
      %p418 = scmp.ne.s32.totalorder %s413, %s415
      %p419 = scmp.eq.s32.totalorder %s30, 0
      %p420 = por %p418, %p419
      %p421 = scmp.ne.s32.totalorder %s413, %s415
      %p422 = scmp.eq.s32.totalorder %s35, 1
      %p423 = por %p421, %p422
      %p424 = scmp.ne.s32.totalorder %s415, %s416
      %p425 = scmp.eq.s32.totalorder %s35, 0
      %p426 = por %p424, %p425
      %p427 = scmp.ne.s32.totalorder %s415, %s416
      %p428 = scmp.eq.s32.totalorder %s36, 1
      %p429 = por %p427, %p428
      %p431 = scmp.ne.s32.totalorder %s416, %s430
      %p432 = scmp.eq.s32.totalorder %s36, 0
      %p433 = por %p431, %p432
      %p434 = scmp.le.s32.totalorder 1, %s30
      %p435 = scmp.lt.s32.totalorder %s30, 3
      %p436 = pnand %p434, %p435
      %p437 = pneg %p436
      // Predicated region
      $region9: #{_lambda_.2} parent=5 // pred_check
        _
      $region10: #{_lambda_.2} parent=5 // pred_check_branch
        %439 = sbr.rel (%p436) target = $region12
      $region11: #{_lambda_.2} parent=5 // pred_region
        %s440 = ssub.s32 %s30, 1
        // Predicated region
        $region13: #{_lambda_.2} parent=11 // pred_check
          %p441 = pneg %p51
        $region14: #{_lambda_.2} parent=11 // pred_check_branch
          %443 = sbr.rel (%p441) target = $region16
        $region15: #{_lambda_.2} parent=11 // pred_region
          _
        $region16: #{_lambda_.2} parent=11 // pred_fallthru
          _
        // Predicated region
        $region17: #{_lambda_.2} parent=11 // pred_check
          %p444 = pneg %p384
        $region18: #{_lambda_.2} parent=11 // pred_check_branch
          %446 = sbr.rel (%p444) target = $region20
        $region19: #{_lambda_.2} parent=11 // pred_region
          _
        $region20: #{_lambda_.2} parent=11 // pred_fallthru
          _
        // Predicated region
        $region21: #{_lambda_.2} parent=11 // pred_check
          %p447 = pneg %p405
        $region22: #{_lambda_.2} parent=11 // pred_check_branch
          %449 = sbr.rel (%p447) target = $region24
        $region23: #{_lambda_.2} parent=11 // pred_region
          _
        $region24: #{_lambda_.2} parent=11 // pred_fallthru
          _
      $region12: #{_lambda_.2} parent=5 // pred_fallthru
        _
      %p450 = scmp.lt.s32.totalorder %s30, 2
      // Predicated region
      $region25: #{_lambda_.2} parent=5 // pred_check
        %p451 = pneg %p450
      $region26: #{_lambda_.2} parent=5 // pred_check_branch
        %453 = sbr.rel (%p451) target = $region28
      $region27: #{_lambda_.2} parent=5 // pred_region
        // Predicated region
        $region29: #{_lambda_.2} parent=27 // pred_check
          %p454 = pneg %p71
        $region30: #{_lambda_.2} parent=27 // pred_check_branch
          %456 = sbr.rel (%p454) target = $region32
        $region31: #{_lambda_.2} parent=27 // pred_region
          %p457 = scmp.lt.s32.totalorder %s30, 1
          %s458 = scalar_select %p457, %s30, 1
          %s459 = scalar_lea.vmem %s1, %s458
        $region32: #{_lambda_.2} parent=27 // pred_fallthru
          _
        // Predicated region
        $region33: #{_lambda_.2} parent=27 // pred_check
          %p460 = pneg %p97
        $region34: #{_lambda_.2} parent=27 // pred_check_branch
          %462 = sbr.rel (%p460) target = $region36
        $region35: #{_lambda_.2} parent=27 // pred_region
          %p463 = scmp.lt.s32.totalorder %s30, 1
          %s464 = scalar_select %p463, %s30, 1
          %s465 = scalar_lea.vmem %s2, %s464
        $region36: #{_lambda_.2} parent=27 // pred_fallthru
          _
        // Predicated region
        $region37: #{_lambda_.2} parent=27 // pred_check
          %p466 = pneg %p123
        $region38: #{_lambda_.2} parent=27 // pred_check_branch
          %468 = sbr.rel (%p466) target = $region40
        $region39: #{_lambda_.2} parent=27 // pred_region
          %s469 = sand.u32 %s113, 1
          %s470 = scalar_lea.sflag [#allocation4], %s469
          %s471 = sand.u32 %s113, 1
          %s472 = smul.addr %s471, 32
          %s473 = scalar_lea.vmem [#allocation3], %s472
          %475 = vsyncadd %s470, 0
          %s476 = smul.addr %s30, 4
          %s477 = smul.addr %s476, 8
          %s478 = scalar_lea.hbm %s3, %s477
          %s479 = sshll.u32 %s478, 4
          %s480 = int_to_ptr.hbm [resolvable:$true] %s479
          %s481 = sshll.u32 %s473, 4
          %s482 = int_to_ptr.vmem [resolvable:$true] %s481
          %487 = dma.hbm_to_vmem [thread:$0]  %s480, 512, %s482, %s470, 128, 128, 8
        $region40: #{_lambda_.2} parent=27 // pred_fallthru
          _
        // Predicated region
        $region41: #{_lambda_.2} parent=27 // pred_check
          %p488 = pneg %p149
        $region42: #{_lambda_.2} parent=27 // pred_check_branch
          %490 = sbr.rel (%p488) target = $region44
        $region43: #{_lambda_.2} parent=27 // pred_region
          %p491 = scmp.lt.s32.totalorder %s30, 1
          %s492 = scalar_select %p491, %s30, 1
          %s493 = scalar_lea.vmem %s4, %s492
        $region44: #{_lambda_.2} parent=27 // pred_fallthru
          _
        // Predicated region
        $region45: #{_lambda_.2} parent=27 // pred_check
          %p494 = pneg %p175
        $region46: #{_lambda_.2} parent=27 // pred_check_branch
          %496 = sbr.rel (%p494) target = $region48
        $region47: #{_lambda_.2} parent=27 // pred_region
          %s497 = sand.u32 %s30, 1
          %s498 = scalar_lea.sflag [#allocation6], %s497
          %s499 = sand.u32 %s165, 1
          %s500 = smul.addr %s499, 32
          %s501 = scalar_lea.vmem [#allocation5], %s500
          %503 = vsyncadd %s498, 0
          %s504 = smul.addr %s30, 4
          %s505 = smul.addr %s504, 8
          %s506 = scalar_lea.hbm %s5, %s505
          %s507 = sshll.u32 %s506, 4
          %s508 = int_to_ptr.hbm [resolvable:$true] %s507
          %s509 = sshll.u32 %s501, 4
          %s510 = int_to_ptr.vmem [resolvable:$true] %s509
          %515 = dma.hbm_to_vmem [thread:$0]  %s508, 512, %s510, %s498, 128, 128, 8
        $region48: #{_lambda_.2} parent=27 // pred_fallthru
          _
        // Predicated region
        $region49: #{_lambda_.2} parent=27 // pred_check
          %p516 = pneg %p201
        $region50: #{_lambda_.2} parent=27 // pred_check_branch
          %518 = sbr.rel (%p516) target = $region52
        $region51: #{_lambda_.2} parent=27 // pred_region
          %p519 = scmp.lt.s32.totalorder %s30, 1
          %s520 = scalar_select %p519, %s30, 1
          %s521 = scalar_lea.vmem %s6, %s520
        $region52: #{_lambda_.2} parent=27 // pred_fallthru
          _
        // Predicated region
        $region53: #{_lambda_.2} parent=27 // pred_check
          %p522 = pneg %p227
        $region54: #{_lambda_.2} parent=27 // pred_check_branch
          %524 = sbr.rel (%p522) target = $region56
        $region55: #{_lambda_.2} parent=27 // pred_region
          %p525 = scmp.lt.s32.totalorder %s30, 1
          %s526 = scalar_select %p525, %s30, 1
          %s527 = scalar_lea.vmem %s7, %s526
        $region56: #{_lambda_.2} parent=27 // pred_fallthru
          _
        // Predicated region
        $region57: #{_lambda_.2} parent=27 // pred_check
          %p528 = pneg %p253
        $region58: #{_lambda_.2} parent=27 // pred_check_branch
          %530 = sbr.rel (%p528) target = $region60
        $region59: #{_lambda_.2} parent=27 // pred_region
          %p531 = scmp.lt.s32.totalorder %s30, 1
          %s532 = scalar_select %p531, %s30, 1
          %s533 = scalar_lea.vmem %s8, %s532
        $region60: #{_lambda_.2} parent=27 // pred_fallthru
          _
        // Predicated region
        $region61: #{_lambda_.2} parent=27 // pred_check
          %p534 = pneg %p279
        $region62: #{_lambda_.2} parent=27 // pred_check_branch
          %536 = sbr.rel (%p534) target = $region64
        $region63: #{_lambda_.2} parent=27 // pred_region
          %s537 = sand.u32 %s30, 1
          %s538 = scalar_lea.sflag [#allocation6], %s537
          %s539 = sand.u32 %s269, 1
          %s540 = smul.addr %s539, 512
          %s541 = scalar_lea.vmem [#allocation7], %s540
          %543 = vsyncadd %s538, 0
          %s544 = smul.addr %s30, 64
          %s545 = smul.addr %s544, 8
          %s546 = scalar_lea.hbm %s9, %s545
          %s547 = sshll.u32 %s546, 4
          %s548 = int_to_ptr.hbm [resolvable:$true] %s547
          %s549 = sshll.u32 %s541, 4
          %s550 = int_to_ptr.vmem [resolvable:$true] %s549
          %555 = dma.hbm_to_vmem [thread:$0]  %s548, 8192, %s550, %s538, 2048, 2048, 128
        $region64: #{_lambda_.2} parent=27 // pred_fallthru
          _
        // Predicated region
        $region65: #{_lambda_.2} parent=27 // pred_check
          %p556 = pneg %p305
        $region66: #{_lambda_.2} parent=27 // pred_check_branch
          %558 = sbr.rel (%p556) target = $region68
        $region67: #{_lambda_.2} parent=27 // pred_region
          %p559 = scmp.lt.s32.totalorder %s30, 1
          %s560 = scalar_select %p559, %s30, 1
          %s561 = smul.addr %s560, 16
          %s562 = scalar_lea.vmem %s10, %s561
        $region68: #{_lambda_.2} parent=27 // pred_fallthru
          _
        // Predicated region
        $region69: #{_lambda_.2} parent=27 // pred_check
          %p563 = pneg %p331
        $region70: #{_lambda_.2} parent=27 // pred_check_branch
          %565 = sbr.rel (%p563) target = $region72
        $region71: #{_lambda_.2} parent=27 // pred_region
          %s566 = sand.u32 %s321, 1
          %s567 = scalar_lea.sflag [#allocation9], %s566
          %s568 = sand.u32 %s321, 1
          %s569 = smul.addr %s568, 2048
          %s570 = scalar_lea.vmem [#allocation8], %s569
          %572 = vsyncadd %s567, 0
          %s573 = smul.addr %s30, 256
          %s574 = smul.addr %s573, 8
          %s575 = scalar_lea.hbm %s11, %s574
          %s576 = sshll.u32 %s575, 4
          %s577 = int_to_ptr.hbm [resolvable:$true] %s576
          %s578 = sshll.u32 %s570, 4
          %s579 = int_to_ptr.vmem [resolvable:$true] %s578
          %584 = dma.hbm_to_vmem [thread:$0]  %s577, 32768, %s579, %s567, 128, 128, 8
        $region72: #{_lambda_.2} parent=27 // pred_fallthru
          _
        // Predicated region
        $region73: #{_lambda_.2} parent=27 // pred_check
          %p585 = pneg %p357
        $region74: #{_lambda_.2} parent=27 // pred_check_branch
          %587 = sbr.rel (%p585) target = $region76
        $region75: #{_lambda_.2} parent=27 // pred_region
          %p588 = scmp.lt.s32.totalorder %s30, 1
          %s589 = scalar_select %p588, %s30, 1
          %s590 = scalar_lea.vmem %s12, %s589
        $region76: #{_lambda_.2} parent=27 // pred_fallthru
          _
      $region28: #{_lambda_.2} parent=5 // pred_fallthru
        _
      %p591 = scmp.le.s32.totalorder 1, %s30
      %p592 = scmp.lt.s32.totalorder %s30, 3
      %p593 = pnand %p591, %p592
      %p594 = pneg %p593
      // Predicated region
      $region77: #{_lambda_.2} parent=5 // pred_check
        _
      $region78: #{_lambda_.2} parent=5 // pred_check_branch
        %596 = sbr.rel (%p593) target = $region80
      $region79: #{_lambda_.2} parent=5 // pred_region
        %s597 = ssub.s32 %s30, 1
        %s598 = sand.u32 %s116, 1
        %s599 = scalar_lea.sflag [#allocation4], %s598
        %s600 = sand.u32 %s116, 1
        %s601 = smul.addr %s600, 32
        %s602 = scalar_lea.vmem [#allocation3], %s601
        // Predicated region
        $region81: #{_lambda_.2} parent=79 // pred_check
          %p603 = pneg %p129
        $region82: #{_lambda_.2} parent=79 // pred_check_branch
          %605 = sbr.rel (%p603) target = $region84
        $region83: #{_lambda_.2} parent=79 // pred_region
          %607 = dma.done %s599, 512
        $region84: #{_lambda_.2} parent=79 // pred_fallthru
          _
        %s608 = sand.u32 %s35, 1
        %s609 = scalar_lea.sflag [#allocation6], %s608
        %s610 = sand.u32 %s168, 1
        %s611 = smul.addr %s610, 32
        %s612 = scalar_lea.vmem [#allocation5], %s611
        // Predicated region
        $region85: #{_lambda_.2} parent=79 // pred_check
          %p613 = pneg %p181
        $region86: #{_lambda_.2} parent=79 // pred_check_branch
          %615 = sbr.rel (%p613) target = $region88
        $region87: #{_lambda_.2} parent=79 // pred_region
          %617 = dma.done %s609, 512
        $region88: #{_lambda_.2} parent=79 // pred_fallthru
          _
        %s618 = sand.u32 %s35, 1
        %s619 = scalar_lea.sflag [#allocation6], %s618
        %s620 = sand.u32 %s272, 1
        %s621 = smul.addr %s620, 512
        %s622 = scalar_lea.vmem [#allocation7], %s621
        // Predicated region
        $region89: #{_lambda_.2} parent=79 // pred_check
          %p623 = pneg %p285
        $region90: #{_lambda_.2} parent=79 // pred_check_branch
          %625 = sbr.rel (%p623) target = $region92
        $region91: #{_lambda_.2} parent=79 // pred_region
          %627 = dma.done %s619, 8192
        $region92: #{_lambda_.2} parent=79 // pred_fallthru
          _
        %s628 = sand.u32 %s324, 1
        %s629 = scalar_lea.sflag [#allocation9], %s628
        %s630 = sand.u32 %s324, 1
        %s631 = smul.addr %s630, 2048
        %s632 = scalar_lea.vmem [#allocation8], %s631
        // Predicated region
        $region93: #{_lambda_.2} parent=79 // pred_check
          %p633 = pneg %p337
        $region94: #{_lambda_.2} parent=79 // pred_check_branch
          %635 = sbr.rel (%p633) target = $region96
        $region95: #{_lambda_.2} parent=79 // pred_region
          %637 = dma.done %s629, 32768
        $region96: #{_lambda_.2} parent=79 // pred_fallthru
          _
        %p638 = pneg %p51
        %p639 = pneg %p48
        %p640 = scmp.lt.s32.totalorder %s35, 1
        %s641 = scalar_select %p640, %s35, 1
        %s642 = scalar_lea.vmem %s1, %s641
        %p643 = pneg %p77
        %p644 = pneg %p74
        %p645 = scmp.lt.s32.totalorder %s35, 1
        %s646 = scalar_select %p645, %s35, 1
        %s647 = scalar_lea.vmem %s2, %s646
        %p648 = pneg %p103
        %p649 = pneg %p100
        %s650 = sand.u32 %s116, 1
        %s651 = scalar_lea.sflag [#allocation4], %s650
        %s652 = sand.u32 %s116, 1
        %s653 = smul.addr %s652, 32
        %s654 = scalar_lea.vmem [#allocation3], %s653
        %p655 = pneg %p129
        %p656 = pneg %p126
        %p657 = scmp.lt.s32.totalorder %s35, 1
        %s658 = scalar_select %p657, %s35, 1
        %s659 = scalar_lea.vmem %s4, %s658
        %p660 = pneg %p155
        %p661 = pneg %p152
        %s662 = sand.u32 %s35, 1
        %s663 = scalar_lea.sflag [#allocation6], %s662
        %s664 = sand.u32 %s168, 1
        %s665 = smul.addr %s664, 32
        %s666 = scalar_lea.vmem [#allocation5], %s665
        %p667 = pneg %p181
        %p668 = pneg %p178
        %p669 = scmp.lt.s32.totalorder %s35, 1
        %s670 = scalar_select %p669, %s35, 1
        %s671 = scalar_lea.vmem %s6, %s670
        %p672 = pneg %p207
        %p673 = pneg %p204
        %p674 = scmp.lt.s32.totalorder %s35, 1
        %s675 = scalar_select %p674, %s35, 1
        %s676 = scalar_lea.vmem %s7, %s675
        %p677 = pneg %p233
        %p678 = pneg %p230
        %p679 = scmp.lt.s32.totalorder %s35, 1
        %s680 = scalar_select %p679, %s35, 1
        %s681 = scalar_lea.vmem %s8, %s680
        %p682 = pneg %p259
        %p683 = pneg %p256
        %s684 = sand.u32 %s35, 1
        %s685 = scalar_lea.sflag [#allocation6], %s684
        %s686 = sand.u32 %s272, 1
        %s687 = smul.addr %s686, 512
        %s688 = scalar_lea.vmem [#allocation7], %s687
        %p689 = pneg %p285
        %p690 = pneg %p282
        %p691 = scmp.lt.s32.totalorder %s35, 1
        %s692 = scalar_select %p691, %s35, 1
        %s693 = smul.addr %s692, 16
        %s694 = scalar_lea.vmem %s10, %s693
        %p695 = pneg %p311
        %p696 = pneg %p308
        %s697 = sand.u32 %s324, 1
        %s698 = scalar_lea.sflag [#allocation9], %s697
        %s699 = sand.u32 %s324, 1
        %s700 = smul.addr %s699, 2048
        %s701 = scalar_lea.vmem [#allocation8], %s700
        %p702 = pneg %p337
        %p703 = pneg %p334
        %p704 = scmp.lt.s32.totalorder %s35, 1
        %s705 = scalar_select %p704, %s35, 1
        %s706 = scalar_lea.vmem %s12, %s705
        %p707 = pneg %p363
        %p708 = pneg %p360
        %p709 = pneg %p384
        %p710 = pneg %p381
        %p711 = pneg %p405
        %p712 = pneg %p402
        %p713 = pneg %p426
        %p714 = pneg %p423
        %p715 = scmp.lt.s32.totalorder %s35, 1
        %s716 = scalar_select %p715, %s35, 1
        %s717 = scalar_lea.vmem %s1, %s716
        %p718 = scmp.lt.s32.totalorder %s35, 1
        %s719 = scalar_select %p718, %s35, 1
        %s720 = scalar_lea.vmem %s2, %s719
        %p721 = scmp.lt.s32.totalorder %s35, 1
        %s722 = scalar_select %p721, %s35, 1
        %s723 = scalar_lea.vmem %s4, %s722
        %p724 = scmp.lt.s32.totalorder %s35, 1
        %s725 = scalar_select %p724, %s35, 1
        %s726 = scalar_lea.vmem %s6, %s725
        %p727 = scmp.lt.s32.totalorder %s35, 1
        %s728 = scalar_select %p727, %s35, 1
        %s729 = scalar_lea.vmem %s7, %s728
        %p730 = scmp.lt.s32.totalorder %s35, 1
        %s731 = scalar_select %p730, %s35, 1
        %s732 = scalar_lea.vmem %s8, %s731
        %p733 = scmp.lt.s32.totalorder %s35, 1
        %s734 = scalar_select %p733, %s35, 1
        %s735 = smul.addr %s734, 16
        %s736 = scalar_lea.vmem %s10, %s735
        %p737 = scmp.lt.s32.totalorder %s35, 1
        %s738 = scalar_select %p737, %s35, 1
        %s739 = scalar_lea.vmem %s12, %s738
        %p740 = scmp.eq.s32.totalorder %s35, 0
        // Predicated region
        $region97: #{_lambda_.2} parent=79 // pred_check
          %p741 = pneg %p740
        $region98: #{_lambda_.2} parent=79 // pred_check_branch
          %743 = sbr.rel (%p741) target = $region100
        $region99: #{_lambda_.2} parent=79 // pred_region
          %v744 = vld [vmem:[%s0] sm:$0xff]
          %v745 = vld [vmem:[%s0 + $0x8] sm:$0xff]
          %vm746 = vcmask 261120
          %747 = vst.msk [vmem:[#allocation2] sm:$0xff] %vm746, %v744
          %748 = vst.msk [vmem:[#allocation2 + $0x8] sm:$0xff] %vm746, %v745
        $region100: #{_lambda_.2} parent=79 // pred_fallthru
          _
        %v749 = vld [vmem:[#allocation2] sm:$0xff]
        %v750 = vld [vmem:[#allocation2 + $0x8] sm:$0xff]
        %v751 = vld [vmem:[%s717] sm:$0x1]
        %v752 = vld [vmem:[%s720] sm:$0x1]
        %vm753 = vcmask 261120
        %v754 = vsel %vm753, %v749, 0.0
        %755 = vadd.xlane.f32.xlu0 %v754
        %v756 = vpop.xlane.xlu0 %755
        %v757 = vsel %vm753, %v750, 0.0
        %758 = vadd.xlane.f32.xlu0 %v757
        %v759 = vpop.xlane.xlu0 %758
        %v760 = vrcp.pop 32.0
        %v761 = vmul.f32 32.0, %v760
        %v762 = vsub.f32 1.0, %v761
        %v763 = vmul.f32 %v760, %v762
        %v764 = vadd.f32 %v760, %v763
        %vm765 = vweird.f32 %v760
        %v766 = vsel %vm765, %v760, %v764
        %v767 = vmul.f32 %v756, %v766
        %v768 = vmul.f32 %v759, %v766
        %v769 = vsub.f32 %v749, %v767
        %v770 = vsub.f32 %v750, %v768
        %v771 = vmul.f32 %v769, %v769
        %v772 = vmul.f32 %v770, %v770
        %v773 = vsel %vm753, %v771, 0.0
        %774 = vadd.xlane.f32.xlu0 %v773
        %v775 = vpop.xlane.xlu0 %774
        %v776 = vsel %vm753, %v772, 0.0
        %777 = vadd.xlane.f32.xlu0 %v776
        %v778 = vpop.xlane.xlu0 %777
        %v779 = vmul.f32 %v775, 0.032258064
        %v780 = vmul.f32 %v778, 0.032258064
        %v781 = vrsqrt.pop %v779
        %v782 = vmul.f32 %v781, %v779
        %v783 = vmul.f32 %v782, %v781
        %v784 = vmul.f32 0.5, %v783
        %v785 = vsub.f32 1.5, %v784
        %v786 = vmul.f32 %v781, %v785
        %v787 = vmul.f32 %v779, %v786
        %vm788 = vcmp.eq.f32.partialorder %v779, inf
        %v789 = vsel %vm788, %v779, %v787
        %vm790 = vcmp.eq.f32.partialorder %v779, 0.0
        %v791 = vand.u32 %v779, 2147483648
        %v792 = vsel %vm790, %v791, %v789
        %v793 = vrsqrt.pop %v780
        %v794 = vmul.f32 %v793, %v780
        %v795 = vmul.f32 %v794, %v793
        %v796 = vmul.f32 0.5, %v795
        %v797 = vsub.f32 1.5, %v796
        %v798 = vmul.f32 %v793, %v797
        %v799 = vmul.f32 %v780, %v798
        %vm800 = vcmp.eq.f32.partialorder %v780, inf
        %v801 = vsel %vm800, %v780, %v799
        %vm802 = vcmp.eq.f32.partialorder %v780, 0.0
        %v803 = vand.u32 %v780, 2147483648
        %v804 = vsel %vm802, %v803, %v801
        %v805 = vadd.f32 %v792, 1e-06
        %v806 = vadd.f32 %v804, 1e-06
        %v807 = vrcp.pop %v805
        %v808 = vrcp.pop %v806
        %v810 = vperm.slane %v751, 0
        %v812 = vmul.f32 %v810, %v769
        %v813 = vmul.f32 %v810, %v770
        %v814 = vmul.f32 %v812, %v807
        %v815 = vmul.f32 %v813, %v808
        %v817 = vperm.slane %v752, 0
        %v819 = vadd.f32 %v814, %v817
        %v820 = vadd.f32 %v815, %v817
        %v821 = vld [vmem:[%s602] sm:$0xff]
        %v822 = vld [vmem:[%s602 + $0x8] sm:$0xff]
        %v823 = vld [vmem:[%s602 + $0x10] sm:$0xff]
        %v824 = vld [vmem:[%s602 + $0x18] sm:$0xff]
        %v825 = vld [vmem:[%s723] sm:$0x1]
        %v827 = vperm.slane %v825, 0
        %v830 = vsel %vm753, %v819, 0
        %v833 = vsel %vm753, %v820, 0
        %835 = vmatpush.msra.mxu0 0.0
        %836 = vmatpush.msra.mxu0 0.0
        %837 = vmatpush.msra.mxu0 0.0
        %838 = vmatpush.msra.mxu0 0.0
        %839 = vmatpush.msra.mxu0 0.0
        %840 = vmatpush.msra.mxu0 0.0
        %841 = vmatpush.msra.mxu0 0.0
        %842 = vmatpush.msra.mxu0 0.0
        %843 = vmatpush.msra.mxu0 0.0
        %844 = vmatpush.msra.mxu0 0.0
        %845 = vmatpush.msra.mxu0 0.0
        %846 = vmatpush.msra.mxu0 0.0
        %847 = vmatpush.msra.mxu0 %v824
        %848 = vmatpush.msra.mxu0 %v823
        %849 = vmatpush.msra.mxu0 %v822
        %850 = vmatpush.msra.mxu0 %v821
        %851 = vmatmul.f32.gmra.mxu0 %v830
        %v852 = vpop.f32.mrf.mxu0
        %v853 = vadd.f32 %v827, %v852
        %854 = vmatmul.f32.gmra.mxu0 %v833
        %v855 = vpop.f32.mrf.mxu0
        %v856 = vadd.f32 %v827, %v855
        %857 = vdwg.mxu0
        %859 = vrot.lane.b32.xlu0 %v853, 96
        %v860 = vpop.permute.xlu0 %859
        %vm861 = vcmask 64512
        %v862 = vsel %vm861, %v853, 0
        %v864 = vsel %vm861, %v860, 0
        %866 = vmatpush.xpose.msra.mxu0 0.0
        %867 = vmatpush.xpose.msra.mxu0 0.0
        %868 = vmatpush.xpose.msra.mxu0 0.0
        %869 = vmatpush.xpose.msra.mxu0 0.0
        %870 = vmatpush.xpose.msra.mxu0 0.0
        %871 = vmatpush.xpose.msra.mxu0 0.0
        %872 = vmatpush.xpose.msra.mxu0 0.0
        %873 = vmatpush.xpose.msra.mxu0 0.0
        %874 = vmatpush.xpose.msra.mxu0 0.0
        %875 = vmatpush.xpose.msra.mxu0 0.0
        %876 = vmatpush.xpose.msra.mxu0 0.0
        %877 = vmatpush.xpose.msra.mxu0 0.0
        %878 = vmatpush.xpose.msra.mxu0 0.0
        %879 = vmatpush.xpose.msra.mxu0 0.0
        %880 = vmatpush.xpose.msra.mxu0 0.0
        %881 = vmatpush.xpose.msra.mxu0 %v864
        %882 = vmatmul.f32.gmra.mxu0 %v862
        %v883 = vpop.f32.mrf.mxu0
        %v884 = vadd.f32 0.0, %v883
        %885 = vdwg.mxu0
        %v886 = vmul.f32 %v884, 0.35355338
        %v887 = vsel %vm861, %v886, -inf
        %888 = vmax.xlane.f32.xlu0 %v887
        %v889 = vpop.xlane.xlu0 %888
        %v890 = vsub.f32 %v886, %v889
        %v891 = vmul.f32 %v890, 1.442695
        %v892 = vpow.pop %v891
        %v893 = vsel %vm861, %v892, 0.0
        %894 = vadd.xlane.f32.xlu0 %v893
        %v895 = vpop.xlane.xlu0 %894
        %v896 = vrcp.pop %v895
        %v897 = vmul.f32 %v892, %v896
        %898 = vrot.lane.b32.xlu0 %v853, 64
        %v899 = vpop.permute.xlu0 %898
        %v902 = vsel %vm861, %v897, 0
        %904 = vmatpush.msra.mxu0 0.0
        %905 = vmatpush.msra.mxu0 0.0
        %906 = vmatpush.msra.mxu0 0.0
        %907 = vmatpush.msra.mxu0 0.0
        %908 = vmatpush.msra.mxu0 0.0
        %909 = vmatpush.msra.mxu0 0.0
        %910 = vmatpush.msra.mxu0 0.0
        %911 = vmatpush.msra.mxu0 0.0
        %912 = vmatpush.msra.mxu0 0.0
        %913 = vmatpush.msra.mxu0 0.0
        %914 = vmatpush.msra.mxu0 0.0
        %915 = vmatpush.msra.mxu0 0.0
        %916 = vmatpush.msra.mxu0 0.0
        %917 = vmatpush.msra.mxu0 0.0
        %918 = vmatpush.msra.mxu0 0.0
        %919 = vmatpush.msra.mxu0 %v899
        %920 = vmatmul.f32.gmra.mxu0 %v902
        %v921 = vpop.f32.mrf.mxu0
        %v922 = vadd.f32 0.0, %v921
        %923 = vdwg.mxu0
        %924 = vrot.lane.b32.xlu0 %v853, 120
        %v925 = vpop.permute.xlu0 %924
        %926 = vrot.lane.b32.xlu0 %v853, 88
        %v927 = vpop.permute.xlu0 %926
        %v928 = vsel %vm861, %v925, 0
        %v930 = vsel %vm861, %v927, 0
        %932 = vmatpush.xpose.msra.mxu0 0.0
        %933 = vmatpush.xpose.msra.mxu0 0.0
        %934 = vmatpush.xpose.msra.mxu0 0.0
        %935 = vmatpush.xpose.msra.mxu0 0.0
        %936 = vmatpush.xpose.msra.mxu0 0.0
        %937 = vmatpush.xpose.msra.mxu0 0.0
        %938 = vmatpush.xpose.msra.mxu0 0.0
        %939 = vmatpush.xpose.msra.mxu0 0.0
        %940 = vmatpush.xpose.msra.mxu0 0.0
        %941 = vmatpush.xpose.msra.mxu0 0.0
        %942 = vmatpush.xpose.msra.mxu0 0.0
        %943 = vmatpush.xpose.msra.mxu0 0.0
        %944 = vmatpush.xpose.msra.mxu0 0.0
        %945 = vmatpush.xpose.msra.mxu0 0.0
        %946 = vmatpush.xpose.msra.mxu0 0.0
        %947 = vmatpush.xpose.msra.mxu0 %v930
        %948 = vmatmul.f32.gmra.mxu0 %v928
        %v949 = vpop.f32.mrf.mxu0
        %v950 = vadd.f32 0.0, %v949
        %951 = vdwg.mxu0
        %v952 = vmul.f32 %v950, 0.35355338
        %v953 = vsel %vm861, %v952, -inf
        %954 = vmax.xlane.f32.xlu0 %v953
        %v955 = vpop.xlane.xlu0 %954
        %v956 = vsub.f32 %v952, %v955
        %v957 = vmul.f32 %v956, 1.442695
        %v958 = vpow.pop %v957
        %v959 = vsel %vm861, %v958, 0.0
        %960 = vadd.xlane.f32.xlu0 %v959
        %v961 = vpop.xlane.xlu0 %960
        %v962 = vrcp.pop %v961
        %v963 = vmul.f32 %v958, %v962
        %964 = vrot.lane.b32.xlu0 %v853, 56
        %v965 = vpop.permute.xlu0 %964
        %v968 = vsel %vm861, %v963, 0
        %970 = vmatpush.msra.mxu0 0.0
        %971 = vmatpush.msra.mxu0 0.0
        %972 = vmatpush.msra.mxu0 0.0
        %973 = vmatpush.msra.mxu0 0.0
        %974 = vmatpush.msra.mxu0 0.0
        %975 = vmatpush.msra.mxu0 0.0
        %976 = vmatpush.msra.mxu0 0.0
        %977 = vmatpush.msra.mxu0 0.0
        %978 = vmatpush.msra.mxu0 0.0
        %979 = vmatpush.msra.mxu0 0.0
        %980 = vmatpush.msra.mxu0 0.0
        %981 = vmatpush.msra.mxu0 0.0
        %982 = vmatpush.msra.mxu0 0.0
        %983 = vmatpush.msra.mxu0 0.0
        %984 = vmatpush.msra.mxu0 0.0
        %985 = vmatpush.msra.mxu0 %v965
        %986 = vmatmul.f32.gmra.mxu0 %v968
        %v987 = vpop.f32.mrf.mxu0
        %v988 = vadd.f32 0.0, %v987
        %989 = vdwg.mxu0
        %990 = vrot.lane.b32.xlu0 %v853, 112
        %v991 = vpop.permute.xlu0 %990
        %992 = vrot.lane.b32.xlu0 %v853, 80
        %v993 = vpop.permute.xlu0 %992
        %v994 = vsel %vm861, %v991, 0
        %v996 = vsel %vm861, %v993, 0
        %998 = vmatpush.xpose.msra.mxu0 0.0
        %999 = vmatpush.xpose.msra.mxu0 0.0
        %1000 = vmatpush.xpose.msra.mxu0 0.0
        %1001 = vmatpush.xpose.msra.mxu0 0.0
        %1002 = vmatpush.xpose.msra.mxu0 0.0
        %1003 = vmatpush.xpose.msra.mxu0 0.0
        %1004 = vmatpush.xpose.msra.mxu0 0.0
        %1005 = vmatpush.xpose.msra.mxu0 0.0
        %1006 = vmatpush.xpose.msra.mxu0 0.0
        %1007 = vmatpush.xpose.msra.mxu0 0.0
        %1008 = vmatpush.xpose.msra.mxu0 0.0
        %1009 = vmatpush.xpose.msra.mxu0 0.0
        %1010 = vmatpush.xpose.msra.mxu0 0.0
        %1011 = vmatpush.xpose.msra.mxu0 0.0
        %1012 = vmatpush.xpose.msra.mxu0 0.0
        %1013 = vmatpush.xpose.msra.mxu0 %v996
        %1014 = vmatmul.f32.gmra.mxu0 %v994
        %v1015 = vpop.f32.mrf.mxu0
        %v1016 = vadd.f32 0.0, %v1015
        %1017 = vdwg.mxu0
        %v1018 = vmul.f32 %v1016, 0.35355338
        %v1019 = vsel %vm861, %v1018, -inf
        %1020 = vmax.xlane.f32.xlu0 %v1019
        %v1021 = vpop.xlane.xlu0 %1020
        %v1022 = vsub.f32 %v1018, %v1021
        %v1023 = vmul.f32 %v1022, 1.442695
        %v1024 = vpow.pop %v1023
        %v1025 = vsel %vm861, %v1024, 0.0
        %1026 = vadd.xlane.f32.xlu0 %v1025
        %v1027 = vpop.xlane.xlu0 %1026
        %v1028 = vrcp.pop %v1027
        %v1029 = vmul.f32 %v1024, %v1028
        %1030 = vrot.lane.b32.xlu0 %v853, 48
        %v1031 = vpop.permute.xlu0 %1030
        %v1034 = vsel %vm861, %v1029, 0
        %1036 = vmatpush.msra.mxu0 0.0
        %1037 = vmatpush.msra.mxu0 0.0
        %1038 = vmatpush.msra.mxu0 0.0
        %1039 = vmatpush.msra.mxu0 0.0
        %1040 = vmatpush.msra.mxu0 0.0
        %1041 = vmatpush.msra.mxu0 0.0
        %1042 = vmatpush.msra.mxu0 0.0
        %1043 = vmatpush.msra.mxu0 0.0
        %1044 = vmatpush.msra.mxu0 0.0
        %1045 = vmatpush.msra.mxu0 0.0
        %1046 = vmatpush.msra.mxu0 0.0
        %1047 = vmatpush.msra.mxu0 0.0
        %1048 = vmatpush.msra.mxu0 0.0
        %1049 = vmatpush.msra.mxu0 0.0
        %1050 = vmatpush.msra.mxu0 0.0
        %1051 = vmatpush.msra.mxu0 %v1031
        %1052 = vmatmul.f32.gmra.mxu0 %v1034
        %v1053 = vpop.f32.mrf.mxu0
        %v1054 = vadd.f32 0.0, %v1053
        %1055 = vdwg.mxu0
        %1056 = vrot.lane.b32.xlu0 %v853, 104
        %v1057 = vpop.permute.xlu0 %1056
        %1058 = vrot.lane.b32.xlu0 %v853, 72
        %v1059 = vpop.permute.xlu0 %1058
        %v1060 = vsel %vm861, %v1057, 0
        %v1062 = vsel %vm861, %v1059, 0
        %1064 = vmatpush.xpose.msra.mxu0 0.0
        %1065 = vmatpush.xpose.msra.mxu0 0.0
        %1066 = vmatpush.xpose.msra.mxu0 0.0
        %1067 = vmatpush.xpose.msra.mxu0 0.0
        %1068 = vmatpush.xpose.msra.mxu0 0.0
        %1069 = vmatpush.xpose.msra.mxu0 0.0
        %1070 = vmatpush.xpose.msra.mxu0 0.0
        %1071 = vmatpush.xpose.msra.mxu0 0.0
        %1072 = vmatpush.xpose.msra.mxu0 0.0
        %1073 = vmatpush.xpose.msra.mxu0 0.0
        %1074 = vmatpush.xpose.msra.mxu0 0.0
        %1075 = vmatpush.xpose.msra.mxu0 0.0
        %1076 = vmatpush.xpose.msra.mxu0 0.0
        %1077 = vmatpush.xpose.msra.mxu0 0.0
        %1078 = vmatpush.xpose.msra.mxu0 0.0
        %1079 = vmatpush.xpose.msra.mxu0 %v1062
        %1080 = vmatmul.f32.gmra.mxu0 %v1060
        %v1081 = vpop.f32.mrf.mxu0
        %v1082 = vadd.f32 0.0, %v1081
        %1083 = vdwg.mxu0
        %v1084 = vmul.f32 %v1082, 0.35355338
        %v1085 = vsel %vm861, %v1084, -inf
        %1086 = vmax.xlane.f32.xlu0 %v1085
        %v1087 = vpop.xlane.xlu0 %1086
        %v1088 = vsub.f32 %v1084, %v1087
        %v1089 = vmul.f32 %v1088, 1.442695
        %v1090 = vpow.pop %v1089
        %v1091 = vsel %vm861, %v1090, 0.0
        %1092 = vadd.xlane.f32.xlu0 %v1091
        %v1093 = vpop.xlane.xlu0 %1092
        %v1094 = vrcp.pop %v1093
        %v1095 = vmul.f32 %v1090, %v1094
        %1096 = vrot.lane.b32.xlu0 %v853, 40
        %v1097 = vpop.permute.xlu0 %1096
        %v1100 = vsel %vm861, %v1095, 0
        %1102 = vmatpush.msra.mxu0 0.0
        %1103 = vmatpush.msra.mxu0 0.0
        %1104 = vmatpush.msra.mxu0 0.0
        %1105 = vmatpush.msra.mxu0 0.0
        %1106 = vmatpush.msra.mxu0 0.0
        %1107 = vmatpush.msra.mxu0 0.0
        %1108 = vmatpush.msra.mxu0 0.0
        %1109 = vmatpush.msra.mxu0 0.0
        %1110 = vmatpush.msra.mxu0 0.0
        %1111 = vmatpush.msra.mxu0 0.0
        %1112 = vmatpush.msra.mxu0 0.0
        %1113 = vmatpush.msra.mxu0 0.0
        %1114 = vmatpush.msra.mxu0 0.0
        %1115 = vmatpush.msra.mxu0 0.0
        %1116 = vmatpush.msra.mxu0 0.0
        %1117 = vmatpush.msra.mxu0 %v1097
        %1118 = vmatmul.f32.gmra.mxu0 %v1100
        %v1119 = vpop.f32.mrf.mxu0
        %v1120 = vadd.f32 0.0, %v1119
        %1121 = vdwg.mxu0
        %1123 = vrot.lane.b32.xlu0 %v988, 8
        %v1124 = vpop.permute.xlu0 %1123
        %1127 = vrot.lane.b32.xlu0 %v1054, 16
        %v1128 = vpop.permute.xlu0 %1127
        %1131 = vrot.lane.b32.xlu0 %v1120, 24
        %v1132 = vpop.permute.xlu0 %1131
        %v1134 = vsel %vm861, %v922, %v1124
        %vm1135 = vcmask 130048
        %v1136 = vsel %vm1135, %v1134, %v1128
        %vm1137 = vcmask 195584
        %v1138 = vsel %vm1137, %v1136, %v1132
        %1140 = vrot.lane.b32.xlu0 %v856, 96
        %v1141 = vpop.permute.xlu0 %1140
        %v1142 = vsel %vm861, %v856, 0
        %v1144 = vsel %vm861, %v1141, 0
        %1146 = vmatpush.xpose.msra.mxu0 0.0
        %1147 = vmatpush.xpose.msra.mxu0 0.0
        %1148 = vmatpush.xpose.msra.mxu0 0.0
        %1149 = vmatpush.xpose.msra.mxu0 0.0
        %1150 = vmatpush.xpose.msra.mxu0 0.0
        %1151 = vmatpush.xpose.msra.mxu0 0.0
        %1152 = vmatpush.xpose.msra.mxu0 0.0
        %1153 = vmatpush.xpose.msra.mxu0 0.0
        %1154 = vmatpush.xpose.msra.mxu0 0.0
        %1155 = vmatpush.xpose.msra.mxu0 0.0
        %1156 = vmatpush.xpose.msra.mxu0 0.0
        %1157 = vmatpush.xpose.msra.mxu0 0.0
        %1158 = vmatpush.xpose.msra.mxu0 0.0
        %1159 = vmatpush.xpose.msra.mxu0 0.0
        %1160 = vmatpush.xpose.msra.mxu0 0.0
        %1161 = vmatpush.xpose.msra.mxu0 %v1144
        %1162 = vmatmul.f32.gmra.mxu0 %v1142
        %v1163 = vpop.f32.mrf.mxu0
        %v1164 = vadd.f32 0.0, %v1163
        %1165 = vdwg.mxu0
        %v1166 = vmul.f32 %v1164, 0.35355338
        %v1167 = vsel %vm861, %v1166, -inf
        %1168 = vmax.xlane.f32.xlu0 %v1167
        %v1169 = vpop.xlane.xlu0 %1168
        %v1170 = vsub.f32 %v1166, %v1169
        %v1171 = vmul.f32 %v1170, 1.442695
        %v1172 = vpow.pop %v1171
        %v1173 = vsel %vm861, %v1172, 0.0
        %1174 = vadd.xlane.f32.xlu0 %v1173
        %v1175 = vpop.xlane.xlu0 %1174
        %v1176 = vrcp.pop %v1175
        %v1177 = vmul.f32 %v1172, %v1176
        %1178 = vrot.lane.b32.xlu0 %v856, 64
        %v1179 = vpop.permute.xlu0 %1178
        %v1182 = vsel %vm861, %v1177, 0
        %1184 = vmatpush.msra.mxu0 0.0
        %1185 = vmatpush.msra.mxu0 0.0
        %1186 = vmatpush.msra.mxu0 0.0
        %1187 = vmatpush.msra.mxu0 0.0
        %1188 = vmatpush.msra.mxu0 0.0
        %1189 = vmatpush.msra.mxu0 0.0
        %1190 = vmatpush.msra.mxu0 0.0
        %1191 = vmatpush.msra.mxu0 0.0
        %1192 = vmatpush.msra.mxu0 0.0
        %1193 = vmatpush.msra.mxu0 0.0
        %1194 = vmatpush.msra.mxu0 0.0
        %1195 = vmatpush.msra.mxu0 0.0
        %1196 = vmatpush.msra.mxu0 0.0
        %1197 = vmatpush.msra.mxu0 0.0
        %1198 = vmatpush.msra.mxu0 0.0
        %1199 = vmatpush.msra.mxu0 %v1179
        %1200 = vmatmul.f32.gmra.mxu0 %v1182
        %v1201 = vpop.f32.mrf.mxu0
        %v1202 = vadd.f32 0.0, %v1201
        %1203 = vdwg.mxu0
        %1204 = vrot.lane.b32.xlu0 %v856, 120
        %v1205 = vpop.permute.xlu0 %1204
        %1206 = vrot.lane.b32.xlu0 %v856, 88
        %v1207 = vpop.permute.xlu0 %1206
        %v1208 = vsel %vm861, %v1205, 0
        %v1210 = vsel %vm861, %v1207, 0
        %1212 = vmatpush.xpose.msra.mxu0 0.0
        %1213 = vmatpush.xpose.msra.mxu0 0.0
        %1214 = vmatpush.xpose.msra.mxu0 0.0
        %1215 = vmatpush.xpose.msra.mxu0 0.0
        %1216 = vmatpush.xpose.msra.mxu0 0.0
        %1217 = vmatpush.xpose.msra.mxu0 0.0
        %1218 = vmatpush.xpose.msra.mxu0 0.0
        %1219 = vmatpush.xpose.msra.mxu0 0.0
        %1220 = vmatpush.xpose.msra.mxu0 0.0
        %1221 = vmatpush.xpose.msra.mxu0 0.0
        %1222 = vmatpush.xpose.msra.mxu0 0.0
        %1223 = vmatpush.xpose.msra.mxu0 0.0
        %1224 = vmatpush.xpose.msra.mxu0 0.0
        %1225 = vmatpush.xpose.msra.mxu0 0.0
        %1226 = vmatpush.xpose.msra.mxu0 0.0
        %1227 = vmatpush.xpose.msra.mxu0 %v1210
        %1228 = vmatmul.f32.gmra.mxu0 %v1208
        %v1229 = vpop.f32.mrf.mxu0
        %v1230 = vadd.f32 0.0, %v1229
        %1231 = vdwg.mxu0
        %v1232 = vmul.f32 %v1230, 0.35355338
        %v1233 = vsel %vm861, %v1232, -inf
        %1234 = vmax.xlane.f32.xlu0 %v1233
        %v1235 = vpop.xlane.xlu0 %1234
        %v1236 = vsub.f32 %v1232, %v1235
        %v1237 = vmul.f32 %v1236, 1.442695
        %v1238 = vpow.pop %v1237
        %v1239 = vsel %vm861, %v1238, 0.0
        %1240 = vadd.xlane.f32.xlu0 %v1239
        %v1241 = vpop.xlane.xlu0 %1240
        %v1242 = vrcp.pop %v1241
        %v1243 = vmul.f32 %v1238, %v1242
        %1244 = vrot.lane.b32.xlu0 %v856, 56
        %v1245 = vpop.permute.xlu0 %1244
        %v1248 = vsel %vm861, %v1243, 0
        %1250 = vmatpush.msra.mxu0 0.0
        %1251 = vmatpush.msra.mxu0 0.0
        %1252 = vmatpush.msra.mxu0 0.0
        %1253 = vmatpush.msra.mxu0 0.0
        %1254 = vmatpush.msra.mxu0 0.0
        %1255 = vmatpush.msra.mxu0 0.0
        %1256 = vmatpush.msra.mxu0 0.0
        %1257 = vmatpush.msra.mxu0 0.0
        %1258 = vmatpush.msra.mxu0 0.0
        %1259 = vmatpush.msra.mxu0 0.0
        %1260 = vmatpush.msra.mxu0 0.0
        %1261 = vmatpush.msra.mxu0 0.0
        %1262 = vmatpush.msra.mxu0 0.0
        %1263 = vmatpush.msra.mxu0 0.0
        %1264 = vmatpush.msra.mxu0 0.0
        %1265 = vmatpush.msra.mxu0 %v1245
        %1266 = vmatmul.f32.gmra.mxu0 %v1248
        %v1267 = vpop.f32.mrf.mxu0
        %v1268 = vadd.f32 0.0, %v1267
        %1269 = vdwg.mxu0
        %1270 = vrot.lane.b32.xlu0 %v856, 112
        %v1271 = vpop.permute.xlu0 %1270
        %1272 = vrot.lane.b32.xlu0 %v856, 80
        %v1273 = vpop.permute.xlu0 %1272
        %v1274 = vsel %vm861, %v1271, 0
        %v1276 = vsel %vm861, %v1273, 0
        %1278 = vmatpush.xpose.msra.mxu0 0.0
        %1279 = vmatpush.xpose.msra.mxu0 0.0
        %1280 = vmatpush.xpose.msra.mxu0 0.0
        %1281 = vmatpush.xpose.msra.mxu0 0.0
        %1282 = vmatpush.xpose.msra.mxu0 0.0
        %1283 = vmatpush.xpose.msra.mxu0 0.0
        %1284 = vmatpush.xpose.msra.mxu0 0.0
        %1285 = vmatpush.xpose.msra.mxu0 0.0
        %1286 = vmatpush.xpose.msra.mxu0 0.0
        %1287 = vmatpush.xpose.msra.mxu0 0.0
        %1288 = vmatpush.xpose.msra.mxu0 0.0
        %1289 = vmatpush.xpose.msra.mxu0 0.0
        %1290 = vmatpush.xpose.msra.mxu0 0.0
        %1291 = vmatpush.xpose.msra.mxu0 0.0
        %1292 = vmatpush.xpose.msra.mxu0 0.0
        %1293 = vmatpush.xpose.msra.mxu0 %v1276
        %1294 = vmatmul.f32.gmra.mxu0 %v1274
        %v1295 = vpop.f32.mrf.mxu0
        %v1296 = vadd.f32 0.0, %v1295
        %1297 = vdwg.mxu0
        %v1298 = vmul.f32 %v1296, 0.35355338
        %v1299 = vsel %vm861, %v1298, -inf
        %1300 = vmax.xlane.f32.xlu0 %v1299
        %v1301 = vpop.xlane.xlu0 %1300
        %v1302 = vsub.f32 %v1298, %v1301
        %v1303 = vmul.f32 %v1302, 1.442695
        %v1304 = vpow.pop %v1303
        %v1305 = vsel %vm861, %v1304, 0.0
        %1306 = vadd.xlane.f32.xlu0 %v1305
        %v1307 = vpop.xlane.xlu0 %1306
        %v1308 = vrcp.pop %v1307
        %v1309 = vmul.f32 %v1304, %v1308
        %1310 = vrot.lane.b32.xlu0 %v856, 48
        %v1311 = vpop.permute.xlu0 %1310
        %v1314 = vsel %vm861, %v1309, 0
        %1316 = vmatpush.msra.mxu0 0.0
        %1317 = vmatpush.msra.mxu0 0.0
        %1318 = vmatpush.msra.mxu0 0.0
        %1319 = vmatpush.msra.mxu0 0.0
        %1320 = vmatpush.msra.mxu0 0.0
        %1321 = vmatpush.msra.mxu0 0.0
        %1322 = vmatpush.msra.mxu0 0.0
        %1323 = vmatpush.msra.mxu0 0.0
        %1324 = vmatpush.msra.mxu0 0.0
        %1325 = vmatpush.msra.mxu0 0.0
        %1326 = vmatpush.msra.mxu0 0.0
        %1327 = vmatpush.msra.mxu0 0.0
        %1328 = vmatpush.msra.mxu0 0.0
        %1329 = vmatpush.msra.mxu0 0.0
        %1330 = vmatpush.msra.mxu0 0.0
        %1331 = vmatpush.msra.mxu0 %v1311
        %1332 = vmatmul.f32.gmra.mxu0 %v1314
        %v1333 = vpop.f32.mrf.mxu0
        %v1334 = vadd.f32 0.0, %v1333
        %1335 = vdwg.mxu0
        %1336 = vrot.lane.b32.xlu0 %v856, 104
        %v1337 = vpop.permute.xlu0 %1336
        %1338 = vrot.lane.b32.xlu0 %v856, 72
        %v1339 = vpop.permute.xlu0 %1338
        %v1340 = vsel %vm861, %v1337, 0
        %v1342 = vsel %vm861, %v1339, 0
        %1344 = vmatpush.xpose.msra.mxu0 0.0
        %1345 = vmatpush.xpose.msra.mxu0 0.0
        %1346 = vmatpush.xpose.msra.mxu0 0.0
        %1347 = vmatpush.xpose.msra.mxu0 0.0
        %1348 = vmatpush.xpose.msra.mxu0 0.0
        %1349 = vmatpush.xpose.msra.mxu0 0.0
        %1350 = vmatpush.xpose.msra.mxu0 0.0
        %1351 = vmatpush.xpose.msra.mxu0 0.0
        %1352 = vmatpush.xpose.msra.mxu0 0.0
        %1353 = vmatpush.xpose.msra.mxu0 0.0
        %1354 = vmatpush.xpose.msra.mxu0 0.0
        %1355 = vmatpush.xpose.msra.mxu0 0.0
        %1356 = vmatpush.xpose.msra.mxu0 0.0
        %1357 = vmatpush.xpose.msra.mxu0 0.0
        %1358 = vmatpush.xpose.msra.mxu0 0.0
        %1359 = vmatpush.xpose.msra.mxu0 %v1342
        %1360 = vmatmul.f32.gmra.mxu0 %v1340
        %v1361 = vpop.f32.mrf.mxu0
        %v1362 = vadd.f32 0.0, %v1361
        %1363 = vdwg.mxu0
        %v1364 = vmul.f32 %v1362, 0.35355338
        %v1365 = vsel %vm861, %v1364, -inf
        %1366 = vmax.xlane.f32.xlu0 %v1365
        %v1367 = vpop.xlane.xlu0 %1366
        %v1368 = vsub.f32 %v1364, %v1367
        %v1369 = vmul.f32 %v1368, 1.442695
        %v1370 = vpow.pop %v1369
        %v1371 = vsel %vm861, %v1370, 0.0
        %1372 = vadd.xlane.f32.xlu0 %v1371
        %v1373 = vpop.xlane.xlu0 %1372
        %v1374 = vrcp.pop %v1373
        %v1375 = vmul.f32 %v1370, %v1374
        %1376 = vrot.lane.b32.xlu0 %v856, 40
        %v1377 = vpop.permute.xlu0 %1376
        %v1380 = vsel %vm861, %v1375, 0
        %1382 = vmatpush.msra.mxu0 0.0
        %1383 = vmatpush.msra.mxu0 0.0
        %1384 = vmatpush.msra.mxu0 0.0
        %1385 = vmatpush.msra.mxu0 0.0
        %1386 = vmatpush.msra.mxu0 0.0
        %1387 = vmatpush.msra.mxu0 0.0
        %1388 = vmatpush.msra.mxu0 0.0
        %1389 = vmatpush.msra.mxu0 0.0
        %1390 = vmatpush.msra.mxu0 0.0
        %1391 = vmatpush.msra.mxu0 0.0
        %1392 = vmatpush.msra.mxu0 0.0
        %1393 = vmatpush.msra.mxu0 0.0
        %1394 = vmatpush.msra.mxu0 0.0
        %1395 = vmatpush.msra.mxu0 0.0
        %1396 = vmatpush.msra.mxu0 0.0
        %1397 = vmatpush.msra.mxu0 %v1377
        %1398 = vmatmul.f32.gmra.mxu0 %v1380
        %v1399 = vpop.f32.mrf.mxu0
        %v1400 = vadd.f32 0.0, %v1399
        %1401 = vdwg.mxu0
        %1403 = vrot.lane.b32.xlu0 %v1268, 8
        %v1404 = vpop.permute.xlu0 %1403
        %1407 = vrot.lane.b32.xlu0 %v1334, 16
        %v1408 = vpop.permute.xlu0 %1407
        %1411 = vrot.lane.b32.xlu0 %v1400, 24
        %v1412 = vpop.permute.xlu0 %1411
        %v1414 = vsel %vm861, %v1202, %v1404
        %v1415 = vsel %vm1135, %v1414, %v1408
        %v1416 = vsel %vm1137, %v1415, %v1412
        %v1417 = vld [vmem:[%s612] sm:$0xff]
        %v1418 = vld [vmem:[%s612 + $0x8] sm:$0xff]
        %v1419 = vld [vmem:[%s612 + $0x10] sm:$0xff]
        %v1420 = vld [vmem:[%s612 + $0x18] sm:$0xff]
        %v1422 = vsel %vm753, %v1138, 0
        %v1425 = vsel %vm753, %v1416, 0
        %1427 = vmatpush.msra.mxu0 0.0
        %1428 = vmatpush.msra.mxu0 0.0
        %1429 = vmatpush.msra.mxu0 0.0
        %1430 = vmatpush.msra.mxu0 0.0
        %1431 = vmatpush.msra.mxu0 0.0
        %1432 = vmatpush.msra.mxu0 0.0
        %1433 = vmatpush.msra.mxu0 0.0
        %1434 = vmatpush.msra.mxu0 0.0
        %1435 = vmatpush.msra.mxu0 0.0
        %1436 = vmatpush.msra.mxu0 0.0
        %1437 = vmatpush.msra.mxu0 0.0
        %1438 = vmatpush.msra.mxu0 0.0
        %1439 = vmatpush.msra.mxu0 %v1420
        %1440 = vmatpush.msra.mxu0 %v1419
        %1441 = vmatpush.msra.mxu0 %v1418
        %1442 = vmatpush.msra.mxu0 %v1417
        %1443 = vmatmul.f32.gmra.mxu0 %v1422
        %v1444 = vpop.f32.mrf.mxu0
        %v1445 = vadd.f32 0.0, %v1444
        %1446 = vmatmul.f32.gmra.mxu0 %v1425
        %v1447 = vpop.f32.mrf.mxu0
        %v1448 = vadd.f32 0.0, %v1447
        %1449 = vdwg.mxu0
        %v1450 = vadd.f32 %v749, %v1445
        %v1451 = vadd.f32 %v750, %v1448
        %v1452 = vld [vmem:[%s726] sm:$0x1]
        %v1454 = vperm.slane %v1452, 0
        %v1456 = vadd.f32 %v1450, %v1454
        %v1457 = vadd.f32 %v1451, %v1454
        %v1458 = vld [vmem:[%s729] sm:$0x1]
        %v1459 = vld [vmem:[%s732] sm:$0x1]
        %v1460 = vsel %vm753, %v1456, 0.0
        %1461 = vadd.xlane.f32.xlu0 %v1460
        %v1462 = vpop.xlane.xlu0 %1461
        %v1463 = vsel %vm753, %v1457, 0.0
        %1464 = vadd.xlane.f32.xlu0 %v1463
        %v1465 = vpop.xlane.xlu0 %1464
        %v1466 = vmul.f32 %v1462, %v766
        %v1467 = vmul.f32 %v1465, %v766
        %v1468 = vsub.f32 %v1456, %v1466
        %v1469 = vsub.f32 %v1457, %v1467
        %v1470 = vmul.f32 %v1468, %v1468
        %v1471 = vmul.f32 %v1469, %v1469
        %v1472 = vsel %vm753, %v1470, 0.0
        %1473 = vadd.xlane.f32.xlu0 %v1472
        %v1474 = vpop.xlane.xlu0 %1473
        %v1475 = vsel %vm753, %v1471, 0.0
        %1476 = vadd.xlane.f32.xlu0 %v1475
        %v1477 = vpop.xlane.xlu0 %1476
        %v1478 = vmul.f32 %v1474, 0.032258064
        %v1479 = vmul.f32 %v1477, 0.032258064
        %v1480 = vrsqrt.pop %v1478
        %v1481 = vmul.f32 %v1480, %v1478
        %v1482 = vmul.f32 %v1481, %v1480
        %v1483 = vmul.f32 0.5, %v1482
        %v1484 = vsub.f32 1.5, %v1483
        %v1485 = vmul.f32 %v1480, %v1484
        %v1486 = vmul.f32 %v1478, %v1485
        %vm1487 = vcmp.eq.f32.partialorder %v1478, inf
        %v1488 = vsel %vm1487, %v1478, %v1486
        %vm1489 = vcmp.eq.f32.partialorder %v1478, 0.0
        %v1490 = vand.u32 %v1478, 2147483648
        %v1491 = vsel %vm1489, %v1490, %v1488
        %v1492 = vrsqrt.pop %v1479
        %v1493 = vmul.f32 %v1492, %v1479
        %v1494 = vmul.f32 %v1493, %v1492
        %v1495 = vmul.f32 0.5, %v1494
        %v1496 = vsub.f32 1.5, %v1495
        %v1497 = vmul.f32 %v1492, %v1496
        %v1498 = vmul.f32 %v1479, %v1497
        %vm1499 = vcmp.eq.f32.partialorder %v1479, inf
        %v1500 = vsel %vm1499, %v1479, %v1498
        %vm1501 = vcmp.eq.f32.partialorder %v1479, 0.0
        %v1502 = vand.u32 %v1479, 2147483648
        %v1503 = vsel %vm1501, %v1502, %v1500
        %v1504 = vadd.f32 %v1491, 1e-06
        %v1505 = vadd.f32 %v1503, 1e-06
        %v1506 = vrcp.pop %v1504
        %v1507 = vrcp.pop %v1505
        %v1509 = vperm.slane %v1458, 0
        %v1511 = vmul.f32 %v1509, %v1468
        %v1512 = vmul.f32 %v1509, %v1469
        %v1513 = vmul.f32 %v1511, %v1506
        %v1514 = vmul.f32 %v1512, %v1507
        %v1516 = vperm.slane %v1459, 0
        %v1518 = vadd.f32 %v1513, %v1516
        %v1519 = vadd.f32 %v1514, %v1516
        %v1520 = vld [vmem:[%s622] sm:$0xff]
        %v1521 = vld [vmem:[%s622 + $0x8] sm:$0xff]
        %v1522 = vld [vmem:[%s622 + $0x10] sm:$0xff]
        %v1523 = vld [vmem:[%s622 + $0x18] sm:$0xff]
        %v1524 = vld [vmem:[%s622 + $0x20] sm:$0xff]
        %v1525 = vld [vmem:[%s622 + $0x28] sm:$0xff]
        %v1526 = vld [vmem:[%s622 + $0x30] sm:$0xff]
        %v1527 = vld [vmem:[%s622 + $0x38] sm:$0xff]
        %v1528 = vld [vmem:[%s622 + $0x40] sm:$0xff]
        %v1529 = vld [vmem:[%s622 + $0x48] sm:$0xff]
        %v1530 = vld [vmem:[%s622 + $0x50] sm:$0xff]
        %v1531 = vld [vmem:[%s622 + $0x58] sm:$0xff]
        %v1532 = vld [vmem:[%s622 + $0x60] sm:$0xff]
        %v1533 = vld [vmem:[%s622 + $0x68] sm:$0xff]
        %v1534 = vld [vmem:[%s622 + $0x70] sm:$0xff]
        %v1535 = vld [vmem:[%s622 + $0x78] sm:$0xff]
        %v1536 = vld [vmem:[%s622 + $0x80] sm:$0xff]
        %v1537 = vld [vmem:[%s622 + $0x88] sm:$0xff]
        %v1538 = vld [vmem:[%s622 + $0x90] sm:$0xff]
        %v1539 = vld [vmem:[%s622 + $0x98] sm:$0xff]
        %v1540 = vld [vmem:[%s622 + $0xa0] sm:$0xff]
        %v1541 = vld [vmem:[%s622 + $0xa8] sm:$0xff]
        %v1542 = vld [vmem:[%s622 + $0xb0] sm:$0xff]
        %v1543 = vld [vmem:[%s622 + $0xb8] sm:$0xff]
        %v1544 = vld [vmem:[%s622 + $0xc0] sm:$0xff]
        %v1545 = vld [vmem:[%s622 + $0xc8] sm:$0xff]
        %v1546 = vld [vmem:[%s622 + $0xd0] sm:$0xff]
        %v1547 = vld [vmem:[%s622 + $0xd8] sm:$0xff]
        %v1548 = vld [vmem:[%s622 + $0xe0] sm:$0xff]
        %v1549 = vld [vmem:[%s622 + $0xe8] sm:$0xff]
        %v1550 = vld [vmem:[%s622 + $0xf0] sm:$0xff]
        %v1551 = vld [vmem:[%s622 + $0xf8] sm:$0xff]
        %v1552 = vld [vmem:[%s622 + $0x100] sm:$0xff]
        %v1553 = vld [vmem:[%s622 + $0x108] sm:$0xff]
        %v1554 = vld [vmem:[%s622 + $0x110] sm:$0xff]
        %v1555 = vld [vmem:[%s622 + $0x118] sm:$0xff]
        %v1556 = vld [vmem:[%s622 + $0x120] sm:$0xff]
        %v1557 = vld [vmem:[%s622 + $0x128] sm:$0xff]
        %v1558 = vld [vmem:[%s622 + $0x130] sm:$0xff]
        %v1559 = vld [vmem:[%s622 + $0x138] sm:$0xff]
        %v1560 = vld [vmem:[%s622 + $0x140] sm:$0xff]
        %v1561 = vld [vmem:[%s622 + $0x148] sm:$0xff]
        %v1562 = vld [vmem:[%s622 + $0x150] sm:$0xff]
        %v1563 = vld [vmem:[%s622 + $0x158] sm:$0xff]
        %v1564 = vld [vmem:[%s622 + $0x160] sm:$0xff]
        %v1565 = vld [vmem:[%s622 + $0x168] sm:$0xff]
        %v1566 = vld [vmem:[%s622 + $0x170] sm:$0xff]
        %v1567 = vld [vmem:[%s622 + $0x178] sm:$0xff]
        %v1568 = vld [vmem:[%s622 + $0x180] sm:$0xff]
        %v1569 = vld [vmem:[%s622 + $0x188] sm:$0xff]
        %v1570 = vld [vmem:[%s622 + $0x190] sm:$0xff]
        %v1571 = vld [vmem:[%s622 + $0x198] sm:$0xff]
        %v1572 = vld [vmem:[%s622 + $0x1a0] sm:$0xff]
        %v1573 = vld [vmem:[%s622 + $0x1a8] sm:$0xff]
        %v1574 = vld [vmem:[%s622 + $0x1b0] sm:$0xff]
        %v1575 = vld [vmem:[%s622 + $0x1b8] sm:$0xff]
        %v1576 = vld [vmem:[%s622 + $0x1c0] sm:$0xff]
        %v1577 = vld [vmem:[%s622 + $0x1c8] sm:$0xff]
        %v1578 = vld [vmem:[%s622 + $0x1d0] sm:$0xff]
        %v1579 = vld [vmem:[%s622 + $0x1d8] sm:$0xff]
        %v1580 = vld [vmem:[%s622 + $0x1e0] sm:$0xff]
        %v1581 = vld [vmem:[%s622 + $0x1e8] sm:$0xff]
        %v1582 = vld [vmem:[%s622 + $0x1f0] sm:$0xff]
        %v1583 = vld [vmem:[%s622 + $0x1f8] sm:$0xff]
        %v1584 = vld [vmem:[%s736] sm:$0xff]
        %v1585 = vld [vmem:[%s736 + $0x8] sm:$0xff]
        %v1588 = vperm.slane %v1584, 0
        %v1589 = vperm.slane %v1584, 1
        %v1590 = vperm.slane %v1584, 2
        %v1591 = vperm.slane %v1584, 3
        %v1592 = vperm.slane %v1584, 4
        %v1593 = vperm.slane %v1584, 5
        %v1594 = vperm.slane %v1584, 6
        %v1595 = vperm.slane %v1584, 7
        %v1596 = vperm.slane %v1585, 0
        %v1597 = vperm.slane %v1585, 1
        %v1598 = vperm.slane %v1585, 2
        %v1599 = vperm.slane %v1585, 3
        %v1600 = vperm.slane %v1585, 4
        %v1601 = vperm.slane %v1585, 5
        %v1602 = vperm.slane %v1585, 6
        %v1603 = vperm.slane %v1585, 7
        %v1621 = vsel %vm753, %v1518, 0
        %v1624 = vsel %vm753, %v1519, 0
        %1626 = vmatpush.msra.mxu0 0.0
        %1627 = vmatpush.msra.mxu0 0.0
        %1628 = vmatpush.msra.mxu0 0.0
        %1629 = vmatpush.msra.mxu0 0.0
        %1630 = vmatpush.msra.mxu0 0.0
        %1631 = vmatpush.msra.mxu0 0.0
        %1632 = vmatpush.msra.mxu0 0.0
        %1633 = vmatpush.msra.mxu0 0.0
        %1634 = vmatpush.msra.mxu0 0.0
        %1635 = vmatpush.msra.mxu0 0.0
        %1636 = vmatpush.msra.mxu0 0.0
        %1637 = vmatpush.msra.mxu0 0.0
        %1638 = vmatpush.msra.mxu0 %v1568
        %1639 = vmatpush.msra.mxu0 %v1552
        %1640 = vmatpush.msra.mxu0 %v1536
        %1641 = vmatpush.msra.mxu0 %v1520
        %1642 = vmatmul.f32.gmra.mxu0 %v1621
        %v1643 = vpop.f32.mrf.mxu0
        %v1644 = vadd.f32 %v1588, %v1643
        %1645 = vmatmul.f32.gmra.mxu0 %v1624
        %v1646 = vpop.f32.mrf.mxu0
        %v1647 = vadd.f32 %v1588, %v1646
        %1648 = vdwg.mxu0
        %1649 = vmatpush.msra.mxu0 0.0
        %1650 = vmatpush.msra.mxu0 0.0
        %1651 = vmatpush.msra.mxu0 0.0
        %1652 = vmatpush.msra.mxu0 0.0
        %1653 = vmatpush.msra.mxu0 0.0
        %1654 = vmatpush.msra.mxu0 0.0
        %1655 = vmatpush.msra.mxu0 0.0
        %1656 = vmatpush.msra.mxu0 0.0
        %1657 = vmatpush.msra.mxu0 0.0
        %1658 = vmatpush.msra.mxu0 0.0
        %1659 = vmatpush.msra.mxu0 0.0
        %1660 = vmatpush.msra.mxu0 0.0
        %1661 = vmatpush.msra.mxu0 %v1569
        %1662 = vmatpush.msra.mxu0 %v1553
        %1663 = vmatpush.msra.mxu0 %v1537
        %1664 = vmatpush.msra.mxu0 %v1521
        %1665 = vmatmul.f32.gmra.mxu0 %v1621
        %v1666 = vpop.f32.mrf.mxu0
        %v1667 = vadd.f32 %v1589, %v1666
        %1668 = vmatmul.f32.gmra.mxu0 %v1624
        %v1669 = vpop.f32.mrf.mxu0
        %v1670 = vadd.f32 %v1589, %v1669
        %1671 = vdwg.mxu0
        %1672 = vmatpush.msra.mxu0 0.0
        %1673 = vmatpush.msra.mxu0 0.0
        %1674 = vmatpush.msra.mxu0 0.0
        %1675 = vmatpush.msra.mxu0 0.0
        %1676 = vmatpush.msra.mxu0 0.0
        %1677 = vmatpush.msra.mxu0 0.0
        %1678 = vmatpush.msra.mxu0 0.0
        %1679 = vmatpush.msra.mxu0 0.0
        %1680 = vmatpush.msra.mxu0 0.0
        %1681 = vmatpush.msra.mxu0 0.0
        %1682 = vmatpush.msra.mxu0 0.0
        %1683 = vmatpush.msra.mxu0 0.0
        %1684 = vmatpush.msra.mxu0 %v1570
        %1685 = vmatpush.msra.mxu0 %v1554
        %1686 = vmatpush.msra.mxu0 %v1538
        %1687 = vmatpush.msra.mxu0 %v1522
        %1688 = vmatmul.f32.gmra.mxu0 %v1621
        %v1689 = vpop.f32.mrf.mxu0
        %v1690 = vadd.f32 %v1590, %v1689
        %1691 = vmatmul.f32.gmra.mxu0 %v1624
        %v1692 = vpop.f32.mrf.mxu0
        %v1693 = vadd.f32 %v1590, %v1692
        %1694 = vdwg.mxu0
        %1695 = vmatpush.msra.mxu0 0.0
        %1696 = vmatpush.msra.mxu0 0.0
        %1697 = vmatpush.msra.mxu0 0.0
        %1698 = vmatpush.msra.mxu0 0.0
        %1699 = vmatpush.msra.mxu0 0.0
        %1700 = vmatpush.msra.mxu0 0.0
        %1701 = vmatpush.msra.mxu0 0.0
        %1702 = vmatpush.msra.mxu0 0.0
        %1703 = vmatpush.msra.mxu0 0.0
        %1704 = vmatpush.msra.mxu0 0.0
        %1705 = vmatpush.msra.mxu0 0.0
        %1706 = vmatpush.msra.mxu0 0.0
        %1707 = vmatpush.msra.mxu0 %v1571
        %1708 = vmatpush.msra.mxu0 %v1555
        %1709 = vmatpush.msra.mxu0 %v1539
        %1710 = vmatpush.msra.mxu0 %v1523
        %1711 = vmatmul.f32.gmra.mxu0 %v1621
        %v1712 = vpop.f32.mrf.mxu0
        %v1713 = vadd.f32 %v1591, %v1712
        %1714 = vmatmul.f32.gmra.mxu0 %v1624
        %v1715 = vpop.f32.mrf.mxu0
        %v1716 = vadd.f32 %v1591, %v1715
        %1717 = vdwg.mxu0
        %1718 = vmatpush.msra.mxu0 0.0
        %1719 = vmatpush.msra.mxu0 0.0
        %1720 = vmatpush.msra.mxu0 0.0
        %1721 = vmatpush.msra.mxu0 0.0
        %1722 = vmatpush.msra.mxu0 0.0
        %1723 = vmatpush.msra.mxu0 0.0
        %1724 = vmatpush.msra.mxu0 0.0
        %1725 = vmatpush.msra.mxu0 0.0
        %1726 = vmatpush.msra.mxu0 0.0
        %1727 = vmatpush.msra.mxu0 0.0
        %1728 = vmatpush.msra.mxu0 0.0
        %1729 = vmatpush.msra.mxu0 0.0
        %1730 = vmatpush.msra.mxu0 %v1572
        %1731 = vmatpush.msra.mxu0 %v1556
        %1732 = vmatpush.msra.mxu0 %v1540
        %1733 = vmatpush.msra.mxu0 %v1524
        %1734 = vmatmul.f32.gmra.mxu0 %v1621
        %v1735 = vpop.f32.mrf.mxu0
        %v1736 = vadd.f32 %v1592, %v1735
        %1737 = vmatmul.f32.gmra.mxu0 %v1624
        %v1738 = vpop.f32.mrf.mxu0
        %v1739 = vadd.f32 %v1592, %v1738
        %1740 = vdwg.mxu0
        %1741 = vmatpush.msra.mxu0 0.0
        %1742 = vmatpush.msra.mxu0 0.0
        %1743 = vmatpush.msra.mxu0 0.0
        %1744 = vmatpush.msra.mxu0 0.0
        %1745 = vmatpush.msra.mxu0 0.0
        %1746 = vmatpush.msra.mxu0 0.0
        %1747 = vmatpush.msra.mxu0 0.0
        %1748 = vmatpush.msra.mxu0 0.0
        %1749 = vmatpush.msra.mxu0 0.0
        %1750 = vmatpush.msra.mxu0 0.0
        %1751 = vmatpush.msra.mxu0 0.0
        %1752 = vmatpush.msra.mxu0 0.0
        %1753 = vmatpush.msra.mxu0 %v1573
        %1754 = vmatpush.msra.mxu0 %v1557
        %1755 = vmatpush.msra.mxu0 %v1541
        %1756 = vmatpush.msra.mxu0 %v1525
        %1757 = vmatmul.f32.gmra.mxu0 %v1621
        %v1758 = vpop.f32.mrf.mxu0
        %v1759 = vadd.f32 %v1593, %v1758
        %1760 = vmatmul.f32.gmra.mxu0 %v1624
        %v1761 = vpop.f32.mrf.mxu0
        %v1762 = vadd.f32 %v1593, %v1761
        %1763 = vdwg.mxu0
        %1764 = vmatpush.msra.mxu0 0.0
        %1765 = vmatpush.msra.mxu0 0.0
        %1766 = vmatpush.msra.mxu0 0.0
        %1767 = vmatpush.msra.mxu0 0.0
        %1768 = vmatpush.msra.mxu0 0.0
        %1769 = vmatpush.msra.mxu0 0.0
        %1770 = vmatpush.msra.mxu0 0.0
        %1771 = vmatpush.msra.mxu0 0.0
        %1772 = vmatpush.msra.mxu0 0.0
        %1773 = vmatpush.msra.mxu0 0.0
        %1774 = vmatpush.msra.mxu0 0.0
        %1775 = vmatpush.msra.mxu0 0.0
        %1776 = vmatpush.msra.mxu0 %v1574
        %1777 = vmatpush.msra.mxu0 %v1558
        %1778 = vmatpush.msra.mxu0 %v1542
        %1779 = vmatpush.msra.mxu0 %v1526
        %1780 = vmatmul.f32.gmra.mxu0 %v1621
        %v1781 = vpop.f32.mrf.mxu0
        %v1782 = vadd.f32 %v1594, %v1781
        %1783 = vmatmul.f32.gmra.mxu0 %v1624
        %v1784 = vpop.f32.mrf.mxu0
        %v1785 = vadd.f32 %v1594, %v1784
        %1786 = vdwg.mxu0
        %1787 = vmatpush.msra.mxu0 0.0
        %1788 = vmatpush.msra.mxu0 0.0
        %1789 = vmatpush.msra.mxu0 0.0
        %1790 = vmatpush.msra.mxu0 0.0
        %1791 = vmatpush.msra.mxu0 0.0
        %1792 = vmatpush.msra.mxu0 0.0
        %1793 = vmatpush.msra.mxu0 0.0
        %1794 = vmatpush.msra.mxu0 0.0
        %1795 = vmatpush.msra.mxu0 0.0
        %1796 = vmatpush.msra.mxu0 0.0
        %1797 = vmatpush.msra.mxu0 0.0
        %1798 = vmatpush.msra.mxu0 0.0
        %1799 = vmatpush.msra.mxu0 %v1575
        %1800 = vmatpush.msra.mxu0 %v1559
        %1801 = vmatpush.msra.mxu0 %v1543
        %1802 = vmatpush.msra.mxu0 %v1527
        %1803 = vmatmul.f32.gmra.mxu0 %v1621
        %v1804 = vpop.f32.mrf.mxu0
        %v1805 = vadd.f32 %v1595, %v1804
        %1806 = vmatmul.f32.gmra.mxu0 %v1624
        %v1807 = vpop.f32.mrf.mxu0
        %v1808 = vadd.f32 %v1595, %v1807
        %1809 = vdwg.mxu0
        %1810 = vmatpush.msra.mxu0 0.0
        %1811 = vmatpush.msra.mxu0 0.0
        %1812 = vmatpush.msra.mxu0 0.0
        %1813 = vmatpush.msra.mxu0 0.0
        %1814 = vmatpush.msra.mxu0 0.0
        %1815 = vmatpush.msra.mxu0 0.0
        %1816 = vmatpush.msra.mxu0 0.0
        %1817 = vmatpush.msra.mxu0 0.0
        %1818 = vmatpush.msra.mxu0 0.0
        %1819 = vmatpush.msra.mxu0 0.0
        %1820 = vmatpush.msra.mxu0 0.0
        %1821 = vmatpush.msra.mxu0 0.0
        %1822 = vmatpush.msra.mxu0 %v1576
        %1823 = vmatpush.msra.mxu0 %v1560
        %1824 = vmatpush.msra.mxu0 %v1544
        %1825 = vmatpush.msra.mxu0 %v1528
        %1826 = vmatmul.f32.gmra.mxu0 %v1621
        %v1827 = vpop.f32.mrf.mxu0
        %v1828 = vadd.f32 %v1596, %v1827
        %1829 = vmatmul.f32.gmra.mxu0 %v1624
        %v1830 = vpop.f32.mrf.mxu0
        %v1831 = vadd.f32 %v1596, %v1830
        %1832 = vdwg.mxu0
        %1833 = vmatpush.msra.mxu0 0.0
        %1834 = vmatpush.msra.mxu0 0.0
        %1835 = vmatpush.msra.mxu0 0.0
        %1836 = vmatpush.msra.mxu0 0.0
        %1837 = vmatpush.msra.mxu0 0.0
        %1838 = vmatpush.msra.mxu0 0.0
        %1839 = vmatpush.msra.mxu0 0.0
        %1840 = vmatpush.msra.mxu0 0.0
        %1841 = vmatpush.msra.mxu0 0.0
        %1842 = vmatpush.msra.mxu0 0.0
        %1843 = vmatpush.msra.mxu0 0.0
        %1844 = vmatpush.msra.mxu0 0.0
        %1845 = vmatpush.msra.mxu0 %v1577
        %1846 = vmatpush.msra.mxu0 %v1561
        %1847 = vmatpush.msra.mxu0 %v1545
        %1848 = vmatpush.msra.mxu0 %v1529
        %1849 = vmatmul.f32.gmra.mxu0 %v1621
        %v1850 = vpop.f32.mrf.mxu0
        %v1851 = vadd.f32 %v1597, %v1850
        %1852 = vmatmul.f32.gmra.mxu0 %v1624
        %v1853 = vpop.f32.mrf.mxu0
        %v1854 = vadd.f32 %v1597, %v1853
        %1855 = vdwg.mxu0
        %1856 = vmatpush.msra.mxu0 0.0
        %1857 = vmatpush.msra.mxu0 0.0
        %1858 = vmatpush.msra.mxu0 0.0
        %1859 = vmatpush.msra.mxu0 0.0
        %1860 = vmatpush.msra.mxu0 0.0
        %1861 = vmatpush.msra.mxu0 0.0
        %1862 = vmatpush.msra.mxu0 0.0
        %1863 = vmatpush.msra.mxu0 0.0
        %1864 = vmatpush.msra.mxu0 0.0
        %1865 = vmatpush.msra.mxu0 0.0
        %1866 = vmatpush.msra.mxu0 0.0
        %1867 = vmatpush.msra.mxu0 0.0
        %1868 = vmatpush.msra.mxu0 %v1578
        %1869 = vmatpush.msra.mxu0 %v1562
        %1870 = vmatpush.msra.mxu0 %v1546
        %1871 = vmatpush.msra.mxu0 %v1530
        %1872 = vmatmul.f32.gmra.mxu0 %v1621
        %v1873 = vpop.f32.mrf.mxu0
        %v1874 = vadd.f32 %v1598, %v1873
        %1875 = vmatmul.f32.gmra.mxu0 %v1624
        %v1876 = vpop.f32.mrf.mxu0
        %v1877 = vadd.f32 %v1598, %v1876
        %1878 = vdwg.mxu0
        %1879 = vmatpush.msra.mxu0 0.0
        %1880 = vmatpush.msra.mxu0 0.0
        %1881 = vmatpush.msra.mxu0 0.0
        %1882 = vmatpush.msra.mxu0 0.0
        %1883 = vmatpush.msra.mxu0 0.0
        %1884 = vmatpush.msra.mxu0 0.0
        %1885 = vmatpush.msra.mxu0 0.0
        %1886 = vmatpush.msra.mxu0 0.0
        %1887 = vmatpush.msra.mxu0 0.0
        %1888 = vmatpush.msra.mxu0 0.0
        %1889 = vmatpush.msra.mxu0 0.0
        %1890 = vmatpush.msra.mxu0 0.0
        %1891 = vmatpush.msra.mxu0 %v1579
        %1892 = vmatpush.msra.mxu0 %v1563
        %1893 = vmatpush.msra.mxu0 %v1547
        %1894 = vmatpush.msra.mxu0 %v1531
        %1895 = vmatmul.f32.gmra.mxu0 %v1621
        %v1896 = vpop.f32.mrf.mxu0
        %v1897 = vadd.f32 %v1599, %v1896
        %1898 = vmatmul.f32.gmra.mxu0 %v1624
        %v1899 = vpop.f32.mrf.mxu0
        %v1900 = vadd.f32 %v1599, %v1899
        %1901 = vdwg.mxu0
        %1902 = vmatpush.msra.mxu0 0.0
        %1903 = vmatpush.msra.mxu0 0.0
        %1904 = vmatpush.msra.mxu0 0.0
        %1905 = vmatpush.msra.mxu0 0.0
        %1906 = vmatpush.msra.mxu0 0.0
        %1907 = vmatpush.msra.mxu0 0.0
        %1908 = vmatpush.msra.mxu0 0.0
        %1909 = vmatpush.msra.mxu0 0.0
        %1910 = vmatpush.msra.mxu0 0.0
        %1911 = vmatpush.msra.mxu0 0.0
        %1912 = vmatpush.msra.mxu0 0.0
        %1913 = vmatpush.msra.mxu0 0.0
        %1914 = vmatpush.msra.mxu0 %v1580
        %1915 = vmatpush.msra.mxu0 %v1564
        %1916 = vmatpush.msra.mxu0 %v1548
        %1917 = vmatpush.msra.mxu0 %v1532
        %1918 = vmatmul.f32.gmra.mxu0 %v1621
        %v1919 = vpop.f32.mrf.mxu0
        %v1920 = vadd.f32 %v1600, %v1919
        %1921 = vmatmul.f32.gmra.mxu0 %v1624
        %v1922 = vpop.f32.mrf.mxu0
        %v1923 = vadd.f32 %v1600, %v1922
        %1924 = vdwg.mxu0
        %1925 = vmatpush.msra.mxu0 0.0
        %1926 = vmatpush.msra.mxu0 0.0
        %1927 = vmatpush.msra.mxu0 0.0
        %1928 = vmatpush.msra.mxu0 0.0
        %1929 = vmatpush.msra.mxu0 0.0
        %1930 = vmatpush.msra.mxu0 0.0
        %1931 = vmatpush.msra.mxu0 0.0
        %1932 = vmatpush.msra.mxu0 0.0
        %1933 = vmatpush.msra.mxu0 0.0
        %1934 = vmatpush.msra.mxu0 0.0
        %1935 = vmatpush.msra.mxu0 0.0
        %1936 = vmatpush.msra.mxu0 0.0
        %1937 = vmatpush.msra.mxu0 %v1581
        %1938 = vmatpush.msra.mxu0 %v1565
        %1939 = vmatpush.msra.mxu0 %v1549
        %1940 = vmatpush.msra.mxu0 %v1533
        %1941 = vmatmul.f32.gmra.mxu0 %v1621
        %v1942 = vpop.f32.mrf.mxu0
        %v1943 = vadd.f32 %v1601, %v1942
        %1944 = vmatmul.f32.gmra.mxu0 %v1624
        %v1945 = vpop.f32.mrf.mxu0
        %v1946 = vadd.f32 %v1601, %v1945
        %1947 = vdwg.mxu0
        %1948 = vmatpush.msra.mxu0 0.0
        %1949 = vmatpush.msra.mxu0 0.0
        %1950 = vmatpush.msra.mxu0 0.0
        %1951 = vmatpush.msra.mxu0 0.0
        %1952 = vmatpush.msra.mxu0 0.0
        %1953 = vmatpush.msra.mxu0 0.0
        %1954 = vmatpush.msra.mxu0 0.0
        %1955 = vmatpush.msra.mxu0 0.0
        %1956 = vmatpush.msra.mxu0 0.0
        %1957 = vmatpush.msra.mxu0 0.0
        %1958 = vmatpush.msra.mxu0 0.0
        %1959 = vmatpush.msra.mxu0 0.0
        %1960 = vmatpush.msra.mxu0 %v1582
        %1961 = vmatpush.msra.mxu0 %v1566
        %1962 = vmatpush.msra.mxu0 %v1550
        %1963 = vmatpush.msra.mxu0 %v1534
        %1964 = vmatmul.f32.gmra.mxu0 %v1621
        %v1965 = vpop.f32.mrf.mxu0
        %v1966 = vadd.f32 %v1602, %v1965
        %1967 = vmatmul.f32.gmra.mxu0 %v1624
        %v1968 = vpop.f32.mrf.mxu0
        %v1969 = vadd.f32 %v1602, %v1968
        %1970 = vdwg.mxu0
        %1971 = vmatpush.msra.mxu0 0.0
        %1972 = vmatpush.msra.mxu0 0.0
        %1973 = vmatpush.msra.mxu0 0.0
        %1974 = vmatpush.msra.mxu0 0.0
        %1975 = vmatpush.msra.mxu0 0.0
        %1976 = vmatpush.msra.mxu0 0.0
        %1977 = vmatpush.msra.mxu0 0.0
        %1978 = vmatpush.msra.mxu0 0.0
        %1979 = vmatpush.msra.mxu0 0.0
        %1980 = vmatpush.msra.mxu0 0.0
        %1981 = vmatpush.msra.mxu0 0.0
        %1982 = vmatpush.msra.mxu0 0.0
        %1983 = vmatpush.msra.mxu0 %v1583
        %1984 = vmatpush.msra.mxu0 %v1567
        %1985 = vmatpush.msra.mxu0 %v1551
        %1986 = vmatpush.msra.mxu0 %v1535
        %1987 = vmatmul.f32.gmra.mxu0 %v1621
        %v1988 = vpop.f32.mrf.mxu0
        %v1989 = vadd.f32 %v1603, %v1988
        %1990 = vmatmul.f32.gmra.mxu0 %v1624
        %v1991 = vpop.f32.mrf.mxu0
        %v1992 = vadd.f32 %v1603, %v1991
        %1993 = vdwg.mxu0
        %v1994 = vmax.f32 %v1644, 0.0
        %v1995 = vmax.f32 %v1667, 0.0
        %v1996 = vmax.f32 %v1690, 0.0
        %v1997 = vmax.f32 %v1713, 0.0
        %v1998 = vmax.f32 %v1736, 0.0
        %v1999 = vmax.f32 %v1759, 0.0
        %v2000 = vmax.f32 %v1782, 0.0
        %v2001 = vmax.f32 %v1805, 0.0
        %v2002 = vmax.f32 %v1828, 0.0
        %v2003 = vmax.f32 %v1851, 0.0
        %v2004 = vmax.f32 %v1874, 0.0
        %v2005 = vmax.f32 %v1897, 0.0
        %v2006 = vmax.f32 %v1920, 0.0
        %v2007 = vmax.f32 %v1943, 0.0
        %v2008 = vmax.f32 %v1966, 0.0
        %v2009 = vmax.f32 %v1989, 0.0
        %v2010 = vmax.f32 %v1647, 0.0
        %v2011 = vmax.f32 %v1670, 0.0
        %v2012 = vmax.f32 %v1693, 0.0
        %v2013 = vmax.f32 %v1716, 0.0
        %v2014 = vmax.f32 %v1739, 0.0
        %v2015 = vmax.f32 %v1762, 0.0
        %v2016 = vmax.f32 %v1785, 0.0
        %v2017 = vmax.f32 %v1808, 0.0
        %v2018 = vmax.f32 %v1831, 0.0
        %v2019 = vmax.f32 %v1854, 0.0
        %v2020 = vmax.f32 %v1877, 0.0
        %v2021 = vmax.f32 %v1900, 0.0
        %v2022 = vmax.f32 %v1923, 0.0
        %v2023 = vmax.f32 %v1946, 0.0
        %v2024 = vmax.f32 %v1969, 0.0
        %v2025 = vmax.f32 %v1992, 0.0
        %v2026 = vld [vmem:[%s632] sm:$0xff]
        %v2027 = vld [vmem:[%s632 + $0x8] sm:$0xff]
        %v2028 = vld [vmem:[%s632 + $0x10] sm:$0xff]
        %v2029 = vld [vmem:[%s632 + $0x18] sm:$0xff]
        %v2030 = vld [vmem:[%s632 + $0x20] sm:$0xff]
        %v2031 = vld [vmem:[%s632 + $0x28] sm:$0xff]
        %v2032 = vld [vmem:[%s632 + $0x30] sm:$0xff]
        %v2033 = vld [vmem:[%s632 + $0x38] sm:$0xff]
        %v2034 = vld [vmem:[%s632 + $0x40] sm:$0xff]
        %v2035 = vld [vmem:[%s632 + $0x48] sm:$0xff]
        %v2036 = vld [vmem:[%s632 + $0x50] sm:$0xff]
        %v2037 = vld [vmem:[%s632 + $0x58] sm:$0xff]
        %v2038 = vld [vmem:[%s632 + $0x60] sm:$0xff]
        %v2039 = vld [vmem:[%s632 + $0x68] sm:$0xff]
        %v2040 = vld [vmem:[%s632 + $0x70] sm:$0xff]
        %v2041 = vld [vmem:[%s632 + $0x78] sm:$0xff]
        %v2042 = vld [vmem:[%s632 + $0x80] sm:$0xff]
        %v2043 = vld [vmem:[%s632 + $0x88] sm:$0xff]
        %v2044 = vld [vmem:[%s632 + $0x90] sm:$0xff]
        %v2045 = vld [vmem:[%s632 + $0x98] sm:$0xff]
        %v2046 = vld [vmem:[%s632 + $0xa0] sm:$0xff]
        %v2047 = vld [vmem:[%s632 + $0xa8] sm:$0xff]
        %v2048 = vld [vmem:[%s632 + $0xb0] sm:$0xff]
        %v2049 = vld [vmem:[%s632 + $0xb8] sm:$0xff]
        %v2050 = vld [vmem:[%s632 + $0xc0] sm:$0xff]
        %v2051 = vld [vmem:[%s632 + $0xc8] sm:$0xff]
        %v2052 = vld [vmem:[%s632 + $0xd0] sm:$0xff]
        %v2053 = vld [vmem:[%s632 + $0xd8] sm:$0xff]
        %v2054 = vld [vmem:[%s632 + $0xe0] sm:$0xff]
        %v2055 = vld [vmem:[%s632 + $0xe8] sm:$0xff]
        %v2056 = vld [vmem:[%s632 + $0xf0] sm:$0xff]
        %v2057 = vld [vmem:[%s632 + $0xf8] sm:$0xff]
        %v2058 = vld [vmem:[%s632 + $0x100] sm:$0xff]
        %v2059 = vld [vmem:[%s632 + $0x108] sm:$0xff]
        %v2060 = vld [vmem:[%s632 + $0x110] sm:$0xff]
        %v2061 = vld [vmem:[%s632 + $0x118] sm:$0xff]
        %v2062 = vld [vmem:[%s632 + $0x120] sm:$0xff]
        %v2063 = vld [vmem:[%s632 + $0x128] sm:$0xff]
        %v2064 = vld [vmem:[%s632 + $0x130] sm:$0xff]
        %v2065 = vld [vmem:[%s632 + $0x138] sm:$0xff]
        %v2066 = vld [vmem:[%s632 + $0x140] sm:$0xff]
        %v2067 = vld [vmem:[%s632 + $0x148] sm:$0xff]
        %v2068 = vld [vmem:[%s632 + $0x150] sm:$0xff]
        %v2069 = vld [vmem:[%s632 + $0x158] sm:$0xff]
        %v2070 = vld [vmem:[%s632 + $0x160] sm:$0xff]
        %v2071 = vld [vmem:[%s632 + $0x168] sm:$0xff]
        %v2072 = vld [vmem:[%s632 + $0x170] sm:$0xff]
        %v2073 = vld [vmem:[%s632 + $0x178] sm:$0xff]
        %v2074 = vld [vmem:[%s632 + $0x180] sm:$0xff]
        %v2075 = vld [vmem:[%s632 + $0x188] sm:$0xff]
        %v2076 = vld [vmem:[%s632 + $0x190] sm:$0xff]
        %v2077 = vld [vmem:[%s632 + $0x198] sm:$0xff]
        %v2078 = vld [vmem:[%s632 + $0x1a0] sm:$0xff]
        %v2079 = vld [vmem:[%s632 + $0x1a8] sm:$0xff]
        %v2080 = vld [vmem:[%s632 + $0x1b0] sm:$0xff]
        %v2081 = vld [vmem:[%s632 + $0x1b8] sm:$0xff]
        %v2082 = vld [vmem:[%s632 + $0x1c0] sm:$0xff]
        %v2083 = vld [vmem:[%s632 + $0x1c8] sm:$0xff]
        %v2084 = vld [vmem:[%s632 + $0x1d0] sm:$0xff]
        %v2085 = vld [vmem:[%s632 + $0x1d8] sm:$0xff]
        %v2086 = vld [vmem:[%s632 + $0x1e0] sm:$0xff]
        %v2087 = vld [vmem:[%s632 + $0x1e8] sm:$0xff]
        %v2088 = vld [vmem:[%s632 + $0x1f0] sm:$0xff]
        %v2089 = vld [vmem:[%s632 + $0x1f8] sm:$0xff]
        %v2090 = vld [vmem:[%s632 + $0x200] sm:$0xff]
        %v2091 = vld [vmem:[%s632 + $0x208] sm:$0xff]
        %v2092 = vld [vmem:[%s632 + $0x210] sm:$0xff]
        %v2093 = vld [vmem:[%s632 + $0x218] sm:$0xff]
        %v2094 = vld [vmem:[%s632 + $0x220] sm:$0xff]
        %v2095 = vld [vmem:[%s632 + $0x228] sm:$0xff]
        %v2096 = vld [vmem:[%s632 + $0x230] sm:$0xff]
        %v2097 = vld [vmem:[%s632 + $0x238] sm:$0xff]
        %v2098 = vld [vmem:[%s632 + $0x240] sm:$0xff]
        %v2099 = vld [vmem:[%s632 + $0x248] sm:$0xff]
        %v2100 = vld [vmem:[%s632 + $0x250] sm:$0xff]
        %v2101 = vld [vmem:[%s632 + $0x258] sm:$0xff]
        %v2102 = vld [vmem:[%s632 + $0x260] sm:$0xff]
        %v2103 = vld [vmem:[%s632 + $0x268] sm:$0xff]
        %v2104 = vld [vmem:[%s632 + $0x270] sm:$0xff]
        %v2105 = vld [vmem:[%s632 + $0x278] sm:$0xff]
        %v2106 = vld [vmem:[%s632 + $0x280] sm:$0xff]
        %v2107 = vld [vmem:[%s632 + $0x288] sm:$0xff]
        %v2108 = vld [vmem:[%s632 + $0x290] sm:$0xff]
        %v2109 = vld [vmem:[%s632 + $0x298] sm:$0xff]
        %v2110 = vld [vmem:[%s632 + $0x2a0] sm:$0xff]
        %v2111 = vld [vmem:[%s632 + $0x2a8] sm:$0xff]
        %v2112 = vld [vmem:[%s632 + $0x2b0] sm:$0xff]
        %v2113 = vld [vmem:[%s632 + $0x2b8] sm:$0xff]
        %v2114 = vld [vmem:[%s632 + $0x2c0] sm:$0xff]
        %v2115 = vld [vmem:[%s632 + $0x2c8] sm:$0xff]
        %v2116 = vld [vmem:[%s632 + $0x2d0] sm:$0xff]
        %v2117 = vld [vmem:[%s632 + $0x2d8] sm:$0xff]
        %v2118 = vld [vmem:[%s632 + $0x2e0] sm:$0xff]
        %v2119 = vld [vmem:[%s632 + $0x2e8] sm:$0xff]
        %v2120 = vld [vmem:[%s632 + $0x2f0] sm:$0xff]
        %v2121 = vld [vmem:[%s632 + $0x2f8] sm:$0xff]
        %v2122 = vld [vmem:[%s632 + $0x300] sm:$0xff]
        %v2123 = vld [vmem:[%s632 + $0x308] sm:$0xff]
        %v2124 = vld [vmem:[%s632 + $0x310] sm:$0xff]
        %v2125 = vld [vmem:[%s632 + $0x318] sm:$0xff]
        %v2126 = vld [vmem:[%s632 + $0x320] sm:$0xff]
        %v2127 = vld [vmem:[%s632 + $0x328] sm:$0xff]
        %v2128 = vld [vmem:[%s632 + $0x330] sm:$0xff]
        %v2129 = vld [vmem:[%s632 + $0x338] sm:$0xff]
        %v2130 = vld [vmem:[%s632 + $0x340] sm:$0xff]
        %v2131 = vld [vmem:[%s632 + $0x348] sm:$0xff]
        %v2132 = vld [vmem:[%s632 + $0x350] sm:$0xff]
        %v2133 = vld [vmem:[%s632 + $0x358] sm:$0xff]
        %v2134 = vld [vmem:[%s632 + $0x360] sm:$0xff]
        %v2135 = vld [vmem:[%s632 + $0x368] sm:$0xff]
        %v2136 = vld [vmem:[%s632 + $0x370] sm:$0xff]
        %v2137 = vld [vmem:[%s632 + $0x378] sm:$0xff]
        %v2138 = vld [vmem:[%s632 + $0x380] sm:$0xff]
        %v2139 = vld [vmem:[%s632 + $0x388] sm:$0xff]
        %v2140 = vld [vmem:[%s632 + $0x390] sm:$0xff]
        %v2141 = vld [vmem:[%s632 + $0x398] sm:$0xff]
        %v2142 = vld [vmem:[%s632 + $0x3a0] sm:$0xff]
        %v2143 = vld [vmem:[%s632 + $0x3a8] sm:$0xff]
        %v2144 = vld [vmem:[%s632 + $0x3b0] sm:$0xff]
        %v2145 = vld [vmem:[%s632 + $0x3b8] sm:$0xff]
        %v2146 = vld [vmem:[%s632 + $0x3c0] sm:$0xff]
        %v2147 = vld [vmem:[%s632 + $0x3c8] sm:$0xff]
        %v2148 = vld [vmem:[%s632 + $0x3d0] sm:$0xff]
        %v2149 = vld [vmem:[%s632 + $0x3d8] sm:$0xff]
        %v2150 = vld [vmem:[%s632 + $0x3e0] sm:$0xff]
        %v2151 = vld [vmem:[%s632 + $0x3e8] sm:$0xff]
        %v2152 = vld [vmem:[%s632 + $0x3f0] sm:$0xff]
        %v2153 = vld [vmem:[%s632 + $0x3f8] sm:$0xff]
        %v2154 = vld [vmem:[%s632 + $0x400] sm:$0xff]
        %v2155 = vld [vmem:[%s632 + $0x408] sm:$0xff]
        %v2156 = vld [vmem:[%s632 + $0x410] sm:$0xff]
        %v2157 = vld [vmem:[%s632 + $0x418] sm:$0xff]
        %v2158 = vld [vmem:[%s632 + $0x420] sm:$0xff]
        %v2159 = vld [vmem:[%s632 + $0x428] sm:$0xff]
        %v2160 = vld [vmem:[%s632 + $0x430] sm:$0xff]
        %v2161 = vld [vmem:[%s632 + $0x438] sm:$0xff]
        %v2162 = vld [vmem:[%s632 + $0x440] sm:$0xff]
        %v2163 = vld [vmem:[%s632 + $0x448] sm:$0xff]
        %v2164 = vld [vmem:[%s632 + $0x450] sm:$0xff]
        %v2165 = vld [vmem:[%s632 + $0x458] sm:$0xff]
        %v2166 = vld [vmem:[%s632 + $0x460] sm:$0xff]
        %v2167 = vld [vmem:[%s632 + $0x468] sm:$0xff]
        %v2168 = vld [vmem:[%s632 + $0x470] sm:$0xff]
        %v2169 = vld [vmem:[%s632 + $0x478] sm:$0xff]
        %v2170 = vld [vmem:[%s632 + $0x480] sm:$0xff]
        %v2171 = vld [vmem:[%s632 + $0x488] sm:$0xff]
        %v2172 = vld [vmem:[%s632 + $0x490] sm:$0xff]
        %v2173 = vld [vmem:[%s632 + $0x498] sm:$0xff]
        %v2174 = vld [vmem:[%s632 + $0x4a0] sm:$0xff]
        %v2175 = vld [vmem:[%s632 + $0x4a8] sm:$0xff]
        %v2176 = vld [vmem:[%s632 + $0x4b0] sm:$0xff]
        %v2177 = vld [vmem:[%s632 + $0x4b8] sm:$0xff]
        %v2178 = vld [vmem:[%s632 + $0x4c0] sm:$0xff]
        %v2179 = vld [vmem:[%s632 + $0x4c8] sm:$0xff]
        %v2180 = vld [vmem:[%s632 + $0x4d0] sm:$0xff]
        %v2181 = vld [vmem:[%s632 + $0x4d8] sm:$0xff]
        %v2182 = vld [vmem:[%s632 + $0x4e0] sm:$0xff]
        %v2183 = vld [vmem:[%s632 + $0x4e8] sm:$0xff]
        %v2184 = vld [vmem:[%s632 + $0x4f0] sm:$0xff]
        %v2185 = vld [vmem:[%s632 + $0x4f8] sm:$0xff]
        %v2186 = vld [vmem:[%s632 + $0x500] sm:$0xff]
        %v2187 = vld [vmem:[%s632 + $0x508] sm:$0xff]
        %v2188 = vld [vmem:[%s632 + $0x510] sm:$0xff]
        %v2189 = vld [vmem:[%s632 + $0x518] sm:$0xff]
        %v2190 = vld [vmem:[%s632 + $0x520] sm:$0xff]
        %v2191 = vld [vmem:[%s632 + $0x528] sm:$0xff]
        %v2192 = vld [vmem:[%s632 + $0x530] sm:$0xff]
        %v2193 = vld [vmem:[%s632 + $0x538] sm:$0xff]
        %v2194 = vld [vmem:[%s632 + $0x540] sm:$0xff]
        %v2195 = vld [vmem:[%s632 + $0x548] sm:$0xff]
        %v2196 = vld [vmem:[%s632 + $0x550] sm:$0xff]
        %v2197 = vld [vmem:[%s632 + $0x558] sm:$0xff]
        %v2198 = vld [vmem:[%s632 + $0x560] sm:$0xff]
        %v2199 = vld [vmem:[%s632 + $0x568] sm:$0xff]
        %v2200 = vld [vmem:[%s632 + $0x570] sm:$0xff]
        %v2201 = vld [vmem:[%s632 + $0x578] sm:$0xff]
        %v2202 = vld [vmem:[%s632 + $0x580] sm:$0xff]
        %v2203 = vld [vmem:[%s632 + $0x588] sm:$0xff]
        %v2204 = vld [vmem:[%s632 + $0x590] sm:$0xff]
        %v2205 = vld [vmem:[%s632 + $0x598] sm:$0xff]
        %v2206 = vld [vmem:[%s632 + $0x5a0] sm:$0xff]
        %v2207 = vld [vmem:[%s632 + $0x5a8] sm:$0xff]
        %v2208 = vld [vmem:[%s632 + $0x5b0] sm:$0xff]
        %v2209 = vld [vmem:[%s632 + $0x5b8] sm:$0xff]
        %v2210 = vld [vmem:[%s632 + $0x5c0] sm:$0xff]
        %v2211 = vld [vmem:[%s632 + $0x5c8] sm:$0xff]
        %v2212 = vld [vmem:[%s632 + $0x5d0] sm:$0xff]
        %v2213 = vld [vmem:[%s632 + $0x5d8] sm:$0xff]
        %v2214 = vld [vmem:[%s632 + $0x5e0] sm:$0xff]
        %v2215 = vld [vmem:[%s632 + $0x5e8] sm:$0xff]
        %v2216 = vld [vmem:[%s632 + $0x5f0] sm:$0xff]
        %v2217 = vld [vmem:[%s632 + $0x5f8] sm:$0xff]
        %v2218 = vld [vmem:[%s632 + $0x600] sm:$0xff]
        %v2219 = vld [vmem:[%s632 + $0x608] sm:$0xff]
        %v2220 = vld [vmem:[%s632 + $0x610] sm:$0xff]
        %v2221 = vld [vmem:[%s632 + $0x618] sm:$0xff]
        %v2222 = vld [vmem:[%s632 + $0x620] sm:$0xff]
        %v2223 = vld [vmem:[%s632 + $0x628] sm:$0xff]
        %v2224 = vld [vmem:[%s632 + $0x630] sm:$0xff]
        %v2225 = vld [vmem:[%s632 + $0x638] sm:$0xff]
        %v2226 = vld [vmem:[%s632 + $0x640] sm:$0xff]
        %v2227 = vld [vmem:[%s632 + $0x648] sm:$0xff]
        %v2228 = vld [vmem:[%s632 + $0x650] sm:$0xff]
        %v2229 = vld [vmem:[%s632 + $0x658] sm:$0xff]
        %v2230 = vld [vmem:[%s632 + $0x660] sm:$0xff]
        %v2231 = vld [vmem:[%s632 + $0x668] sm:$0xff]
        %v2232 = vld [vmem:[%s632 + $0x670] sm:$0xff]
        %v2233 = vld [vmem:[%s632 + $0x678] sm:$0xff]
        %v2234 = vld [vmem:[%s632 + $0x680] sm:$0xff]
        %v2235 = vld [vmem:[%s632 + $0x688] sm:$0xff]
        %v2236 = vld [vmem:[%s632 + $0x690] sm:$0xff]
        %v2237 = vld [vmem:[%s632 + $0x698] sm:$0xff]
        %v2238 = vld [vmem:[%s632 + $0x6a0] sm:$0xff]
        %v2239 = vld [vmem:[%s632 + $0x6a8] sm:$0xff]
        %v2240 = vld [vmem:[%s632 + $0x6b0] sm:$0xff]
        %v2241 = vld [vmem:[%s632 + $0x6b8] sm:$0xff]
        %v2242 = vld [vmem:[%s632 + $0x6c0] sm:$0xff]
        %v2243 = vld [vmem:[%s632 + $0x6c8] sm:$0xff]
        %v2244 = vld [vmem:[%s632 + $0x6d0] sm:$0xff]
        %v2245 = vld [vmem:[%s632 + $0x6d8] sm:$0xff]
        %v2246 = vld [vmem:[%s632 + $0x6e0] sm:$0xff]
        %v2247 = vld [vmem:[%s632 + $0x6e8] sm:$0xff]
        %v2248 = vld [vmem:[%s632 + $0x6f0] sm:$0xff]
        %v2249 = vld [vmem:[%s632 + $0x6f8] sm:$0xff]
        %v2250 = vld [vmem:[%s632 + $0x700] sm:$0xff]
        %v2251 = vld [vmem:[%s632 + $0x708] sm:$0xff]
        %v2252 = vld [vmem:[%s632 + $0x710] sm:$0xff]
        %v2253 = vld [vmem:[%s632 + $0x718] sm:$0xff]
        %v2254 = vld [vmem:[%s632 + $0x720] sm:$0xff]
        %v2255 = vld [vmem:[%s632 + $0x728] sm:$0xff]
        %v2256 = vld [vmem:[%s632 + $0x730] sm:$0xff]
        %v2257 = vld [vmem:[%s632 + $0x738] sm:$0xff]
        %v2258 = vld [vmem:[%s632 + $0x740] sm:$0xff]
        %v2259 = vld [vmem:[%s632 + $0x748] sm:$0xff]
        %v2260 = vld [vmem:[%s632 + $0x750] sm:$0xff]
        %v2261 = vld [vmem:[%s632 + $0x758] sm:$0xff]
        %v2262 = vld [vmem:[%s632 + $0x760] sm:$0xff]
        %v2263 = vld [vmem:[%s632 + $0x768] sm:$0xff]
        %v2264 = vld [vmem:[%s632 + $0x770] sm:$0xff]
        %v2265 = vld [vmem:[%s632 + $0x778] sm:$0xff]
        %v2266 = vld [vmem:[%s632 + $0x780] sm:$0xff]
        %v2267 = vld [vmem:[%s632 + $0x788] sm:$0xff]
        %v2268 = vld [vmem:[%s632 + $0x790] sm:$0xff]
        %v2269 = vld [vmem:[%s632 + $0x798] sm:$0xff]
        %v2270 = vld [vmem:[%s632 + $0x7a0] sm:$0xff]
        %v2271 = vld [vmem:[%s632 + $0x7a8] sm:$0xff]
        %v2272 = vld [vmem:[%s632 + $0x7b0] sm:$0xff]
        %v2273 = vld [vmem:[%s632 + $0x7b8] sm:$0xff]
        %v2274 = vld [vmem:[%s632 + $0x7c0] sm:$0xff]
        %v2275 = vld [vmem:[%s632 + $0x7c8] sm:$0xff]
        %v2276 = vld [vmem:[%s632 + $0x7d0] sm:$0xff]
        %v2277 = vld [vmem:[%s632 + $0x7d8] sm:$0xff]
        %v2278 = vld [vmem:[%s632 + $0x7e0] sm:$0xff]
        %v2279 = vld [vmem:[%s632 + $0x7e8] sm:$0xff]
        %v2280 = vld [vmem:[%s632 + $0x7f0] sm:$0xff]
        %v2281 = vld [vmem:[%s632 + $0x7f8] sm:$0xff]
        %2282 = vmatpush.msra.mxu0 %v2041
        %2283 = vmatpush.msra.mxu0 %v2040
        %2284 = vmatpush.msra.mxu0 %v2039
        %2285 = vmatpush.msra.mxu0 %v2038
        %2286 = vmatpush.msra.mxu0 %v2037
        %2287 = vmatpush.msra.mxu0 %v2036
        %2288 = vmatpush.msra.mxu0 %v2035
        %2289 = vmatpush.msra.mxu0 %v2034
        %2290 = vmatpush.msra.mxu0 %v2033
        %2291 = vmatpush.msra.mxu0 %v2032
        %2292 = vmatpush.msra.mxu0 %v2031
        %2293 = vmatpush.msra.mxu0 %v2030
        %2294 = vmatpush.msra.mxu0 %v2029
        %2295 = vmatpush.msra.mxu0 %v2028
        %2296 = vmatpush.msra.mxu0 %v2027
        %2297 = vmatpush.msra.mxu0 %v2026
        %2298 = vmatmul.f32.gmra.mxu0 %v1994
        %v2299 = vpop.f32.mrf.mxu0
        %v2300 = vadd.f32 0.0, %v2299
        %2301 = vmatmul.f32.gmra.mxu0 %v2010
        %v2302 = vpop.f32.mrf.mxu0
        %v2303 = vadd.f32 0.0, %v2302
        %2304 = vdwg.mxu0
        %2305 = vmatpush.msra.mxu0 %v2057
        %2306 = vmatpush.msra.mxu0 %v2056
        %2307 = vmatpush.msra.mxu0 %v2055
        %2308 = vmatpush.msra.mxu0 %v2054
        %2309 = vmatpush.msra.mxu0 %v2053
        %2310 = vmatpush.msra.mxu0 %v2052
        %2311 = vmatpush.msra.mxu0 %v2051
        %2312 = vmatpush.msra.mxu0 %v2050
        %2313 = vmatpush.msra.mxu0 %v2049
        %2314 = vmatpush.msra.mxu0 %v2048
        %2315 = vmatpush.msra.mxu0 %v2047
        %2316 = vmatpush.msra.mxu0 %v2046
        %2317 = vmatpush.msra.mxu0 %v2045
        %2318 = vmatpush.msra.mxu0 %v2044
        %2319 = vmatpush.msra.mxu0 %v2043
        %2320 = vmatpush.msra.mxu0 %v2042
        %2321 = vmatmul.f32.gmra.mxu0 %v1995
        %v2322 = vpop.f32.mrf.mxu0
        %v2323 = vadd.f32 %v2300, %v2322
        %2324 = vmatmul.f32.gmra.mxu0 %v2011
        %v2325 = vpop.f32.mrf.mxu0
        %v2326 = vadd.f32 %v2303, %v2325
        %2327 = vdwg.mxu0
        %2328 = vmatpush.msra.mxu0 %v2073
        %2329 = vmatpush.msra.mxu0 %v2072
        %2330 = vmatpush.msra.mxu0 %v2071
        %2331 = vmatpush.msra.mxu0 %v2070
        %2332 = vmatpush.msra.mxu0 %v2069
        %2333 = vmatpush.msra.mxu0 %v2068
        %2334 = vmatpush.msra.mxu0 %v2067
        %2335 = vmatpush.msra.mxu0 %v2066
        %2336 = vmatpush.msra.mxu0 %v2065
        %2337 = vmatpush.msra.mxu0 %v2064
        %2338 = vmatpush.msra.mxu0 %v2063
        %2339 = vmatpush.msra.mxu0 %v2062
        %2340 = vmatpush.msra.mxu0 %v2061
        %2341 = vmatpush.msra.mxu0 %v2060
        %2342 = vmatpush.msra.mxu0 %v2059
        %2343 = vmatpush.msra.mxu0 %v2058
        %2344 = vmatmul.f32.gmra.mxu0 %v1996
        %v2345 = vpop.f32.mrf.mxu0
        %v2346 = vadd.f32 %v2323, %v2345
        %2347 = vmatmul.f32.gmra.mxu0 %v2012
        %v2348 = vpop.f32.mrf.mxu0
        %v2349 = vadd.f32 %v2326, %v2348
        %2350 = vdwg.mxu0
        %2351 = vmatpush.msra.mxu0 %v2089
        %2352 = vmatpush.msra.mxu0 %v2088
        %2353 = vmatpush.msra.mxu0 %v2087
        %2354 = vmatpush.msra.mxu0 %v2086
        %2355 = vmatpush.msra.mxu0 %v2085
        %2356 = vmatpush.msra.mxu0 %v2084
        %2357 = vmatpush.msra.mxu0 %v2083
        %2358 = vmatpush.msra.mxu0 %v2082
        %2359 = vmatpush.msra.mxu0 %v2081
        %2360 = vmatpush.msra.mxu0 %v2080
        %2361 = vmatpush.msra.mxu0 %v2079
        %2362 = vmatpush.msra.mxu0 %v2078
        %2363 = vmatpush.msra.mxu0 %v2077
        %2364 = vmatpush.msra.mxu0 %v2076
        %2365 = vmatpush.msra.mxu0 %v2075
        %2366 = vmatpush.msra.mxu0 %v2074
        %2367 = vmatmul.f32.gmra.mxu0 %v1997
        %v2368 = vpop.f32.mrf.mxu0
        %v2369 = vadd.f32 %v2346, %v2368
        %2370 = vmatmul.f32.gmra.mxu0 %v2013
        %v2371 = vpop.f32.mrf.mxu0
        %v2372 = vadd.f32 %v2349, %v2371
        %2373 = vdwg.mxu0
        %2374 = vmatpush.msra.mxu0 %v2105
        %2375 = vmatpush.msra.mxu0 %v2104
        %2376 = vmatpush.msra.mxu0 %v2103
        %2377 = vmatpush.msra.mxu0 %v2102
        %2378 = vmatpush.msra.mxu0 %v2101
        %2379 = vmatpush.msra.mxu0 %v2100
        %2380 = vmatpush.msra.mxu0 %v2099
        %2381 = vmatpush.msra.mxu0 %v2098
        %2382 = vmatpush.msra.mxu0 %v2097
        %2383 = vmatpush.msra.mxu0 %v2096
        %2384 = vmatpush.msra.mxu0 %v2095
        %2385 = vmatpush.msra.mxu0 %v2094
        %2386 = vmatpush.msra.mxu0 %v2093
        %2387 = vmatpush.msra.mxu0 %v2092
        %2388 = vmatpush.msra.mxu0 %v2091
        %2389 = vmatpush.msra.mxu0 %v2090
        %2390 = vmatmul.f32.gmra.mxu0 %v1998
        %v2391 = vpop.f32.mrf.mxu0
        %v2392 = vadd.f32 %v2369, %v2391
        %2393 = vmatmul.f32.gmra.mxu0 %v2014
        %v2394 = vpop.f32.mrf.mxu0
        %v2395 = vadd.f32 %v2372, %v2394
        %2396 = vdwg.mxu0
        %2397 = vmatpush.msra.mxu0 %v2121
        %2398 = vmatpush.msra.mxu0 %v2120
        %2399 = vmatpush.msra.mxu0 %v2119
        %2400 = vmatpush.msra.mxu0 %v2118
        %2401 = vmatpush.msra.mxu0 %v2117
        %2402 = vmatpush.msra.mxu0 %v2116
        %2403 = vmatpush.msra.mxu0 %v2115
        %2404 = vmatpush.msra.mxu0 %v2114
        %2405 = vmatpush.msra.mxu0 %v2113
        %2406 = vmatpush.msra.mxu0 %v2112
        %2407 = vmatpush.msra.mxu0 %v2111
        %2408 = vmatpush.msra.mxu0 %v2110
        %2409 = vmatpush.msra.mxu0 %v2109
        %2410 = vmatpush.msra.mxu0 %v2108
        %2411 = vmatpush.msra.mxu0 %v2107
        %2412 = vmatpush.msra.mxu0 %v2106
        %2413 = vmatmul.f32.gmra.mxu0 %v1999
        %v2414 = vpop.f32.mrf.mxu0
        %v2415 = vadd.f32 %v2392, %v2414
        %2416 = vmatmul.f32.gmra.mxu0 %v2015
        %v2417 = vpop.f32.mrf.mxu0
        %v2418 = vadd.f32 %v2395, %v2417
        %2419 = vdwg.mxu0
        %2420 = vmatpush.msra.mxu0 %v2137
        %2421 = vmatpush.msra.mxu0 %v2136
        %2422 = vmatpush.msra.mxu0 %v2135
        %2423 = vmatpush.msra.mxu0 %v2134
        %2424 = vmatpush.msra.mxu0 %v2133
        %2425 = vmatpush.msra.mxu0 %v2132
        %2426 = vmatpush.msra.mxu0 %v2131
        %2427 = vmatpush.msra.mxu0 %v2130
        %2428 = vmatpush.msra.mxu0 %v2129
        %2429 = vmatpush.msra.mxu0 %v2128
        %2430 = vmatpush.msra.mxu0 %v2127
        %2431 = vmatpush.msra.mxu0 %v2126
        %2432 = vmatpush.msra.mxu0 %v2125
        %2433 = vmatpush.msra.mxu0 %v2124
        %2434 = vmatpush.msra.mxu0 %v2123
        %2435 = vmatpush.msra.mxu0 %v2122
        %2436 = vmatmul.f32.gmra.mxu0 %v2000
        %v2437 = vpop.f32.mrf.mxu0
        %v2438 = vadd.f32 %v2415, %v2437
        %2439 = vmatmul.f32.gmra.mxu0 %v2016
        %v2440 = vpop.f32.mrf.mxu0
        %v2441 = vadd.f32 %v2418, %v2440
        %2442 = vdwg.mxu0
        %2443 = vmatpush.msra.mxu0 %v2153
        %2444 = vmatpush.msra.mxu0 %v2152
        %2445 = vmatpush.msra.mxu0 %v2151
        %2446 = vmatpush.msra.mxu0 %v2150
        %2447 = vmatpush.msra.mxu0 %v2149
        %2448 = vmatpush.msra.mxu0 %v2148
        %2449 = vmatpush.msra.mxu0 %v2147
        %2450 = vmatpush.msra.mxu0 %v2146
        %2451 = vmatpush.msra.mxu0 %v2145
        %2452 = vmatpush.msra.mxu0 %v2144
        %2453 = vmatpush.msra.mxu0 %v2143
        %2454 = vmatpush.msra.mxu0 %v2142
        %2455 = vmatpush.msra.mxu0 %v2141
        %2456 = vmatpush.msra.mxu0 %v2140
        %2457 = vmatpush.msra.mxu0 %v2139
        %2458 = vmatpush.msra.mxu0 %v2138
        %2459 = vmatmul.f32.gmra.mxu0 %v2001
        %v2460 = vpop.f32.mrf.mxu0
        %v2461 = vadd.f32 %v2438, %v2460
        %2462 = vmatmul.f32.gmra.mxu0 %v2017
        %v2463 = vpop.f32.mrf.mxu0
        %v2464 = vadd.f32 %v2441, %v2463
        %2465 = vdwg.mxu0
        %2466 = vmatpush.msra.mxu0 %v2169
        %2467 = vmatpush.msra.mxu0 %v2168
        %2468 = vmatpush.msra.mxu0 %v2167
        %2469 = vmatpush.msra.mxu0 %v2166
        %2470 = vmatpush.msra.mxu0 %v2165
        %2471 = vmatpush.msra.mxu0 %v2164
        %2472 = vmatpush.msra.mxu0 %v2163
        %2473 = vmatpush.msra.mxu0 %v2162
        %2474 = vmatpush.msra.mxu0 %v2161
        %2475 = vmatpush.msra.mxu0 %v2160
        %2476 = vmatpush.msra.mxu0 %v2159
        %2477 = vmatpush.msra.mxu0 %v2158
        %2478 = vmatpush.msra.mxu0 %v2157
        %2479 = vmatpush.msra.mxu0 %v2156
        %2480 = vmatpush.msra.mxu0 %v2155
        %2481 = vmatpush.msra.mxu0 %v2154
        %2482 = vmatmul.f32.gmra.mxu0 %v2002
        %v2483 = vpop.f32.mrf.mxu0
        %v2484 = vadd.f32 %v2461, %v2483
        %2485 = vmatmul.f32.gmra.mxu0 %v2018
        %v2486 = vpop.f32.mrf.mxu0
        %v2487 = vadd.f32 %v2464, %v2486
        %2488 = vdwg.mxu0
        %2489 = vmatpush.msra.mxu0 %v2185
        %2490 = vmatpush.msra.mxu0 %v2184
        %2491 = vmatpush.msra.mxu0 %v2183
        %2492 = vmatpush.msra.mxu0 %v2182
        %2493 = vmatpush.msra.mxu0 %v2181
        %2494 = vmatpush.msra.mxu0 %v2180
        %2495 = vmatpush.msra.mxu0 %v2179
        %2496 = vmatpush.msra.mxu0 %v2178
        %2497 = vmatpush.msra.mxu0 %v2177
        %2498 = vmatpush.msra.mxu0 %v2176
        %2499 = vmatpush.msra.mxu0 %v2175
        %2500 = vmatpush.msra.mxu0 %v2174
        %2501 = vmatpush.msra.mxu0 %v2173
        %2502 = vmatpush.msra.mxu0 %v2172
        %2503 = vmatpush.msra.mxu0 %v2171
        %2504 = vmatpush.msra.mxu0 %v2170
        %2505 = vmatmul.f32.gmra.mxu0 %v2003
        %v2506 = vpop.f32.mrf.mxu0
        %v2507 = vadd.f32 %v2484, %v2506
        %2508 = vmatmul.f32.gmra.mxu0 %v2019
        %v2509 = vpop.f32.mrf.mxu0
        %v2510 = vadd.f32 %v2487, %v2509
        %2511 = vdwg.mxu0
        %2512 = vmatpush.msra.mxu0 %v2201
        %2513 = vmatpush.msra.mxu0 %v2200
        %2514 = vmatpush.msra.mxu0 %v2199
        %2515 = vmatpush.msra.mxu0 %v2198
        %2516 = vmatpush.msra.mxu0 %v2197
        %2517 = vmatpush.msra.mxu0 %v2196
        %2518 = vmatpush.msra.mxu0 %v2195
        %2519 = vmatpush.msra.mxu0 %v2194
        %2520 = vmatpush.msra.mxu0 %v2193
        %2521 = vmatpush.msra.mxu0 %v2192
        %2522 = vmatpush.msra.mxu0 %v2191
        %2523 = vmatpush.msra.mxu0 %v2190
        %2524 = vmatpush.msra.mxu0 %v2189
        %2525 = vmatpush.msra.mxu0 %v2188
        %2526 = vmatpush.msra.mxu0 %v2187
        %2527 = vmatpush.msra.mxu0 %v2186
        %2528 = vmatmul.f32.gmra.mxu0 %v2004
        %v2529 = vpop.f32.mrf.mxu0
        %v2530 = vadd.f32 %v2507, %v2529
        %2531 = vmatmul.f32.gmra.mxu0 %v2020
        %v2532 = vpop.f32.mrf.mxu0
        %v2533 = vadd.f32 %v2510, %v2532
        %2534 = vdwg.mxu0
        %2535 = vmatpush.msra.mxu0 %v2217
        %2536 = vmatpush.msra.mxu0 %v2216
        %2537 = vmatpush.msra.mxu0 %v2215
        %2538 = vmatpush.msra.mxu0 %v2214
        %2539 = vmatpush.msra.mxu0 %v2213
        %2540 = vmatpush.msra.mxu0 %v2212
        %2541 = vmatpush.msra.mxu0 %v2211
        %2542 = vmatpush.msra.mxu0 %v2210
        %2543 = vmatpush.msra.mxu0 %v2209
        %2544 = vmatpush.msra.mxu0 %v2208
        %2545 = vmatpush.msra.mxu0 %v2207
        %2546 = vmatpush.msra.mxu0 %v2206
        %2547 = vmatpush.msra.mxu0 %v2205
        %2548 = vmatpush.msra.mxu0 %v2204
        %2549 = vmatpush.msra.mxu0 %v2203
        %2550 = vmatpush.msra.mxu0 %v2202
        %2551 = vmatmul.f32.gmra.mxu0 %v2005
        %v2552 = vpop.f32.mrf.mxu0
        %v2553 = vadd.f32 %v2530, %v2552
        %2554 = vmatmul.f32.gmra.mxu0 %v2021
        %v2555 = vpop.f32.mrf.mxu0
        %v2556 = vadd.f32 %v2533, %v2555
        %2557 = vdwg.mxu0
        %2558 = vmatpush.msra.mxu0 %v2233
        %2559 = vmatpush.msra.mxu0 %v2232
        %2560 = vmatpush.msra.mxu0 %v2231
        %2561 = vmatpush.msra.mxu0 %v2230
        %2562 = vmatpush.msra.mxu0 %v2229
        %2563 = vmatpush.msra.mxu0 %v2228
        %2564 = vmatpush.msra.mxu0 %v2227
        %2565 = vmatpush.msra.mxu0 %v2226
        %2566 = vmatpush.msra.mxu0 %v2225
        %2567 = vmatpush.msra.mxu0 %v2224
        %2568 = vmatpush.msra.mxu0 %v2223
        %2569 = vmatpush.msra.mxu0 %v2222
        %2570 = vmatpush.msra.mxu0 %v2221
        %2571 = vmatpush.msra.mxu0 %v2220
        %2572 = vmatpush.msra.mxu0 %v2219
        %2573 = vmatpush.msra.mxu0 %v2218
        %2574 = vmatmul.f32.gmra.mxu0 %v2006
        %v2575 = vpop.f32.mrf.mxu0
        %v2576 = vadd.f32 %v2553, %v2575
        %2577 = vmatmul.f32.gmra.mxu0 %v2022
        %v2578 = vpop.f32.mrf.mxu0
        %v2579 = vadd.f32 %v2556, %v2578
        %2580 = vdwg.mxu0
        %2581 = vmatpush.msra.mxu0 %v2249
        %2582 = vmatpush.msra.mxu0 %v2248
        %2583 = vmatpush.msra.mxu0 %v2247
        %2584 = vmatpush.msra.mxu0 %v2246
        %2585 = vmatpush.msra.mxu0 %v2245
        %2586 = vmatpush.msra.mxu0 %v2244
        %2587 = vmatpush.msra.mxu0 %v2243
        %2588 = vmatpush.msra.mxu0 %v2242
        %2589 = vmatpush.msra.mxu0 %v2241
        %2590 = vmatpush.msra.mxu0 %v2240
        %2591 = vmatpush.msra.mxu0 %v2239
        %2592 = vmatpush.msra.mxu0 %v2238
        %2593 = vmatpush.msra.mxu0 %v2237
        %2594 = vmatpush.msra.mxu0 %v2236
        %2595 = vmatpush.msra.mxu0 %v2235
        %2596 = vmatpush.msra.mxu0 %v2234
        %2597 = vmatmul.f32.gmra.mxu0 %v2007
        %v2598 = vpop.f32.mrf.mxu0
        %v2599 = vadd.f32 %v2576, %v2598
        %2600 = vmatmul.f32.gmra.mxu0 %v2023
        %v2601 = vpop.f32.mrf.mxu0
        %v2602 = vadd.f32 %v2579, %v2601
        %2603 = vdwg.mxu0
        %2604 = vmatpush.msra.mxu0 %v2265
        %2605 = vmatpush.msra.mxu0 %v2264
        %2606 = vmatpush.msra.mxu0 %v2263
        %2607 = vmatpush.msra.mxu0 %v2262
        %2608 = vmatpush.msra.mxu0 %v2261
        %2609 = vmatpush.msra.mxu0 %v2260
        %2610 = vmatpush.msra.mxu0 %v2259
        %2611 = vmatpush.msra.mxu0 %v2258
        %2612 = vmatpush.msra.mxu0 %v2257
        %2613 = vmatpush.msra.mxu0 %v2256
        %2614 = vmatpush.msra.mxu0 %v2255
        %2615 = vmatpush.msra.mxu0 %v2254
        %2616 = vmatpush.msra.mxu0 %v2253
        %2617 = vmatpush.msra.mxu0 %v2252
        %2618 = vmatpush.msra.mxu0 %v2251
        %2619 = vmatpush.msra.mxu0 %v2250
        %2620 = vmatmul.f32.gmra.mxu0 %v2008
        %v2621 = vpop.f32.mrf.mxu0
        %v2622 = vadd.f32 %v2599, %v2621
        %2623 = vmatmul.f32.gmra.mxu0 %v2024
        %v2624 = vpop.f32.mrf.mxu0
        %v2625 = vadd.f32 %v2602, %v2624
        %2626 = vdwg.mxu0
        %2627 = vmatpush.msra.mxu0 %v2281
        %2628 = vmatpush.msra.mxu0 %v2280
        %2629 = vmatpush.msra.mxu0 %v2279
        %2630 = vmatpush.msra.mxu0 %v2278
        %2631 = vmatpush.msra.mxu0 %v2277
        %2632 = vmatpush.msra.mxu0 %v2276
        %2633 = vmatpush.msra.mxu0 %v2275
        %2634 = vmatpush.msra.mxu0 %v2274
        %2635 = vmatpush.msra.mxu0 %v2273
        %2636 = vmatpush.msra.mxu0 %v2272
        %2637 = vmatpush.msra.mxu0 %v2271
        %2638 = vmatpush.msra.mxu0 %v2270
        %2639 = vmatpush.msra.mxu0 %v2269
        %2640 = vmatpush.msra.mxu0 %v2268
        %2641 = vmatpush.msra.mxu0 %v2267
        %2642 = vmatpush.msra.mxu0 %v2266
        %2643 = vmatmul.f32.gmra.mxu0 %v2009
        %v2644 = vpop.f32.mrf.mxu0
        %v2645 = vadd.f32 %v2622, %v2644
        %2646 = vmatmul.f32.gmra.mxu0 %v2025
        %v2647 = vpop.f32.mrf.mxu0
        %v2648 = vadd.f32 %v2625, %v2647
        %2649 = vdwg.mxu0
        %v2650 = vadd.f32 %v1456, %v2645
        %v2651 = vadd.f32 %v1457, %v2648
        %v2652 = vld [vmem:[%s739] sm:$0x1]
        %v2654 = vperm.slane %v2652, 0
        %v2656 = vadd.f32 %v2650, %v2654
        %v2657 = vadd.f32 %v2651, %v2654
        %2658 = vst.msk [vmem:[#allocation2] sm:$0xff] %vm753, %v2656
        %2659 = vst.msk [vmem:[#allocation2 + $0x8] sm:$0xff] %vm753, %v2657
        %p2660 = scmp.eq.s32.totalorder %s35, 1
        // Predicated region
        $region101: #{_lambda_.2} parent=79 // pred_check
          %p2661 = pneg %p2660
        $region102: #{_lambda_.2} parent=79 // pred_check_branch
          %2663 = sbr.rel (%p2661) target = $region104
        $region103: #{_lambda_.2} parent=79 // pred_region
          %v2664 = vld [vmem:[%s13] sm:$0x1]
          %v2665 = vld [vmem:[%s14] sm:$0x1]
          %v2666 = vsel %vm753, %v2656, 0.0
          %2667 = vadd.xlane.f32.xlu0 %v2666
          %v2668 = vpop.xlane.xlu0 %2667
          %v2669 = vsel %vm753, %v2657, 0.0
          %2670 = vadd.xlane.f32.xlu0 %v2669
          %v2671 = vpop.xlane.xlu0 %2670
          %v2672 = vmul.f32 %v2668, %v766
          %v2673 = vmul.f32 %v2671, %v766
          %v2674 = vsub.f32 %v2656, %v2672
          %v2675 = vsub.f32 %v2657, %v2673
          %v2676 = vmul.f32 %v2674, %v2674
          %v2677 = vmul.f32 %v2675, %v2675
          %v2678 = vsel %vm753, %v2676, 0.0
          %2679 = vadd.xlane.f32.xlu0 %v2678
          %v2680 = vpop.xlane.xlu0 %2679
          %v2681 = vsel %vm753, %v2677, 0.0
          %2682 = vadd.xlane.f32.xlu0 %v2681
          %v2683 = vpop.xlane.xlu0 %2682
          %v2684 = vmul.f32 %v2680, 0.032258064
          %v2685 = vmul.f32 %v2683, 0.032258064
          %v2686 = vrsqrt.pop %v2684
          %v2687 = vmul.f32 %v2686, %v2684
          %v2688 = vmul.f32 %v2687, %v2686
          %v2689 = vmul.f32 0.5, %v2688
          %v2690 = vsub.f32 1.5, %v2689
          %v2691 = vmul.f32 %v2686, %v2690
          %v2692 = vmul.f32 %v2684, %v2691
          %vm2693 = vcmp.eq.f32.partialorder %v2684, inf
          %v2694 = vsel %vm2693, %v2684, %v2692
          %vm2695 = vcmp.eq.f32.partialorder %v2684, 0.0
          %v2696 = vand.u32 %v2684, 2147483648
          %v2697 = vsel %vm2695, %v2696, %v2694
          %v2698 = vrsqrt.pop %v2685
          %v2699 = vmul.f32 %v2698, %v2685
          %v2700 = vmul.f32 %v2699, %v2698
          %v2701 = vmul.f32 0.5, %v2700
          %v2702 = vsub.f32 1.5, %v2701
          %v2703 = vmul.f32 %v2698, %v2702
          %v2704 = vmul.f32 %v2685, %v2703
          %vm2705 = vcmp.eq.f32.partialorder %v2685, inf
          %v2706 = vsel %vm2705, %v2685, %v2704
          %vm2707 = vcmp.eq.f32.partialorder %v2685, 0.0
          %v2708 = vand.u32 %v2685, 2147483648
          %v2709 = vsel %vm2707, %v2708, %v2706
          %v2710 = vadd.f32 %v2697, 1e-06
          %v2711 = vadd.f32 %v2709, 1e-06
          %v2712 = vrcp.pop %v2710
          %v2713 = vrcp.pop %v2711
          %v2715 = vperm.slane %v2664, 0
          %v2717 = vmul.f32 %v2715, %v2674
          %v2718 = vmul.f32 %v2715, %v2675
          %v2719 = vmul.f32 %v2717, %v2712
          %v2720 = vmul.f32 %v2718, %v2713
          %v2722 = vperm.slane %v2665, 0
          %v2724 = vadd.f32 %v2719, %v2722
          %v2725 = vadd.f32 %v2720, %v2722
          %2726 = vst.msk [vmem:[%s15] sm:$0xff] %vm753, %v2724
          %2727 = vst.msk [vmem:[%s15 + $0x8] sm:$0xff] %vm753, %v2725
        $region104: #{_lambda_.2} parent=79 // pred_fallthru
          _
        // Predicated region
        $region105: #{_lambda_.2} parent=79 // pred_check
          %p2728 = pneg %p423
        $region106: #{_lambda_.2} parent=79 // pred_check_branch
          %2730 = sbr.rel (%p2728) target = $region108
        $region107: #{_lambda_.2} parent=79 // pred_region
          _
        $region108: #{_lambda_.2} parent=79 // pred_fallthru
          _
        // Predicated region
        $region109: #{_lambda_.2} parent=79 // pred_check
          %p2731 = pneg %p423
        $region110: #{_lambda_.2} parent=79 // pred_check_branch
          %2733 = sbr.rel (%p2731) target = $region112
        $region111: #{_lambda_.2} parent=79 // pred_region
          _
        $region112: #{_lambda_.2} parent=79 // pred_fallthru
          _
      $region80: #{_lambda_.2} parent=5 // pred_fallthru
        _
      %p2734 = scmp.le.s32.totalorder 2, %s30
      // Predicated region
      $region113: #{_lambda_.2} parent=5 // pred_check
        %p2735 = pneg %p2734
      $region114: #{_lambda_.2} parent=5 // pred_check_branch
        %2737 = sbr.rel (%p2735) target = $region116
      $region115: #{_lambda_.2} parent=5 // pred_region
        %s2738 = ssub.s32 %s30, 2
      $region116: #{_lambda_.2} parent=5 // pred_fallthru
        _
    $region6: #{_lambda_.2} parent=1 // loop_footer
      %s34 = sadd.s32 1, %s30
    $region7: #{_lambda_.2} parent=1 // loop_footer_branch
      %29 = sbr.rel target = $region3
    $region8: #{_lambda_.2} parent=1 // loop_exit
      _
    %2739 = vsyncpa [#allocation4], 1
    %s2740 = scalar_lea.sflag [#allocation4], 1
    %2741 = vsyncpa %s2740, 1
    %2742 = vsyncpa [#allocation6], 1
    %s2743 = scalar_lea.sflag [#allocation6], 1
    %2744 = vsyncpa %s2743, 1
    %2745 = vsyncpa [#allocation9], 1
    %s2746 = scalar_lea.sflag [#allocation9], 1
    %2747 = vsyncpa %s2746, 1

// kernel: _lambda_.3
$region0: #{_lambda_.3}
  #allocation0 [shape = 'u32[]', space=smem, size = 0x4, offset = 0x4, fixed_abs, tag = 'smem constant byte address 0x4 - core index']
  #allocation1 [shape = 'u32[72,128]{1,0:T(1,128)}', space=vmem, size = 0x9000, scoped, tag = 'internal scratch']
  #allocation2 [shape = 'f32[16,32]{1,0:T(8,128)}', space=vmem, size = 0x2000, scoped, tag = 'scratch operand']
  %s0 = inlined_call_operand.vmem [shape: f32[16,32], index: 0, kind: input, shape index: {}]
  %s1 = inlined_call_operand.vmem [shape: f32[16,32], index: 1, kind: input, shape index: {}]
  %s2 = inlined_call_operand.vmem [shape: f32[2,1,32], index: 2, kind: input, shape index: {}, may-alias: {2,8,16}]
  %s3 = inlined_call_operand.vmem [shape: f32[2,1,32], index: 3, kind: input, shape index: {}, may-alias: {3,7,9,11,15,17,21}]
  %s4 = inlined_call_operand.hbm [shape: f32[2,32,96], index: 4, kind: input, shape index: {}]
  %s5 = inlined_call_operand.vmem [shape: f32[2,1,96], index: 5, kind: input, shape index: {}]
  %s6 = inlined_call_operand.hbm [shape: f32[2,32,32], index: 6, kind: input, shape index: {}]
  %s7 = inlined_call_operand.vmem [shape: f32[2,1,32], index: 7, kind: input, shape index: {}, may-alias: {3,7,9,11,15,17,21}]
  %s8 = inlined_call_operand.vmem [shape: f32[2,1,32], index: 8, kind: input, shape index: {}, may-alias: {2,8,16}]
  %s9 = inlined_call_operand.vmem [shape: f32[2,1,32], index: 9, kind: input, shape index: {}, may-alias: {3,7,9,11,15,17,21}]
  %s10 = inlined_call_operand.hbm [shape: f32[2,32,32], index: 10, kind: input, shape index: {}]
  %s11 = inlined_call_operand.vmem [shape: f32[2,1,32], index: 11, kind: input, shape index: {}, may-alias: {3,7,9,11,15,17,21}]
  %s12 = inlined_call_operand.hbm [shape: f32[2,32,64], index: 12, kind: input, shape index: {}]
  %s13 = inlined_call_operand.vmem [shape: f32[2,1,64], index: 13, kind: input, shape index: {}]
  %s14 = inlined_call_operand.hbm [shape: f32[2,32,32], index: 14, kind: input, shape index: {}]
  %s15 = inlined_call_operand.vmem [shape: f32[2,1,32], index: 15, kind: input, shape index: {}, may-alias: {3,7,9,11,15,17,21}]
  %s16 = inlined_call_operand.vmem [shape: f32[2,1,32], index: 16, kind: input, shape index: {}, may-alias: {2,8,16}]
  %s17 = inlined_call_operand.vmem [shape: f32[2,1,32], index: 17, kind: input, shape index: {}, may-alias: {3,7,9,11,15,17,21}]
  %s18 = inlined_call_operand.hbm [shape: f32[2,32,2048], index: 18, kind: input, shape index: {}]
  %s19 = inlined_call_operand.vmem [shape: f32[2,1,2048], index: 19, kind: input, shape index: {}]
  %s20 = inlined_call_operand.hbm [shape: f32[2,2048,32], index: 20, kind: input, shape index: {}]
  %s21 = inlined_call_operand.vmem [shape: f32[2,1,32], index: 21, kind: input, shape index: {}, may-alias: {3,7,9,11,15,17,21}]
  %s22 = inlined_call_operand.vmem [shape: f32[1,32], index: 22, kind: input, shape index: {}]
  %s23 = inlined_call_operand.vmem [shape: f32[1,32], index: 23, kind: input, shape index: {}]
  %s24 = inlined_call_operand.hbm [shape: f32[32,128], index: 24, kind: input, shape index: {}]
  %s25 = inlined_call_operand.vmem [shape: f32[1,128], index: 25, kind: input, shape index: {}]
  %s26 = inlined_call_operand.hbm [shape: f32[16,128], index: 26, kind: output, shape index: {}]
  %s27 = sld [smem:[#allocation0]]
  $region177: #{_lambda_.3} parent=0
    _
  %s29 = ssub.s32 1, %s27
  %s30 = scalar_select 0, %s29, %s27
  $region1: #{_lambda_.3} parent=0
    #allocation3 [shape = 'u8[32768]{0}', space=vmem, size = 0x8000, scoped, tag = 'input window, operand 4']
    #allocation4 [shape = 's32[2]{0}', space=sflag, size = 0x8, scoped, tag = 'scoped memory for _lambda_.3']
    #allocation5 [shape = 's32[2]{0}', space=sflag, size = 0x8, scoped, tag = 'scoped memory for _lambda_.3']
    #allocation6 [shape = 'u8[32768]{0}', space=vmem, size = 0x8000, scoped, tag = 'input window, operand 6']
    #allocation7 [shape = 's32[2]{0}', space=sflag, size = 0x8, scoped, tag = 'scoped memory for _lambda_.3']
    #allocation8 [shape = 'u8[32768]{0}', space=vmem, size = 0x8000, scoped, tag = 'input window, operand 10']
    #allocation9 [shape = 'u8[32768]{0}', space=vmem, size = 0x8000, scoped, tag = 'input window, operand 12']
    #allocation10 [shape = 's32[2]{0}', space=sflag, size = 0x8, scoped, tag = 'scoped memory for _lambda_.3']
    #allocation11 [shape = 'u8[32768]{0}', space=vmem, size = 0x8000, scoped, tag = 'input window, operand 14']
    #allocation12 [shape = 'u8[524288]{0}', space=vmem, size = 0x80000, scoped, tag = 'input window, operand 18']
    #allocation13 [shape = 's32[2]{0}', space=sflag, size = 0x8, scoped, tag = 'scoped memory for _lambda_.3']
    #allocation14 [shape = 'u8[2097152]{0}', space=vmem, size = 0x200000, scoped, tag = 'input window, operand 20']
    #allocation15 [shape = 'u8[16384]{0}', space=vmem, size = 0x4000, scoped, tag = 'input window, operand 24, single buffered']
    #allocation16 [shape = 's32[1]{0}', space=sflag, size = 0x4, scoped, tag = 'scoped memory for _lambda_.3']
    #allocation17 [shape = 'u8[8192]{0}', space=vmem, size = 0x2000, scoped, tag = 'output window, operand 0, single buffered']
    %31 = vsyncpa [#allocation4], 0
    %s32 = scalar_lea.sflag [#allocation4], 1
    %33 = vsyncpa %s32, 0
    %34 = vsyncpa [#allocation7], 0
    %s35 = scalar_lea.sflag [#allocation7], 1
    %36 = vsyncpa %s35, 0
    %37 = vsyncpa [#allocation10], 0
    %s38 = scalar_lea.sflag [#allocation10], 1
    %39 = vsyncpa %s38, 0
    %40 = vsyncpa [#allocation13], 0
    %s41 = scalar_lea.sflag [#allocation13], 1
    %42 = vsyncpa %s41, 0
    %43 = vsyncpa [#allocation16], 0
    %44 = vsyncpa [#allocation5], 0
    loop: start=0, step=1, limit=4
    $region2: #{_lambda_.3} parent=1 // loop_pre_header
      _
    $region3: #{_lambda_.3} parent=1 // loop_header
      %s46 = sphi 0, %s50
      %p47 = scmp.ge.s32.totalorder %s46, 4
      %s54 = sphi 0, %s54
      %s56 = sphi 0, %s54
      %s57 = sphi 0, %s56
      %s71 = sphi 0, %s57
      %s75 = sphi 0, %s75
      %s77 = sphi 0, %s75
      %s78 = sphi 0, %s77
      %s92 = sphi 0, %s78
      %s98 = sphi 0, %s100
      %s101 = sphi 0, %s98
      %s102 = sphi 0, %s101
      %s118 = sphi 0, %s102
      %s124 = sphi 0, %s126
      %s127 = sphi 0, %s124
      %s128 = sphi 0, %s127
      %s144 = sphi 0, %s128
      %s150 = sphi 0, %s152
      %s153 = sphi 0, %s150
      %s154 = sphi 0, %s153
      %s170 = sphi 0, %s154
      %s176 = sphi 0, %s178
      %s179 = sphi 0, %s176
      %s180 = sphi 0, %s179
      %s196 = sphi 0, %s180
      %s202 = sphi 0, %s204
      %s205 = sphi 0, %s202
      %s206 = sphi 0, %s205
      %s222 = sphi 0, %s206
      %s228 = sphi 0, %s230
      %s231 = sphi 0, %s228
      %s232 = sphi 0, %s231
      %s248 = sphi 0, %s232
      %s254 = sphi 0, %s256
      %s257 = sphi 0, %s254
      %s258 = sphi 0, %s257
      %s274 = sphi 0, %s258
      %s280 = sphi 0, %s282
      %s283 = sphi 0, %s280
      %s284 = sphi 0, %s283
      %s300 = sphi 0, %s284
      %s306 = sphi 0, %s308
      %s309 = sphi 0, %s306
      %s310 = sphi 0, %s309
      %s326 = sphi 0, %s310
      %s332 = sphi 0, %s334
      %s335 = sphi 0, %s332
      %s336 = sphi 0, %s335
      %s352 = sphi 0, %s336
      %s358 = sphi 0, %s360
      %s361 = sphi 0, %s358
      %s362 = sphi 0, %s361
      %s378 = sphi 0, %s362
      %s384 = sphi 0, %s386
      %s387 = sphi 0, %s384
      %s388 = sphi 0, %s387
      %s404 = sphi 0, %s388
      %s410 = sphi 0, %s412
      %s413 = sphi 0, %s410
      %s414 = sphi 0, %s413
      %s430 = sphi 0, %s414
      %s436 = sphi 0, %s438
      %s439 = sphi 0, %s436
      %s440 = sphi 0, %s439
      %s456 = sphi 0, %s440
      %s462 = sphi 0, %s464
      %s465 = sphi 0, %s462
      %s466 = sphi 0, %s465
      %s482 = sphi 0, %s466
      %s488 = sphi 0, %s490
      %s491 = sphi 0, %s488
      %s492 = sphi 0, %s491
      %s508 = sphi 0, %s492
      %s514 = sphi 0, %s516
      %s517 = sphi 0, %s514
      %s518 = sphi 0, %s517
      %s534 = sphi 0, %s518
      %s540 = sphi 0, %s542
      %s543 = sphi 0, %s540
      %s544 = sphi 0, %s543
      %s560 = sphi 0, %s544
      %s566 = sphi 0, %s568
      %s569 = sphi 0, %s566
      %s570 = sphi 0, %s569
      %s586 = sphi 0, %s570
      %s592 = sphi 0, %s594
      %s595 = sphi 0, %s592
      %s596 = sphi 0, %s595
      %s612 = sphi 0, %s596
      %s616 = sphi 0, %s616
      %s618 = sphi 0, %s616
      %s619 = sphi 0, %s618
      %s633 = sphi 0, %s619
      %s637 = sphi 0, %s637
      %s639 = sphi 0, %s637
      %s640 = sphi 0, %s639
      %s654 = sphi 0, %s640
      %s658 = sphi 0, %s658
      %s660 = sphi 0, %s658
      %s661 = sphi 0, %s660
      %s675 = sphi 0, %s661
      %s679 = sphi 0, %s679
      %s681 = sphi 0, %s679
      %s682 = sphi 0, %s681
      %s696 = sphi 0, %s682
      %s700 = sphi 0, %s700
      %s702 = sphi 0, %s700
      %s703 = sphi 0, %s702
      %s717 = sphi 0, %s703
    $region4: #{_lambda_.3} parent=1 // loop_header_branch
      %49 = sbr.rel (%p47) target = $region8
    $region5: #{_lambda_.3} parent=1 // loop_body
      %s51 = ssub.s32 %s46, 1
      %s52 = ssub.s32 %s46, 2
      %s53 = sadd.s32 %s46, 1
      %s55 = sadd.s32 %s54, 1
      %p58 = scmp.eq.s32.totalorder %s46, 1
      %p59 = scmp.ne.s32.totalorder %s54, %s56
      %p60 = scmp.eq.s32.totalorder %s46, 0
      %p61 = por %p59, %p60
      %p62 = scmp.ne.s32.totalorder %s54, %s56
      %p63 = scmp.eq.s32.totalorder %s51, 1
      %p64 = por %p62, %p63
      %p65 = scmp.ne.s32.totalorder %s56, %s57
      %p66 = scmp.eq.s32.totalorder %s51, 0
      %p67 = por %p65, %p66
      %p68 = scmp.ne.s32.totalorder %s56, %s57
      %p69 = scmp.eq.s32.totalorder %s52, 1
      %p70 = por %p68, %p69
      %p72 = scmp.ne.s32.totalorder %s57, %s71
      %p73 = scmp.eq.s32.totalorder %s52, 0
      %p74 = por %p72, %p73
      %s76 = sadd.s32 %s75, 1
      %p79 = scmp.eq.s32.totalorder %s46, 1
      %p80 = scmp.ne.s32.totalorder %s75, %s77
      %p81 = scmp.eq.s32.totalorder %s46, 0
      %p82 = por %p80, %p81
      %p83 = scmp.ne.s32.totalorder %s75, %s77
      %p84 = scmp.eq.s32.totalorder %s51, 1
      %p85 = por %p83, %p84
      %p86 = scmp.ne.s32.totalorder %s77, %s78
      %p87 = scmp.eq.s32.totalorder %s51, 0
      %p88 = por %p86, %p87
      %p89 = scmp.ne.s32.totalorder %s77, %s78
      %p90 = scmp.eq.s32.totalorder %s52, 1
      %p91 = por %p89, %p90
      %p93 = scmp.ne.s32.totalorder %s78, %s92
      %p94 = scmp.eq.s32.totalorder %s52, 0
      %p95 = por %p93, %p94
      %s96 = ssub.s32 %s46, %s53
      %p97 = scmp.eq.s32.totalorder %s96, 0
      %s99 = sadd.s32 %s98, 1
      %s100 = scalar_select %p97, %s98, %s99
      %p103 = pneg %p97
      %p104 = scmp.eq.s32.totalorder %s46, 1
      %p105 = por %p103, %p104
      %p106 = scmp.ne.s32.totalorder %s98, %s101
      %p107 = scmp.eq.s32.totalorder %s46, 0
      %p108 = por %p106, %p107
      %p109 = scmp.ne.s32.totalorder %s98, %s101
      %p110 = scmp.eq.s32.totalorder %s51, 1
      %p111 = por %p109, %p110
      %p112 = scmp.ne.s32.totalorder %s101, %s102
      %p113 = scmp.eq.s32.totalorder %s51, 0
      %p114 = por %p112, %p113
      %p115 = scmp.ne.s32.totalorder %s101, %s102
      %p116 = scmp.eq.s32.totalorder %s52, 1
      %p117 = por %p115, %p116
      %p119 = scmp.ne.s32.totalorder %s102, %s118
      %p120 = scmp.eq.s32.totalorder %s52, 0
      %p121 = por %p119, %p120
      %s122 = ssub.s32 %s46, %s53
      %p123 = scmp.eq.s32.totalorder %s122, 0
      %s125 = sadd.s32 %s124, 1
      %s126 = scalar_select %p123, %s124, %s125
      %p129 = pneg %p123
      %p130 = scmp.eq.s32.totalorder %s46, 1
      %p131 = por %p129, %p130
      %p132 = scmp.ne.s32.totalorder %s124, %s127
      %p133 = scmp.eq.s32.totalorder %s46, 0
      %p134 = por %p132, %p133
      %p135 = scmp.ne.s32.totalorder %s124, %s127
      %p136 = scmp.eq.s32.totalorder %s51, 1
      %p137 = por %p135, %p136
      %p138 = scmp.ne.s32.totalorder %s127, %s128
      %p139 = scmp.eq.s32.totalorder %s51, 0
      %p140 = por %p138, %p139
      %p141 = scmp.ne.s32.totalorder %s127, %s128
      %p142 = scmp.eq.s32.totalorder %s52, 1
      %p143 = por %p141, %p142
      %p145 = scmp.ne.s32.totalorder %s128, %s144
      %p146 = scmp.eq.s32.totalorder %s52, 0
      %p147 = por %p145, %p146
      %s148 = ssub.s32 %s46, %s53
      %p149 = scmp.eq.s32.totalorder %s148, 0
      %s151 = sadd.s32 %s150, 1
      %s152 = scalar_select %p149, %s150, %s151
      %p155 = pneg %p149
      %p156 = scmp.eq.s32.totalorder %s46, 1
      %p157 = por %p155, %p156
      %p158 = scmp.ne.s32.totalorder %s150, %s153
      %p159 = scmp.eq.s32.totalorder %s46, 0
      %p160 = por %p158, %p159
      %p161 = scmp.ne.s32.totalorder %s150, %s153
      %p162 = scmp.eq.s32.totalorder %s51, 1
      %p163 = por %p161, %p162
      %p164 = scmp.ne.s32.totalorder %s153, %s154
      %p165 = scmp.eq.s32.totalorder %s51, 0
      %p166 = por %p164, %p165
      %p167 = scmp.ne.s32.totalorder %s153, %s154
      %p168 = scmp.eq.s32.totalorder %s52, 1
      %p169 = por %p167, %p168
      %p171 = scmp.ne.s32.totalorder %s154, %s170
      %p172 = scmp.eq.s32.totalorder %s52, 0
      %p173 = por %p171, %p172
      %s174 = ssub.s32 %s46, %s53
      %p175 = scmp.eq.s32.totalorder %s174, 0
      %s177 = sadd.s32 %s176, 1
      %s178 = scalar_select %p175, %s176, %s177
      %p181 = pneg %p175
      %p182 = scmp.eq.s32.totalorder %s46, 1
      %p183 = por %p181, %p182
      %p184 = scmp.ne.s32.totalorder %s176, %s179
      %p185 = scmp.eq.s32.totalorder %s46, 0
      %p186 = por %p184, %p185
      %p187 = scmp.ne.s32.totalorder %s176, %s179
      %p188 = scmp.eq.s32.totalorder %s51, 1
      %p189 = por %p187, %p188
      %p190 = scmp.ne.s32.totalorder %s179, %s180
      %p191 = scmp.eq.s32.totalorder %s51, 0
      %p192 = por %p190, %p191
      %p193 = scmp.ne.s32.totalorder %s179, %s180
      %p194 = scmp.eq.s32.totalorder %s52, 1
      %p195 = por %p193, %p194
      %p197 = scmp.ne.s32.totalorder %s180, %s196
      %p198 = scmp.eq.s32.totalorder %s52, 0
      %p199 = por %p197, %p198
      %s200 = ssub.s32 %s46, %s53
      %p201 = scmp.eq.s32.totalorder %s200, 0
      %s203 = sadd.s32 %s202, 1
      %s204 = scalar_select %p201, %s202, %s203
      %p207 = pneg %p201
      %p208 = scmp.eq.s32.totalorder %s46, 1
      %p209 = por %p207, %p208
      %p210 = scmp.ne.s32.totalorder %s202, %s205
      %p211 = scmp.eq.s32.totalorder %s46, 0
      %p212 = por %p210, %p211
      %p213 = scmp.ne.s32.totalorder %s202, %s205
      %p214 = scmp.eq.s32.totalorder %s51, 1
      %p215 = por %p213, %p214
      %p216 = scmp.ne.s32.totalorder %s205, %s206
      %p217 = scmp.eq.s32.totalorder %s51, 0
      %p218 = por %p216, %p217
      %p219 = scmp.ne.s32.totalorder %s205, %s206
      %p220 = scmp.eq.s32.totalorder %s52, 1
      %p221 = por %p219, %p220
      %p223 = scmp.ne.s32.totalorder %s206, %s222
      %p224 = scmp.eq.s32.totalorder %s52, 0
      %p225 = por %p223, %p224
      %s226 = ssub.s32 %s46, %s53
      %p227 = scmp.eq.s32.totalorder %s226, 0
      %s229 = sadd.s32 %s228, 1
      %s230 = scalar_select %p227, %s228, %s229
      %p233 = pneg %p227
      %p234 = scmp.eq.s32.totalorder %s46, 1
      %p235 = por %p233, %p234
      %p236 = scmp.ne.s32.totalorder %s228, %s231
      %p237 = scmp.eq.s32.totalorder %s46, 0
      %p238 = por %p236, %p237
      %p239 = scmp.ne.s32.totalorder %s228, %s231
      %p240 = scmp.eq.s32.totalorder %s51, 1
      %p241 = por %p239, %p240
      %p242 = scmp.ne.s32.totalorder %s231, %s232
      %p243 = scmp.eq.s32.totalorder %s51, 0
      %p244 = por %p242, %p243
      %p245 = scmp.ne.s32.totalorder %s231, %s232
      %p246 = scmp.eq.s32.totalorder %s52, 1
      %p247 = por %p245, %p246
      %p249 = scmp.ne.s32.totalorder %s232, %s248
      %p250 = scmp.eq.s32.totalorder %s52, 0
      %p251 = por %p249, %p250
      %s252 = ssub.s32 %s46, %s53
      %p253 = scmp.eq.s32.totalorder %s252, 0
      %s255 = sadd.s32 %s254, 1
      %s256 = scalar_select %p253, %s254, %s255
      %p259 = pneg %p253
      %p260 = scmp.eq.s32.totalorder %s46, 1
      %p261 = por %p259, %p260
      %p262 = scmp.ne.s32.totalorder %s254, %s257
      %p263 = scmp.eq.s32.totalorder %s46, 0
      %p264 = por %p262, %p263
      %p265 = scmp.ne.s32.totalorder %s254, %s257
      %p266 = scmp.eq.s32.totalorder %s51, 1
      %p267 = por %p265, %p266
      %p268 = scmp.ne.s32.totalorder %s257, %s258
      %p269 = scmp.eq.s32.totalorder %s51, 0
      %p270 = por %p268, %p269
      %p271 = scmp.ne.s32.totalorder %s257, %s258
      %p272 = scmp.eq.s32.totalorder %s52, 1
      %p273 = por %p271, %p272
      %p275 = scmp.ne.s32.totalorder %s258, %s274
      %p276 = scmp.eq.s32.totalorder %s52, 0
      %p277 = por %p275, %p276
      %s278 = ssub.s32 %s46, %s53
      %p279 = scmp.eq.s32.totalorder %s278, 0
      %s281 = sadd.s32 %s280, 1
      %s282 = scalar_select %p279, %s280, %s281
      %p285 = pneg %p279
      %p286 = scmp.eq.s32.totalorder %s46, 1
      %p287 = por %p285, %p286
      %p288 = scmp.ne.s32.totalorder %s280, %s283
      %p289 = scmp.eq.s32.totalorder %s46, 0
      %p290 = por %p288, %p289
      %p291 = scmp.ne.s32.totalorder %s280, %s283
      %p292 = scmp.eq.s32.totalorder %s51, 1
      %p293 = por %p291, %p292
      %p294 = scmp.ne.s32.totalorder %s283, %s284
      %p295 = scmp.eq.s32.totalorder %s51, 0
      %p296 = por %p294, %p295
      %p297 = scmp.ne.s32.totalorder %s283, %s284
      %p298 = scmp.eq.s32.totalorder %s52, 1
      %p299 = por %p297, %p298
      %p301 = scmp.ne.s32.totalorder %s284, %s300
      %p302 = scmp.eq.s32.totalorder %s52, 0
      %p303 = por %p301, %p302
      %s304 = ssub.s32 %s46, %s53
      %p305 = scmp.eq.s32.totalorder %s304, 0
      %s307 = sadd.s32 %s306, 1
      %s308 = scalar_select %p305, %s306, %s307
      %p311 = pneg %p305
      %p312 = scmp.eq.s32.totalorder %s46, 1
      %p313 = por %p311, %p312
      %p314 = scmp.ne.s32.totalorder %s306, %s309
      %p315 = scmp.eq.s32.totalorder %s46, 0
      %p316 = por %p314, %p315
      %p317 = scmp.ne.s32.totalorder %s306, %s309
      %p318 = scmp.eq.s32.totalorder %s51, 1
      %p319 = por %p317, %p318
      %p320 = scmp.ne.s32.totalorder %s309, %s310
      %p321 = scmp.eq.s32.totalorder %s51, 0
      %p322 = por %p320, %p321
      %p323 = scmp.ne.s32.totalorder %s309, %s310
      %p324 = scmp.eq.s32.totalorder %s52, 1
      %p325 = por %p323, %p324
      %p327 = scmp.ne.s32.totalorder %s310, %s326
      %p328 = scmp.eq.s32.totalorder %s52, 0
      %p329 = por %p327, %p328
      %s330 = ssub.s32 %s46, %s53
      %p331 = scmp.eq.s32.totalorder %s330, 0
      %s333 = sadd.s32 %s332, 1
      %s334 = scalar_select %p331, %s332, %s333
      %p337 = pneg %p331
      %p338 = scmp.eq.s32.totalorder %s46, 1
      %p339 = por %p337, %p338
      %p340 = scmp.ne.s32.totalorder %s332, %s335
      %p341 = scmp.eq.s32.totalorder %s46, 0
      %p342 = por %p340, %p341
      %p343 = scmp.ne.s32.totalorder %s332, %s335
      %p344 = scmp.eq.s32.totalorder %s51, 1
      %p345 = por %p343, %p344
      %p346 = scmp.ne.s32.totalorder %s335, %s336
      %p347 = scmp.eq.s32.totalorder %s51, 0
      %p348 = por %p346, %p347
      %p349 = scmp.ne.s32.totalorder %s335, %s336
      %p350 = scmp.eq.s32.totalorder %s52, 1
      %p351 = por %p349, %p350
      %p353 = scmp.ne.s32.totalorder %s336, %s352
      %p354 = scmp.eq.s32.totalorder %s52, 0
      %p355 = por %p353, %p354
      %s356 = ssub.s32 %s46, %s53
      %p357 = scmp.eq.s32.totalorder %s356, 0
      %s359 = sadd.s32 %s358, 1
      %s360 = scalar_select %p357, %s358, %s359
      %p363 = pneg %p357
      %p364 = scmp.eq.s32.totalorder %s46, 1
      %p365 = por %p363, %p364
      %p366 = scmp.ne.s32.totalorder %s358, %s361
      %p367 = scmp.eq.s32.totalorder %s46, 0
      %p368 = por %p366, %p367
      %p369 = scmp.ne.s32.totalorder %s358, %s361
      %p370 = scmp.eq.s32.totalorder %s51, 1
      %p371 = por %p369, %p370
      %p372 = scmp.ne.s32.totalorder %s361, %s362
      %p373 = scmp.eq.s32.totalorder %s51, 0
      %p374 = por %p372, %p373
      %p375 = scmp.ne.s32.totalorder %s361, %s362
      %p376 = scmp.eq.s32.totalorder %s52, 1
      %p377 = por %p375, %p376
      %p379 = scmp.ne.s32.totalorder %s362, %s378
      %p380 = scmp.eq.s32.totalorder %s52, 0
      %p381 = por %p379, %p380
      %s382 = ssub.s32 %s46, %s53
      %p383 = scmp.eq.s32.totalorder %s382, 0
      %s385 = sadd.s32 %s384, 1
      %s386 = scalar_select %p383, %s384, %s385
      %p389 = pneg %p383
      %p390 = scmp.eq.s32.totalorder %s46, 1
      %p391 = por %p389, %p390
      %p392 = scmp.ne.s32.totalorder %s384, %s387
      %p393 = scmp.eq.s32.totalorder %s46, 0
      %p394 = por %p392, %p393
      %p395 = scmp.ne.s32.totalorder %s384, %s387
      %p396 = scmp.eq.s32.totalorder %s51, 1
      %p397 = por %p395, %p396
      %p398 = scmp.ne.s32.totalorder %s387, %s388
      %p399 = scmp.eq.s32.totalorder %s51, 0
      %p400 = por %p398, %p399
      %p401 = scmp.ne.s32.totalorder %s387, %s388
      %p402 = scmp.eq.s32.totalorder %s52, 1
      %p403 = por %p401, %p402
      %p405 = scmp.ne.s32.totalorder %s388, %s404
      %p406 = scmp.eq.s32.totalorder %s52, 0
      %p407 = por %p405, %p406
      %s408 = ssub.s32 %s46, %s53
      %p409 = scmp.eq.s32.totalorder %s408, 0
      %s411 = sadd.s32 %s410, 1
      %s412 = scalar_select %p409, %s410, %s411
      %p415 = pneg %p409
      %p416 = scmp.eq.s32.totalorder %s46, 1
      %p417 = por %p415, %p416
      %p418 = scmp.ne.s32.totalorder %s410, %s413
      %p419 = scmp.eq.s32.totalorder %s46, 0
      %p420 = por %p418, %p419
      %p421 = scmp.ne.s32.totalorder %s410, %s413
      %p422 = scmp.eq.s32.totalorder %s51, 1
      %p423 = por %p421, %p422
      %p424 = scmp.ne.s32.totalorder %s413, %s414
      %p425 = scmp.eq.s32.totalorder %s51, 0
      %p426 = por %p424, %p425
      %p427 = scmp.ne.s32.totalorder %s413, %s414
      %p428 = scmp.eq.s32.totalorder %s52, 1
      %p429 = por %p427, %p428
      %p431 = scmp.ne.s32.totalorder %s414, %s430
      %p432 = scmp.eq.s32.totalorder %s52, 0
      %p433 = por %p431, %p432
      %s434 = ssub.s32 %s46, %s53
      %p435 = scmp.eq.s32.totalorder %s434, 0
      %s437 = sadd.s32 %s436, 1
      %s438 = scalar_select %p435, %s436, %s437
      %p441 = pneg %p435
      %p442 = scmp.eq.s32.totalorder %s46, 1
      %p443 = por %p441, %p442
      %p444 = scmp.ne.s32.totalorder %s436, %s439
      %p445 = scmp.eq.s32.totalorder %s46, 0
      %p446 = por %p444, %p445
      %p447 = scmp.ne.s32.totalorder %s436, %s439
      %p448 = scmp.eq.s32.totalorder %s51, 1
      %p449 = por %p447, %p448
      %p450 = scmp.ne.s32.totalorder %s439, %s440
      %p451 = scmp.eq.s32.totalorder %s51, 0
      %p452 = por %p450, %p451
      %p453 = scmp.ne.s32.totalorder %s439, %s440
      %p454 = scmp.eq.s32.totalorder %s52, 1
      %p455 = por %p453, %p454
      %p457 = scmp.ne.s32.totalorder %s440, %s456
      %p458 = scmp.eq.s32.totalorder %s52, 0
      %p459 = por %p457, %p458
      %s460 = ssub.s32 %s46, %s53
      %p461 = scmp.eq.s32.totalorder %s460, 0
      %s463 = sadd.s32 %s462, 1
      %s464 = scalar_select %p461, %s462, %s463
      %p467 = pneg %p461
      %p468 = scmp.eq.s32.totalorder %s46, 1
      %p469 = por %p467, %p468
      %p470 = scmp.ne.s32.totalorder %s462, %s465
      %p471 = scmp.eq.s32.totalorder %s46, 0
      %p472 = por %p470, %p471
      %p473 = scmp.ne.s32.totalorder %s462, %s465
      %p474 = scmp.eq.s32.totalorder %s51, 1
      %p475 = por %p473, %p474
      %p476 = scmp.ne.s32.totalorder %s465, %s466
      %p477 = scmp.eq.s32.totalorder %s51, 0
      %p478 = por %p476, %p477
      %p479 = scmp.ne.s32.totalorder %s465, %s466
      %p480 = scmp.eq.s32.totalorder %s52, 1
      %p481 = por %p479, %p480
      %p483 = scmp.ne.s32.totalorder %s466, %s482
      %p484 = scmp.eq.s32.totalorder %s52, 0
      %p485 = por %p483, %p484
      %s486 = ssub.s32 %s46, %s53
      %p487 = scmp.eq.s32.totalorder %s486, 0
      %s489 = sadd.s32 %s488, 1
      %s490 = scalar_select %p487, %s488, %s489
      %p493 = pneg %p487
      %p494 = scmp.eq.s32.totalorder %s46, 1
      %p495 = por %p493, %p494
      %p496 = scmp.ne.s32.totalorder %s488, %s491
      %p497 = scmp.eq.s32.totalorder %s46, 0
      %p498 = por %p496, %p497
      %p499 = scmp.ne.s32.totalorder %s488, %s491
      %p500 = scmp.eq.s32.totalorder %s51, 1
      %p501 = por %p499, %p500
      %p502 = scmp.ne.s32.totalorder %s491, %s492
      %p503 = scmp.eq.s32.totalorder %s51, 0
      %p504 = por %p502, %p503
      %p505 = scmp.ne.s32.totalorder %s491, %s492
      %p506 = scmp.eq.s32.totalorder %s52, 1
      %p507 = por %p505, %p506
      %p509 = scmp.ne.s32.totalorder %s492, %s508
      %p510 = scmp.eq.s32.totalorder %s52, 0
      %p511 = por %p509, %p510
      %s512 = ssub.s32 %s46, %s53
      %p513 = scmp.eq.s32.totalorder %s512, 0
      %s515 = sadd.s32 %s514, 1
      %s516 = scalar_select %p513, %s514, %s515
      %p519 = pneg %p513
      %p520 = scmp.eq.s32.totalorder %s46, 1
      %p521 = por %p519, %p520
      %p522 = scmp.ne.s32.totalorder %s514, %s517
      %p523 = scmp.eq.s32.totalorder %s46, 0
      %p524 = por %p522, %p523
      %p525 = scmp.ne.s32.totalorder %s514, %s517
      %p526 = scmp.eq.s32.totalorder %s51, 1
      %p527 = por %p525, %p526
      %p528 = scmp.ne.s32.totalorder %s517, %s518
      %p529 = scmp.eq.s32.totalorder %s51, 0
      %p530 = por %p528, %p529
      %p531 = scmp.ne.s32.totalorder %s517, %s518
      %p532 = scmp.eq.s32.totalorder %s52, 1
      %p533 = por %p531, %p532
      %p535 = scmp.ne.s32.totalorder %s518, %s534
      %p536 = scmp.eq.s32.totalorder %s52, 0
      %p537 = por %p535, %p536
      %s538 = ssub.s32 %s46, %s53
      %p539 = scmp.eq.s32.totalorder %s538, 0
      %s541 = sadd.s32 %s540, 1
      %s542 = scalar_select %p539, %s540, %s541
      %p545 = pneg %p539
      %p546 = scmp.eq.s32.totalorder %s46, 1
      %p547 = por %p545, %p546
      %p548 = scmp.ne.s32.totalorder %s540, %s543
      %p549 = scmp.eq.s32.totalorder %s46, 0
      %p550 = por %p548, %p549
      %p551 = scmp.ne.s32.totalorder %s540, %s543
      %p552 = scmp.eq.s32.totalorder %s51, 1
      %p553 = por %p551, %p552
      %p554 = scmp.ne.s32.totalorder %s543, %s544
      %p555 = scmp.eq.s32.totalorder %s51, 0
      %p556 = por %p554, %p555
      %p557 = scmp.ne.s32.totalorder %s543, %s544
      %p558 = scmp.eq.s32.totalorder %s52, 1
      %p559 = por %p557, %p558
      %p561 = scmp.ne.s32.totalorder %s544, %s560
      %p562 = scmp.eq.s32.totalorder %s52, 0
      %p563 = por %p561, %p562
      %s564 = ssub.s32 %s46, %s53
      %p565 = scmp.eq.s32.totalorder %s564, 0
      %s567 = sadd.s32 %s566, 1
      %s568 = scalar_select %p565, %s566, %s567
      %p571 = pneg %p565
      %p572 = scmp.eq.s32.totalorder %s46, 1
      %p573 = por %p571, %p572
      %p574 = scmp.ne.s32.totalorder %s566, %s569
      %p575 = scmp.eq.s32.totalorder %s46, 0
      %p576 = por %p574, %p575
      %p577 = scmp.ne.s32.totalorder %s566, %s569
      %p578 = scmp.eq.s32.totalorder %s51, 1
      %p579 = por %p577, %p578
      %p580 = scmp.ne.s32.totalorder %s569, %s570
      %p581 = scmp.eq.s32.totalorder %s51, 0
      %p582 = por %p580, %p581
      %p583 = scmp.ne.s32.totalorder %s569, %s570
      %p584 = scmp.eq.s32.totalorder %s52, 1
      %p585 = por %p583, %p584
      %p587 = scmp.ne.s32.totalorder %s570, %s586
      %p588 = scmp.eq.s32.totalorder %s52, 0
      %p589 = por %p587, %p588
      %s590 = ssub.s32 %s46, %s53
      %p591 = scmp.eq.s32.totalorder %s590, 0
      %s593 = sadd.s32 %s592, 1
      %s594 = scalar_select %p591, %s592, %s593
      %p597 = pneg %p591
      %p598 = scmp.eq.s32.totalorder %s46, 1
      %p599 = por %p597, %p598
      %p600 = scmp.ne.s32.totalorder %s592, %s595
      %p601 = scmp.eq.s32.totalorder %s46, 0
      %p602 = por %p600, %p601
      %p603 = scmp.ne.s32.totalorder %s592, %s595
      %p604 = scmp.eq.s32.totalorder %s51, 1
      %p605 = por %p603, %p604
      %p606 = scmp.ne.s32.totalorder %s595, %s596
      %p607 = scmp.eq.s32.totalorder %s51, 0
      %p608 = por %p606, %p607
      %p609 = scmp.ne.s32.totalorder %s595, %s596
      %p610 = scmp.eq.s32.totalorder %s52, 1
      %p611 = por %p609, %p610
      %p613 = scmp.ne.s32.totalorder %s596, %s612
      %p614 = scmp.eq.s32.totalorder %s52, 0
      %p615 = por %p613, %p614
      %s617 = sadd.s32 %s616, 1
      %p620 = scmp.eq.s32.totalorder %s46, 1
      %p621 = scmp.ne.s32.totalorder %s616, %s618
      %p622 = scmp.eq.s32.totalorder %s46, 0
      %p623 = por %p621, %p622
      %p624 = scmp.ne.s32.totalorder %s616, %s618
      %p625 = scmp.eq.s32.totalorder %s51, 1
      %p626 = por %p624, %p625
      %p627 = scmp.ne.s32.totalorder %s618, %s619
      %p628 = scmp.eq.s32.totalorder %s51, 0
      %p629 = por %p627, %p628
      %p630 = scmp.ne.s32.totalorder %s618, %s619
      %p631 = scmp.eq.s32.totalorder %s52, 1
      %p632 = por %p630, %p631
      %p634 = scmp.ne.s32.totalorder %s619, %s633
      %p635 = scmp.eq.s32.totalorder %s52, 0
      %p636 = por %p634, %p635
      %s638 = sadd.s32 %s637, 1
      %p641 = scmp.eq.s32.totalorder %s46, 1
      %p642 = scmp.ne.s32.totalorder %s637, %s639
      %p643 = scmp.eq.s32.totalorder %s46, 0
      %p644 = por %p642, %p643
      %p645 = scmp.ne.s32.totalorder %s637, %s639
      %p646 = scmp.eq.s32.totalorder %s51, 1
      %p647 = por %p645, %p646
      %p648 = scmp.ne.s32.totalorder %s639, %s640
      %p649 = scmp.eq.s32.totalorder %s51, 0
      %p650 = por %p648, %p649
      %p651 = scmp.ne.s32.totalorder %s639, %s640
      %p652 = scmp.eq.s32.totalorder %s52, 1
      %p653 = por %p651, %p652
      %p655 = scmp.ne.s32.totalorder %s640, %s654
      %p656 = scmp.eq.s32.totalorder %s52, 0
      %p657 = por %p655, %p656
      %s659 = sadd.s32 %s658, 1
      %p662 = scmp.eq.s32.totalorder %s46, 1
      %p663 = scmp.ne.s32.totalorder %s658, %s660
      %p664 = scmp.eq.s32.totalorder %s46, 0
      %p665 = por %p663, %p664
      %p666 = scmp.ne.s32.totalorder %s658, %s660
      %p667 = scmp.eq.s32.totalorder %s51, 1
      %p668 = por %p666, %p667
      %p669 = scmp.ne.s32.totalorder %s660, %s661
      %p670 = scmp.eq.s32.totalorder %s51, 0
      %p671 = por %p669, %p670
      %p672 = scmp.ne.s32.totalorder %s660, %s661
      %p673 = scmp.eq.s32.totalorder %s52, 1
      %p674 = por %p672, %p673
      %p676 = scmp.ne.s32.totalorder %s661, %s675
      %p677 = scmp.eq.s32.totalorder %s52, 0
      %p678 = por %p676, %p677
      %s680 = sadd.s32 %s679, 1
      %p683 = scmp.eq.s32.totalorder %s46, 1
      %p684 = scmp.ne.s32.totalorder %s679, %s681
      %p685 = scmp.eq.s32.totalorder %s46, 0
      %p686 = por %p684, %p685
      %p687 = scmp.ne.s32.totalorder %s679, %s681
      %p688 = scmp.eq.s32.totalorder %s51, 1
      %p689 = por %p687, %p688
      %p690 = scmp.ne.s32.totalorder %s681, %s682
      %p691 = scmp.eq.s32.totalorder %s51, 0
      %p692 = por %p690, %p691
      %p693 = scmp.ne.s32.totalorder %s681, %s682
      %p694 = scmp.eq.s32.totalorder %s52, 1
      %p695 = por %p693, %p694
      %p697 = scmp.ne.s32.totalorder %s682, %s696
      %p698 = scmp.eq.s32.totalorder %s52, 0
      %p699 = por %p697, %p698
      %s701 = sadd.s32 %s700, 1
      %p704 = scmp.eq.s32.totalorder %s46, 1
      %p705 = scmp.ne.s32.totalorder %s700, %s702
      %p706 = scmp.eq.s32.totalorder %s46, 0
      %p707 = por %p705, %p706
      %p708 = scmp.ne.s32.totalorder %s700, %s702
      %p709 = scmp.eq.s32.totalorder %s51, 1
      %p710 = por %p708, %p709
      %p711 = scmp.ne.s32.totalorder %s702, %s703
      %p712 = scmp.eq.s32.totalorder %s51, 0
      %p713 = por %p711, %p712
      %p714 = scmp.ne.s32.totalorder %s702, %s703
      %p715 = scmp.eq.s32.totalorder %s52, 1
      %p716 = por %p714, %p715
      %p718 = scmp.ne.s32.totalorder %s703, %s717
      %p719 = scmp.eq.s32.totalorder %s52, 0
      %p720 = por %p718, %p719
      %p721 = scmp.le.s32.totalorder 1, %s46
      %p722 = scmp.lt.s32.totalorder %s46, 3
      %p723 = pnand %p721, %p722
      %p724 = pneg %p723
      // Predicated region
      $region9: #{_lambda_.3} parent=5 // pred_check
        _
      $region10: #{_lambda_.3} parent=5 // pred_check_branch
        %726 = sbr.rel (%p723) target = $region12
      $region11: #{_lambda_.3} parent=5 // pred_region
        %s727 = ssub.s32 %s46, 1
        // Predicated region
        $region13: #{_lambda_.3} parent=11 // pred_check
          %p728 = pneg %p67
        $region14: #{_lambda_.3} parent=11 // pred_check_branch
          %730 = sbr.rel (%p728) target = $region16
        $region15: #{_lambda_.3} parent=11 // pred_region
          _
        $region16: #{_lambda_.3} parent=11 // pred_fallthru
          _
        // Predicated region
        $region17: #{_lambda_.3} parent=11 // pred_check
          %p731 = pneg %p88
        $region18: #{_lambda_.3} parent=11 // pred_check_branch
          %733 = sbr.rel (%p731) target = $region20
        $region19: #{_lambda_.3} parent=11 // pred_region
          _
        $region20: #{_lambda_.3} parent=11 // pred_fallthru
          _
        // Predicated region
        $region21: #{_lambda_.3} parent=11 // pred_check
          %p734 = pneg %p629
        $region22: #{_lambda_.3} parent=11 // pred_check_branch
          %736 = sbr.rel (%p734) target = $region24
        $region23: #{_lambda_.3} parent=11 // pred_region
          _
        $region24: #{_lambda_.3} parent=11 // pred_fallthru
          _
        // Predicated region
        $region25: #{_lambda_.3} parent=11 // pred_check
          %p737 = pneg %p650
        $region26: #{_lambda_.3} parent=11 // pred_check_branch
          %739 = sbr.rel (%p737) target = $region28
        $region27: #{_lambda_.3} parent=11 // pred_region
          _
        $region28: #{_lambda_.3} parent=11 // pred_fallthru
          _
        // Predicated region
        $region29: #{_lambda_.3} parent=11 // pred_check
          %p740 = pneg %p671
        $region30: #{_lambda_.3} parent=11 // pred_check_branch
          %742 = sbr.rel (%p740) target = $region32
        $region31: #{_lambda_.3} parent=11 // pred_region
          %744 = vsyncadd [#allocation16], 0
          %s745 = sshll.u32 %s24, 4
          %s746 = int_to_ptr.hbm [resolvable:$true] %s745
          %s747 = sshll.u32 [#allocation15], 4
          %s748 = int_to_ptr.vmem [resolvable:$true] %s747
          %753 = dma.hbm_to_vmem [thread:$0]  %s746, 512, %s748, [#allocation16], 128, 128, 8
        $region32: #{_lambda_.3} parent=11 // pred_fallthru
          _
        // Predicated region
        $region33: #{_lambda_.3} parent=11 // pred_check
          %p754 = pneg %p692
        $region34: #{_lambda_.3} parent=11 // pred_check_branch
          %756 = sbr.rel (%p754) target = $region36
        $region35: #{_lambda_.3} parent=11 // pred_region
          _
        $region36: #{_lambda_.3} parent=11 // pred_fallthru
          _
      $region12: #{_lambda_.3} parent=5 // pred_fallthru
        _
      %p757 = scmp.lt.s32.totalorder %s46, 2
      // Predicated region
      $region37: #{_lambda_.3} parent=5 // pred_check
        %p758 = pneg %p757
      $region38: #{_lambda_.3} parent=5 // pred_check_branch
        %760 = sbr.rel (%p758) target = $region40
      $region39: #{_lambda_.3} parent=5 // pred_region
        // Predicated region
        $region41: #{_lambda_.3} parent=39 // pred_check
          %p761 = pneg %p108
        $region42: #{_lambda_.3} parent=39 // pred_check_branch
          %763 = sbr.rel (%p761) target = $region44
        $region43: #{_lambda_.3} parent=39 // pred_region
          %p764 = scmp.lt.s32.totalorder %s46, 1
          %s765 = scalar_select %p764, %s46, 1
          %s766 = scalar_lea.vmem %s2, %s765
        $region44: #{_lambda_.3} parent=39 // pred_fallthru
          _
        // Predicated region
        $region45: #{_lambda_.3} parent=39 // pred_check
          %p767 = pneg %p134
        $region46: #{_lambda_.3} parent=39 // pred_check_branch
          %769 = sbr.rel (%p767) target = $region48
        $region47: #{_lambda_.3} parent=39 // pred_region
          %p770 = scmp.lt.s32.totalorder %s46, 1
          %s771 = scalar_select %p770, %s46, 1
          %s772 = scalar_lea.vmem %s3, %s771
        $region48: #{_lambda_.3} parent=39 // pred_fallthru
          _
        // Predicated region
        $region49: #{_lambda_.3} parent=39 // pred_check
          %p773 = pneg %p160
        $region50: #{_lambda_.3} parent=39 // pred_check_branch
          %775 = sbr.rel (%p773) target = $region52
        $region51: #{_lambda_.3} parent=39 // pred_region
          %s776 = sand.u32 %s150, 1
          %s777 = scalar_lea.sflag [#allocation4], %s776
          %s778 = sand.u32 %s150, 1
          %s779 = smul.addr %s778, 32
          %s780 = scalar_lea.vmem [#allocation3], %s779
          %782 = vsyncadd %s777, 0
          %s783 = smul.addr %s46, 4
          %s784 = smul.addr %s783, 8
          %s785 = scalar_lea.hbm %s4, %s784
          %s786 = sshll.u32 %s785, 4
          %s787 = int_to_ptr.hbm [resolvable:$true] %s786
          %s788 = sshll.u32 %s780, 4
          %s789 = int_to_ptr.vmem [resolvable:$true] %s788
          %794 = dma.hbm_to_vmem [thread:$0]  %s787, 512, %s789, %s777, 128, 128, 8
        $region52: #{_lambda_.3} parent=39 // pred_fallthru
          _
        // Predicated region
        $region53: #{_lambda_.3} parent=39 // pred_check
          %p795 = pneg %p186
        $region54: #{_lambda_.3} parent=39 // pred_check_branch
          %797 = sbr.rel (%p795) target = $region56
        $region55: #{_lambda_.3} parent=39 // pred_region
          %p798 = scmp.lt.s32.totalorder %s46, 1
          %s799 = scalar_select %p798, %s46, 1
          %s800 = scalar_lea.vmem %s5, %s799
        $region56: #{_lambda_.3} parent=39 // pred_fallthru
          _
        // Predicated region
        $region57: #{_lambda_.3} parent=39 // pred_check
          %p801 = pneg %p212
        $region58: #{_lambda_.3} parent=39 // pred_check_branch
          %803 = sbr.rel (%p801) target = $region60
        $region59: #{_lambda_.3} parent=39 // pred_region
          %s804 = sand.u32 %s46, 1
          %s805 = scalar_lea.sflag [#allocation7], %s804
          %s806 = sand.u32 %s202, 1
          %s807 = smul.addr %s806, 32
          %s808 = scalar_lea.vmem [#allocation6], %s807
          %810 = vsyncadd %s805, 0
          %s811 = smul.addr %s46, 4
          %s812 = smul.addr %s811, 8
          %s813 = scalar_lea.hbm %s6, %s812
          %s814 = sshll.u32 %s813, 4
          %s815 = int_to_ptr.hbm [resolvable:$true] %s814
          %s816 = sshll.u32 %s808, 4
          %s817 = int_to_ptr.vmem [resolvable:$true] %s816
          %822 = dma.hbm_to_vmem [thread:$0]  %s815, 512, %s817, %s805, 128, 128, 8
        $region60: #{_lambda_.3} parent=39 // pred_fallthru
          _
        // Predicated region
        $region61: #{_lambda_.3} parent=39 // pred_check
          %p823 = pneg %p238
        $region62: #{_lambda_.3} parent=39 // pred_check_branch
          %825 = sbr.rel (%p823) target = $region64
        $region63: #{_lambda_.3} parent=39 // pred_region
          %p826 = scmp.lt.s32.totalorder %s46, 1
          %s827 = scalar_select %p826, %s46, 1
          %s828 = scalar_lea.vmem %s7, %s827
        $region64: #{_lambda_.3} parent=39 // pred_fallthru
          _
        // Predicated region
        $region65: #{_lambda_.3} parent=39 // pred_check
          %p829 = pneg %p264
        $region66: #{_lambda_.3} parent=39 // pred_check_branch
          %831 = sbr.rel (%p829) target = $region68
        $region67: #{_lambda_.3} parent=39 // pred_region
          %p832 = scmp.lt.s32.totalorder %s46, 1
          %s833 = scalar_select %p832, %s46, 1
          %s834 = scalar_lea.vmem %s8, %s833
        $region68: #{_lambda_.3} parent=39 // pred_fallthru
          _
        // Predicated region
        $region69: #{_lambda_.3} parent=39 // pred_check
          %p835 = pneg %p290
        $region70: #{_lambda_.3} parent=39 // pred_check_branch
          %837 = sbr.rel (%p835) target = $region72
        $region71: #{_lambda_.3} parent=39 // pred_region
          %p838 = scmp.lt.s32.totalorder %s46, 1
          %s839 = scalar_select %p838, %s46, 1
          %s840 = scalar_lea.vmem %s9, %s839
        $region72: #{_lambda_.3} parent=39 // pred_fallthru
          _
        // Predicated region
        $region73: #{_lambda_.3} parent=39 // pred_check
          %p841 = pneg %p316
        $region74: #{_lambda_.3} parent=39 // pred_check_branch
          %843 = sbr.rel (%p841) target = $region76
        $region75: #{_lambda_.3} parent=39 // pred_region
          %s844 = sand.u32 %s46, 1
          %s845 = scalar_lea.sflag [#allocation7], %s844
          %s846 = sand.u32 %s306, 1
          %s847 = smul.addr %s846, 32
          %s848 = scalar_lea.vmem [#allocation8], %s847
          %850 = vsyncadd %s845, 0
          %s851 = smul.addr %s46, 4
          %s852 = smul.addr %s851, 8
          %s853 = scalar_lea.hbm %s10, %s852
          %s854 = sshll.u32 %s853, 4
          %s855 = int_to_ptr.hbm [resolvable:$true] %s854
          %s856 = sshll.u32 %s848, 4
          %s857 = int_to_ptr.vmem [resolvable:$true] %s856
          %862 = dma.hbm_to_vmem [thread:$0]  %s855, 512, %s857, %s845, 128, 128, 8
        $region76: #{_lambda_.3} parent=39 // pred_fallthru
          _
        // Predicated region
        $region77: #{_lambda_.3} parent=39 // pred_check
          %p863 = pneg %p342
        $region78: #{_lambda_.3} parent=39 // pred_check_branch
          %865 = sbr.rel (%p863) target = $region80
        $region79: #{_lambda_.3} parent=39 // pred_region
          %p866 = scmp.lt.s32.totalorder %s46, 1
          %s867 = scalar_select %p866, %s46, 1
          %s868 = scalar_lea.vmem %s11, %s867
        $region80: #{_lambda_.3} parent=39 // pred_fallthru
          _
        // Predicated region
        $region81: #{_lambda_.3} parent=39 // pred_check
          %p869 = pneg %p368
        $region82: #{_lambda_.3} parent=39 // pred_check_branch
          %871 = sbr.rel (%p869) target = $region84
        $region83: #{_lambda_.3} parent=39 // pred_region
          %s872 = sand.u32 %s46, 1
          %s873 = scalar_lea.sflag [#allocation10], %s872
          %s874 = sand.u32 %s358, 1
          %s875 = smul.addr %s874, 32
          %s876 = scalar_lea.vmem [#allocation9], %s875
          %878 = vsyncadd %s873, 0
          %s879 = smul.addr %s46, 4
          %s880 = smul.addr %s879, 8
          %s881 = scalar_lea.hbm %s12, %s880
          %s882 = sshll.u32 %s881, 4
          %s883 = int_to_ptr.hbm [resolvable:$true] %s882
          %s884 = sshll.u32 %s876, 4
          %s885 = int_to_ptr.vmem [resolvable:$true] %s884
          %890 = dma.hbm_to_vmem [thread:$0]  %s883, 512, %s885, %s873, 128, 128, 8
        $region84: #{_lambda_.3} parent=39 // pred_fallthru
          _
        // Predicated region
        $region85: #{_lambda_.3} parent=39 // pred_check
          %p891 = pneg %p394
        $region86: #{_lambda_.3} parent=39 // pred_check_branch
          %893 = sbr.rel (%p891) target = $region88
        $region87: #{_lambda_.3} parent=39 // pred_region
          %p894 = scmp.lt.s32.totalorder %s46, 1
          %s895 = scalar_select %p894, %s46, 1
          %s896 = scalar_lea.vmem %s13, %s895
        $region88: #{_lambda_.3} parent=39 // pred_fallthru
          _
        // Predicated region
        $region89: #{_lambda_.3} parent=39 // pred_check
          %p897 = pneg %p420
        $region90: #{_lambda_.3} parent=39 // pred_check_branch
          %899 = sbr.rel (%p897) target = $region92
        $region91: #{_lambda_.3} parent=39 // pred_region
          %s900 = sand.u32 %s46, 1
          %s901 = scalar_lea.sflag [#allocation10], %s900
          %s902 = sand.u32 %s410, 1
          %s903 = smul.addr %s902, 32
          %s904 = scalar_lea.vmem [#allocation11], %s903
          %906 = vsyncadd %s901, 0
          %s907 = smul.addr %s46, 4
          %s908 = smul.addr %s907, 8
          %s909 = scalar_lea.hbm %s14, %s908
          %s910 = sshll.u32 %s909, 4
          %s911 = int_to_ptr.hbm [resolvable:$true] %s910
          %s912 = sshll.u32 %s904, 4
          %s913 = int_to_ptr.vmem [resolvable:$true] %s912
          %918 = dma.hbm_to_vmem [thread:$0]  %s911, 512, %s913, %s901, 128, 128, 8
        $region92: #{_lambda_.3} parent=39 // pred_fallthru
          _
        // Predicated region
        $region93: #{_lambda_.3} parent=39 // pred_check
          %p919 = pneg %p446
        $region94: #{_lambda_.3} parent=39 // pred_check_branch
          %921 = sbr.rel (%p919) target = $region96
        $region95: #{_lambda_.3} parent=39 // pred_region
          %p922 = scmp.lt.s32.totalorder %s46, 1
          %s923 = scalar_select %p922, %s46, 1
          %s924 = scalar_lea.vmem %s15, %s923
        $region96: #{_lambda_.3} parent=39 // pred_fallthru
          _
        // Predicated region
        $region97: #{_lambda_.3} parent=39 // pred_check
          %p925 = pneg %p472
        $region98: #{_lambda_.3} parent=39 // pred_check_branch
          %927 = sbr.rel (%p925) target = $region100
        $region99: #{_lambda_.3} parent=39 // pred_region
          %p928 = scmp.lt.s32.totalorder %s46, 1
          %s929 = scalar_select %p928, %s46, 1
          %s930 = scalar_lea.vmem %s16, %s929
        $region100: #{_lambda_.3} parent=39 // pred_fallthru
          _
        // Predicated region
        $region101: #{_lambda_.3} parent=39 // pred_check
          %p931 = pneg %p498
        $region102: #{_lambda_.3} parent=39 // pred_check_branch
          %933 = sbr.rel (%p931) target = $region104
        $region103: #{_lambda_.3} parent=39 // pred_region
          %p934 = scmp.lt.s32.totalorder %s46, 1
          %s935 = scalar_select %p934, %s46, 1
          %s936 = scalar_lea.vmem %s17, %s935
        $region104: #{_lambda_.3} parent=39 // pred_fallthru
          _
        // Predicated region
        $region105: #{_lambda_.3} parent=39 // pred_check
          %p937 = pneg %p524
        $region106: #{_lambda_.3} parent=39 // pred_check_branch
          %939 = sbr.rel (%p937) target = $region108
        $region107: #{_lambda_.3} parent=39 // pred_region
          %s940 = sand.u32 %s46, 1
          %s941 = scalar_lea.sflag [#allocation13], %s940
          %s942 = sand.u32 %s514, 1
          %s943 = smul.addr %s942, 512
          %s944 = scalar_lea.vmem [#allocation12], %s943
          %946 = vsyncadd %s941, 0
          %s947 = smul.addr %s46, 64
          %s948 = smul.addr %s947, 8
          %s949 = scalar_lea.hbm %s18, %s948
          %s950 = sshll.u32 %s949, 4
          %s951 = int_to_ptr.hbm [resolvable:$true] %s950
          %s952 = sshll.u32 %s944, 4
          %s953 = int_to_ptr.vmem [resolvable:$true] %s952
          %958 = dma.hbm_to_vmem [thread:$0]  %s951, 8192, %s953, %s941, 2048, 2048, 128
        $region108: #{_lambda_.3} parent=39 // pred_fallthru
          _
        // Predicated region
        $region109: #{_lambda_.3} parent=39 // pred_check
          %p959 = pneg %p550
        $region110: #{_lambda_.3} parent=39 // pred_check_branch
          %961 = sbr.rel (%p959) target = $region112
        $region111: #{_lambda_.3} parent=39 // pred_region
          %p962 = scmp.lt.s32.totalorder %s46, 1
          %s963 = scalar_select %p962, %s46, 1
          %s964 = smul.addr %s963, 16
          %s965 = scalar_lea.vmem %s19, %s964
        $region112: #{_lambda_.3} parent=39 // pred_fallthru
          _
        // Predicated region
        $region113: #{_lambda_.3} parent=39 // pred_check
          %p966 = pneg %p576
        $region114: #{_lambda_.3} parent=39 // pred_check_branch
          %968 = sbr.rel (%p966) target = $region116
        $region115: #{_lambda_.3} parent=39 // pred_region
          %s969 = sand.u32 %s46, 1
          %s970 = scalar_lea.sflag [#allocation13], %s969
          %s971 = sand.u32 %s566, 1
          %s972 = smul.addr %s971, 2048
          %s973 = scalar_lea.vmem [#allocation14], %s972
          %975 = vsyncadd %s970, 0
          %s976 = smul.addr %s46, 256
          %s977 = smul.addr %s976, 8
          %s978 = scalar_lea.hbm %s20, %s977
          %s979 = sshll.u32 %s978, 4
          %s980 = int_to_ptr.hbm [resolvable:$true] %s979
          %s981 = sshll.u32 %s973, 4
          %s982 = int_to_ptr.vmem [resolvable:$true] %s981
          %987 = dma.hbm_to_vmem [thread:$0]  %s980, 32768, %s982, %s970, 128, 128, 8
        $region116: #{_lambda_.3} parent=39 // pred_fallthru
          _
        // Predicated region
        $region117: #{_lambda_.3} parent=39 // pred_check
          %p988 = pneg %p602
        $region118: #{_lambda_.3} parent=39 // pred_check_branch
          %990 = sbr.rel (%p988) target = $region120
        $region119: #{_lambda_.3} parent=39 // pred_region
          %p991 = scmp.lt.s32.totalorder %s46, 1
          %s992 = scalar_select %p991, %s46, 1
          %s993 = scalar_lea.vmem %s21, %s992
        $region120: #{_lambda_.3} parent=39 // pred_fallthru
          _
      $region40: #{_lambda_.3} parent=5 // pred_fallthru
        _
      %p994 = scmp.le.s32.totalorder 1, %s46
      %p995 = scmp.lt.s32.totalorder %s46, 3
      %p996 = pnand %p994, %p995
      %p997 = pneg %p996
      // Predicated region
      $region121: #{_lambda_.3} parent=5 // pred_check
        _
      $region122: #{_lambda_.3} parent=5 // pred_check_branch
        %999 = sbr.rel (%p996) target = $region124
      $region123: #{_lambda_.3} parent=5 // pred_region
        %s1000 = ssub.s32 %s46, 1
        %s1001 = sand.u32 %s153, 1
        %s1002 = scalar_lea.sflag [#allocation4], %s1001
        %s1003 = sand.u32 %s153, 1
        %s1004 = smul.addr %s1003, 32
        %s1005 = scalar_lea.vmem [#allocation3], %s1004
        // Predicated region
        $region125: #{_lambda_.3} parent=123 // pred_check
          %p1006 = pneg %p166
        $region126: #{_lambda_.3} parent=123 // pred_check_branch
          %1008 = sbr.rel (%p1006) target = $region128
        $region127: #{_lambda_.3} parent=123 // pred_region
          %1010 = dma.done %s1002, 512
        $region128: #{_lambda_.3} parent=123 // pred_fallthru
          _
        %s1011 = sand.u32 %s51, 1
        %s1012 = scalar_lea.sflag [#allocation7], %s1011
        %s1013 = sand.u32 %s205, 1
        %s1014 = smul.addr %s1013, 32
        %s1015 = scalar_lea.vmem [#allocation6], %s1014
        // Predicated region
        $region129: #{_lambda_.3} parent=123 // pred_check
          %p1016 = pneg %p218
        $region130: #{_lambda_.3} parent=123 // pred_check_branch
          %1018 = sbr.rel (%p1016) target = $region132
        $region131: #{_lambda_.3} parent=123 // pred_region
          %1020 = dma.done %s1012, 512
        $region132: #{_lambda_.3} parent=123 // pred_fallthru
          _
        %s1021 = sand.u32 %s51, 1
        %s1022 = scalar_lea.sflag [#allocation7], %s1021
        %s1023 = sand.u32 %s309, 1
        %s1024 = smul.addr %s1023, 32
        %s1025 = scalar_lea.vmem [#allocation8], %s1024
        // Predicated region
        $region133: #{_lambda_.3} parent=123 // pred_check
          %p1026 = pneg %p322
        $region134: #{_lambda_.3} parent=123 // pred_check_branch
          %1028 = sbr.rel (%p1026) target = $region136
        $region135: #{_lambda_.3} parent=123 // pred_region
          %1030 = dma.done %s1022, 512
        $region136: #{_lambda_.3} parent=123 // pred_fallthru
          _
        %s1031 = sand.u32 %s51, 1
        %s1032 = scalar_lea.sflag [#allocation10], %s1031
        %s1033 = sand.u32 %s361, 1
        %s1034 = smul.addr %s1033, 32
        %s1035 = scalar_lea.vmem [#allocation9], %s1034
        // Predicated region
        $region137: #{_lambda_.3} parent=123 // pred_check
          %p1036 = pneg %p374
        $region138: #{_lambda_.3} parent=123 // pred_check_branch
          %1038 = sbr.rel (%p1036) target = $region140
        $region139: #{_lambda_.3} parent=123 // pred_region
          %1040 = dma.done %s1032, 512
        $region140: #{_lambda_.3} parent=123 // pred_fallthru
          _
        %s1041 = sand.u32 %s51, 1
        %s1042 = scalar_lea.sflag [#allocation10], %s1041
        %s1043 = sand.u32 %s413, 1
        %s1044 = smul.addr %s1043, 32
        %s1045 = scalar_lea.vmem [#allocation11], %s1044
        // Predicated region
        $region141: #{_lambda_.3} parent=123 // pred_check
          %p1046 = pneg %p426
        $region142: #{_lambda_.3} parent=123 // pred_check_branch
          %1048 = sbr.rel (%p1046) target = $region144
        $region143: #{_lambda_.3} parent=123 // pred_region
          %1050 = dma.done %s1042, 512
        $region144: #{_lambda_.3} parent=123 // pred_fallthru
          _
        %s1051 = sand.u32 %s51, 1
        %s1052 = scalar_lea.sflag [#allocation13], %s1051
        %s1053 = sand.u32 %s517, 1
        %s1054 = smul.addr %s1053, 512
        %s1055 = scalar_lea.vmem [#allocation12], %s1054
        // Predicated region
        $region145: #{_lambda_.3} parent=123 // pred_check
          %p1056 = pneg %p530
        $region146: #{_lambda_.3} parent=123 // pred_check_branch
          %1058 = sbr.rel (%p1056) target = $region148
        $region147: #{_lambda_.3} parent=123 // pred_region
          %1060 = dma.done %s1052, 8192
        $region148: #{_lambda_.3} parent=123 // pred_fallthru
          _
        %s1061 = sand.u32 %s51, 1
        %s1062 = scalar_lea.sflag [#allocation13], %s1061
        %s1063 = sand.u32 %s569, 1
        %s1064 = smul.addr %s1063, 2048
        %s1065 = scalar_lea.vmem [#allocation14], %s1064
        // Predicated region
        $region149: #{_lambda_.3} parent=123 // pred_check
          %p1066 = pneg %p582
        $region150: #{_lambda_.3} parent=123 // pred_check_branch
          %1068 = sbr.rel (%p1066) target = $region152
        $region151: #{_lambda_.3} parent=123 // pred_region
          %1070 = dma.done %s1062, 32768
        $region152: #{_lambda_.3} parent=123 // pred_fallthru
          _
        // Predicated region
        $region153: #{_lambda_.3} parent=123 // pred_check
          %p1071 = pneg %p671
        $region154: #{_lambda_.3} parent=123 // pred_check_branch
          %1073 = sbr.rel (%p1071) target = $region156
        $region155: #{_lambda_.3} parent=123 // pred_region
          %1075 = dma.done [#allocation16], 512
        $region156: #{_lambda_.3} parent=123 // pred_fallthru
          _
        %p1076 = pneg %p67
        %p1077 = pneg %p64
        %p1078 = pneg %p88
        %p1079 = pneg %p85
        %p1080 = scmp.lt.s32.totalorder %s51, 1
        %s1081 = scalar_select %p1080, %s51, 1
        %s1082 = scalar_lea.vmem %s2, %s1081
        %p1083 = pneg %p114
        %p1084 = pneg %p111
        %p1085 = scmp.lt.s32.totalorder %s51, 1
        %s1086 = scalar_select %p1085, %s51, 1
        %s1087 = scalar_lea.vmem %s3, %s1086
        %p1088 = pneg %p140
        %p1089 = pneg %p137
        %s1090 = sand.u32 %s153, 1
        %s1091 = scalar_lea.sflag [#allocation4], %s1090
        %s1092 = sand.u32 %s153, 1
        %s1093 = smul.addr %s1092, 32
        %s1094 = scalar_lea.vmem [#allocation3], %s1093
        %p1095 = pneg %p166
        %p1096 = pneg %p163
        %p1097 = scmp.lt.s32.totalorder %s51, 1
        %s1098 = scalar_select %p1097, %s51, 1
        %s1099 = scalar_lea.vmem %s5, %s1098
        %p1100 = pneg %p192
        %p1101 = pneg %p189
        %s1102 = sand.u32 %s51, 1
        %s1103 = scalar_lea.sflag [#allocation7], %s1102
        %s1104 = sand.u32 %s205, 1
        %s1105 = smul.addr %s1104, 32
        %s1106 = scalar_lea.vmem [#allocation6], %s1105
        %p1107 = pneg %p218
        %p1108 = pneg %p215
        %p1109 = scmp.lt.s32.totalorder %s51, 1
        %s1110 = scalar_select %p1109, %s51, 1
        %s1111 = scalar_lea.vmem %s7, %s1110
        %p1112 = pneg %p244
        %p1113 = pneg %p241
        %p1114 = scmp.lt.s32.totalorder %s51, 1
        %s1115 = scalar_select %p1114, %s51, 1
        %s1116 = scalar_lea.vmem %s8, %s1115
        %p1117 = pneg %p270
        %p1118 = pneg %p267
        %p1119 = scmp.lt.s32.totalorder %s51, 1
        %s1120 = scalar_select %p1119, %s51, 1
        %s1121 = scalar_lea.vmem %s9, %s1120
        %p1122 = pneg %p296
        %p1123 = pneg %p293
        %s1124 = sand.u32 %s51, 1
        %s1125 = scalar_lea.sflag [#allocation7], %s1124
        %s1126 = sand.u32 %s309, 1
        %s1127 = smul.addr %s1126, 32
        %s1128 = scalar_lea.vmem [#allocation8], %s1127
        %p1129 = pneg %p322
        %p1130 = pneg %p319
        %p1131 = scmp.lt.s32.totalorder %s51, 1
        %s1132 = scalar_select %p1131, %s51, 1
        %s1133 = scalar_lea.vmem %s11, %s1132
        %p1134 = pneg %p348
        %p1135 = pneg %p345
        %s1136 = sand.u32 %s51, 1
        %s1137 = scalar_lea.sflag [#allocation10], %s1136
        %s1138 = sand.u32 %s361, 1
        %s1139 = smul.addr %s1138, 32
        %s1140 = scalar_lea.vmem [#allocation9], %s1139
        %p1141 = pneg %p374
        %p1142 = pneg %p371
        %p1143 = scmp.lt.s32.totalorder %s51, 1
        %s1144 = scalar_select %p1143, %s51, 1
        %s1145 = scalar_lea.vmem %s13, %s1144
        %p1146 = pneg %p400
        %p1147 = pneg %p397
        %s1148 = sand.u32 %s51, 1
        %s1149 = scalar_lea.sflag [#allocation10], %s1148
        %s1150 = sand.u32 %s413, 1
        %s1151 = smul.addr %s1150, 32
        %s1152 = scalar_lea.vmem [#allocation11], %s1151
        %p1153 = pneg %p426
        %p1154 = pneg %p423
        %p1155 = scmp.lt.s32.totalorder %s51, 1
        %s1156 = scalar_select %p1155, %s51, 1
        %s1157 = scalar_lea.vmem %s15, %s1156
        %p1158 = pneg %p452
        %p1159 = pneg %p449
        %p1160 = scmp.lt.s32.totalorder %s51, 1
        %s1161 = scalar_select %p1160, %s51, 1
        %s1162 = scalar_lea.vmem %s16, %s1161
        %p1163 = pneg %p478
        %p1164 = pneg %p475
        %p1165 = scmp.lt.s32.totalorder %s51, 1
        %s1166 = scalar_select %p1165, %s51, 1
        %s1167 = scalar_lea.vmem %s17, %s1166
        %p1168 = pneg %p504
        %p1169 = pneg %p501
        %s1170 = sand.u32 %s51, 1
        %s1171 = scalar_lea.sflag [#allocation13], %s1170
        %s1172 = sand.u32 %s517, 1
        %s1173 = smul.addr %s1172, 512
        %s1174 = scalar_lea.vmem [#allocation12], %s1173
        %p1175 = pneg %p530
        %p1176 = pneg %p527
        %p1177 = scmp.lt.s32.totalorder %s51, 1
        %s1178 = scalar_select %p1177, %s51, 1
        %s1179 = smul.addr %s1178, 16
        %s1180 = scalar_lea.vmem %s19, %s1179
        %p1181 = pneg %p556
        %p1182 = pneg %p553
        %s1183 = sand.u32 %s51, 1
        %s1184 = scalar_lea.sflag [#allocation13], %s1183
        %s1185 = sand.u32 %s569, 1
        %s1186 = smul.addr %s1185, 2048
        %s1187 = scalar_lea.vmem [#allocation14], %s1186
        %p1188 = pneg %p582
        %p1189 = pneg %p579
        %p1190 = scmp.lt.s32.totalorder %s51, 1
        %s1191 = scalar_select %p1190, %s51, 1
        %s1192 = scalar_lea.vmem %s21, %s1191
        %p1193 = pneg %p608
        %p1194 = pneg %p605
        %p1195 = pneg %p629
        %p1196 = pneg %p626
        %p1197 = pneg %p650
        %p1198 = pneg %p647
        %p1199 = pneg %p671
        %p1200 = pneg %p668
        %p1201 = pneg %p692
        %p1202 = pneg %p689
        %p1203 = pneg %p713
        %p1204 = pneg %p710
        %p1205 = scmp.lt.s32.totalorder %s51, 1
        %s1206 = scalar_select %p1205, %s51, 1
        %s1207 = scalar_lea.vmem %s2, %s1206
        %p1208 = scmp.lt.s32.totalorder %s51, 1
        %s1209 = scalar_select %p1208, %s51, 1
        %s1210 = scalar_lea.vmem %s3, %s1209
        %p1211 = scmp.lt.s32.totalorder %s51, 1
        %s1212 = scalar_select %p1211, %s51, 1
        %s1213 = scalar_lea.vmem %s5, %s1212
        %p1214 = scmp.lt.s32.totalorder %s51, 1
        %s1215 = scalar_select %p1214, %s51, 1
        %s1216 = scalar_lea.vmem %s7, %s1215
        %p1217 = scmp.lt.s32.totalorder %s51, 1
        %s1218 = scalar_select %p1217, %s51, 1
        %s1219 = scalar_lea.vmem %s8, %s1218
        %p1220 = scmp.lt.s32.totalorder %s51, 1
        %s1221 = scalar_select %p1220, %s51, 1
        %s1222 = scalar_lea.vmem %s9, %s1221
        %p1223 = scmp.lt.s32.totalorder %s51, 1
        %s1224 = scalar_select %p1223, %s51, 1
        %s1225 = scalar_lea.vmem %s11, %s1224
        %p1226 = scmp.lt.s32.totalorder %s51, 1
        %s1227 = scalar_select %p1226, %s51, 1
        %s1228 = scalar_lea.vmem %s13, %s1227
        %p1229 = scmp.lt.s32.totalorder %s51, 1
        %s1230 = scalar_select %p1229, %s51, 1
        %s1231 = scalar_lea.vmem %s15, %s1230
        %p1232 = scmp.lt.s32.totalorder %s51, 1
        %s1233 = scalar_select %p1232, %s51, 1
        %s1234 = scalar_lea.vmem %s16, %s1233
        %p1235 = scmp.lt.s32.totalorder %s51, 1
        %s1236 = scalar_select %p1235, %s51, 1
        %s1237 = scalar_lea.vmem %s17, %s1236
        %p1238 = scmp.lt.s32.totalorder %s51, 1
        %s1239 = scalar_select %p1238, %s51, 1
        %s1240 = smul.addr %s1239, 16
        %s1241 = scalar_lea.vmem %s19, %s1240
        %p1242 = scmp.lt.s32.totalorder %s51, 1
        %s1243 = scalar_select %p1242, %s51, 1
        %s1244 = scalar_lea.vmem %s21, %s1243
        %p1245 = scmp.eq.s32.totalorder %s51, 0
        // Predicated region
        $region157: #{_lambda_.3} parent=123 // pred_check
          %p1246 = pneg %p1245
        $region158: #{_lambda_.3} parent=123 // pred_check_branch
          %1248 = sbr.rel (%p1246) target = $region160
        $region159: #{_lambda_.3} parent=123 // pred_region
          %v1249 = vld [vmem:[%s0] sm:$0xff]
          %v1250 = vld [vmem:[%s0 + $0x8] sm:$0xff]
          %vm1251 = vcmask 261120
          %1252 = vst.msk [vmem:[#allocation2] sm:$0xff] %vm1251, %v1249
          %1253 = vst.msk [vmem:[#allocation2 + $0x8] sm:$0xff] %vm1251, %v1250
        $region160: #{_lambda_.3} parent=123 // pred_fallthru
          _
        %v1254 = vld [vmem:[#allocation2] sm:$0xff]
        %v1255 = vld [vmem:[#allocation2 + $0x8] sm:$0xff]
        %v1256 = vld [vmem:[%s1] sm:$0xff]
        %v1257 = vld [vmem:[%s1 + $0x8] sm:$0xff]
        %v1258 = vld [vmem:[%s1207] sm:$0x1]
        %v1259 = vld [vmem:[%s1210] sm:$0x1]
        %vm1260 = vcmask 261120
        %v1261 = vsel %vm1260, %v1254, 0.0
        %1262 = vadd.xlane.f32.xlu0 %v1261
        %v1263 = vpop.xlane.xlu0 %1262
        %v1264 = vsel %vm1260, %v1255, 0.0
        %1265 = vadd.xlane.f32.xlu0 %v1264
        %v1266 = vpop.xlane.xlu0 %1265
        %v1267 = vrcp.pop 32.0
        %v1268 = vmul.f32 32.0, %v1267
        %v1269 = vsub.f32 1.0, %v1268
        %v1270 = vmul.f32 %v1267, %v1269
        %v1271 = vadd.f32 %v1267, %v1270
        %vm1272 = vweird.f32 %v1267
        %v1273 = vsel %vm1272, %v1267, %v1271
        %v1274 = vmul.f32 %v1263, %v1273
        %v1275 = vmul.f32 %v1266, %v1273
        %v1276 = vsub.f32 %v1254, %v1274
        %v1277 = vsub.f32 %v1255, %v1275
        %v1278 = vmul.f32 %v1276, %v1276
        %v1279 = vmul.f32 %v1277, %v1277
        %v1280 = vsel %vm1260, %v1278, 0.0
        %1281 = vadd.xlane.f32.xlu0 %v1280
        %v1282 = vpop.xlane.xlu0 %1281
        %v1283 = vsel %vm1260, %v1279, 0.0
        %1284 = vadd.xlane.f32.xlu0 %v1283
        %v1285 = vpop.xlane.xlu0 %1284
        %v1286 = vmul.f32 %v1282, 0.032258064
        %v1287 = vmul.f32 %v1285, 0.032258064
        %v1288 = vrsqrt.pop %v1286
        %v1289 = vmul.f32 %v1288, %v1286
        %v1290 = vmul.f32 %v1289, %v1288
        %v1291 = vmul.f32 0.5, %v1290
        %v1292 = vsub.f32 1.5, %v1291
        %v1293 = vmul.f32 %v1288, %v1292
        %v1294 = vmul.f32 %v1286, %v1293
        %vm1295 = vcmp.eq.f32.partialorder %v1286, inf
        %v1296 = vsel %vm1295, %v1286, %v1294
        %vm1297 = vcmp.eq.f32.partialorder %v1286, 0.0
        %v1298 = vand.u32 %v1286, 2147483648
        %v1299 = vsel %vm1297, %v1298, %v1296
        %v1300 = vrsqrt.pop %v1287
        %v1301 = vmul.f32 %v1300, %v1287
        %v1302 = vmul.f32 %v1301, %v1300
        %v1303 = vmul.f32 0.5, %v1302
        %v1304 = vsub.f32 1.5, %v1303
        %v1305 = vmul.f32 %v1300, %v1304
        %v1306 = vmul.f32 %v1287, %v1305
        %vm1307 = vcmp.eq.f32.partialorder %v1287, inf
        %v1308 = vsel %vm1307, %v1287, %v1306
        %vm1309 = vcmp.eq.f32.partialorder %v1287, 0.0
        %v1310 = vand.u32 %v1287, 2147483648
        %v1311 = vsel %vm1309, %v1310, %v1308
        %v1312 = vadd.f32 %v1299, 1e-06
        %v1313 = vadd.f32 %v1311, 1e-06
        %v1314 = vrcp.pop %v1312
        %v1315 = vrcp.pop %v1313
        %v1317 = vperm.slane %v1258, 0
        %v1319 = vmul.f32 %v1317, %v1276
        %v1320 = vmul.f32 %v1317, %v1277
        %v1321 = vmul.f32 %v1319, %v1314
        %v1322 = vmul.f32 %v1320, %v1315
        %v1324 = vperm.slane %v1259, 0
        %v1326 = vadd.f32 %v1321, %v1324
        %v1327 = vadd.f32 %v1322, %v1324
        %v1328 = vld [vmem:[%s1005] sm:$0xff]
        %v1329 = vld [vmem:[%s1005 + $0x8] sm:$0xff]
        %v1330 = vld [vmem:[%s1005 + $0x10] sm:$0xff]
        %v1331 = vld [vmem:[%s1005 + $0x18] sm:$0xff]
        %v1332 = vld [vmem:[%s1213] sm:$0x1]
        %v1334 = vperm.slane %v1332, 0
        %v1337 = vsel %vm1260, %v1326, 0
        %v1340 = vsel %vm1260, %v1327, 0
        %1342 = vmatpush.msra.mxu0 0.0
        %1343 = vmatpush.msra.mxu0 0.0
        %1344 = vmatpush.msra.mxu0 0.0
        %1345 = vmatpush.msra.mxu0 0.0
        %1346 = vmatpush.msra.mxu0 0.0
        %1347 = vmatpush.msra.mxu0 0.0
        %1348 = vmatpush.msra.mxu0 0.0
        %1349 = vmatpush.msra.mxu0 0.0
        %1350 = vmatpush.msra.mxu0 0.0
        %1351 = vmatpush.msra.mxu0 0.0
        %1352 = vmatpush.msra.mxu0 0.0
        %1353 = vmatpush.msra.mxu0 0.0
        %1354 = vmatpush.msra.mxu0 %v1331
        %1355 = vmatpush.msra.mxu0 %v1330
        %1356 = vmatpush.msra.mxu0 %v1329
        %1357 = vmatpush.msra.mxu0 %v1328
        %1358 = vmatmul.f32.gmra.mxu0 %v1337
        %v1359 = vpop.f32.mrf.mxu0
        %v1360 = vadd.f32 %v1334, %v1359
        %1361 = vmatmul.f32.gmra.mxu0 %v1340
        %v1362 = vpop.f32.mrf.mxu0
        %v1363 = vadd.f32 %v1334, %v1362
        %1364 = vdwg.mxu0
        %1366 = vrot.lane.b32.xlu0 %v1360, 96
        %v1367 = vpop.permute.xlu0 %1366
        %vm1368 = vcmask 64512
        %v1369 = vsel %vm1368, %v1360, 0
        %v1371 = vsel %vm1368, %v1367, 0
        %1373 = vmatpush.xpose.msra.mxu0 0.0
        %1374 = vmatpush.xpose.msra.mxu0 0.0
        %1375 = vmatpush.xpose.msra.mxu0 0.0
        %1376 = vmatpush.xpose.msra.mxu0 0.0
        %1377 = vmatpush.xpose.msra.mxu0 0.0
        %1378 = vmatpush.xpose.msra.mxu0 0.0
        %1379 = vmatpush.xpose.msra.mxu0 0.0
        %1380 = vmatpush.xpose.msra.mxu0 0.0
        %1381 = vmatpush.xpose.msra.mxu0 0.0
        %1382 = vmatpush.xpose.msra.mxu0 0.0
        %1383 = vmatpush.xpose.msra.mxu0 0.0
        %1384 = vmatpush.xpose.msra.mxu0 0.0
        %1385 = vmatpush.xpose.msra.mxu0 0.0
        %1386 = vmatpush.xpose.msra.mxu0 0.0
        %1387 = vmatpush.xpose.msra.mxu0 0.0
        %1388 = vmatpush.xpose.msra.mxu0 %v1371
        %1389 = vmatmul.f32.gmra.mxu0 %v1369
        %v1390 = vpop.f32.mrf.mxu0
        %v1391 = vadd.f32 0.0, %v1390
        %1392 = vdwg.mxu0
        %v1393 = vmul.f32 %v1391, 0.35355338
        %v1394 = vsel %vm1368, %v1393, -inf
        %1395 = vmax.xlane.f32.xlu0 %v1394
        %v1396 = vpop.xlane.xlu0 %1395
        %v1397 = vsub.f32 %v1393, %v1396
        %v1398 = vmul.f32 %v1397, 1.442695
        %v1399 = vpow.pop %v1398
        %v1400 = vsel %vm1368, %v1399, 0.0
        %1401 = vadd.xlane.f32.xlu0 %v1400
        %v1402 = vpop.xlane.xlu0 %1401
        %v1403 = vrcp.pop %v1402
        %v1404 = vmul.f32 %v1399, %v1403
        %1405 = vrot.lane.b32.xlu0 %v1360, 64
        %v1406 = vpop.permute.xlu0 %1405
        %v1409 = vsel %vm1368, %v1404, 0
        %1411 = vmatpush.msra.mxu0 0.0
        %1412 = vmatpush.msra.mxu0 0.0
        %1413 = vmatpush.msra.mxu0 0.0
        %1414 = vmatpush.msra.mxu0 0.0
        %1415 = vmatpush.msra.mxu0 0.0
        %1416 = vmatpush.msra.mxu0 0.0
        %1417 = vmatpush.msra.mxu0 0.0
        %1418 = vmatpush.msra.mxu0 0.0
        %1419 = vmatpush.msra.mxu0 0.0
        %1420 = vmatpush.msra.mxu0 0.0
        %1421 = vmatpush.msra.mxu0 0.0
        %1422 = vmatpush.msra.mxu0 0.0
        %1423 = vmatpush.msra.mxu0 0.0
        %1424 = vmatpush.msra.mxu0 0.0
        %1425 = vmatpush.msra.mxu0 0.0
        %1426 = vmatpush.msra.mxu0 %v1406
        %1427 = vmatmul.f32.gmra.mxu0 %v1409
        %v1428 = vpop.f32.mrf.mxu0
        %v1429 = vadd.f32 0.0, %v1428
        %1430 = vdwg.mxu0
        %1431 = vrot.lane.b32.xlu0 %v1360, 120
        %v1432 = vpop.permute.xlu0 %1431
        %1433 = vrot.lane.b32.xlu0 %v1360, 88
        %v1434 = vpop.permute.xlu0 %1433
        %v1435 = vsel %vm1368, %v1432, 0
        %v1437 = vsel %vm1368, %v1434, 0
        %1439 = vmatpush.xpose.msra.mxu0 0.0
        %1440 = vmatpush.xpose.msra.mxu0 0.0
        %1441 = vmatpush.xpose.msra.mxu0 0.0
        %1442 = vmatpush.xpose.msra.mxu0 0.0
        %1443 = vmatpush.xpose.msra.mxu0 0.0
        %1444 = vmatpush.xpose.msra.mxu0 0.0
        %1445 = vmatpush.xpose.msra.mxu0 0.0
        %1446 = vmatpush.xpose.msra.mxu0 0.0
        %1447 = vmatpush.xpose.msra.mxu0 0.0
        %1448 = vmatpush.xpose.msra.mxu0 0.0
        %1449 = vmatpush.xpose.msra.mxu0 0.0
        %1450 = vmatpush.xpose.msra.mxu0 0.0
        %1451 = vmatpush.xpose.msra.mxu0 0.0
        %1452 = vmatpush.xpose.msra.mxu0 0.0
        %1453 = vmatpush.xpose.msra.mxu0 0.0
        %1454 = vmatpush.xpose.msra.mxu0 %v1437
        %1455 = vmatmul.f32.gmra.mxu0 %v1435
        %v1456 = vpop.f32.mrf.mxu0
        %v1457 = vadd.f32 0.0, %v1456
        %1458 = vdwg.mxu0
        %v1459 = vmul.f32 %v1457, 0.35355338
        %v1460 = vsel %vm1368, %v1459, -inf
        %1461 = vmax.xlane.f32.xlu0 %v1460
        %v1462 = vpop.xlane.xlu0 %1461
        %v1463 = vsub.f32 %v1459, %v1462
        %v1464 = vmul.f32 %v1463, 1.442695
        %v1465 = vpow.pop %v1464
        %v1466 = vsel %vm1368, %v1465, 0.0
        %1467 = vadd.xlane.f32.xlu0 %v1466
        %v1468 = vpop.xlane.xlu0 %1467
        %v1469 = vrcp.pop %v1468
        %v1470 = vmul.f32 %v1465, %v1469
        %1471 = vrot.lane.b32.xlu0 %v1360, 56
        %v1472 = vpop.permute.xlu0 %1471
        %v1475 = vsel %vm1368, %v1470, 0
        %1477 = vmatpush.msra.mxu0 0.0
        %1478 = vmatpush.msra.mxu0 0.0
        %1479 = vmatpush.msra.mxu0 0.0
        %1480 = vmatpush.msra.mxu0 0.0
        %1481 = vmatpush.msra.mxu0 0.0
        %1482 = vmatpush.msra.mxu0 0.0
        %1483 = vmatpush.msra.mxu0 0.0
        %1484 = vmatpush.msra.mxu0 0.0
        %1485 = vmatpush.msra.mxu0 0.0
        %1486 = vmatpush.msra.mxu0 0.0
        %1487 = vmatpush.msra.mxu0 0.0
        %1488 = vmatpush.msra.mxu0 0.0
        %1489 = vmatpush.msra.mxu0 0.0
        %1490 = vmatpush.msra.mxu0 0.0
        %1491 = vmatpush.msra.mxu0 0.0
        %1492 = vmatpush.msra.mxu0 %v1472
        %1493 = vmatmul.f32.gmra.mxu0 %v1475
        %v1494 = vpop.f32.mrf.mxu0
        %v1495 = vadd.f32 0.0, %v1494
        %1496 = vdwg.mxu0
        %1497 = vrot.lane.b32.xlu0 %v1360, 112
        %v1498 = vpop.permute.xlu0 %1497
        %1499 = vrot.lane.b32.xlu0 %v1360, 80
        %v1500 = vpop.permute.xlu0 %1499
        %v1501 = vsel %vm1368, %v1498, 0
        %v1503 = vsel %vm1368, %v1500, 0
        %1505 = vmatpush.xpose.msra.mxu0 0.0
        %1506 = vmatpush.xpose.msra.mxu0 0.0
        %1507 = vmatpush.xpose.msra.mxu0 0.0
        %1508 = vmatpush.xpose.msra.mxu0 0.0
        %1509 = vmatpush.xpose.msra.mxu0 0.0
        %1510 = vmatpush.xpose.msra.mxu0 0.0
        %1511 = vmatpush.xpose.msra.mxu0 0.0
        %1512 = vmatpush.xpose.msra.mxu0 0.0
        %1513 = vmatpush.xpose.msra.mxu0 0.0
        %1514 = vmatpush.xpose.msra.mxu0 0.0
        %1515 = vmatpush.xpose.msra.mxu0 0.0
        %1516 = vmatpush.xpose.msra.mxu0 0.0
        %1517 = vmatpush.xpose.msra.mxu0 0.0
        %1518 = vmatpush.xpose.msra.mxu0 0.0
        %1519 = vmatpush.xpose.msra.mxu0 0.0
        %1520 = vmatpush.xpose.msra.mxu0 %v1503
        %1521 = vmatmul.f32.gmra.mxu0 %v1501
        %v1522 = vpop.f32.mrf.mxu0
        %v1523 = vadd.f32 0.0, %v1522
        %1524 = vdwg.mxu0
        %v1525 = vmul.f32 %v1523, 0.35355338
        %v1526 = vsel %vm1368, %v1525, -inf
        %1527 = vmax.xlane.f32.xlu0 %v1526
        %v1528 = vpop.xlane.xlu0 %1527
        %v1529 = vsub.f32 %v1525, %v1528
        %v1530 = vmul.f32 %v1529, 1.442695
        %v1531 = vpow.pop %v1530
        %v1532 = vsel %vm1368, %v1531, 0.0
        %1533 = vadd.xlane.f32.xlu0 %v1532
        %v1534 = vpop.xlane.xlu0 %1533
        %v1535 = vrcp.pop %v1534
        %v1536 = vmul.f32 %v1531, %v1535
        %1537 = vrot.lane.b32.xlu0 %v1360, 48
        %v1538 = vpop.permute.xlu0 %1537
        %v1541 = vsel %vm1368, %v1536, 0
        %1543 = vmatpush.msra.mxu0 0.0
        %1544 = vmatpush.msra.mxu0 0.0
        %1545 = vmatpush.msra.mxu0 0.0
        %1546 = vmatpush.msra.mxu0 0.0
        %1547 = vmatpush.msra.mxu0 0.0
        %1548 = vmatpush.msra.mxu0 0.0
        %1549 = vmatpush.msra.mxu0 0.0
        %1550 = vmatpush.msra.mxu0 0.0
        %1551 = vmatpush.msra.mxu0 0.0
        %1552 = vmatpush.msra.mxu0 0.0
        %1553 = vmatpush.msra.mxu0 0.0
        %1554 = vmatpush.msra.mxu0 0.0
        %1555 = vmatpush.msra.mxu0 0.0
        %1556 = vmatpush.msra.mxu0 0.0
        %1557 = vmatpush.msra.mxu0 0.0
        %1558 = vmatpush.msra.mxu0 %v1538
        %1559 = vmatmul.f32.gmra.mxu0 %v1541
        %v1560 = vpop.f32.mrf.mxu0
        %v1561 = vadd.f32 0.0, %v1560
        %1562 = vdwg.mxu0
        %1563 = vrot.lane.b32.xlu0 %v1360, 104
        %v1564 = vpop.permute.xlu0 %1563
        %1565 = vrot.lane.b32.xlu0 %v1360, 72
        %v1566 = vpop.permute.xlu0 %1565
        %v1567 = vsel %vm1368, %v1564, 0
        %v1569 = vsel %vm1368, %v1566, 0
        %1571 = vmatpush.xpose.msra.mxu0 0.0
        %1572 = vmatpush.xpose.msra.mxu0 0.0
        %1573 = vmatpush.xpose.msra.mxu0 0.0
        %1574 = vmatpush.xpose.msra.mxu0 0.0
        %1575 = vmatpush.xpose.msra.mxu0 0.0
        %1576 = vmatpush.xpose.msra.mxu0 0.0
        %1577 = vmatpush.xpose.msra.mxu0 0.0
        %1578 = vmatpush.xpose.msra.mxu0 0.0
        %1579 = vmatpush.xpose.msra.mxu0 0.0
        %1580 = vmatpush.xpose.msra.mxu0 0.0
        %1581 = vmatpush.xpose.msra.mxu0 0.0
        %1582 = vmatpush.xpose.msra.mxu0 0.0
        %1583 = vmatpush.xpose.msra.mxu0 0.0
        %1584 = vmatpush.xpose.msra.mxu0 0.0
        %1585 = vmatpush.xpose.msra.mxu0 0.0
        %1586 = vmatpush.xpose.msra.mxu0 %v1569
        %1587 = vmatmul.f32.gmra.mxu0 %v1567
        %v1588 = vpop.f32.mrf.mxu0
        %v1589 = vadd.f32 0.0, %v1588
        %1590 = vdwg.mxu0
        %v1591 = vmul.f32 %v1589, 0.35355338
        %v1592 = vsel %vm1368, %v1591, -inf
        %1593 = vmax.xlane.f32.xlu0 %v1592
        %v1594 = vpop.xlane.xlu0 %1593
        %v1595 = vsub.f32 %v1591, %v1594
        %v1596 = vmul.f32 %v1595, 1.442695
        %v1597 = vpow.pop %v1596
        %v1598 = vsel %vm1368, %v1597, 0.0
        %1599 = vadd.xlane.f32.xlu0 %v1598
        %v1600 = vpop.xlane.xlu0 %1599
        %v1601 = vrcp.pop %v1600
        %v1602 = vmul.f32 %v1597, %v1601
        %1603 = vrot.lane.b32.xlu0 %v1360, 40
        %v1604 = vpop.permute.xlu0 %1603
        %v1607 = vsel %vm1368, %v1602, 0
        %1609 = vmatpush.msra.mxu0 0.0
        %1610 = vmatpush.msra.mxu0 0.0
        %1611 = vmatpush.msra.mxu0 0.0
        %1612 = vmatpush.msra.mxu0 0.0
        %1613 = vmatpush.msra.mxu0 0.0
        %1614 = vmatpush.msra.mxu0 0.0
        %1615 = vmatpush.msra.mxu0 0.0
        %1616 = vmatpush.msra.mxu0 0.0
        %1617 = vmatpush.msra.mxu0 0.0
        %1618 = vmatpush.msra.mxu0 0.0
        %1619 = vmatpush.msra.mxu0 0.0
        %1620 = vmatpush.msra.mxu0 0.0
        %1621 = vmatpush.msra.mxu0 0.0
        %1622 = vmatpush.msra.mxu0 0.0
        %1623 = vmatpush.msra.mxu0 0.0
        %1624 = vmatpush.msra.mxu0 %v1604
        %1625 = vmatmul.f32.gmra.mxu0 %v1607
        %v1626 = vpop.f32.mrf.mxu0
        %v1627 = vadd.f32 0.0, %v1626
        %1628 = vdwg.mxu0
        %1630 = vrot.lane.b32.xlu0 %v1495, 8
        %v1631 = vpop.permute.xlu0 %1630
        %1634 = vrot.lane.b32.xlu0 %v1561, 16
        %v1635 = vpop.permute.xlu0 %1634
        %1638 = vrot.lane.b32.xlu0 %v1627, 24
        %v1639 = vpop.permute.xlu0 %1638
        %v1641 = vsel %vm1368, %v1429, %v1631
        %vm1642 = vcmask 130048
        %v1643 = vsel %vm1642, %v1641, %v1635
        %vm1644 = vcmask 195584
        %v1645 = vsel %vm1644, %v1643, %v1639
        %1647 = vrot.lane.b32.xlu0 %v1363, 96
        %v1648 = vpop.permute.xlu0 %1647
        %v1649 = vsel %vm1368, %v1363, 0
        %v1651 = vsel %vm1368, %v1648, 0
        %1653 = vmatpush.xpose.msra.mxu0 0.0
        %1654 = vmatpush.xpose.msra.mxu0 0.0
        %1655 = vmatpush.xpose.msra.mxu0 0.0
        %1656 = vmatpush.xpose.msra.mxu0 0.0
        %1657 = vmatpush.xpose.msra.mxu0 0.0
        %1658 = vmatpush.xpose.msra.mxu0 0.0
        %1659 = vmatpush.xpose.msra.mxu0 0.0
        %1660 = vmatpush.xpose.msra.mxu0 0.0
        %1661 = vmatpush.xpose.msra.mxu0 0.0
        %1662 = vmatpush.xpose.msra.mxu0 0.0
        %1663 = vmatpush.xpose.msra.mxu0 0.0
        %1664 = vmatpush.xpose.msra.mxu0 0.0
        %1665 = vmatpush.xpose.msra.mxu0 0.0
        %1666 = vmatpush.xpose.msra.mxu0 0.0
        %1667 = vmatpush.xpose.msra.mxu0 0.0
        %1668 = vmatpush.xpose.msra.mxu0 %v1651
        %1669 = vmatmul.f32.gmra.mxu0 %v1649
        %v1670 = vpop.f32.mrf.mxu0
        %v1671 = vadd.f32 0.0, %v1670
        %1672 = vdwg.mxu0
        %v1673 = vmul.f32 %v1671, 0.35355338
        %v1674 = vsel %vm1368, %v1673, -inf
        %1675 = vmax.xlane.f32.xlu0 %v1674
        %v1676 = vpop.xlane.xlu0 %1675
        %v1677 = vsub.f32 %v1673, %v1676
        %v1678 = vmul.f32 %v1677, 1.442695
        %v1679 = vpow.pop %v1678
        %v1680 = vsel %vm1368, %v1679, 0.0
        %1681 = vadd.xlane.f32.xlu0 %v1680
        %v1682 = vpop.xlane.xlu0 %1681
        %v1683 = vrcp.pop %v1682
        %v1684 = vmul.f32 %v1679, %v1683
        %1685 = vrot.lane.b32.xlu0 %v1363, 64
        %v1686 = vpop.permute.xlu0 %1685
        %v1689 = vsel %vm1368, %v1684, 0
        %1691 = vmatpush.msra.mxu0 0.0
        %1692 = vmatpush.msra.mxu0 0.0
        %1693 = vmatpush.msra.mxu0 0.0
        %1694 = vmatpush.msra.mxu0 0.0
        %1695 = vmatpush.msra.mxu0 0.0
        %1696 = vmatpush.msra.mxu0 0.0
        %1697 = vmatpush.msra.mxu0 0.0
        %1698 = vmatpush.msra.mxu0 0.0
        %1699 = vmatpush.msra.mxu0 0.0
        %1700 = vmatpush.msra.mxu0 0.0
        %1701 = vmatpush.msra.mxu0 0.0
        %1702 = vmatpush.msra.mxu0 0.0
        %1703 = vmatpush.msra.mxu0 0.0
        %1704 = vmatpush.msra.mxu0 0.0
        %1705 = vmatpush.msra.mxu0 0.0
        %1706 = vmatpush.msra.mxu0 %v1686
        %1707 = vmatmul.f32.gmra.mxu0 %v1689
        %v1708 = vpop.f32.mrf.mxu0
        %v1709 = vadd.f32 0.0, %v1708
        %1710 = vdwg.mxu0
        %1711 = vrot.lane.b32.xlu0 %v1363, 120
        %v1712 = vpop.permute.xlu0 %1711
        %1713 = vrot.lane.b32.xlu0 %v1363, 88
        %v1714 = vpop.permute.xlu0 %1713
        %v1715 = vsel %vm1368, %v1712, 0
        %v1717 = vsel %vm1368, %v1714, 0
        %1719 = vmatpush.xpose.msra.mxu0 0.0
        %1720 = vmatpush.xpose.msra.mxu0 0.0
        %1721 = vmatpush.xpose.msra.mxu0 0.0
        %1722 = vmatpush.xpose.msra.mxu0 0.0
        %1723 = vmatpush.xpose.msra.mxu0 0.0
        %1724 = vmatpush.xpose.msra.mxu0 0.0
        %1725 = vmatpush.xpose.msra.mxu0 0.0
        %1726 = vmatpush.xpose.msra.mxu0 0.0
        %1727 = vmatpush.xpose.msra.mxu0 0.0
        %1728 = vmatpush.xpose.msra.mxu0 0.0
        %1729 = vmatpush.xpose.msra.mxu0 0.0
        %1730 = vmatpush.xpose.msra.mxu0 0.0
        %1731 = vmatpush.xpose.msra.mxu0 0.0
        %1732 = vmatpush.xpose.msra.mxu0 0.0
        %1733 = vmatpush.xpose.msra.mxu0 0.0
        %1734 = vmatpush.xpose.msra.mxu0 %v1717
        %1735 = vmatmul.f32.gmra.mxu0 %v1715
        %v1736 = vpop.f32.mrf.mxu0
        %v1737 = vadd.f32 0.0, %v1736
        %1738 = vdwg.mxu0
        %v1739 = vmul.f32 %v1737, 0.35355338
        %v1740 = vsel %vm1368, %v1739, -inf
        %1741 = vmax.xlane.f32.xlu0 %v1740
        %v1742 = vpop.xlane.xlu0 %1741
        %v1743 = vsub.f32 %v1739, %v1742
        %v1744 = vmul.f32 %v1743, 1.442695
        %v1745 = vpow.pop %v1744
        %v1746 = vsel %vm1368, %v1745, 0.0
        %1747 = vadd.xlane.f32.xlu0 %v1746
        %v1748 = vpop.xlane.xlu0 %1747
        %v1749 = vrcp.pop %v1748
        %v1750 = vmul.f32 %v1745, %v1749
        %1751 = vrot.lane.b32.xlu0 %v1363, 56
        %v1752 = vpop.permute.xlu0 %1751
        %v1755 = vsel %vm1368, %v1750, 0
        %1757 = vmatpush.msra.mxu0 0.0
        %1758 = vmatpush.msra.mxu0 0.0
        %1759 = vmatpush.msra.mxu0 0.0
        %1760 = vmatpush.msra.mxu0 0.0
        %1761 = vmatpush.msra.mxu0 0.0
        %1762 = vmatpush.msra.mxu0 0.0
        %1763 = vmatpush.msra.mxu0 0.0
        %1764 = vmatpush.msra.mxu0 0.0
        %1765 = vmatpush.msra.mxu0 0.0
        %1766 = vmatpush.msra.mxu0 0.0
        %1767 = vmatpush.msra.mxu0 0.0
        %1768 = vmatpush.msra.mxu0 0.0
        %1769 = vmatpush.msra.mxu0 0.0
        %1770 = vmatpush.msra.mxu0 0.0
        %1771 = vmatpush.msra.mxu0 0.0
        %1772 = vmatpush.msra.mxu0 %v1752
        %1773 = vmatmul.f32.gmra.mxu0 %v1755
        %v1774 = vpop.f32.mrf.mxu0
        %v1775 = vadd.f32 0.0, %v1774
        %1776 = vdwg.mxu0
        %1777 = vrot.lane.b32.xlu0 %v1363, 112
        %v1778 = vpop.permute.xlu0 %1777
        %1779 = vrot.lane.b32.xlu0 %v1363, 80
        %v1780 = vpop.permute.xlu0 %1779
        %v1781 = vsel %vm1368, %v1778, 0
        %v1783 = vsel %vm1368, %v1780, 0
        %1785 = vmatpush.xpose.msra.mxu0 0.0
        %1786 = vmatpush.xpose.msra.mxu0 0.0
        %1787 = vmatpush.xpose.msra.mxu0 0.0
        %1788 = vmatpush.xpose.msra.mxu0 0.0
        %1789 = vmatpush.xpose.msra.mxu0 0.0
        %1790 = vmatpush.xpose.msra.mxu0 0.0
        %1791 = vmatpush.xpose.msra.mxu0 0.0
        %1792 = vmatpush.xpose.msra.mxu0 0.0
        %1793 = vmatpush.xpose.msra.mxu0 0.0
        %1794 = vmatpush.xpose.msra.mxu0 0.0
        %1795 = vmatpush.xpose.msra.mxu0 0.0
        %1796 = vmatpush.xpose.msra.mxu0 0.0
        %1797 = vmatpush.xpose.msra.mxu0 0.0
        %1798 = vmatpush.xpose.msra.mxu0 0.0
        %1799 = vmatpush.xpose.msra.mxu0 0.0
        %1800 = vmatpush.xpose.msra.mxu0 %v1783
        %1801 = vmatmul.f32.gmra.mxu0 %v1781
        %v1802 = vpop.f32.mrf.mxu0
        %v1803 = vadd.f32 0.0, %v1802
        %1804 = vdwg.mxu0
        %v1805 = vmul.f32 %v1803, 0.35355338
        %v1806 = vsel %vm1368, %v1805, -inf
        %1807 = vmax.xlane.f32.xlu0 %v1806
        %v1808 = vpop.xlane.xlu0 %1807
        %v1809 = vsub.f32 %v1805, %v1808
        %v1810 = vmul.f32 %v1809, 1.442695
        %v1811 = vpow.pop %v1810
        %v1812 = vsel %vm1368, %v1811, 0.0
        %1813 = vadd.xlane.f32.xlu0 %v1812
        %v1814 = vpop.xlane.xlu0 %1813
        %v1815 = vrcp.pop %v1814
        %v1816 = vmul.f32 %v1811, %v1815
        %1817 = vrot.lane.b32.xlu0 %v1363, 48
        %v1818 = vpop.permute.xlu0 %1817
        %v1821 = vsel %vm1368, %v1816, 0
        %1823 = vmatpush.msra.mxu0 0.0
        %1824 = vmatpush.msra.mxu0 0.0
        %1825 = vmatpush.msra.mxu0 0.0
        %1826 = vmatpush.msra.mxu0 0.0
        %1827 = vmatpush.msra.mxu0 0.0
        %1828 = vmatpush.msra.mxu0 0.0
        %1829 = vmatpush.msra.mxu0 0.0
        %1830 = vmatpush.msra.mxu0 0.0
        %1831 = vmatpush.msra.mxu0 0.0
        %1832 = vmatpush.msra.mxu0 0.0
        %1833 = vmatpush.msra.mxu0 0.0
        %1834 = vmatpush.msra.mxu0 0.0
        %1835 = vmatpush.msra.mxu0 0.0
        %1836 = vmatpush.msra.mxu0 0.0
        %1837 = vmatpush.msra.mxu0 0.0
        %1838 = vmatpush.msra.mxu0 %v1818
        %1839 = vmatmul.f32.gmra.mxu0 %v1821
        %v1840 = vpop.f32.mrf.mxu0
        %v1841 = vadd.f32 0.0, %v1840
        %1842 = vdwg.mxu0
        %1843 = vrot.lane.b32.xlu0 %v1363, 104
        %v1844 = vpop.permute.xlu0 %1843
        %1845 = vrot.lane.b32.xlu0 %v1363, 72
        %v1846 = vpop.permute.xlu0 %1845
        %v1847 = vsel %vm1368, %v1844, 0
        %v1849 = vsel %vm1368, %v1846, 0
        %1851 = vmatpush.xpose.msra.mxu0 0.0
        %1852 = vmatpush.xpose.msra.mxu0 0.0
        %1853 = vmatpush.xpose.msra.mxu0 0.0
        %1854 = vmatpush.xpose.msra.mxu0 0.0
        %1855 = vmatpush.xpose.msra.mxu0 0.0
        %1856 = vmatpush.xpose.msra.mxu0 0.0
        %1857 = vmatpush.xpose.msra.mxu0 0.0
        %1858 = vmatpush.xpose.msra.mxu0 0.0
        %1859 = vmatpush.xpose.msra.mxu0 0.0
        %1860 = vmatpush.xpose.msra.mxu0 0.0
        %1861 = vmatpush.xpose.msra.mxu0 0.0
        %1862 = vmatpush.xpose.msra.mxu0 0.0
        %1863 = vmatpush.xpose.msra.mxu0 0.0
        %1864 = vmatpush.xpose.msra.mxu0 0.0
        %1865 = vmatpush.xpose.msra.mxu0 0.0
        %1866 = vmatpush.xpose.msra.mxu0 %v1849
        %1867 = vmatmul.f32.gmra.mxu0 %v1847
        %v1868 = vpop.f32.mrf.mxu0
        %v1869 = vadd.f32 0.0, %v1868
        %1870 = vdwg.mxu0
        %v1871 = vmul.f32 %v1869, 0.35355338
        %v1872 = vsel %vm1368, %v1871, -inf
        %1873 = vmax.xlane.f32.xlu0 %v1872
        %v1874 = vpop.xlane.xlu0 %1873
        %v1875 = vsub.f32 %v1871, %v1874
        %v1876 = vmul.f32 %v1875, 1.442695
        %v1877 = vpow.pop %v1876
        %v1878 = vsel %vm1368, %v1877, 0.0
        %1879 = vadd.xlane.f32.xlu0 %v1878
        %v1880 = vpop.xlane.xlu0 %1879
        %v1881 = vrcp.pop %v1880
        %v1882 = vmul.f32 %v1877, %v1881
        %1883 = vrot.lane.b32.xlu0 %v1363, 40
        %v1884 = vpop.permute.xlu0 %1883
        %v1887 = vsel %vm1368, %v1882, 0
        %1889 = vmatpush.msra.mxu0 0.0
        %1890 = vmatpush.msra.mxu0 0.0
        %1891 = vmatpush.msra.mxu0 0.0
        %1892 = vmatpush.msra.mxu0 0.0
        %1893 = vmatpush.msra.mxu0 0.0
        %1894 = vmatpush.msra.mxu0 0.0
        %1895 = vmatpush.msra.mxu0 0.0
        %1896 = vmatpush.msra.mxu0 0.0
        %1897 = vmatpush.msra.mxu0 0.0
        %1898 = vmatpush.msra.mxu0 0.0
        %1899 = vmatpush.msra.mxu0 0.0
        %1900 = vmatpush.msra.mxu0 0.0
        %1901 = vmatpush.msra.mxu0 0.0
        %1902 = vmatpush.msra.mxu0 0.0
        %1903 = vmatpush.msra.mxu0 0.0
        %1904 = vmatpush.msra.mxu0 %v1884
        %1905 = vmatmul.f32.gmra.mxu0 %v1887
        %v1906 = vpop.f32.mrf.mxu0
        %v1907 = vadd.f32 0.0, %v1906
        %1908 = vdwg.mxu0
        %1910 = vrot.lane.b32.xlu0 %v1775, 8
        %v1911 = vpop.permute.xlu0 %1910
        %1914 = vrot.lane.b32.xlu0 %v1841, 16
        %v1915 = vpop.permute.xlu0 %1914
        %1918 = vrot.lane.b32.xlu0 %v1907, 24
        %v1919 = vpop.permute.xlu0 %1918
        %v1921 = vsel %vm1368, %v1709, %v1911
        %v1922 = vsel %vm1642, %v1921, %v1915
        %v1923 = vsel %vm1644, %v1922, %v1919
        %v1924 = vld [vmem:[%s1015] sm:$0xff]
        %v1925 = vld [vmem:[%s1015 + $0x8] sm:$0xff]
        %v1926 = vld [vmem:[%s1015 + $0x10] sm:$0xff]
        %v1927 = vld [vmem:[%s1015 + $0x18] sm:$0xff]
        %v1929 = vsel %vm1260, %v1645, 0
        %v1932 = vsel %vm1260, %v1923, 0
        %1934 = vmatpush.msra.mxu0 0.0
        %1935 = vmatpush.msra.mxu0 0.0
        %1936 = vmatpush.msra.mxu0 0.0
        %1937 = vmatpush.msra.mxu0 0.0
        %1938 = vmatpush.msra.mxu0 0.0
        %1939 = vmatpush.msra.mxu0 0.0
        %1940 = vmatpush.msra.mxu0 0.0
        %1941 = vmatpush.msra.mxu0 0.0
        %1942 = vmatpush.msra.mxu0 0.0
        %1943 = vmatpush.msra.mxu0 0.0
        %1944 = vmatpush.msra.mxu0 0.0
        %1945 = vmatpush.msra.mxu0 0.0
        %1946 = vmatpush.msra.mxu0 %v1927
        %1947 = vmatpush.msra.mxu0 %v1926
        %1948 = vmatpush.msra.mxu0 %v1925
        %1949 = vmatpush.msra.mxu0 %v1924
        %1950 = vmatmul.f32.gmra.mxu0 %v1929
        %v1951 = vpop.f32.mrf.mxu0
        %v1952 = vadd.f32 0.0, %v1951
        %1953 = vmatmul.f32.gmra.mxu0 %v1932
        %v1954 = vpop.f32.mrf.mxu0
        %v1955 = vadd.f32 0.0, %v1954
        %1956 = vdwg.mxu0
        %v1957 = vadd.f32 %v1254, %v1952
        %v1958 = vadd.f32 %v1255, %v1955
        %v1959 = vld [vmem:[%s1216] sm:$0x1]
        %v1961 = vperm.slane %v1959, 0
        %v1963 = vadd.f32 %v1957, %v1961
        %v1964 = vadd.f32 %v1958, %v1961
        %v1965 = vld [vmem:[%s1219] sm:$0x1]
        %v1966 = vld [vmem:[%s1222] sm:$0x1]
        %v1967 = vsel %vm1260, %v1963, 0.0
        %1968 = vadd.xlane.f32.xlu0 %v1967
        %v1969 = vpop.xlane.xlu0 %1968
        %v1970 = vsel %vm1260, %v1964, 0.0
        %1971 = vadd.xlane.f32.xlu0 %v1970
        %v1972 = vpop.xlane.xlu0 %1971
        %v1973 = vmul.f32 %v1969, %v1273
        %v1974 = vmul.f32 %v1972, %v1273
        %v1975 = vsub.f32 %v1963, %v1973
        %v1976 = vsub.f32 %v1964, %v1974
        %v1977 = vmul.f32 %v1975, %v1975
        %v1978 = vmul.f32 %v1976, %v1976
        %v1979 = vsel %vm1260, %v1977, 0.0
        %1980 = vadd.xlane.f32.xlu0 %v1979
        %v1981 = vpop.xlane.xlu0 %1980
        %v1982 = vsel %vm1260, %v1978, 0.0
        %1983 = vadd.xlane.f32.xlu0 %v1982
        %v1984 = vpop.xlane.xlu0 %1983
        %v1985 = vmul.f32 %v1981, 0.032258064
        %v1986 = vmul.f32 %v1984, 0.032258064
        %v1987 = vrsqrt.pop %v1985
        %v1988 = vmul.f32 %v1987, %v1985
        %v1989 = vmul.f32 %v1988, %v1987
        %v1990 = vmul.f32 0.5, %v1989
        %v1991 = vsub.f32 1.5, %v1990
        %v1992 = vmul.f32 %v1987, %v1991
        %v1993 = vmul.f32 %v1985, %v1992
        %vm1994 = vcmp.eq.f32.partialorder %v1985, inf
        %v1995 = vsel %vm1994, %v1985, %v1993
        %vm1996 = vcmp.eq.f32.partialorder %v1985, 0.0
        %v1997 = vand.u32 %v1985, 2147483648
        %v1998 = vsel %vm1996, %v1997, %v1995
        %v1999 = vrsqrt.pop %v1986
        %v2000 = vmul.f32 %v1999, %v1986
        %v2001 = vmul.f32 %v2000, %v1999
        %v2002 = vmul.f32 0.5, %v2001
        %v2003 = vsub.f32 1.5, %v2002
        %v2004 = vmul.f32 %v1999, %v2003
        %v2005 = vmul.f32 %v1986, %v2004
        %vm2006 = vcmp.eq.f32.partialorder %v1986, inf
        %v2007 = vsel %vm2006, %v1986, %v2005
        %vm2008 = vcmp.eq.f32.partialorder %v1986, 0.0
        %v2009 = vand.u32 %v1986, 2147483648
        %v2010 = vsel %vm2008, %v2009, %v2007
        %v2011 = vadd.f32 %v1998, 1e-06
        %v2012 = vadd.f32 %v2010, 1e-06
        %v2013 = vrcp.pop %v2011
        %v2014 = vrcp.pop %v2012
        %v2016 = vperm.slane %v1965, 0
        %v2018 = vmul.f32 %v2016, %v1975
        %v2019 = vmul.f32 %v2016, %v1976
        %v2020 = vmul.f32 %v2018, %v2013
        %v2021 = vmul.f32 %v2019, %v2014
        %v2023 = vperm.slane %v1966, 0
        %v2025 = vadd.f32 %v2020, %v2023
        %v2026 = vadd.f32 %v2021, %v2023
        %v2027 = vld [vmem:[%s1025] sm:$0xff]
        %v2028 = vld [vmem:[%s1025 + $0x8] sm:$0xff]
        %v2029 = vld [vmem:[%s1025 + $0x10] sm:$0xff]
        %v2030 = vld [vmem:[%s1025 + $0x18] sm:$0xff]
        %v2031 = vld [vmem:[%s1225] sm:$0x1]
        %v2033 = vperm.slane %v2031, 0
        %v2036 = vsel %vm1260, %v2025, 0
        %v2039 = vsel %vm1260, %v2026, 0
        %2041 = vmatpush.msra.mxu0 0.0
        %2042 = vmatpush.msra.mxu0 0.0
        %2043 = vmatpush.msra.mxu0 0.0
        %2044 = vmatpush.msra.mxu0 0.0
        %2045 = vmatpush.msra.mxu0 0.0
        %2046 = vmatpush.msra.mxu0 0.0
        %2047 = vmatpush.msra.mxu0 0.0
        %2048 = vmatpush.msra.mxu0 0.0
        %2049 = vmatpush.msra.mxu0 0.0
        %2050 = vmatpush.msra.mxu0 0.0
        %2051 = vmatpush.msra.mxu0 0.0
        %2052 = vmatpush.msra.mxu0 0.0
        %2053 = vmatpush.msra.mxu0 %v2030
        %2054 = vmatpush.msra.mxu0 %v2029
        %2055 = vmatpush.msra.mxu0 %v2028
        %2056 = vmatpush.msra.mxu0 %v2027
        %2057 = vmatmul.f32.gmra.mxu0 %v2036
        %v2058 = vpop.f32.mrf.mxu0
        %v2059 = vadd.f32 %v2033, %v2058
        %2060 = vmatmul.f32.gmra.mxu0 %v2039
        %v2061 = vpop.f32.mrf.mxu0
        %v2062 = vadd.f32 %v2033, %v2061
        %2063 = vdwg.mxu0
        %v2064 = vld [vmem:[%s1035] sm:$0xff]
        %v2065 = vld [vmem:[%s1035 + $0x8] sm:$0xff]
        %v2066 = vld [vmem:[%s1035 + $0x10] sm:$0xff]
        %v2067 = vld [vmem:[%s1035 + $0x18] sm:$0xff]
        %v2068 = vld [vmem:[%s1228] sm:$0x1]
        %v2070 = vperm.slane %v2068, 0
        %v2073 = vsel %vm1260, %v1256, 0
        %v2076 = vsel %vm1260, %v1257, 0
        %2078 = vmatpush.msra.mxu0 0.0
        %2079 = vmatpush.msra.mxu0 0.0
        %2080 = vmatpush.msra.mxu0 0.0
        %2081 = vmatpush.msra.mxu0 0.0
        %2082 = vmatpush.msra.mxu0 0.0
        %2083 = vmatpush.msra.mxu0 0.0
        %2084 = vmatpush.msra.mxu0 0.0
        %2085 = vmatpush.msra.mxu0 0.0
        %2086 = vmatpush.msra.mxu0 0.0
        %2087 = vmatpush.msra.mxu0 0.0
        %2088 = vmatpush.msra.mxu0 0.0
        %2089 = vmatpush.msra.mxu0 0.0
        %2090 = vmatpush.msra.mxu0 %v2067
        %2091 = vmatpush.msra.mxu0 %v2066
        %2092 = vmatpush.msra.mxu0 %v2065
        %2093 = vmatpush.msra.mxu0 %v2064
        %2094 = vmatmul.f32.gmra.mxu0 %v2073
        %v2095 = vpop.f32.mrf.mxu0
        %v2096 = vadd.f32 %v2070, %v2095
        %2097 = vmatmul.f32.gmra.mxu0 %v2076
        %v2098 = vpop.f32.mrf.mxu0
        %v2099 = vadd.f32 %v2070, %v2098
        %2100 = vdwg.mxu0
        %v2102 = vsel %vm1368, %v2059, 0
        %v2105 = vsel %vm1368, %v2096, 0
        %2107 = vmatpush.xpose.msra.mxu0 0.0
        %2108 = vmatpush.xpose.msra.mxu0 0.0
        %2109 = vmatpush.xpose.msra.mxu0 0.0
        %2110 = vmatpush.xpose.msra.mxu0 0.0
        %2111 = vmatpush.xpose.msra.mxu0 0.0
        %2112 = vmatpush.xpose.msra.mxu0 0.0
        %2113 = vmatpush.xpose.msra.mxu0 0.0
        %2114 = vmatpush.xpose.msra.mxu0 0.0
        %2115 = vmatpush.xpose.msra.mxu0 0.0
        %2116 = vmatpush.xpose.msra.mxu0 0.0
        %2117 = vmatpush.xpose.msra.mxu0 0.0
        %2118 = vmatpush.xpose.msra.mxu0 0.0
        %2119 = vmatpush.xpose.msra.mxu0 0.0
        %2120 = vmatpush.xpose.msra.mxu0 0.0
        %2121 = vmatpush.xpose.msra.mxu0 0.0
        %2122 = vmatpush.xpose.msra.mxu0 %v2105
        %2123 = vmatmul.f32.gmra.mxu0 %v2102
        %v2124 = vpop.f32.mrf.mxu0
        %v2125 = vadd.f32 0.0, %v2124
        %2126 = vdwg.mxu0
        %v2127 = vmul.f32 %v2125, 0.35355338
        %v2128 = vsel %vm1368, %v2127, -inf
        %2129 = vmax.xlane.f32.xlu0 %v2128
        %v2130 = vpop.xlane.xlu0 %2129
        %v2131 = vsub.f32 %v2127, %v2130
        %v2132 = vmul.f32 %v2131, 1.442695
        %v2133 = vpow.pop %v2132
        %v2134 = vsel %vm1368, %v2133, 0.0
        %2135 = vadd.xlane.f32.xlu0 %v2134
        %v2136 = vpop.xlane.xlu0 %2135
        %v2137 = vrcp.pop %v2136
        %v2138 = vmul.f32 %v2133, %v2137
        %2139 = vrot.lane.b32.xlu0 %v2096, 96
        %v2140 = vpop.permute.xlu0 %2139
        %v2143 = vsel %vm1368, %v2138, 0
        %2145 = vmatpush.msra.mxu0 0.0
        %2146 = vmatpush.msra.mxu0 0.0
        %2147 = vmatpush.msra.mxu0 0.0
        %2148 = vmatpush.msra.mxu0 0.0
        %2149 = vmatpush.msra.mxu0 0.0
        %2150 = vmatpush.msra.mxu0 0.0
        %2151 = vmatpush.msra.mxu0 0.0
        %2152 = vmatpush.msra.mxu0 0.0
        %2153 = vmatpush.msra.mxu0 0.0
        %2154 = vmatpush.msra.mxu0 0.0
        %2155 = vmatpush.msra.mxu0 0.0
        %2156 = vmatpush.msra.mxu0 0.0
        %2157 = vmatpush.msra.mxu0 0.0
        %2158 = vmatpush.msra.mxu0 0.0
        %2159 = vmatpush.msra.mxu0 0.0
        %2160 = vmatpush.msra.mxu0 %v2140
        %2161 = vmatmul.f32.gmra.mxu0 %v2143
        %v2162 = vpop.f32.mrf.mxu0
        %v2163 = vadd.f32 0.0, %v2162
        %2164 = vdwg.mxu0
        %2165 = vrot.lane.b32.xlu0 %v2059, 120
        %v2166 = vpop.permute.xlu0 %2165
        %2167 = vrot.lane.b32.xlu0 %v2096, 120
        %v2168 = vpop.permute.xlu0 %2167
        %v2169 = vsel %vm1368, %v2166, 0
        %v2171 = vsel %vm1368, %v2168, 0
        %2173 = vmatpush.xpose.msra.mxu0 0.0
        %2174 = vmatpush.xpose.msra.mxu0 0.0
        %2175 = vmatpush.xpose.msra.mxu0 0.0
        %2176 = vmatpush.xpose.msra.mxu0 0.0
        %2177 = vmatpush.xpose.msra.mxu0 0.0
        %2178 = vmatpush.xpose.msra.mxu0 0.0
        %2179 = vmatpush.xpose.msra.mxu0 0.0
        %2180 = vmatpush.xpose.msra.mxu0 0.0
        %2181 = vmatpush.xpose.msra.mxu0 0.0
        %2182 = vmatpush.xpose.msra.mxu0 0.0
        %2183 = vmatpush.xpose.msra.mxu0 0.0
        %2184 = vmatpush.xpose.msra.mxu0 0.0
        %2185 = vmatpush.xpose.msra.mxu0 0.0
        %2186 = vmatpush.xpose.msra.mxu0 0.0
        %2187 = vmatpush.xpose.msra.mxu0 0.0
        %2188 = vmatpush.xpose.msra.mxu0 %v2171
        %2189 = vmatmul.f32.gmra.mxu0 %v2169
        %v2190 = vpop.f32.mrf.mxu0
        %v2191 = vadd.f32 0.0, %v2190
        %2192 = vdwg.mxu0
        %v2193 = vmul.f32 %v2191, 0.35355338
        %v2194 = vsel %vm1368, %v2193, -inf
        %2195 = vmax.xlane.f32.xlu0 %v2194
        %v2196 = vpop.xlane.xlu0 %2195
        %v2197 = vsub.f32 %v2193, %v2196
        %v2198 = vmul.f32 %v2197, 1.442695
        %v2199 = vpow.pop %v2198
        %v2200 = vsel %vm1368, %v2199, 0.0
        %2201 = vadd.xlane.f32.xlu0 %v2200
        %v2202 = vpop.xlane.xlu0 %2201
        %v2203 = vrcp.pop %v2202
        %v2204 = vmul.f32 %v2199, %v2203
        %2205 = vrot.lane.b32.xlu0 %v2096, 88
        %v2206 = vpop.permute.xlu0 %2205
        %v2209 = vsel %vm1368, %v2204, 0
        %2211 = vmatpush.msra.mxu0 0.0
        %2212 = vmatpush.msra.mxu0 0.0
        %2213 = vmatpush.msra.mxu0 0.0
        %2214 = vmatpush.msra.mxu0 0.0
        %2215 = vmatpush.msra.mxu0 0.0
        %2216 = vmatpush.msra.mxu0 0.0
        %2217 = vmatpush.msra.mxu0 0.0
        %2218 = vmatpush.msra.mxu0 0.0
        %2219 = vmatpush.msra.mxu0 0.0
        %2220 = vmatpush.msra.mxu0 0.0
        %2221 = vmatpush.msra.mxu0 0.0
        %2222 = vmatpush.msra.mxu0 0.0
        %2223 = vmatpush.msra.mxu0 0.0
        %2224 = vmatpush.msra.mxu0 0.0
        %2225 = vmatpush.msra.mxu0 0.0
        %2226 = vmatpush.msra.mxu0 %v2206
        %2227 = vmatmul.f32.gmra.mxu0 %v2209
        %v2228 = vpop.f32.mrf.mxu0
        %v2229 = vadd.f32 0.0, %v2228
        %2230 = vdwg.mxu0
        %2231 = vrot.lane.b32.xlu0 %v2059, 112
        %v2232 = vpop.permute.xlu0 %2231
        %2233 = vrot.lane.b32.xlu0 %v2096, 112
        %v2234 = vpop.permute.xlu0 %2233
        %v2235 = vsel %vm1368, %v2232, 0
        %v2237 = vsel %vm1368, %v2234, 0
        %2239 = vmatpush.xpose.msra.mxu0 0.0
        %2240 = vmatpush.xpose.msra.mxu0 0.0
        %2241 = vmatpush.xpose.msra.mxu0 0.0
        %2242 = vmatpush.xpose.msra.mxu0 0.0
        %2243 = vmatpush.xpose.msra.mxu0 0.0
        %2244 = vmatpush.xpose.msra.mxu0 0.0
        %2245 = vmatpush.xpose.msra.mxu0 0.0
        %2246 = vmatpush.xpose.msra.mxu0 0.0
        %2247 = vmatpush.xpose.msra.mxu0 0.0
        %2248 = vmatpush.xpose.msra.mxu0 0.0
        %2249 = vmatpush.xpose.msra.mxu0 0.0
        %2250 = vmatpush.xpose.msra.mxu0 0.0
        %2251 = vmatpush.xpose.msra.mxu0 0.0
        %2252 = vmatpush.xpose.msra.mxu0 0.0
        %2253 = vmatpush.xpose.msra.mxu0 0.0
        %2254 = vmatpush.xpose.msra.mxu0 %v2237
        %2255 = vmatmul.f32.gmra.mxu0 %v2235
        %v2256 = vpop.f32.mrf.mxu0
        %v2257 = vadd.f32 0.0, %v2256
        %2258 = vdwg.mxu0
        %v2259 = vmul.f32 %v2257, 0.35355338
        %v2260 = vsel %vm1368, %v2259, -inf
        %2261 = vmax.xlane.f32.xlu0 %v2260
        %v2262 = vpop.xlane.xlu0 %2261
        %v2263 = vsub.f32 %v2259, %v2262
        %v2264 = vmul.f32 %v2263, 1.442695
        %v2265 = vpow.pop %v2264
        %v2266 = vsel %vm1368, %v2265, 0.0
        %2267 = vadd.xlane.f32.xlu0 %v2266
        %v2268 = vpop.xlane.xlu0 %2267
        %v2269 = vrcp.pop %v2268
        %v2270 = vmul.f32 %v2265, %v2269
        %2271 = vrot.lane.b32.xlu0 %v2096, 80
        %v2272 = vpop.permute.xlu0 %2271
        %v2275 = vsel %vm1368, %v2270, 0
        %2277 = vmatpush.msra.mxu0 0.0
        %2278 = vmatpush.msra.mxu0 0.0
        %2279 = vmatpush.msra.mxu0 0.0
        %2280 = vmatpush.msra.mxu0 0.0
        %2281 = vmatpush.msra.mxu0 0.0
        %2282 = vmatpush.msra.mxu0 0.0
        %2283 = vmatpush.msra.mxu0 0.0
        %2284 = vmatpush.msra.mxu0 0.0
        %2285 = vmatpush.msra.mxu0 0.0
        %2286 = vmatpush.msra.mxu0 0.0
        %2287 = vmatpush.msra.mxu0 0.0
        %2288 = vmatpush.msra.mxu0 0.0
        %2289 = vmatpush.msra.mxu0 0.0
        %2290 = vmatpush.msra.mxu0 0.0
        %2291 = vmatpush.msra.mxu0 0.0
        %2292 = vmatpush.msra.mxu0 %v2272
        %2293 = vmatmul.f32.gmra.mxu0 %v2275
        %v2294 = vpop.f32.mrf.mxu0
        %v2295 = vadd.f32 0.0, %v2294
        %2296 = vdwg.mxu0
        %2297 = vrot.lane.b32.xlu0 %v2059, 104
        %v2298 = vpop.permute.xlu0 %2297
        %2299 = vrot.lane.b32.xlu0 %v2096, 104
        %v2300 = vpop.permute.xlu0 %2299
        %v2301 = vsel %vm1368, %v2298, 0
        %v2303 = vsel %vm1368, %v2300, 0
        %2305 = vmatpush.xpose.msra.mxu0 0.0
        %2306 = vmatpush.xpose.msra.mxu0 0.0
        %2307 = vmatpush.xpose.msra.mxu0 0.0
        %2308 = vmatpush.xpose.msra.mxu0 0.0
        %2309 = vmatpush.xpose.msra.mxu0 0.0
        %2310 = vmatpush.xpose.msra.mxu0 0.0
        %2311 = vmatpush.xpose.msra.mxu0 0.0
        %2312 = vmatpush.xpose.msra.mxu0 0.0
        %2313 = vmatpush.xpose.msra.mxu0 0.0
        %2314 = vmatpush.xpose.msra.mxu0 0.0
        %2315 = vmatpush.xpose.msra.mxu0 0.0
        %2316 = vmatpush.xpose.msra.mxu0 0.0
        %2317 = vmatpush.xpose.msra.mxu0 0.0
        %2318 = vmatpush.xpose.msra.mxu0 0.0
        %2319 = vmatpush.xpose.msra.mxu0 0.0
        %2320 = vmatpush.xpose.msra.mxu0 %v2303
        %2321 = vmatmul.f32.gmra.mxu0 %v2301
        %v2322 = vpop.f32.mrf.mxu0
        %v2323 = vadd.f32 0.0, %v2322
        %2324 = vdwg.mxu0
        %v2325 = vmul.f32 %v2323, 0.35355338
        %v2326 = vsel %vm1368, %v2325, -inf
        %2327 = vmax.xlane.f32.xlu0 %v2326
        %v2328 = vpop.xlane.xlu0 %2327
        %v2329 = vsub.f32 %v2325, %v2328
        %v2330 = vmul.f32 %v2329, 1.442695
        %v2331 = vpow.pop %v2330
        %v2332 = vsel %vm1368, %v2331, 0.0
        %2333 = vadd.xlane.f32.xlu0 %v2332
        %v2334 = vpop.xlane.xlu0 %2333
        %v2335 = vrcp.pop %v2334
        %v2336 = vmul.f32 %v2331, %v2335
        %2337 = vrot.lane.b32.xlu0 %v2096, 72
        %v2338 = vpop.permute.xlu0 %2337
        %v2341 = vsel %vm1368, %v2336, 0
        %2343 = vmatpush.msra.mxu0 0.0
        %2344 = vmatpush.msra.mxu0 0.0
        %2345 = vmatpush.msra.mxu0 0.0
        %2346 = vmatpush.msra.mxu0 0.0
        %2347 = vmatpush.msra.mxu0 0.0
        %2348 = vmatpush.msra.mxu0 0.0
        %2349 = vmatpush.msra.mxu0 0.0
        %2350 = vmatpush.msra.mxu0 0.0
        %2351 = vmatpush.msra.mxu0 0.0
        %2352 = vmatpush.msra.mxu0 0.0
        %2353 = vmatpush.msra.mxu0 0.0
        %2354 = vmatpush.msra.mxu0 0.0
        %2355 = vmatpush.msra.mxu0 0.0
        %2356 = vmatpush.msra.mxu0 0.0
        %2357 = vmatpush.msra.mxu0 0.0
        %2358 = vmatpush.msra.mxu0 %v2338
        %2359 = vmatmul.f32.gmra.mxu0 %v2341
        %v2360 = vpop.f32.mrf.mxu0
        %v2361 = vadd.f32 0.0, %v2360
        %2362 = vdwg.mxu0
        %2364 = vrot.lane.b32.xlu0 %v2229, 8
        %v2365 = vpop.permute.xlu0 %2364
        %2368 = vrot.lane.b32.xlu0 %v2295, 16
        %v2369 = vpop.permute.xlu0 %2368
        %2372 = vrot.lane.b32.xlu0 %v2361, 24
        %v2373 = vpop.permute.xlu0 %2372
        %v2375 = vsel %vm1368, %v2163, %v2365
        %v2376 = vsel %vm1642, %v2375, %v2369
        %v2377 = vsel %vm1644, %v2376, %v2373
        %v2379 = vsel %vm1368, %v2062, 0
        %v2382 = vsel %vm1368, %v2099, 0
        %2384 = vmatpush.xpose.msra.mxu0 0.0
        %2385 = vmatpush.xpose.msra.mxu0 0.0
        %2386 = vmatpush.xpose.msra.mxu0 0.0
        %2387 = vmatpush.xpose.msra.mxu0 0.0
        %2388 = vmatpush.xpose.msra.mxu0 0.0
        %2389 = vmatpush.xpose.msra.mxu0 0.0
        %2390 = vmatpush.xpose.msra.mxu0 0.0
        %2391 = vmatpush.xpose.msra.mxu0 0.0
        %2392 = vmatpush.xpose.msra.mxu0 0.0
        %2393 = vmatpush.xpose.msra.mxu0 0.0
        %2394 = vmatpush.xpose.msra.mxu0 0.0
        %2395 = vmatpush.xpose.msra.mxu0 0.0
        %2396 = vmatpush.xpose.msra.mxu0 0.0
        %2397 = vmatpush.xpose.msra.mxu0 0.0
        %2398 = vmatpush.xpose.msra.mxu0 0.0
        %2399 = vmatpush.xpose.msra.mxu0 %v2382
        %2400 = vmatmul.f32.gmra.mxu0 %v2379
        %v2401 = vpop.f32.mrf.mxu0
        %v2402 = vadd.f32 0.0, %v2401
        %2403 = vdwg.mxu0
        %v2404 = vmul.f32 %v2402, 0.35355338
        %v2405 = vsel %vm1368, %v2404, -inf
        %2406 = vmax.xlane.f32.xlu0 %v2405
        %v2407 = vpop.xlane.xlu0 %2406
        %v2408 = vsub.f32 %v2404, %v2407
        %v2409 = vmul.f32 %v2408, 1.442695
        %v2410 = vpow.pop %v2409
        %v2411 = vsel %vm1368, %v2410, 0.0
        %2412 = vadd.xlane.f32.xlu0 %v2411
        %v2413 = vpop.xlane.xlu0 %2412
        %v2414 = vrcp.pop %v2413
        %v2415 = vmul.f32 %v2410, %v2414
        %2416 = vrot.lane.b32.xlu0 %v2099, 96
        %v2417 = vpop.permute.xlu0 %2416
        %v2420 = vsel %vm1368, %v2415, 0
        %2422 = vmatpush.msra.mxu0 0.0
        %2423 = vmatpush.msra.mxu0 0.0
        %2424 = vmatpush.msra.mxu0 0.0
        %2425 = vmatpush.msra.mxu0 0.0
        %2426 = vmatpush.msra.mxu0 0.0
        %2427 = vmatpush.msra.mxu0 0.0
        %2428 = vmatpush.msra.mxu0 0.0
        %2429 = vmatpush.msra.mxu0 0.0
        %2430 = vmatpush.msra.mxu0 0.0
        %2431 = vmatpush.msra.mxu0 0.0
        %2432 = vmatpush.msra.mxu0 0.0
        %2433 = vmatpush.msra.mxu0 0.0
        %2434 = vmatpush.msra.mxu0 0.0
        %2435 = vmatpush.msra.mxu0 0.0
        %2436 = vmatpush.msra.mxu0 0.0
        %2437 = vmatpush.msra.mxu0 %v2417
        %2438 = vmatmul.f32.gmra.mxu0 %v2420
        %v2439 = vpop.f32.mrf.mxu0
        %v2440 = vadd.f32 0.0, %v2439
        %2441 = vdwg.mxu0
        %2442 = vrot.lane.b32.xlu0 %v2062, 120
        %v2443 = vpop.permute.xlu0 %2442
        %2444 = vrot.lane.b32.xlu0 %v2099, 120
        %v2445 = vpop.permute.xlu0 %2444
        %v2446 = vsel %vm1368, %v2443, 0
        %v2448 = vsel %vm1368, %v2445, 0
        %2450 = vmatpush.xpose.msra.mxu0 0.0
        %2451 = vmatpush.xpose.msra.mxu0 0.0
        %2452 = vmatpush.xpose.msra.mxu0 0.0
        %2453 = vmatpush.xpose.msra.mxu0 0.0
        %2454 = vmatpush.xpose.msra.mxu0 0.0
        %2455 = vmatpush.xpose.msra.mxu0 0.0
        %2456 = vmatpush.xpose.msra.mxu0 0.0
        %2457 = vmatpush.xpose.msra.mxu0 0.0
        %2458 = vmatpush.xpose.msra.mxu0 0.0
        %2459 = vmatpush.xpose.msra.mxu0 0.0
        %2460 = vmatpush.xpose.msra.mxu0 0.0
        %2461 = vmatpush.xpose.msra.mxu0 0.0
        %2462 = vmatpush.xpose.msra.mxu0 0.0
        %2463 = vmatpush.xpose.msra.mxu0 0.0
        %2464 = vmatpush.xpose.msra.mxu0 0.0
        %2465 = vmatpush.xpose.msra.mxu0 %v2448
        %2466 = vmatmul.f32.gmra.mxu0 %v2446
        %v2467 = vpop.f32.mrf.mxu0
        %v2468 = vadd.f32 0.0, %v2467
        %2469 = vdwg.mxu0
        %v2470 = vmul.f32 %v2468, 0.35355338
        %v2471 = vsel %vm1368, %v2470, -inf
        %2472 = vmax.xlane.f32.xlu0 %v2471
        %v2473 = vpop.xlane.xlu0 %2472
        %v2474 = vsub.f32 %v2470, %v2473
        %v2475 = vmul.f32 %v2474, 1.442695
        %v2476 = vpow.pop %v2475
        %v2477 = vsel %vm1368, %v2476, 0.0
        %2478 = vadd.xlane.f32.xlu0 %v2477
        %v2479 = vpop.xlane.xlu0 %2478
        %v2480 = vrcp.pop %v2479
        %v2481 = vmul.f32 %v2476, %v2480
        %2482 = vrot.lane.b32.xlu0 %v2099, 88
        %v2483 = vpop.permute.xlu0 %2482
        %v2486 = vsel %vm1368, %v2481, 0
        %2488 = vmatpush.msra.mxu0 0.0
        %2489 = vmatpush.msra.mxu0 0.0
        %2490 = vmatpush.msra.mxu0 0.0
        %2491 = vmatpush.msra.mxu0 0.0
        %2492 = vmatpush.msra.mxu0 0.0
        %2493 = vmatpush.msra.mxu0 0.0
        %2494 = vmatpush.msra.mxu0 0.0
        %2495 = vmatpush.msra.mxu0 0.0
        %2496 = vmatpush.msra.mxu0 0.0
        %2497 = vmatpush.msra.mxu0 0.0
        %2498 = vmatpush.msra.mxu0 0.0
        %2499 = vmatpush.msra.mxu0 0.0
        %2500 = vmatpush.msra.mxu0 0.0
        %2501 = vmatpush.msra.mxu0 0.0
        %2502 = vmatpush.msra.mxu0 0.0
        %2503 = vmatpush.msra.mxu0 %v2483
        %2504 = vmatmul.f32.gmra.mxu0 %v2486
        %v2505 = vpop.f32.mrf.mxu0
        %v2506 = vadd.f32 0.0, %v2505
        %2507 = vdwg.mxu0
        %2508 = vrot.lane.b32.xlu0 %v2062, 112
        %v2509 = vpop.permute.xlu0 %2508
        %2510 = vrot.lane.b32.xlu0 %v2099, 112
        %v2511 = vpop.permute.xlu0 %2510
        %v2512 = vsel %vm1368, %v2509, 0
        %v2514 = vsel %vm1368, %v2511, 0
        %2516 = vmatpush.xpose.msra.mxu0 0.0
        %2517 = vmatpush.xpose.msra.mxu0 0.0
        %2518 = vmatpush.xpose.msra.mxu0 0.0
        %2519 = vmatpush.xpose.msra.mxu0 0.0
        %2520 = vmatpush.xpose.msra.mxu0 0.0
        %2521 = vmatpush.xpose.msra.mxu0 0.0
        %2522 = vmatpush.xpose.msra.mxu0 0.0
        %2523 = vmatpush.xpose.msra.mxu0 0.0
        %2524 = vmatpush.xpose.msra.mxu0 0.0
        %2525 = vmatpush.xpose.msra.mxu0 0.0
        %2526 = vmatpush.xpose.msra.mxu0 0.0
        %2527 = vmatpush.xpose.msra.mxu0 0.0
        %2528 = vmatpush.xpose.msra.mxu0 0.0
        %2529 = vmatpush.xpose.msra.mxu0 0.0
        %2530 = vmatpush.xpose.msra.mxu0 0.0
        %2531 = vmatpush.xpose.msra.mxu0 %v2514
        %2532 = vmatmul.f32.gmra.mxu0 %v2512
        %v2533 = vpop.f32.mrf.mxu0
        %v2534 = vadd.f32 0.0, %v2533
        %2535 = vdwg.mxu0
        %v2536 = vmul.f32 %v2534, 0.35355338
        %v2537 = vsel %vm1368, %v2536, -inf
        %2538 = vmax.xlane.f32.xlu0 %v2537
        %v2539 = vpop.xlane.xlu0 %2538
        %v2540 = vsub.f32 %v2536, %v2539
        %v2541 = vmul.f32 %v2540, 1.442695
        %v2542 = vpow.pop %v2541
        %v2543 = vsel %vm1368, %v2542, 0.0
        %2544 = vadd.xlane.f32.xlu0 %v2543
        %v2545 = vpop.xlane.xlu0 %2544
        %v2546 = vrcp.pop %v2545
        %v2547 = vmul.f32 %v2542, %v2546
        %2548 = vrot.lane.b32.xlu0 %v2099, 80
        %v2549 = vpop.permute.xlu0 %2548
        %v2552 = vsel %vm1368, %v2547, 0
        %2554 = vmatpush.msra.mxu0 0.0
        %2555 = vmatpush.msra.mxu0 0.0
        %2556 = vmatpush.msra.mxu0 0.0
        %2557 = vmatpush.msra.mxu0 0.0
        %2558 = vmatpush.msra.mxu0 0.0
        %2559 = vmatpush.msra.mxu0 0.0
        %2560 = vmatpush.msra.mxu0 0.0
        %2561 = vmatpush.msra.mxu0 0.0
        %2562 = vmatpush.msra.mxu0 0.0
        %2563 = vmatpush.msra.mxu0 0.0
        %2564 = vmatpush.msra.mxu0 0.0
        %2565 = vmatpush.msra.mxu0 0.0
        %2566 = vmatpush.msra.mxu0 0.0
        %2567 = vmatpush.msra.mxu0 0.0
        %2568 = vmatpush.msra.mxu0 0.0
        %2569 = vmatpush.msra.mxu0 %v2549
        %2570 = vmatmul.f32.gmra.mxu0 %v2552
        %v2571 = vpop.f32.mrf.mxu0
        %v2572 = vadd.f32 0.0, %v2571
        %2573 = vdwg.mxu0
        %2574 = vrot.lane.b32.xlu0 %v2062, 104
        %v2575 = vpop.permute.xlu0 %2574
        %2576 = vrot.lane.b32.xlu0 %v2099, 104
        %v2577 = vpop.permute.xlu0 %2576
        %v2578 = vsel %vm1368, %v2575, 0
        %v2580 = vsel %vm1368, %v2577, 0
        %2582 = vmatpush.xpose.msra.mxu0 0.0
        %2583 = vmatpush.xpose.msra.mxu0 0.0
        %2584 = vmatpush.xpose.msra.mxu0 0.0
        %2585 = vmatpush.xpose.msra.mxu0 0.0
        %2586 = vmatpush.xpose.msra.mxu0 0.0
        %2587 = vmatpush.xpose.msra.mxu0 0.0
        %2588 = vmatpush.xpose.msra.mxu0 0.0
        %2589 = vmatpush.xpose.msra.mxu0 0.0
        %2590 = vmatpush.xpose.msra.mxu0 0.0
        %2591 = vmatpush.xpose.msra.mxu0 0.0
        %2592 = vmatpush.xpose.msra.mxu0 0.0
        %2593 = vmatpush.xpose.msra.mxu0 0.0
        %2594 = vmatpush.xpose.msra.mxu0 0.0
        %2595 = vmatpush.xpose.msra.mxu0 0.0
        %2596 = vmatpush.xpose.msra.mxu0 0.0
        %2597 = vmatpush.xpose.msra.mxu0 %v2580
        %2598 = vmatmul.f32.gmra.mxu0 %v2578
        %v2599 = vpop.f32.mrf.mxu0
        %v2600 = vadd.f32 0.0, %v2599
        %2601 = vdwg.mxu0
        %v2602 = vmul.f32 %v2600, 0.35355338
        %v2603 = vsel %vm1368, %v2602, -inf
        %2604 = vmax.xlane.f32.xlu0 %v2603
        %v2605 = vpop.xlane.xlu0 %2604
        %v2606 = vsub.f32 %v2602, %v2605
        %v2607 = vmul.f32 %v2606, 1.442695
        %v2608 = vpow.pop %v2607
        %v2609 = vsel %vm1368, %v2608, 0.0
        %2610 = vadd.xlane.f32.xlu0 %v2609
        %v2611 = vpop.xlane.xlu0 %2610
        %v2612 = vrcp.pop %v2611
        %v2613 = vmul.f32 %v2608, %v2612
        %2614 = vrot.lane.b32.xlu0 %v2099, 72
        %v2615 = vpop.permute.xlu0 %2614
        %v2618 = vsel %vm1368, %v2613, 0
        %2620 = vmatpush.msra.mxu0 0.0
        %2621 = vmatpush.msra.mxu0 0.0
        %2622 = vmatpush.msra.mxu0 0.0
        %2623 = vmatpush.msra.mxu0 0.0
        %2624 = vmatpush.msra.mxu0 0.0
        %2625 = vmatpush.msra.mxu0 0.0
        %2626 = vmatpush.msra.mxu0 0.0
        %2627 = vmatpush.msra.mxu0 0.0
        %2628 = vmatpush.msra.mxu0 0.0
        %2629 = vmatpush.msra.mxu0 0.0
        %2630 = vmatpush.msra.mxu0 0.0
        %2631 = vmatpush.msra.mxu0 0.0
        %2632 = vmatpush.msra.mxu0 0.0
        %2633 = vmatpush.msra.mxu0 0.0
        %2634 = vmatpush.msra.mxu0 0.0
        %2635 = vmatpush.msra.mxu0 %v2615
        %2636 = vmatmul.f32.gmra.mxu0 %v2618
        %v2637 = vpop.f32.mrf.mxu0
        %v2638 = vadd.f32 0.0, %v2637
        %2639 = vdwg.mxu0
        %2641 = vrot.lane.b32.xlu0 %v2506, 8
        %v2642 = vpop.permute.xlu0 %2641
        %2645 = vrot.lane.b32.xlu0 %v2572, 16
        %v2646 = vpop.permute.xlu0 %2645
        %2649 = vrot.lane.b32.xlu0 %v2638, 24
        %v2650 = vpop.permute.xlu0 %2649
        %v2652 = vsel %vm1368, %v2440, %v2642
        %v2653 = vsel %vm1642, %v2652, %v2646
        %v2654 = vsel %vm1644, %v2653, %v2650
        %v2655 = vld [vmem:[%s1045] sm:$0xff]
        %v2656 = vld [vmem:[%s1045 + $0x8] sm:$0xff]
        %v2657 = vld [vmem:[%s1045 + $0x10] sm:$0xff]
        %v2658 = vld [vmem:[%s1045 + $0x18] sm:$0xff]
        %v2660 = vsel %vm1260, %v2377, 0
        %v2663 = vsel %vm1260, %v2654, 0
        %2665 = vmatpush.msra.mxu0 0.0
        %2666 = vmatpush.msra.mxu0 0.0
        %2667 = vmatpush.msra.mxu0 0.0
        %2668 = vmatpush.msra.mxu0 0.0
        %2669 = vmatpush.msra.mxu0 0.0
        %2670 = vmatpush.msra.mxu0 0.0
        %2671 = vmatpush.msra.mxu0 0.0
        %2672 = vmatpush.msra.mxu0 0.0
        %2673 = vmatpush.msra.mxu0 0.0
        %2674 = vmatpush.msra.mxu0 0.0
        %2675 = vmatpush.msra.mxu0 0.0
        %2676 = vmatpush.msra.mxu0 0.0
        %2677 = vmatpush.msra.mxu0 %v2658
        %2678 = vmatpush.msra.mxu0 %v2657
        %2679 = vmatpush.msra.mxu0 %v2656
        %2680 = vmatpush.msra.mxu0 %v2655
        %2681 = vmatmul.f32.gmra.mxu0 %v2660
        %v2682 = vpop.f32.mrf.mxu0
        %v2683 = vadd.f32 0.0, %v2682
        %2684 = vmatmul.f32.gmra.mxu0 %v2663
        %v2685 = vpop.f32.mrf.mxu0
        %v2686 = vadd.f32 0.0, %v2685
        %2687 = vdwg.mxu0
        %v2688 = vadd.f32 %v1963, %v2683
        %v2689 = vadd.f32 %v1964, %v2686
        %v2690 = vld [vmem:[%s1231] sm:$0x1]
        %v2692 = vperm.slane %v2690, 0
        %v2694 = vadd.f32 %v2688, %v2692
        %v2695 = vadd.f32 %v2689, %v2692
        %v2696 = vld [vmem:[%s1234] sm:$0x1]
        %v2697 = vld [vmem:[%s1237] sm:$0x1]
        %v2698 = vsel %vm1260, %v2694, 0.0
        %2699 = vadd.xlane.f32.xlu0 %v2698
        %v2700 = vpop.xlane.xlu0 %2699
        %v2701 = vsel %vm1260, %v2695, 0.0
        %2702 = vadd.xlane.f32.xlu0 %v2701
        %v2703 = vpop.xlane.xlu0 %2702
        %v2704 = vmul.f32 %v2700, %v1273
        %v2705 = vmul.f32 %v2703, %v1273
        %v2706 = vsub.f32 %v2694, %v2704
        %v2707 = vsub.f32 %v2695, %v2705
        %v2708 = vmul.f32 %v2706, %v2706
        %v2709 = vmul.f32 %v2707, %v2707
        %v2710 = vsel %vm1260, %v2708, 0.0
        %2711 = vadd.xlane.f32.xlu0 %v2710
        %v2712 = vpop.xlane.xlu0 %2711
        %v2713 = vsel %vm1260, %v2709, 0.0
        %2714 = vadd.xlane.f32.xlu0 %v2713
        %v2715 = vpop.xlane.xlu0 %2714
        %v2716 = vmul.f32 %v2712, 0.032258064
        %v2717 = vmul.f32 %v2715, 0.032258064
        %v2718 = vrsqrt.pop %v2716
        %v2719 = vmul.f32 %v2718, %v2716
        %v2720 = vmul.f32 %v2719, %v2718
        %v2721 = vmul.f32 0.5, %v2720
        %v2722 = vsub.f32 1.5, %v2721
        %v2723 = vmul.f32 %v2718, %v2722
        %v2724 = vmul.f32 %v2716, %v2723
        %vm2725 = vcmp.eq.f32.partialorder %v2716, inf
        %v2726 = vsel %vm2725, %v2716, %v2724
        %vm2727 = vcmp.eq.f32.partialorder %v2716, 0.0
        %v2728 = vand.u32 %v2716, 2147483648
        %v2729 = vsel %vm2727, %v2728, %v2726
        %v2730 = vrsqrt.pop %v2717
        %v2731 = vmul.f32 %v2730, %v2717
        %v2732 = vmul.f32 %v2731, %v2730
        %v2733 = vmul.f32 0.5, %v2732
        %v2734 = vsub.f32 1.5, %v2733
        %v2735 = vmul.f32 %v2730, %v2734
        %v2736 = vmul.f32 %v2717, %v2735
        %vm2737 = vcmp.eq.f32.partialorder %v2717, inf
        %v2738 = vsel %vm2737, %v2717, %v2736
        %vm2739 = vcmp.eq.f32.partialorder %v2717, 0.0
        %v2740 = vand.u32 %v2717, 2147483648
        %v2741 = vsel %vm2739, %v2740, %v2738
        %v2742 = vadd.f32 %v2729, 1e-06
        %v2743 = vadd.f32 %v2741, 1e-06
        %v2744 = vrcp.pop %v2742
        %v2745 = vrcp.pop %v2743
        %v2747 = vperm.slane %v2696, 0
        %v2749 = vmul.f32 %v2747, %v2706
        %v2750 = vmul.f32 %v2747, %v2707
        %v2751 = vmul.f32 %v2749, %v2744
        %v2752 = vmul.f32 %v2750, %v2745
        %v2754 = vperm.slane %v2697, 0
        %v2756 = vadd.f32 %v2751, %v2754
        %v2757 = vadd.f32 %v2752, %v2754
        %v2758 = vld [vmem:[%s1055] sm:$0xff]
        %v2759 = vld [vmem:[%s1055 + $0x8] sm:$0xff]
        %v2760 = vld [vmem:[%s1055 + $0x10] sm:$0xff]
        %v2761 = vld [vmem:[%s1055 + $0x18] sm:$0xff]
        %v2762 = vld [vmem:[%s1055 + $0x20] sm:$0xff]
        %v2763 = vld [vmem:[%s1055 + $0x28] sm:$0xff]
        %v2764 = vld [vmem:[%s1055 + $0x30] sm:$0xff]
        %v2765 = vld [vmem:[%s1055 + $0x38] sm:$0xff]
        %v2766 = vld [vmem:[%s1055 + $0x40] sm:$0xff]
        %v2767 = vld [vmem:[%s1055 + $0x48] sm:$0xff]
        %v2768 = vld [vmem:[%s1055 + $0x50] sm:$0xff]
        %v2769 = vld [vmem:[%s1055 + $0x58] sm:$0xff]
        %v2770 = vld [vmem:[%s1055 + $0x60] sm:$0xff]
        %v2771 = vld [vmem:[%s1055 + $0x68] sm:$0xff]
        %v2772 = vld [vmem:[%s1055 + $0x70] sm:$0xff]
        %v2773 = vld [vmem:[%s1055 + $0x78] sm:$0xff]
        %v2774 = vld [vmem:[%s1055 + $0x80] sm:$0xff]
        %v2775 = vld [vmem:[%s1055 + $0x88] sm:$0xff]
        %v2776 = vld [vmem:[%s1055 + $0x90] sm:$0xff]
        %v2777 = vld [vmem:[%s1055 + $0x98] sm:$0xff]
        %v2778 = vld [vmem:[%s1055 + $0xa0] sm:$0xff]
        %v2779 = vld [vmem:[%s1055 + $0xa8] sm:$0xff]
        %v2780 = vld [vmem:[%s1055 + $0xb0] sm:$0xff]
        %v2781 = vld [vmem:[%s1055 + $0xb8] sm:$0xff]
        %v2782 = vld [vmem:[%s1055 + $0xc0] sm:$0xff]
        %v2783 = vld [vmem:[%s1055 + $0xc8] sm:$0xff]
        %v2784 = vld [vmem:[%s1055 + $0xd0] sm:$0xff]
        %v2785 = vld [vmem:[%s1055 + $0xd8] sm:$0xff]
        %v2786 = vld [vmem:[%s1055 + $0xe0] sm:$0xff]
        %v2787 = vld [vmem:[%s1055 + $0xe8] sm:$0xff]
        %v2788 = vld [vmem:[%s1055 + $0xf0] sm:$0xff]
        %v2789 = vld [vmem:[%s1055 + $0xf8] sm:$0xff]
        %v2790 = vld [vmem:[%s1055 + $0x100] sm:$0xff]
        %v2791 = vld [vmem:[%s1055 + $0x108] sm:$0xff]
        %v2792 = vld [vmem:[%s1055 + $0x110] sm:$0xff]
        %v2793 = vld [vmem:[%s1055 + $0x118] sm:$0xff]
        %v2794 = vld [vmem:[%s1055 + $0x120] sm:$0xff]
        %v2795 = vld [vmem:[%s1055 + $0x128] sm:$0xff]
        %v2796 = vld [vmem:[%s1055 + $0x130] sm:$0xff]
        %v2797 = vld [vmem:[%s1055 + $0x138] sm:$0xff]
        %v2798 = vld [vmem:[%s1055 + $0x140] sm:$0xff]
        %v2799 = vld [vmem:[%s1055 + $0x148] sm:$0xff]
        %v2800 = vld [vmem:[%s1055 + $0x150] sm:$0xff]
        %v2801 = vld [vmem:[%s1055 + $0x158] sm:$0xff]
        %v2802 = vld [vmem:[%s1055 + $0x160] sm:$0xff]
        %v2803 = vld [vmem:[%s1055 + $0x168] sm:$0xff]
        %v2804 = vld [vmem:[%s1055 + $0x170] sm:$0xff]
        %v2805 = vld [vmem:[%s1055 + $0x178] sm:$0xff]
        %v2806 = vld [vmem:[%s1055 + $0x180] sm:$0xff]
        %v2807 = vld [vmem:[%s1055 + $0x188] sm:$0xff]
        %v2808 = vld [vmem:[%s1055 + $0x190] sm:$0xff]
        %v2809 = vld [vmem:[%s1055 + $0x198] sm:$0xff]
        %v2810 = vld [vmem:[%s1055 + $0x1a0] sm:$0xff]
        %v2811 = vld [vmem:[%s1055 + $0x1a8] sm:$0xff]
        %v2812 = vld [vmem:[%s1055 + $0x1b0] sm:$0xff]
        %v2813 = vld [vmem:[%s1055 + $0x1b8] sm:$0xff]
        %v2814 = vld [vmem:[%s1055 + $0x1c0] sm:$0xff]
        %v2815 = vld [vmem:[%s1055 + $0x1c8] sm:$0xff]
        %v2816 = vld [vmem:[%s1055 + $0x1d0] sm:$0xff]
        %v2817 = vld [vmem:[%s1055 + $0x1d8] sm:$0xff]
        %v2818 = vld [vmem:[%s1055 + $0x1e0] sm:$0xff]
        %v2819 = vld [vmem:[%s1055 + $0x1e8] sm:$0xff]
        %v2820 = vld [vmem:[%s1055 + $0x1f0] sm:$0xff]
        %v2821 = vld [vmem:[%s1055 + $0x1f8] sm:$0xff]
        %v2822 = vld [vmem:[%s1241] sm:$0xff]
        %v2823 = vld [vmem:[%s1241 + $0x8] sm:$0xff]
        %v2826 = vperm.slane %v2822, 0
        %v2827 = vperm.slane %v2822, 1
        %v2828 = vperm.slane %v2822, 2
        %v2829 = vperm.slane %v2822, 3
        %v2830 = vperm.slane %v2822, 4
        %v2831 = vperm.slane %v2822, 5
        %v2832 = vperm.slane %v2822, 6
        %v2833 = vperm.slane %v2822, 7
        %v2834 = vperm.slane %v2823, 0
        %v2835 = vperm.slane %v2823, 1
        %v2836 = vperm.slane %v2823, 2
        %v2837 = vperm.slane %v2823, 3
        %v2838 = vperm.slane %v2823, 4
        %v2839 = vperm.slane %v2823, 5
        %v2840 = vperm.slane %v2823, 6
        %v2841 = vperm.slane %v2823, 7
        %v2859 = vsel %vm1260, %v2756, 0
        %v2862 = vsel %vm1260, %v2757, 0
        %2864 = vmatpush.msra.mxu0 0.0
        %2865 = vmatpush.msra.mxu0 0.0
        %2866 = vmatpush.msra.mxu0 0.0
        %2867 = vmatpush.msra.mxu0 0.0
        %2868 = vmatpush.msra.mxu0 0.0
        %2869 = vmatpush.msra.mxu0 0.0
        %2870 = vmatpush.msra.mxu0 0.0
        %2871 = vmatpush.msra.mxu0 0.0
        %2872 = vmatpush.msra.mxu0 0.0
        %2873 = vmatpush.msra.mxu0 0.0
        %2874 = vmatpush.msra.mxu0 0.0
        %2875 = vmatpush.msra.mxu0 0.0
        %2876 = vmatpush.msra.mxu0 %v2806
        %2877 = vmatpush.msra.mxu0 %v2790
        %2878 = vmatpush.msra.mxu0 %v2774
        %2879 = vmatpush.msra.mxu0 %v2758
        %2880 = vmatmul.f32.gmra.mxu0 %v2859
        %v2881 = vpop.f32.mrf.mxu0
        %v2882 = vadd.f32 %v2826, %v2881
        %2883 = vmatmul.f32.gmra.mxu0 %v2862
        %v2884 = vpop.f32.mrf.mxu0
        %v2885 = vadd.f32 %v2826, %v2884
        %2886 = vdwg.mxu0
        %2887 = vmatpush.msra.mxu0 0.0
        %2888 = vmatpush.msra.mxu0 0.0
        %2889 = vmatpush.msra.mxu0 0.0
        %2890 = vmatpush.msra.mxu0 0.0
        %2891 = vmatpush.msra.mxu0 0.0
        %2892 = vmatpush.msra.mxu0 0.0
        %2893 = vmatpush.msra.mxu0 0.0
        %2894 = vmatpush.msra.mxu0 0.0
        %2895 = vmatpush.msra.mxu0 0.0
        %2896 = vmatpush.msra.mxu0 0.0
        %2897 = vmatpush.msra.mxu0 0.0
        %2898 = vmatpush.msra.mxu0 0.0
        %2899 = vmatpush.msra.mxu0 %v2807
        %2900 = vmatpush.msra.mxu0 %v2791
        %2901 = vmatpush.msra.mxu0 %v2775
        %2902 = vmatpush.msra.mxu0 %v2759
        %2903 = vmatmul.f32.gmra.mxu0 %v2859
        %v2904 = vpop.f32.mrf.mxu0
        %v2905 = vadd.f32 %v2827, %v2904
        %2906 = vmatmul.f32.gmra.mxu0 %v2862
        %v2907 = vpop.f32.mrf.mxu0
        %v2908 = vadd.f32 %v2827, %v2907
        %2909 = vdwg.mxu0
        %2910 = vmatpush.msra.mxu0 0.0
        %2911 = vmatpush.msra.mxu0 0.0
        %2912 = vmatpush.msra.mxu0 0.0
        %2913 = vmatpush.msra.mxu0 0.0
        %2914 = vmatpush.msra.mxu0 0.0
        %2915 = vmatpush.msra.mxu0 0.0
        %2916 = vmatpush.msra.mxu0 0.0
        %2917 = vmatpush.msra.mxu0 0.0
        %2918 = vmatpush.msra.mxu0 0.0
        %2919 = vmatpush.msra.mxu0 0.0
        %2920 = vmatpush.msra.mxu0 0.0
        %2921 = vmatpush.msra.mxu0 0.0
        %2922 = vmatpush.msra.mxu0 %v2808
        %2923 = vmatpush.msra.mxu0 %v2792
        %2924 = vmatpush.msra.mxu0 %v2776
        %2925 = vmatpush.msra.mxu0 %v2760
        %2926 = vmatmul.f32.gmra.mxu0 %v2859
        %v2927 = vpop.f32.mrf.mxu0
        %v2928 = vadd.f32 %v2828, %v2927
        %2929 = vmatmul.f32.gmra.mxu0 %v2862
        %v2930 = vpop.f32.mrf.mxu0
        %v2931 = vadd.f32 %v2828, %v2930
        %2932 = vdwg.mxu0
        %2933 = vmatpush.msra.mxu0 0.0
        %2934 = vmatpush.msra.mxu0 0.0
        %2935 = vmatpush.msra.mxu0 0.0
        %2936 = vmatpush.msra.mxu0 0.0
        %2937 = vmatpush.msra.mxu0 0.0
        %2938 = vmatpush.msra.mxu0 0.0
        %2939 = vmatpush.msra.mxu0 0.0
        %2940 = vmatpush.msra.mxu0 0.0
        %2941 = vmatpush.msra.mxu0 0.0
        %2942 = vmatpush.msra.mxu0 0.0
        %2943 = vmatpush.msra.mxu0 0.0
        %2944 = vmatpush.msra.mxu0 0.0
        %2945 = vmatpush.msra.mxu0 %v2809
        %2946 = vmatpush.msra.mxu0 %v2793
        %2947 = vmatpush.msra.mxu0 %v2777
        %2948 = vmatpush.msra.mxu0 %v2761
        %2949 = vmatmul.f32.gmra.mxu0 %v2859
        %v2950 = vpop.f32.mrf.mxu0
        %v2951 = vadd.f32 %v2829, %v2950
        %2952 = vmatmul.f32.gmra.mxu0 %v2862
        %v2953 = vpop.f32.mrf.mxu0
        %v2954 = vadd.f32 %v2829, %v2953
        %2955 = vdwg.mxu0
        %2956 = vmatpush.msra.mxu0 0.0
        %2957 = vmatpush.msra.mxu0 0.0
        %2958 = vmatpush.msra.mxu0 0.0
        %2959 = vmatpush.msra.mxu0 0.0
        %2960 = vmatpush.msra.mxu0 0.0
        %2961 = vmatpush.msra.mxu0 0.0
        %2962 = vmatpush.msra.mxu0 0.0
        %2963 = vmatpush.msra.mxu0 0.0
        %2964 = vmatpush.msra.mxu0 0.0
        %2965 = vmatpush.msra.mxu0 0.0
        %2966 = vmatpush.msra.mxu0 0.0
        %2967 = vmatpush.msra.mxu0 0.0
        %2968 = vmatpush.msra.mxu0 %v2810
        %2969 = vmatpush.msra.mxu0 %v2794
        %2970 = vmatpush.msra.mxu0 %v2778
        %2971 = vmatpush.msra.mxu0 %v2762
        %2972 = vmatmul.f32.gmra.mxu0 %v2859
        %v2973 = vpop.f32.mrf.mxu0
        %v2974 = vadd.f32 %v2830, %v2973
        %2975 = vmatmul.f32.gmra.mxu0 %v2862
        %v2976 = vpop.f32.mrf.mxu0
        %v2977 = vadd.f32 %v2830, %v2976
        %2978 = vdwg.mxu0
        %2979 = vmatpush.msra.mxu0 0.0
        %2980 = vmatpush.msra.mxu0 0.0
        %2981 = vmatpush.msra.mxu0 0.0
        %2982 = vmatpush.msra.mxu0 0.0
        %2983 = vmatpush.msra.mxu0 0.0
        %2984 = vmatpush.msra.mxu0 0.0
        %2985 = vmatpush.msra.mxu0 0.0
        %2986 = vmatpush.msra.mxu0 0.0
        %2987 = vmatpush.msra.mxu0 0.0
        %2988 = vmatpush.msra.mxu0 0.0
        %2989 = vmatpush.msra.mxu0 0.0
        %2990 = vmatpush.msra.mxu0 0.0
        %2991 = vmatpush.msra.mxu0 %v2811
        %2992 = vmatpush.msra.mxu0 %v2795
        %2993 = vmatpush.msra.mxu0 %v2779
        %2994 = vmatpush.msra.mxu0 %v2763
        %2995 = vmatmul.f32.gmra.mxu0 %v2859
        %v2996 = vpop.f32.mrf.mxu0
        %v2997 = vadd.f32 %v2831, %v2996
        %2998 = vmatmul.f32.gmra.mxu0 %v2862
        %v2999 = vpop.f32.mrf.mxu0
        %v3000 = vadd.f32 %v2831, %v2999
        %3001 = vdwg.mxu0
        %3002 = vmatpush.msra.mxu0 0.0
        %3003 = vmatpush.msra.mxu0 0.0
        %3004 = vmatpush.msra.mxu0 0.0
        %3005 = vmatpush.msra.mxu0 0.0
        %3006 = vmatpush.msra.mxu0 0.0
        %3007 = vmatpush.msra.mxu0 0.0
        %3008 = vmatpush.msra.mxu0 0.0
        %3009 = vmatpush.msra.mxu0 0.0
        %3010 = vmatpush.msra.mxu0 0.0
        %3011 = vmatpush.msra.mxu0 0.0
        %3012 = vmatpush.msra.mxu0 0.0
        %3013 = vmatpush.msra.mxu0 0.0
        %3014 = vmatpush.msra.mxu0 %v2812
        %3015 = vmatpush.msra.mxu0 %v2796
        %3016 = vmatpush.msra.mxu0 %v2780
        %3017 = vmatpush.msra.mxu0 %v2764
        %3018 = vmatmul.f32.gmra.mxu0 %v2859
        %v3019 = vpop.f32.mrf.mxu0
        %v3020 = vadd.f32 %v2832, %v3019
        %3021 = vmatmul.f32.gmra.mxu0 %v2862
        %v3022 = vpop.f32.mrf.mxu0
        %v3023 = vadd.f32 %v2832, %v3022
        %3024 = vdwg.mxu0
        %3025 = vmatpush.msra.mxu0 0.0
        %3026 = vmatpush.msra.mxu0 0.0
        %3027 = vmatpush.msra.mxu0 0.0
        %3028 = vmatpush.msra.mxu0 0.0
        %3029 = vmatpush.msra.mxu0 0.0
        %3030 = vmatpush.msra.mxu0 0.0
        %3031 = vmatpush.msra.mxu0 0.0
        %3032 = vmatpush.msra.mxu0 0.0
        %3033 = vmatpush.msra.mxu0 0.0
        %3034 = vmatpush.msra.mxu0 0.0
        %3035 = vmatpush.msra.mxu0 0.0
        %3036 = vmatpush.msra.mxu0 0.0
        %3037 = vmatpush.msra.mxu0 %v2813
        %3038 = vmatpush.msra.mxu0 %v2797
        %3039 = vmatpush.msra.mxu0 %v2781
        %3040 = vmatpush.msra.mxu0 %v2765
        %3041 = vmatmul.f32.gmra.mxu0 %v2859
        %v3042 = vpop.f32.mrf.mxu0
        %v3043 = vadd.f32 %v2833, %v3042
        %3044 = vmatmul.f32.gmra.mxu0 %v2862
        %v3045 = vpop.f32.mrf.mxu0
        %v3046 = vadd.f32 %v2833, %v3045
        %3047 = vdwg.mxu0
        %3048 = vmatpush.msra.mxu0 0.0
        %3049 = vmatpush.msra.mxu0 0.0
        %3050 = vmatpush.msra.mxu0 0.0
        %3051 = vmatpush.msra.mxu0 0.0
        %3052 = vmatpush.msra.mxu0 0.0
        %3053 = vmatpush.msra.mxu0 0.0
        %3054 = vmatpush.msra.mxu0 0.0
        %3055 = vmatpush.msra.mxu0 0.0
        %3056 = vmatpush.msra.mxu0 0.0
        %3057 = vmatpush.msra.mxu0 0.0
        %3058 = vmatpush.msra.mxu0 0.0
        %3059 = vmatpush.msra.mxu0 0.0
        %3060 = vmatpush.msra.mxu0 %v2814
        %3061 = vmatpush.msra.mxu0 %v2798
        %3062 = vmatpush.msra.mxu0 %v2782
        %3063 = vmatpush.msra.mxu0 %v2766
        %3064 = vmatmul.f32.gmra.mxu0 %v2859
        %v3065 = vpop.f32.mrf.mxu0
        %v3066 = vadd.f32 %v2834, %v3065
        %3067 = vmatmul.f32.gmra.mxu0 %v2862
        %v3068 = vpop.f32.mrf.mxu0
        %v3069 = vadd.f32 %v2834, %v3068
        %3070 = vdwg.mxu0
        %3071 = vmatpush.msra.mxu0 0.0
        %3072 = vmatpush.msra.mxu0 0.0
        %3073 = vmatpush.msra.mxu0 0.0
        %3074 = vmatpush.msra.mxu0 0.0
        %3075 = vmatpush.msra.mxu0 0.0
        %3076 = vmatpush.msra.mxu0 0.0
        %3077 = vmatpush.msra.mxu0 0.0
        %3078 = vmatpush.msra.mxu0 0.0
        %3079 = vmatpush.msra.mxu0 0.0
        %3080 = vmatpush.msra.mxu0 0.0
        %3081 = vmatpush.msra.mxu0 0.0
        %3082 = vmatpush.msra.mxu0 0.0
        %3083 = vmatpush.msra.mxu0 %v2815
        %3084 = vmatpush.msra.mxu0 %v2799
        %3085 = vmatpush.msra.mxu0 %v2783
        %3086 = vmatpush.msra.mxu0 %v2767
        %3087 = vmatmul.f32.gmra.mxu0 %v2859
        %v3088 = vpop.f32.mrf.mxu0
        %v3089 = vadd.f32 %v2835, %v3088
        %3090 = vmatmul.f32.gmra.mxu0 %v2862
        %v3091 = vpop.f32.mrf.mxu0
        %v3092 = vadd.f32 %v2835, %v3091
        %3093 = vdwg.mxu0
        %3094 = vmatpush.msra.mxu0 0.0
        %3095 = vmatpush.msra.mxu0 0.0
        %3096 = vmatpush.msra.mxu0 0.0
        %3097 = vmatpush.msra.mxu0 0.0
        %3098 = vmatpush.msra.mxu0 0.0
        %3099 = vmatpush.msra.mxu0 0.0
        %3100 = vmatpush.msra.mxu0 0.0
        %3101 = vmatpush.msra.mxu0 0.0
        %3102 = vmatpush.msra.mxu0 0.0
        %3103 = vmatpush.msra.mxu0 0.0
        %3104 = vmatpush.msra.mxu0 0.0
        %3105 = vmatpush.msra.mxu0 0.0
        %3106 = vmatpush.msra.mxu0 %v2816
        %3107 = vmatpush.msra.mxu0 %v2800
        %3108 = vmatpush.msra.mxu0 %v2784
        %3109 = vmatpush.msra.mxu0 %v2768
        %3110 = vmatmul.f32.gmra.mxu0 %v2859
        %v3111 = vpop.f32.mrf.mxu0
        %v3112 = vadd.f32 %v2836, %v3111
        %3113 = vmatmul.f32.gmra.mxu0 %v2862
        %v3114 = vpop.f32.mrf.mxu0
        %v3115 = vadd.f32 %v2836, %v3114
        %3116 = vdwg.mxu0
        %3117 = vmatpush.msra.mxu0 0.0
        %3118 = vmatpush.msra.mxu0 0.0
        %3119 = vmatpush.msra.mxu0 0.0
        %3120 = vmatpush.msra.mxu0 0.0
        %3121 = vmatpush.msra.mxu0 0.0
        %3122 = vmatpush.msra.mxu0 0.0
        %3123 = vmatpush.msra.mxu0 0.0
        %3124 = vmatpush.msra.mxu0 0.0
        %3125 = vmatpush.msra.mxu0 0.0
        %3126 = vmatpush.msra.mxu0 0.0
        %3127 = vmatpush.msra.mxu0 0.0
        %3128 = vmatpush.msra.mxu0 0.0
        %3129 = vmatpush.msra.mxu0 %v2817
        %3130 = vmatpush.msra.mxu0 %v2801
        %3131 = vmatpush.msra.mxu0 %v2785
        %3132 = vmatpush.msra.mxu0 %v2769
        %3133 = vmatmul.f32.gmra.mxu0 %v2859
        %v3134 = vpop.f32.mrf.mxu0
        %v3135 = vadd.f32 %v2837, %v3134
        %3136 = vmatmul.f32.gmra.mxu0 %v2862
        %v3137 = vpop.f32.mrf.mxu0
        %v3138 = vadd.f32 %v2837, %v3137
        %3139 = vdwg.mxu0
        %3140 = vmatpush.msra.mxu0 0.0
        %3141 = vmatpush.msra.mxu0 0.0
        %3142 = vmatpush.msra.mxu0 0.0
        %3143 = vmatpush.msra.mxu0 0.0
        %3144 = vmatpush.msra.mxu0 0.0
        %3145 = vmatpush.msra.mxu0 0.0
        %3146 = vmatpush.msra.mxu0 0.0
        %3147 = vmatpush.msra.mxu0 0.0
        %3148 = vmatpush.msra.mxu0 0.0
        %3149 = vmatpush.msra.mxu0 0.0
        %3150 = vmatpush.msra.mxu0 0.0
        %3151 = vmatpush.msra.mxu0 0.0
        %3152 = vmatpush.msra.mxu0 %v2818
        %3153 = vmatpush.msra.mxu0 %v2802
        %3154 = vmatpush.msra.mxu0 %v2786
        %3155 = vmatpush.msra.mxu0 %v2770
        %3156 = vmatmul.f32.gmra.mxu0 %v2859
        %v3157 = vpop.f32.mrf.mxu0
        %v3158 = vadd.f32 %v2838, %v3157
        %3159 = vmatmul.f32.gmra.mxu0 %v2862
        %v3160 = vpop.f32.mrf.mxu0
        %v3161 = vadd.f32 %v2838, %v3160
        %3162 = vdwg.mxu0
        %3163 = vmatpush.msra.mxu0 0.0
        %3164 = vmatpush.msra.mxu0 0.0
        %3165 = vmatpush.msra.mxu0 0.0
        %3166 = vmatpush.msra.mxu0 0.0
        %3167 = vmatpush.msra.mxu0 0.0
        %3168 = vmatpush.msra.mxu0 0.0
        %3169 = vmatpush.msra.mxu0 0.0
        %3170 = vmatpush.msra.mxu0 0.0
        %3171 = vmatpush.msra.mxu0 0.0
        %3172 = vmatpush.msra.mxu0 0.0
        %3173 = vmatpush.msra.mxu0 0.0
        %3174 = vmatpush.msra.mxu0 0.0
        %3175 = vmatpush.msra.mxu0 %v2819
        %3176 = vmatpush.msra.mxu0 %v2803
        %3177 = vmatpush.msra.mxu0 %v2787
        %3178 = vmatpush.msra.mxu0 %v2771
        %3179 = vmatmul.f32.gmra.mxu0 %v2859
        %v3180 = vpop.f32.mrf.mxu0
        %v3181 = vadd.f32 %v2839, %v3180
        %3182 = vmatmul.f32.gmra.mxu0 %v2862
        %v3183 = vpop.f32.mrf.mxu0
        %v3184 = vadd.f32 %v2839, %v3183
        %3185 = vdwg.mxu0
        %3186 = vmatpush.msra.mxu0 0.0
        %3187 = vmatpush.msra.mxu0 0.0
        %3188 = vmatpush.msra.mxu0 0.0
        %3189 = vmatpush.msra.mxu0 0.0
        %3190 = vmatpush.msra.mxu0 0.0
        %3191 = vmatpush.msra.mxu0 0.0
        %3192 = vmatpush.msra.mxu0 0.0
        %3193 = vmatpush.msra.mxu0 0.0
        %3194 = vmatpush.msra.mxu0 0.0
        %3195 = vmatpush.msra.mxu0 0.0
        %3196 = vmatpush.msra.mxu0 0.0
        %3197 = vmatpush.msra.mxu0 0.0
        %3198 = vmatpush.msra.mxu0 %v2820
        %3199 = vmatpush.msra.mxu0 %v2804
        %3200 = vmatpush.msra.mxu0 %v2788
        %3201 = vmatpush.msra.mxu0 %v2772
        %3202 = vmatmul.f32.gmra.mxu0 %v2859
        %v3203 = vpop.f32.mrf.mxu0
        %v3204 = vadd.f32 %v2840, %v3203
        %3205 = vmatmul.f32.gmra.mxu0 %v2862
        %v3206 = vpop.f32.mrf.mxu0
        %v3207 = vadd.f32 %v2840, %v3206
        %3208 = vdwg.mxu0
        %3209 = vmatpush.msra.mxu0 0.0
        %3210 = vmatpush.msra.mxu0 0.0
        %3211 = vmatpush.msra.mxu0 0.0
        %3212 = vmatpush.msra.mxu0 0.0
        %3213 = vmatpush.msra.mxu0 0.0
        %3214 = vmatpush.msra.mxu0 0.0
        %3215 = vmatpush.msra.mxu0 0.0
        %3216 = vmatpush.msra.mxu0 0.0
        %3217 = vmatpush.msra.mxu0 0.0
        %3218 = vmatpush.msra.mxu0 0.0
        %3219 = vmatpush.msra.mxu0 0.0
        %3220 = vmatpush.msra.mxu0 0.0
        %3221 = vmatpush.msra.mxu0 %v2821
        %3222 = vmatpush.msra.mxu0 %v2805
        %3223 = vmatpush.msra.mxu0 %v2789
        %3224 = vmatpush.msra.mxu0 %v2773
        %3225 = vmatmul.f32.gmra.mxu0 %v2859
        %v3226 = vpop.f32.mrf.mxu0
        %v3227 = vadd.f32 %v2841, %v3226
        %3228 = vmatmul.f32.gmra.mxu0 %v2862
        %v3229 = vpop.f32.mrf.mxu0
        %v3230 = vadd.f32 %v2841, %v3229
        %3231 = vdwg.mxu0
        %v3232 = vmax.f32 %v2882, 0.0
        %v3233 = vmax.f32 %v2905, 0.0
        %v3234 = vmax.f32 %v2928, 0.0
        %v3235 = vmax.f32 %v2951, 0.0
        %v3236 = vmax.f32 %v2974, 0.0
        %v3237 = vmax.f32 %v2997, 0.0
        %v3238 = vmax.f32 %v3020, 0.0
        %v3239 = vmax.f32 %v3043, 0.0
        %v3240 = vmax.f32 %v3066, 0.0
        %v3241 = vmax.f32 %v3089, 0.0
        %v3242 = vmax.f32 %v3112, 0.0
        %v3243 = vmax.f32 %v3135, 0.0
        %v3244 = vmax.f32 %v3158, 0.0
        %v3245 = vmax.f32 %v3181, 0.0
        %v3246 = vmax.f32 %v3204, 0.0
        %v3247 = vmax.f32 %v3227, 0.0
        %v3248 = vmax.f32 %v2885, 0.0
        %v3249 = vmax.f32 %v2908, 0.0
        %v3250 = vmax.f32 %v2931, 0.0
        %v3251 = vmax.f32 %v2954, 0.0
        %v3252 = vmax.f32 %v2977, 0.0
        %v3253 = vmax.f32 %v3000, 0.0
        %v3254 = vmax.f32 %v3023, 0.0
        %v3255 = vmax.f32 %v3046, 0.0
        %v3256 = vmax.f32 %v3069, 0.0
        %v3257 = vmax.f32 %v3092, 0.0
        %v3258 = vmax.f32 %v3115, 0.0
        %v3259 = vmax.f32 %v3138, 0.0
        %v3260 = vmax.f32 %v3161, 0.0
        %v3261 = vmax.f32 %v3184, 0.0
        %v3262 = vmax.f32 %v3207, 0.0
        %v3263 = vmax.f32 %v3230, 0.0
        %v3264 = vld [vmem:[%s1065] sm:$0xff]
        %v3265 = vld [vmem:[%s1065 + $0x8] sm:$0xff]
        %v3266 = vld [vmem:[%s1065 + $0x10] sm:$0xff]
        %v3267 = vld [vmem:[%s1065 + $0x18] sm:$0xff]
        %v3268 = vld [vmem:[%s1065 + $0x20] sm:$0xff]
        %v3269 = vld [vmem:[%s1065 + $0x28] sm:$0xff]
        %v3270 = vld [vmem:[%s1065 + $0x30] sm:$0xff]
        %v3271 = vld [vmem:[%s1065 + $0x38] sm:$0xff]
        %v3272 = vld [vmem:[%s1065 + $0x40] sm:$0xff]
        %v3273 = vld [vmem:[%s1065 + $0x48] sm:$0xff]
        %v3274 = vld [vmem:[%s1065 + $0x50] sm:$0xff]
        %v3275 = vld [vmem:[%s1065 + $0x58] sm:$0xff]
        %v3276 = vld [vmem:[%s1065 + $0x60] sm:$0xff]
        %v3277 = vld [vmem:[%s1065 + $0x68] sm:$0xff]
        %v3278 = vld [vmem:[%s1065 + $0x70] sm:$0xff]
        %v3279 = vld [vmem:[%s1065 + $0x78] sm:$0xff]
        %v3280 = vld [vmem:[%s1065 + $0x80] sm:$0xff]
        %v3281 = vld [vmem:[%s1065 + $0x88] sm:$0xff]
        %v3282 = vld [vmem:[%s1065 + $0x90] sm:$0xff]
        %v3283 = vld [vmem:[%s1065 + $0x98] sm:$0xff]
        %v3284 = vld [vmem:[%s1065 + $0xa0] sm:$0xff]
        %v3285 = vld [vmem:[%s1065 + $0xa8] sm:$0xff]
        %v3286 = vld [vmem:[%s1065 + $0xb0] sm:$0xff]
        %v3287 = vld [vmem:[%s1065 + $0xb8] sm:$0xff]
        %v3288 = vld [vmem:[%s1065 + $0xc0] sm:$0xff]
        %v3289 = vld [vmem:[%s1065 + $0xc8] sm:$0xff]
        %v3290 = vld [vmem:[%s1065 + $0xd0] sm:$0xff]
        %v3291 = vld [vmem:[%s1065 + $0xd8] sm:$0xff]
        %v3292 = vld [vmem:[%s1065 + $0xe0] sm:$0xff]
        %v3293 = vld [vmem:[%s1065 + $0xe8] sm:$0xff]
        %v3294 = vld [vmem:[%s1065 + $0xf0] sm:$0xff]
        %v3295 = vld [vmem:[%s1065 + $0xf8] sm:$0xff]
        %v3296 = vld [vmem:[%s1065 + $0x100] sm:$0xff]
        %v3297 = vld [vmem:[%s1065 + $0x108] sm:$0xff]
        %v3298 = vld [vmem:[%s1065 + $0x110] sm:$0xff]
        %v3299 = vld [vmem:[%s1065 + $0x118] sm:$0xff]
        %v3300 = vld [vmem:[%s1065 + $0x120] sm:$0xff]
        %v3301 = vld [vmem:[%s1065 + $0x128] sm:$0xff]
        %v3302 = vld [vmem:[%s1065 + $0x130] sm:$0xff]
        %v3303 = vld [vmem:[%s1065 + $0x138] sm:$0xff]
        %v3304 = vld [vmem:[%s1065 + $0x140] sm:$0xff]
        %v3305 = vld [vmem:[%s1065 + $0x148] sm:$0xff]
        %v3306 = vld [vmem:[%s1065 + $0x150] sm:$0xff]
        %v3307 = vld [vmem:[%s1065 + $0x158] sm:$0xff]
        %v3308 = vld [vmem:[%s1065 + $0x160] sm:$0xff]
        %v3309 = vld [vmem:[%s1065 + $0x168] sm:$0xff]
        %v3310 = vld [vmem:[%s1065 + $0x170] sm:$0xff]
        %v3311 = vld [vmem:[%s1065 + $0x178] sm:$0xff]
        %v3312 = vld [vmem:[%s1065 + $0x180] sm:$0xff]
        %v3313 = vld [vmem:[%s1065 + $0x188] sm:$0xff]
        %v3314 = vld [vmem:[%s1065 + $0x190] sm:$0xff]
        %v3315 = vld [vmem:[%s1065 + $0x198] sm:$0xff]
        %v3316 = vld [vmem:[%s1065 + $0x1a0] sm:$0xff]
        %v3317 = vld [vmem:[%s1065 + $0x1a8] sm:$0xff]
        %v3318 = vld [vmem:[%s1065 + $0x1b0] sm:$0xff]
        %v3319 = vld [vmem:[%s1065 + $0x1b8] sm:$0xff]
        %v3320 = vld [vmem:[%s1065 + $0x1c0] sm:$0xff]
        %v3321 = vld [vmem:[%s1065 + $0x1c8] sm:$0xff]
        %v3322 = vld [vmem:[%s1065 + $0x1d0] sm:$0xff]
        %v3323 = vld [vmem:[%s1065 + $0x1d8] sm:$0xff]
        %v3324 = vld [vmem:[%s1065 + $0x1e0] sm:$0xff]
        %v3325 = vld [vmem:[%s1065 + $0x1e8] sm:$0xff]
        %v3326 = vld [vmem:[%s1065 + $0x1f0] sm:$0xff]
        %v3327 = vld [vmem:[%s1065 + $0x1f8] sm:$0xff]
        %v3328 = vld [vmem:[%s1065 + $0x200] sm:$0xff]
        %v3329 = vld [vmem:[%s1065 + $0x208] sm:$0xff]
        %v3330 = vld [vmem:[%s1065 + $0x210] sm:$0xff]
        %v3331 = vld [vmem:[%s1065 + $0x218] sm:$0xff]
        %v3332 = vld [vmem:[%s1065 + $0x220] sm:$0xff]
        %v3333 = vld [vmem:[%s1065 + $0x228] sm:$0xff]
        %v3334 = vld [vmem:[%s1065 + $0x230] sm:$0xff]
        %v3335 = vld [vmem:[%s1065 + $0x238] sm:$0xff]
        %v3336 = vld [vmem:[%s1065 + $0x240] sm:$0xff]
        %v3337 = vld [vmem:[%s1065 + $0x248] sm:$0xff]
        %v3338 = vld [vmem:[%s1065 + $0x250] sm:$0xff]
        %v3339 = vld [vmem:[%s1065 + $0x258] sm:$0xff]
        %v3340 = vld [vmem:[%s1065 + $0x260] sm:$0xff]
        %v3341 = vld [vmem:[%s1065 + $0x268] sm:$0xff]
        %v3342 = vld [vmem:[%s1065 + $0x270] sm:$0xff]
        %v3343 = vld [vmem:[%s1065 + $0x278] sm:$0xff]
        %v3344 = vld [vmem:[%s1065 + $0x280] sm:$0xff]
        %v3345 = vld [vmem:[%s1065 + $0x288] sm:$0xff]
        %v3346 = vld [vmem:[%s1065 + $0x290] sm:$0xff]
        %v3347 = vld [vmem:[%s1065 + $0x298] sm:$0xff]
        %v3348 = vld [vmem:[%s1065 + $0x2a0] sm:$0xff]
        %v3349 = vld [vmem:[%s1065 + $0x2a8] sm:$0xff]
        %v3350 = vld [vmem:[%s1065 + $0x2b0] sm:$0xff]
        %v3351 = vld [vmem:[%s1065 + $0x2b8] sm:$0xff]
        %v3352 = vld [vmem:[%s1065 + $0x2c0] sm:$0xff]
        %v3353 = vld [vmem:[%s1065 + $0x2c8] sm:$0xff]
        %v3354 = vld [vmem:[%s1065 + $0x2d0] sm:$0xff]
        %v3355 = vld [vmem:[%s1065 + $0x2d8] sm:$0xff]
        %v3356 = vld [vmem:[%s1065 + $0x2e0] sm:$0xff]
        %v3357 = vld [vmem:[%s1065 + $0x2e8] sm:$0xff]
        %v3358 = vld [vmem:[%s1065 + $0x2f0] sm:$0xff]
        %v3359 = vld [vmem:[%s1065 + $0x2f8] sm:$0xff]
        %v3360 = vld [vmem:[%s1065 + $0x300] sm:$0xff]
        %v3361 = vld [vmem:[%s1065 + $0x308] sm:$0xff]
        %v3362 = vld [vmem:[%s1065 + $0x310] sm:$0xff]
        %v3363 = vld [vmem:[%s1065 + $0x318] sm:$0xff]
        %v3364 = vld [vmem:[%s1065 + $0x320] sm:$0xff]
        %v3365 = vld [vmem:[%s1065 + $0x328] sm:$0xff]
        %v3366 = vld [vmem:[%s1065 + $0x330] sm:$0xff]
        %v3367 = vld [vmem:[%s1065 + $0x338] sm:$0xff]
        %v3368 = vld [vmem:[%s1065 + $0x340] sm:$0xff]
        %v3369 = vld [vmem:[%s1065 + $0x348] sm:$0xff]
        %v3370 = vld [vmem:[%s1065 + $0x350] sm:$0xff]
        %v3371 = vld [vmem:[%s1065 + $0x358] sm:$0xff]
        %v3372 = vld [vmem:[%s1065 + $0x360] sm:$0xff]
        %v3373 = vld [vmem:[%s1065 + $0x368] sm:$0xff]
        %v3374 = vld [vmem:[%s1065 + $0x370] sm:$0xff]
        %v3375 = vld [vmem:[%s1065 + $0x378] sm:$0xff]
        %v3376 = vld [vmem:[%s1065 + $0x380] sm:$0xff]
        %v3377 = vld [vmem:[%s1065 + $0x388] sm:$0xff]
        %v3378 = vld [vmem:[%s1065 + $0x390] sm:$0xff]
        %v3379 = vld [vmem:[%s1065 + $0x398] sm:$0xff]
        %v3380 = vld [vmem:[%s1065 + $0x3a0] sm:$0xff]
        %v3381 = vld [vmem:[%s1065 + $0x3a8] sm:$0xff]
        %v3382 = vld [vmem:[%s1065 + $0x3b0] sm:$0xff]
        %v3383 = vld [vmem:[%s1065 + $0x3b8] sm:$0xff]
        %v3384 = vld [vmem:[%s1065 + $0x3c0] sm:$0xff]
        %v3385 = vld [vmem:[%s1065 + $0x3c8] sm:$0xff]
        %v3386 = vld [vmem:[%s1065 + $0x3d0] sm:$0xff]
        %v3387 = vld [vmem:[%s1065 + $0x3d8] sm:$0xff]
        %v3388 = vld [vmem:[%s1065 + $0x3e0] sm:$0xff]
        %v3389 = vld [vmem:[%s1065 + $0x3e8] sm:$0xff]
        %v3390 = vld [vmem:[%s1065 + $0x3f0] sm:$0xff]
        %v3391 = vld [vmem:[%s1065 + $0x3f8] sm:$0xff]
        %v3392 = vld [vmem:[%s1065 + $0x400] sm:$0xff]
        %v3393 = vld [vmem:[%s1065 + $0x408] sm:$0xff]
        %v3394 = vld [vmem:[%s1065 + $0x410] sm:$0xff]
        %v3395 = vld [vmem:[%s1065 + $0x418] sm:$0xff]
        %v3396 = vld [vmem:[%s1065 + $0x420] sm:$0xff]
        %v3397 = vld [vmem:[%s1065 + $0x428] sm:$0xff]
        %v3398 = vld [vmem:[%s1065 + $0x430] sm:$0xff]
        %v3399 = vld [vmem:[%s1065 + $0x438] sm:$0xff]
        %v3400 = vld [vmem:[%s1065 + $0x440] sm:$0xff]
        %v3401 = vld [vmem:[%s1065 + $0x448] sm:$0xff]
        %v3402 = vld [vmem:[%s1065 + $0x450] sm:$0xff]
        %v3403 = vld [vmem:[%s1065 + $0x458] sm:$0xff]
        %v3404 = vld [vmem:[%s1065 + $0x460] sm:$0xff]
        %v3405 = vld [vmem:[%s1065 + $0x468] sm:$0xff]
        %v3406 = vld [vmem:[%s1065 + $0x470] sm:$0xff]
        %v3407 = vld [vmem:[%s1065 + $0x478] sm:$0xff]
        %v3408 = vld [vmem:[%s1065 + $0x480] sm:$0xff]
        %v3409 = vld [vmem:[%s1065 + $0x488] sm:$0xff]
        %v3410 = vld [vmem:[%s1065 + $0x490] sm:$0xff]
        %v3411 = vld [vmem:[%s1065 + $0x498] sm:$0xff]
        %v3412 = vld [vmem:[%s1065 + $0x4a0] sm:$0xff]
        %v3413 = vld [vmem:[%s1065 + $0x4a8] sm:$0xff]
        %v3414 = vld [vmem:[%s1065 + $0x4b0] sm:$0xff]
        %v3415 = vld [vmem:[%s1065 + $0x4b8] sm:$0xff]
        %v3416 = vld [vmem:[%s1065 + $0x4c0] sm:$0xff]
        %v3417 = vld [vmem:[%s1065 + $0x4c8] sm:$0xff]
        %v3418 = vld [vmem:[%s1065 + $0x4d0] sm:$0xff]
        %v3419 = vld [vmem:[%s1065 + $0x4d8] sm:$0xff]
        %v3420 = vld [vmem:[%s1065 + $0x4e0] sm:$0xff]
        %v3421 = vld [vmem:[%s1065 + $0x4e8] sm:$0xff]
        %v3422 = vld [vmem:[%s1065 + $0x4f0] sm:$0xff]
        %v3423 = vld [vmem:[%s1065 + $0x4f8] sm:$0xff]
        %v3424 = vld [vmem:[%s1065 + $0x500] sm:$0xff]
        %v3425 = vld [vmem:[%s1065 + $0x508] sm:$0xff]
        %v3426 = vld [vmem:[%s1065 + $0x510] sm:$0xff]
        %v3427 = vld [vmem:[%s1065 + $0x518] sm:$0xff]
        %v3428 = vld [vmem:[%s1065 + $0x520] sm:$0xff]
        %v3429 = vld [vmem:[%s1065 + $0x528] sm:$0xff]
        %v3430 = vld [vmem:[%s1065 + $0x530] sm:$0xff]
        %v3431 = vld [vmem:[%s1065 + $0x538] sm:$0xff]
        %v3432 = vld [vmem:[%s1065 + $0x540] sm:$0xff]
        %v3433 = vld [vmem:[%s1065 + $0x548] sm:$0xff]
        %v3434 = vld [vmem:[%s1065 + $0x550] sm:$0xff]
        %v3435 = vld [vmem:[%s1065 + $0x558] sm:$0xff]
        %v3436 = vld [vmem:[%s1065 + $0x560] sm:$0xff]
        %v3437 = vld [vmem:[%s1065 + $0x568] sm:$0xff]
        %v3438 = vld [vmem:[%s1065 + $0x570] sm:$0xff]
        %v3439 = vld [vmem:[%s1065 + $0x578] sm:$0xff]
        %v3440 = vld [vmem:[%s1065 + $0x580] sm:$0xff]
        %v3441 = vld [vmem:[%s1065 + $0x588] sm:$0xff]
        %v3442 = vld [vmem:[%s1065 + $0x590] sm:$0xff]
        %v3443 = vld [vmem:[%s1065 + $0x598] sm:$0xff]
        %v3444 = vld [vmem:[%s1065 + $0x5a0] sm:$0xff]
        %v3445 = vld [vmem:[%s1065 + $0x5a8] sm:$0xff]
        %v3446 = vld [vmem:[%s1065 + $0x5b0] sm:$0xff]
        %v3447 = vld [vmem:[%s1065 + $0x5b8] sm:$0xff]
        %v3448 = vld [vmem:[%s1065 + $0x5c0] sm:$0xff]
        %v3449 = vld [vmem:[%s1065 + $0x5c8] sm:$0xff]
        %v3450 = vld [vmem:[%s1065 + $0x5d0] sm:$0xff]
        %v3451 = vld [vmem:[%s1065 + $0x5d8] sm:$0xff]
        %v3452 = vld [vmem:[%s1065 + $0x5e0] sm:$0xff]
        %v3453 = vld [vmem:[%s1065 + $0x5e8] sm:$0xff]
        %v3454 = vld [vmem:[%s1065 + $0x5f0] sm:$0xff]
        %v3455 = vld [vmem:[%s1065 + $0x5f8] sm:$0xff]
        %v3456 = vld [vmem:[%s1065 + $0x600] sm:$0xff]
        %v3457 = vld [vmem:[%s1065 + $0x608] sm:$0xff]
        %v3458 = vld [vmem:[%s1065 + $0x610] sm:$0xff]
        %v3459 = vld [vmem:[%s1065 + $0x618] sm:$0xff]
        %v3460 = vld [vmem:[%s1065 + $0x620] sm:$0xff]
        %v3461 = vld [vmem:[%s1065 + $0x628] sm:$0xff]
        %v3462 = vld [vmem:[%s1065 + $0x630] sm:$0xff]
        %v3463 = vld [vmem:[%s1065 + $0x638] sm:$0xff]
        %v3464 = vld [vmem:[%s1065 + $0x640] sm:$0xff]
        %v3465 = vld [vmem:[%s1065 + $0x648] sm:$0xff]
        %v3466 = vld [vmem:[%s1065 + $0x650] sm:$0xff]
        %v3467 = vld [vmem:[%s1065 + $0x658] sm:$0xff]
        %v3468 = vld [vmem:[%s1065 + $0x660] sm:$0xff]
        %v3469 = vld [vmem:[%s1065 + $0x668] sm:$0xff]
        %v3470 = vld [vmem:[%s1065 + $0x670] sm:$0xff]
        %v3471 = vld [vmem:[%s1065 + $0x678] sm:$0xff]
        %v3472 = vld [vmem:[%s1065 + $0x680] sm:$0xff]
        %v3473 = vld [vmem:[%s1065 + $0x688] sm:$0xff]
        %v3474 = vld [vmem:[%s1065 + $0x690] sm:$0xff]
        %v3475 = vld [vmem:[%s1065 + $0x698] sm:$0xff]
        %v3476 = vld [vmem:[%s1065 + $0x6a0] sm:$0xff]
        %v3477 = vld [vmem:[%s1065 + $0x6a8] sm:$0xff]
        %v3478 = vld [vmem:[%s1065 + $0x6b0] sm:$0xff]
        %v3479 = vld [vmem:[%s1065 + $0x6b8] sm:$0xff]
        %v3480 = vld [vmem:[%s1065 + $0x6c0] sm:$0xff]
        %v3481 = vld [vmem:[%s1065 + $0x6c8] sm:$0xff]
        %v3482 = vld [vmem:[%s1065 + $0x6d0] sm:$0xff]
        %v3483 = vld [vmem:[%s1065 + $0x6d8] sm:$0xff]
        %v3484 = vld [vmem:[%s1065 + $0x6e0] sm:$0xff]
        %v3485 = vld [vmem:[%s1065 + $0x6e8] sm:$0xff]
        %v3486 = vld [vmem:[%s1065 + $0x6f0] sm:$0xff]
        %v3487 = vld [vmem:[%s1065 + $0x6f8] sm:$0xff]
        %v3488 = vld [vmem:[%s1065 + $0x700] sm:$0xff]
        %v3489 = vld [vmem:[%s1065 + $0x708] sm:$0xff]
        %v3490 = vld [vmem:[%s1065 + $0x710] sm:$0xff]
        %v3491 = vld [vmem:[%s1065 + $0x718] sm:$0xff]
        %v3492 = vld [vmem:[%s1065 + $0x720] sm:$0xff]
        %v3493 = vld [vmem:[%s1065 + $0x728] sm:$0xff]
        %v3494 = vld [vmem:[%s1065 + $0x730] sm:$0xff]
        %v3495 = vld [vmem:[%s1065 + $0x738] sm:$0xff]
        %v3496 = vld [vmem:[%s1065 + $0x740] sm:$0xff]
        %v3497 = vld [vmem:[%s1065 + $0x748] sm:$0xff]
        %v3498 = vld [vmem:[%s1065 + $0x750] sm:$0xff]
        %v3499 = vld [vmem:[%s1065 + $0x758] sm:$0xff]
        %v3500 = vld [vmem:[%s1065 + $0x760] sm:$0xff]
        %v3501 = vld [vmem:[%s1065 + $0x768] sm:$0xff]
        %v3502 = vld [vmem:[%s1065 + $0x770] sm:$0xff]
        %v3503 = vld [vmem:[%s1065 + $0x778] sm:$0xff]
        %v3504 = vld [vmem:[%s1065 + $0x780] sm:$0xff]
        %v3505 = vld [vmem:[%s1065 + $0x788] sm:$0xff]
        %v3506 = vld [vmem:[%s1065 + $0x790] sm:$0xff]
        %v3507 = vld [vmem:[%s1065 + $0x798] sm:$0xff]
        %v3508 = vld [vmem:[%s1065 + $0x7a0] sm:$0xff]
        %v3509 = vld [vmem:[%s1065 + $0x7a8] sm:$0xff]
        %v3510 = vld [vmem:[%s1065 + $0x7b0] sm:$0xff]
        %v3511 = vld [vmem:[%s1065 + $0x7b8] sm:$0xff]
        %v3512 = vld [vmem:[%s1065 + $0x7c0] sm:$0xff]
        %v3513 = vld [vmem:[%s1065 + $0x7c8] sm:$0xff]
        %v3514 = vld [vmem:[%s1065 + $0x7d0] sm:$0xff]
        %v3515 = vld [vmem:[%s1065 + $0x7d8] sm:$0xff]
        %v3516 = vld [vmem:[%s1065 + $0x7e0] sm:$0xff]
        %v3517 = vld [vmem:[%s1065 + $0x7e8] sm:$0xff]
        %v3518 = vld [vmem:[%s1065 + $0x7f0] sm:$0xff]
        %v3519 = vld [vmem:[%s1065 + $0x7f8] sm:$0xff]
        %3520 = vmatpush.msra.mxu0 %v3279
        %3521 = vmatpush.msra.mxu0 %v3278
        %3522 = vmatpush.msra.mxu0 %v3277
        %3523 = vmatpush.msra.mxu0 %v3276
        %3524 = vmatpush.msra.mxu0 %v3275
        %3525 = vmatpush.msra.mxu0 %v3274
        %3526 = vmatpush.msra.mxu0 %v3273
        %3527 = vmatpush.msra.mxu0 %v3272
        %3528 = vmatpush.msra.mxu0 %v3271
        %3529 = vmatpush.msra.mxu0 %v3270
        %3530 = vmatpush.msra.mxu0 %v3269
        %3531 = vmatpush.msra.mxu0 %v3268
        %3532 = vmatpush.msra.mxu0 %v3267
        %3533 = vmatpush.msra.mxu0 %v3266
        %3534 = vmatpush.msra.mxu0 %v3265
        %3535 = vmatpush.msra.mxu0 %v3264
        %3536 = vmatmul.f32.gmra.mxu0 %v3232
        %v3537 = vpop.f32.mrf.mxu0
        %v3538 = vadd.f32 0.0, %v3537
        %3539 = vmatmul.f32.gmra.mxu0 %v3248
        %v3540 = vpop.f32.mrf.mxu0
        %v3541 = vadd.f32 0.0, %v3540
        %3542 = vdwg.mxu0
        %3543 = vmatpush.msra.mxu0 %v3295
        %3544 = vmatpush.msra.mxu0 %v3294
        %3545 = vmatpush.msra.mxu0 %v3293
        %3546 = vmatpush.msra.mxu0 %v3292
        %3547 = vmatpush.msra.mxu0 %v3291
        %3548 = vmatpush.msra.mxu0 %v3290
        %3549 = vmatpush.msra.mxu0 %v3289
        %3550 = vmatpush.msra.mxu0 %v3288
        %3551 = vmatpush.msra.mxu0 %v3287
        %3552 = vmatpush.msra.mxu0 %v3286
        %3553 = vmatpush.msra.mxu0 %v3285
        %3554 = vmatpush.msra.mxu0 %v3284
        %3555 = vmatpush.msra.mxu0 %v3283
        %3556 = vmatpush.msra.mxu0 %v3282
        %3557 = vmatpush.msra.mxu0 %v3281
        %3558 = vmatpush.msra.mxu0 %v3280
        %3559 = vmatmul.f32.gmra.mxu0 %v3233
        %v3560 = vpop.f32.mrf.mxu0
        %v3561 = vadd.f32 %v3538, %v3560
        %3562 = vmatmul.f32.gmra.mxu0 %v3249
        %v3563 = vpop.f32.mrf.mxu0
        %v3564 = vadd.f32 %v3541, %v3563
        %3565 = vdwg.mxu0
        %3566 = vmatpush.msra.mxu0 %v3311
        %3567 = vmatpush.msra.mxu0 %v3310
        %3568 = vmatpush.msra.mxu0 %v3309
        %3569 = vmatpush.msra.mxu0 %v3308
        %3570 = vmatpush.msra.mxu0 %v3307
        %3571 = vmatpush.msra.mxu0 %v3306
        %3572 = vmatpush.msra.mxu0 %v3305
        %3573 = vmatpush.msra.mxu0 %v3304
        %3574 = vmatpush.msra.mxu0 %v3303
        %3575 = vmatpush.msra.mxu0 %v3302
        %3576 = vmatpush.msra.mxu0 %v3301
        %3577 = vmatpush.msra.mxu0 %v3300
        %3578 = vmatpush.msra.mxu0 %v3299
        %3579 = vmatpush.msra.mxu0 %v3298
        %3580 = vmatpush.msra.mxu0 %v3297
        %3581 = vmatpush.msra.mxu0 %v3296
        %3582 = vmatmul.f32.gmra.mxu0 %v3234
        %v3583 = vpop.f32.mrf.mxu0
        %v3584 = vadd.f32 %v3561, %v3583
        %3585 = vmatmul.f32.gmra.mxu0 %v3250
        %v3586 = vpop.f32.mrf.mxu0
        %v3587 = vadd.f32 %v3564, %v3586
        %3588 = vdwg.mxu0
        %3589 = vmatpush.msra.mxu0 %v3327
        %3590 = vmatpush.msra.mxu0 %v3326
        %3591 = vmatpush.msra.mxu0 %v3325
        %3592 = vmatpush.msra.mxu0 %v3324
        %3593 = vmatpush.msra.mxu0 %v3323
        %3594 = vmatpush.msra.mxu0 %v3322
        %3595 = vmatpush.msra.mxu0 %v3321
        %3596 = vmatpush.msra.mxu0 %v3320
        %3597 = vmatpush.msra.mxu0 %v3319
        %3598 = vmatpush.msra.mxu0 %v3318
        %3599 = vmatpush.msra.mxu0 %v3317
        %3600 = vmatpush.msra.mxu0 %v3316
        %3601 = vmatpush.msra.mxu0 %v3315
        %3602 = vmatpush.msra.mxu0 %v3314
        %3603 = vmatpush.msra.mxu0 %v3313
        %3604 = vmatpush.msra.mxu0 %v3312
        %3605 = vmatmul.f32.gmra.mxu0 %v3235
        %v3606 = vpop.f32.mrf.mxu0
        %v3607 = vadd.f32 %v3584, %v3606
        %3608 = vmatmul.f32.gmra.mxu0 %v3251
        %v3609 = vpop.f32.mrf.mxu0
        %v3610 = vadd.f32 %v3587, %v3609
        %3611 = vdwg.mxu0
        %3612 = vmatpush.msra.mxu0 %v3343
        %3613 = vmatpush.msra.mxu0 %v3342
        %3614 = vmatpush.msra.mxu0 %v3341
        %3615 = vmatpush.msra.mxu0 %v3340
        %3616 = vmatpush.msra.mxu0 %v3339
        %3617 = vmatpush.msra.mxu0 %v3338
        %3618 = vmatpush.msra.mxu0 %v3337
        %3619 = vmatpush.msra.mxu0 %v3336
        %3620 = vmatpush.msra.mxu0 %v3335
        %3621 = vmatpush.msra.mxu0 %v3334
        %3622 = vmatpush.msra.mxu0 %v3333
        %3623 = vmatpush.msra.mxu0 %v3332
        %3624 = vmatpush.msra.mxu0 %v3331
        %3625 = vmatpush.msra.mxu0 %v3330
        %3626 = vmatpush.msra.mxu0 %v3329
        %3627 = vmatpush.msra.mxu0 %v3328
        %3628 = vmatmul.f32.gmra.mxu0 %v3236
        %v3629 = vpop.f32.mrf.mxu0
        %v3630 = vadd.f32 %v3607, %v3629
        %3631 = vmatmul.f32.gmra.mxu0 %v3252
        %v3632 = vpop.f32.mrf.mxu0
        %v3633 = vadd.f32 %v3610, %v3632
        %3634 = vdwg.mxu0
        %3635 = vmatpush.msra.mxu0 %v3359
        %3636 = vmatpush.msra.mxu0 %v3358
        %3637 = vmatpush.msra.mxu0 %v3357
        %3638 = vmatpush.msra.mxu0 %v3356
        %3639 = vmatpush.msra.mxu0 %v3355
        %3640 = vmatpush.msra.mxu0 %v3354
        %3641 = vmatpush.msra.mxu0 %v3353
        %3642 = vmatpush.msra.mxu0 %v3352
        %3643 = vmatpush.msra.mxu0 %v3351
        %3644 = vmatpush.msra.mxu0 %v3350
        %3645 = vmatpush.msra.mxu0 %v3349
        %3646 = vmatpush.msra.mxu0 %v3348
        %3647 = vmatpush.msra.mxu0 %v3347
        %3648 = vmatpush.msra.mxu0 %v3346
        %3649 = vmatpush.msra.mxu0 %v3345
        %3650 = vmatpush.msra.mxu0 %v3344
        %3651 = vmatmul.f32.gmra.mxu0 %v3237
        %v3652 = vpop.f32.mrf.mxu0
        %v3653 = vadd.f32 %v3630, %v3652
        %3654 = vmatmul.f32.gmra.mxu0 %v3253
        %v3655 = vpop.f32.mrf.mxu0
        %v3656 = vadd.f32 %v3633, %v3655
        %3657 = vdwg.mxu0
        %3658 = vmatpush.msra.mxu0 %v3375
        %3659 = vmatpush.msra.mxu0 %v3374
        %3660 = vmatpush.msra.mxu0 %v3373
        %3661 = vmatpush.msra.mxu0 %v3372
        %3662 = vmatpush.msra.mxu0 %v3371
        %3663 = vmatpush.msra.mxu0 %v3370
        %3664 = vmatpush.msra.mxu0 %v3369
        %3665 = vmatpush.msra.mxu0 %v3368
        %3666 = vmatpush.msra.mxu0 %v3367
        %3667 = vmatpush.msra.mxu0 %v3366
        %3668 = vmatpush.msra.mxu0 %v3365
        %3669 = vmatpush.msra.mxu0 %v3364
        %3670 = vmatpush.msra.mxu0 %v3363
        %3671 = vmatpush.msra.mxu0 %v3362
        %3672 = vmatpush.msra.mxu0 %v3361
        %3673 = vmatpush.msra.mxu0 %v3360
        %3674 = vmatmul.f32.gmra.mxu0 %v3238
        %v3675 = vpop.f32.mrf.mxu0
        %v3676 = vadd.f32 %v3653, %v3675
        %3677 = vmatmul.f32.gmra.mxu0 %v3254
        %v3678 = vpop.f32.mrf.mxu0
        %v3679 = vadd.f32 %v3656, %v3678
        %3680 = vdwg.mxu0
        %3681 = vmatpush.msra.mxu0 %v3391
        %3682 = vmatpush.msra.mxu0 %v3390
        %3683 = vmatpush.msra.mxu0 %v3389
        %3684 = vmatpush.msra.mxu0 %v3388
        %3685 = vmatpush.msra.mxu0 %v3387
        %3686 = vmatpush.msra.mxu0 %v3386
        %3687 = vmatpush.msra.mxu0 %v3385
        %3688 = vmatpush.msra.mxu0 %v3384
        %3689 = vmatpush.msra.mxu0 %v3383
        %3690 = vmatpush.msra.mxu0 %v3382
        %3691 = vmatpush.msra.mxu0 %v3381
        %3692 = vmatpush.msra.mxu0 %v3380
        %3693 = vmatpush.msra.mxu0 %v3379
        %3694 = vmatpush.msra.mxu0 %v3378
        %3695 = vmatpush.msra.mxu0 %v3377
        %3696 = vmatpush.msra.mxu0 %v3376
        %3697 = vmatmul.f32.gmra.mxu0 %v3239
        %v3698 = vpop.f32.mrf.mxu0
        %v3699 = vadd.f32 %v3676, %v3698
        %3700 = vmatmul.f32.gmra.mxu0 %v3255
        %v3701 = vpop.f32.mrf.mxu0
        %v3702 = vadd.f32 %v3679, %v3701
        %3703 = vdwg.mxu0
        %3704 = vmatpush.msra.mxu0 %v3407
        %3705 = vmatpush.msra.mxu0 %v3406
        %3706 = vmatpush.msra.mxu0 %v3405
        %3707 = vmatpush.msra.mxu0 %v3404
        %3708 = vmatpush.msra.mxu0 %v3403
        %3709 = vmatpush.msra.mxu0 %v3402
        %3710 = vmatpush.msra.mxu0 %v3401
        %3711 = vmatpush.msra.mxu0 %v3400
        %3712 = vmatpush.msra.mxu0 %v3399
        %3713 = vmatpush.msra.mxu0 %v3398
        %3714 = vmatpush.msra.mxu0 %v3397
        %3715 = vmatpush.msra.mxu0 %v3396
        %3716 = vmatpush.msra.mxu0 %v3395
        %3717 = vmatpush.msra.mxu0 %v3394
        %3718 = vmatpush.msra.mxu0 %v3393
        %3719 = vmatpush.msra.mxu0 %v3392
        %3720 = vmatmul.f32.gmra.mxu0 %v3240
        %v3721 = vpop.f32.mrf.mxu0
        %v3722 = vadd.f32 %v3699, %v3721
        %3723 = vmatmul.f32.gmra.mxu0 %v3256
        %v3724 = vpop.f32.mrf.mxu0
        %v3725 = vadd.f32 %v3702, %v3724
        %3726 = vdwg.mxu0
        %3727 = vmatpush.msra.mxu0 %v3423
        %3728 = vmatpush.msra.mxu0 %v3422
        %3729 = vmatpush.msra.mxu0 %v3421
        %3730 = vmatpush.msra.mxu0 %v3420
        %3731 = vmatpush.msra.mxu0 %v3419
        %3732 = vmatpush.msra.mxu0 %v3418
        %3733 = vmatpush.msra.mxu0 %v3417
        %3734 = vmatpush.msra.mxu0 %v3416
        %3735 = vmatpush.msra.mxu0 %v3415
        %3736 = vmatpush.msra.mxu0 %v3414
        %3737 = vmatpush.msra.mxu0 %v3413
        %3738 = vmatpush.msra.mxu0 %v3412
        %3739 = vmatpush.msra.mxu0 %v3411
        %3740 = vmatpush.msra.mxu0 %v3410
        %3741 = vmatpush.msra.mxu0 %v3409
        %3742 = vmatpush.msra.mxu0 %v3408
        %3743 = vmatmul.f32.gmra.mxu0 %v3241
        %v3744 = vpop.f32.mrf.mxu0
        %v3745 = vadd.f32 %v3722, %v3744
        %3746 = vmatmul.f32.gmra.mxu0 %v3257
        %v3747 = vpop.f32.mrf.mxu0
        %v3748 = vadd.f32 %v3725, %v3747
        %3749 = vdwg.mxu0
        %3750 = vmatpush.msra.mxu0 %v3439
        %3751 = vmatpush.msra.mxu0 %v3438
        %3752 = vmatpush.msra.mxu0 %v3437
        %3753 = vmatpush.msra.mxu0 %v3436
        %3754 = vmatpush.msra.mxu0 %v3435
        %3755 = vmatpush.msra.mxu0 %v3434
        %3756 = vmatpush.msra.mxu0 %v3433
        %3757 = vmatpush.msra.mxu0 %v3432
        %3758 = vmatpush.msra.mxu0 %v3431
        %3759 = vmatpush.msra.mxu0 %v3430
        %3760 = vmatpush.msra.mxu0 %v3429
        %3761 = vmatpush.msra.mxu0 %v3428
        %3762 = vmatpush.msra.mxu0 %v3427
        %3763 = vmatpush.msra.mxu0 %v3426
        %3764 = vmatpush.msra.mxu0 %v3425
        %3765 = vmatpush.msra.mxu0 %v3424
        %3766 = vmatmul.f32.gmra.mxu0 %v3242
        %v3767 = vpop.f32.mrf.mxu0
        %v3768 = vadd.f32 %v3745, %v3767
        %3769 = vmatmul.f32.gmra.mxu0 %v3258
        %v3770 = vpop.f32.mrf.mxu0
        %v3771 = vadd.f32 %v3748, %v3770
        %3772 = vdwg.mxu0
        %3773 = vmatpush.msra.mxu0 %v3455
        %3774 = vmatpush.msra.mxu0 %v3454
        %3775 = vmatpush.msra.mxu0 %v3453
        %3776 = vmatpush.msra.mxu0 %v3452
        %3777 = vmatpush.msra.mxu0 %v3451
        %3778 = vmatpush.msra.mxu0 %v3450
        %3779 = vmatpush.msra.mxu0 %v3449
        %3780 = vmatpush.msra.mxu0 %v3448
        %3781 = vmatpush.msra.mxu0 %v3447
        %3782 = vmatpush.msra.mxu0 %v3446
        %3783 = vmatpush.msra.mxu0 %v3445
        %3784 = vmatpush.msra.mxu0 %v3444
        %3785 = vmatpush.msra.mxu0 %v3443
        %3786 = vmatpush.msra.mxu0 %v3442
        %3787 = vmatpush.msra.mxu0 %v3441
        %3788 = vmatpush.msra.mxu0 %v3440
        %3789 = vmatmul.f32.gmra.mxu0 %v3243
        %v3790 = vpop.f32.mrf.mxu0
        %v3791 = vadd.f32 %v3768, %v3790
        %3792 = vmatmul.f32.gmra.mxu0 %v3259
        %v3793 = vpop.f32.mrf.mxu0
        %v3794 = vadd.f32 %v3771, %v3793
        %3795 = vdwg.mxu0
        %3796 = vmatpush.msra.mxu0 %v3471
        %3797 = vmatpush.msra.mxu0 %v3470
        %3798 = vmatpush.msra.mxu0 %v3469
        %3799 = vmatpush.msra.mxu0 %v3468
        %3800 = vmatpush.msra.mxu0 %v3467
        %3801 = vmatpush.msra.mxu0 %v3466
        %3802 = vmatpush.msra.mxu0 %v3465
        %3803 = vmatpush.msra.mxu0 %v3464
        %3804 = vmatpush.msra.mxu0 %v3463
        %3805 = vmatpush.msra.mxu0 %v3462
        %3806 = vmatpush.msra.mxu0 %v3461
        %3807 = vmatpush.msra.mxu0 %v3460
        %3808 = vmatpush.msra.mxu0 %v3459
        %3809 = vmatpush.msra.mxu0 %v3458
        %3810 = vmatpush.msra.mxu0 %v3457
        %3811 = vmatpush.msra.mxu0 %v3456
        %3812 = vmatmul.f32.gmra.mxu0 %v3244
        %v3813 = vpop.f32.mrf.mxu0
        %v3814 = vadd.f32 %v3791, %v3813
        %3815 = vmatmul.f32.gmra.mxu0 %v3260
        %v3816 = vpop.f32.mrf.mxu0
        %v3817 = vadd.f32 %v3794, %v3816
        %3818 = vdwg.mxu0
        %3819 = vmatpush.msra.mxu0 %v3487
        %3820 = vmatpush.msra.mxu0 %v3486
        %3821 = vmatpush.msra.mxu0 %v3485
        %3822 = vmatpush.msra.mxu0 %v3484
        %3823 = vmatpush.msra.mxu0 %v3483
        %3824 = vmatpush.msra.mxu0 %v3482
        %3825 = vmatpush.msra.mxu0 %v3481
        %3826 = vmatpush.msra.mxu0 %v3480
        %3827 = vmatpush.msra.mxu0 %v3479
        %3828 = vmatpush.msra.mxu0 %v3478
        %3829 = vmatpush.msra.mxu0 %v3477
        %3830 = vmatpush.msra.mxu0 %v3476
        %3831 = vmatpush.msra.mxu0 %v3475
        %3832 = vmatpush.msra.mxu0 %v3474
        %3833 = vmatpush.msra.mxu0 %v3473
        %3834 = vmatpush.msra.mxu0 %v3472
        %3835 = vmatmul.f32.gmra.mxu0 %v3245
        %v3836 = vpop.f32.mrf.mxu0
        %v3837 = vadd.f32 %v3814, %v3836
        %3838 = vmatmul.f32.gmra.mxu0 %v3261
        %v3839 = vpop.f32.mrf.mxu0
        %v3840 = vadd.f32 %v3817, %v3839
        %3841 = vdwg.mxu0
        %3842 = vmatpush.msra.mxu0 %v3503
        %3843 = vmatpush.msra.mxu0 %v3502
        %3844 = vmatpush.msra.mxu0 %v3501
        %3845 = vmatpush.msra.mxu0 %v3500
        %3846 = vmatpush.msra.mxu0 %v3499
        %3847 = vmatpush.msra.mxu0 %v3498
        %3848 = vmatpush.msra.mxu0 %v3497
        %3849 = vmatpush.msra.mxu0 %v3496
        %3850 = vmatpush.msra.mxu0 %v3495
        %3851 = vmatpush.msra.mxu0 %v3494
        %3852 = vmatpush.msra.mxu0 %v3493
        %3853 = vmatpush.msra.mxu0 %v3492
        %3854 = vmatpush.msra.mxu0 %v3491
        %3855 = vmatpush.msra.mxu0 %v3490
        %3856 = vmatpush.msra.mxu0 %v3489
        %3857 = vmatpush.msra.mxu0 %v3488
        %3858 = vmatmul.f32.gmra.mxu0 %v3246
        %v3859 = vpop.f32.mrf.mxu0
        %v3860 = vadd.f32 %v3837, %v3859
        %3861 = vmatmul.f32.gmra.mxu0 %v3262
        %v3862 = vpop.f32.mrf.mxu0
        %v3863 = vadd.f32 %v3840, %v3862
        %3864 = vdwg.mxu0
        %3865 = vmatpush.msra.mxu0 %v3519
        %3866 = vmatpush.msra.mxu0 %v3518
        %3867 = vmatpush.msra.mxu0 %v3517
        %3868 = vmatpush.msra.mxu0 %v3516
        %3869 = vmatpush.msra.mxu0 %v3515
        %3870 = vmatpush.msra.mxu0 %v3514
        %3871 = vmatpush.msra.mxu0 %v3513
        %3872 = vmatpush.msra.mxu0 %v3512
        %3873 = vmatpush.msra.mxu0 %v3511
        %3874 = vmatpush.msra.mxu0 %v3510
        %3875 = vmatpush.msra.mxu0 %v3509
        %3876 = vmatpush.msra.mxu0 %v3508
        %3877 = vmatpush.msra.mxu0 %v3507
        %3878 = vmatpush.msra.mxu0 %v3506
        %3879 = vmatpush.msra.mxu0 %v3505
        %3880 = vmatpush.msra.mxu0 %v3504
        %3881 = vmatmul.f32.gmra.mxu0 %v3247
        %v3882 = vpop.f32.mrf.mxu0
        %v3883 = vadd.f32 %v3860, %v3882
        %3884 = vmatmul.f32.gmra.mxu0 %v3263
        %v3885 = vpop.f32.mrf.mxu0
        %v3886 = vadd.f32 %v3863, %v3885
        %3887 = vdwg.mxu0
        %v3888 = vadd.f32 %v2694, %v3883
        %v3889 = vadd.f32 %v2695, %v3886
        %v3890 = vld [vmem:[%s1244] sm:$0x1]
        %v3892 = vperm.slane %v3890, 0
        %v3894 = vadd.f32 %v3888, %v3892
        %v3895 = vadd.f32 %v3889, %v3892
        %3896 = vst.msk [vmem:[#allocation2] sm:$0xff] %vm1260, %v3894
        %3897 = vst.msk [vmem:[#allocation2 + $0x8] sm:$0xff] %vm1260, %v3895
        %p3898 = scmp.eq.s32.totalorder %s51, 1
        // Predicated region
        $region161: #{_lambda_.3} parent=123 // pred_check
          %p3899 = pneg %p3898
        $region162: #{_lambda_.3} parent=123 // pred_check_branch
          %3901 = sbr.rel (%p3899) target = $region164
        $region163: #{_lambda_.3} parent=123 // pred_region
          %v3902 = vld [vmem:[%s22] sm:$0x1]
          %v3903 = vld [vmem:[%s23] sm:$0x1]
          %v3904 = vsel %vm1260, %v3894, 0.0
          %3905 = vadd.xlane.f32.xlu0 %v3904
          %v3906 = vpop.xlane.xlu0 %3905
          %v3907 = vsel %vm1260, %v3895, 0.0
          %3908 = vadd.xlane.f32.xlu0 %v3907
          %v3909 = vpop.xlane.xlu0 %3908
          %v3910 = vmul.f32 %v3906, %v1273
          %v3911 = vmul.f32 %v3909, %v1273
          %v3912 = vsub.f32 %v3894, %v3910
          %v3913 = vsub.f32 %v3895, %v3911
          %v3914 = vmul.f32 %v3912, %v3912
          %v3915 = vmul.f32 %v3913, %v3913
          %v3916 = vsel %vm1260, %v3914, 0.0
          %3917 = vadd.xlane.f32.xlu0 %v3916
          %v3918 = vpop.xlane.xlu0 %3917
          %v3919 = vsel %vm1260, %v3915, 0.0
          %3920 = vadd.xlane.f32.xlu0 %v3919
          %v3921 = vpop.xlane.xlu0 %3920
          %v3922 = vmul.f32 %v3918, 0.032258064
          %v3923 = vmul.f32 %v3921, 0.032258064
          %v3924 = vrsqrt.pop %v3922
          %v3925 = vmul.f32 %v3924, %v3922
          %v3926 = vmul.f32 %v3925, %v3924
          %v3927 = vmul.f32 0.5, %v3926
          %v3928 = vsub.f32 1.5, %v3927
          %v3929 = vmul.f32 %v3924, %v3928
          %v3930 = vmul.f32 %v3922, %v3929
          %vm3931 = vcmp.eq.f32.partialorder %v3922, inf
          %v3932 = vsel %vm3931, %v3922, %v3930
          %vm3933 = vcmp.eq.f32.partialorder %v3922, 0.0
          %v3934 = vand.u32 %v3922, 2147483648
          %v3935 = vsel %vm3933, %v3934, %v3932
          %v3936 = vrsqrt.pop %v3923
          %v3937 = vmul.f32 %v3936, %v3923
          %v3938 = vmul.f32 %v3937, %v3936
          %v3939 = vmul.f32 0.5, %v3938
          %v3940 = vsub.f32 1.5, %v3939
          %v3941 = vmul.f32 %v3936, %v3940
          %v3942 = vmul.f32 %v3923, %v3941
          %vm3943 = vcmp.eq.f32.partialorder %v3923, inf
          %v3944 = vsel %vm3943, %v3923, %v3942
          %vm3945 = vcmp.eq.f32.partialorder %v3923, 0.0
          %v3946 = vand.u32 %v3923, 2147483648
          %v3947 = vsel %vm3945, %v3946, %v3944
          %v3948 = vadd.f32 %v3935, 1e-06
          %v3949 = vadd.f32 %v3947, 1e-06
          %v3950 = vrcp.pop %v3948
          %v3951 = vrcp.pop %v3949
          %v3953 = vperm.slane %v3902, 0
          %v3955 = vmul.f32 %v3953, %v3912
          %v3956 = vmul.f32 %v3953, %v3913
          %v3957 = vmul.f32 %v3955, %v3950
          %v3958 = vmul.f32 %v3956, %v3951
          %v3960 = vperm.slane %v3903, 0
          %v3962 = vadd.f32 %v3957, %v3960
          %v3963 = vadd.f32 %v3958, %v3960
          %v3964 = vld [vmem:[#allocation15] sm:$0xff]
          %v3965 = vld [vmem:[#allocation15 + $0x8] sm:$0xff]
          %v3966 = vld [vmem:[#allocation15 + $0x10] sm:$0xff]
          %v3967 = vld [vmem:[#allocation15 + $0x18] sm:$0xff]
          %v3968 = vld [vmem:[%s25] sm:$0x1]
          %v3970 = vperm.slane %v3968, 0
          %v3973 = vsel %vm1260, %v3962, 0
          %v3976 = vsel %vm1260, %v3963, 0
          %3978 = vmatpush.msra.mxu0 0.0
          %3979 = vmatpush.msra.mxu0 0.0
          %3980 = vmatpush.msra.mxu0 0.0
          %3981 = vmatpush.msra.mxu0 0.0
          %3982 = vmatpush.msra.mxu0 0.0
          %3983 = vmatpush.msra.mxu0 0.0
          %3984 = vmatpush.msra.mxu0 0.0
          %3985 = vmatpush.msra.mxu0 0.0
          %3986 = vmatpush.msra.mxu0 0.0
          %3987 = vmatpush.msra.mxu0 0.0
          %3988 = vmatpush.msra.mxu0 0.0
          %3989 = vmatpush.msra.mxu0 0.0
          %3990 = vmatpush.msra.mxu0 %v3967
          %3991 = vmatpush.msra.mxu0 %v3966
          %3992 = vmatpush.msra.mxu0 %v3965
          %3993 = vmatpush.msra.mxu0 %v3964
          %3994 = vmatmul.f32.gmra.mxu0 %v3973
          %v3995 = vpop.f32.mrf.mxu0
          %v3996 = vadd.f32 %v3970, %v3995
          %3997 = vmatmul.f32.gmra.mxu0 %v3976
          %v3998 = vpop.f32.mrf.mxu0
          %v3999 = vadd.f32 %v3970, %v3998
          %4000 = vdwg.mxu0
          %4001 = vst [vmem:[#allocation17] sm:$0xff] %v3996
          %4002 = vst [vmem:[#allocation17 + $0x8] sm:$0xff] %v3999
        $region164: #{_lambda_.3} parent=123 // pred_fallthru
          _
        // Predicated region
        $region165: #{_lambda_.3} parent=123 // pred_check
          %p4003 = pneg %p710
        $region166: #{_lambda_.3} parent=123 // pred_check_branch
          %4005 = sbr.rel (%p4003) target = $region168
        $region167: #{_lambda_.3} parent=123 // pred_region
          %4007 = vsyncadd [#allocation5], 0
          %s4008 = sshll.u32 [#allocation17], 4
          %s4009 = int_to_ptr.vmem [resolvable:$true] %s4008
          %s4010 = sshll.u32 %s26, 4
          %s4011 = int_to_ptr.hbm [resolvable:$true] %s4010
          %4016 = dma.vmem_to_hbm [thread:$0]  %s4009, 256, %s4011, [#allocation5], 128, 128, 8
        $region168: #{_lambda_.3} parent=123 // pred_fallthru
          _
        // Predicated region
        $region169: #{_lambda_.3} parent=123 // pred_check
          %p4017 = pneg %p710
        $region170: #{_lambda_.3} parent=123 // pred_check_branch
          %4019 = sbr.rel (%p4017) target = $region172
        $region171: #{_lambda_.3} parent=123 // pred_region
          %4021 = dma.done [#allocation5], 256
        $region172: #{_lambda_.3} parent=123 // pred_fallthru
          _
      $region124: #{_lambda_.3} parent=5 // pred_fallthru
        _
      %p4022 = scmp.le.s32.totalorder 2, %s46
      // Predicated region
      $region173: #{_lambda_.3} parent=5 // pred_check
        %p4023 = pneg %p4022
      $region174: #{_lambda_.3} parent=5 // pred_check_branch
        %4025 = sbr.rel (%p4023) target = $region176
      $region175: #{_lambda_.3} parent=5 // pred_region
        %s4026 = ssub.s32 %s46, 2
      $region176: #{_lambda_.3} parent=5 // pred_fallthru
        _
    $region6: #{_lambda_.3} parent=1 // loop_footer
      %s50 = sadd.s32 1, %s46
    $region7: #{_lambda_.3} parent=1 // loop_footer_branch
      %45 = sbr.rel target = $region3
    $region8: #{_lambda_.3} parent=1 // loop_exit
      _
    %4027 = vsyncpa [#allocation4], 1
    %s4028 = scalar_lea.sflag [#allocation4], 1
    %4029 = vsyncpa %s4028, 1
    %4030 = vsyncpa [#allocation7], 1
    %s4031 = scalar_lea.sflag [#allocation7], 1
    %4032 = vsyncpa %s4031, 1
    %4033 = vsyncpa [#allocation10], 1
    %s4034 = scalar_lea.sflag [#allocation10], 1
    %4035 = vsyncpa %s4034, 1
    %4036 = vsyncpa [#allocation13], 1
    %s4037 = scalar_lea.sflag [#allocation13], 1
    %4038 = vsyncpa %s4037, 1
    %4039 = vsyncpa [#allocation16], 1
    %4040 = vsyncpa [#allocation5], 1
    %s4041 = scalar_lea.sflag [#allocation5], 1
    %4042 = vsyncpa %s4041, 1

</llo_original>
